<compile_context>
chip_gen: v7x
topology: tpu7x:2x2x1
jax: 0.10.0
libtpu: 0.0.40
codegen_flags: <defaults>
</compile_context>

<pallas_src>
import math

import jax
import jax.numpy as jnp
import numpy as np
from jax.experimental import pallas as pl
from jax.experimental.pallas import tpu as pltpu

_B = 8  # images per grid step


def _lenet_kernel(x_ref, w1_ref, b1_ref, w2_ref, b2_ref,
                  se_ref, so_ref, sqe_ref, sqo_ref,
                  wf1_ref, bf1_ref, wf2_ref, bf2_ref, wf3_ref, bf3_ref,
                  out_ref):
    f32, bf16 = jnp.float32, jnp.bfloat16
    B = out_ref.shape[0]

    # ---- conv1: 5 banded matmuls over the row shift dh (no im2col, no stores) ----
    # x_ref block: (B, 40, 96), lane = 3*w + ci, rows 32..39 are zero padding.
    # acc1[b*32+h, 8*wo+co] = conv1 pre-activation at (h, wo, co)  (rows h>=28 unused).
    acc1 = jnp.zeros((B * 32, 224), f32)
    for dh in range(5):
        xs = x_ref[:, dh:dh + 32, :].reshape(B * 32, 96).astype(bf16)
        acc1 = acc1 + jnp.dot(xs, w1_ref[dh], preferred_element_type=f32)
    a1 = jnp.maximum(acc1 + b1_ref[...], 0.0)                       # (B*32, 224)

    # ---- pool1: width-pair max via lane-shifted slice, height-pair max + row
    #      compaction via two exact 0/1 selector matmuls (even rows / odd rows). ----
    a1w = jnp.maximum(a1[:, 0:216], a1[:, 8:224]).astype(bf16)      # (B*32, 216)
    p1 = jnp.maximum(
        jnp.dot(se_ref[...], a1w, preferred_element_type=f32),
        jnp.dot(so_ref[...], a1w, preferred_element_type=f32))      # (B*24, 216)
    p1 = p1.reshape(B, 24, 216)          # rows 14..23 per image are exact zeros

    # ---- conv2: same banded-matmul scheme (input lane = 16*wi + ci) ----
    acc2 = jnp.zeros((B * 16, 160), f32)
    for dh in range(5):
        ps = p1[:, dh:dh + 16, :].reshape(B * 16, 216).astype(bf16)
        acc2 = acc2 + jnp.dot(ps, w2_ref[dh], preferred_element_type=f32)
    a2 = jnp.maximum(acc2 + b2_ref[...], 0.0)                       # (B*16, 160)

    # ---- pool2 + gather of the 5 pooled rows per image (h-major stacking) ----
    a2w = jnp.maximum(a2[:, 0:144], a2[:, 16:160]).astype(bf16)     # (B*16, 144)
    q = jnp.maximum(
        jnp.dot(sqe_ref[...], a2w, preferred_element_type=f32),
        jnp.dot(sqo_ref[...], a2w, preferred_element_type=f32))     # (5*B, 144)

    # ---- fc1 as accumulation over the 5 pooled rows (PyTorch flatten folded into
    #      the per-row weight slabs), then fc2 / fc3, all lane-padded to 128 ----
    acc3 = jnp.zeros((B, 128), f32)
    for h in range(5):
        acc3 = acc3 + jnp.dot(q[h * B:(h + 1) * B, :].astype(bf16), wf1_ref[h],
                              preferred_element_type=f32)
    h1 = jnp.maximum(acc3 + bf1_ref[...], 0.0)
    h2 = jnp.maximum(jnp.dot(h1.astype(bf16), wf2_ref[...],
                             preferred_element_type=f32) + bf2_ref[...], 0.0)
    out_ref[...] = jnp.dot(h2.astype(bf16), wf3_ref[...],
                           preferred_element_type=f32) + bf3_ref[...]


def lenet_forward(x_nchw, prepped):
    n = x_nchw.shape[0]
    n_pad = ((n + _B - 1) // _B) * _B
    # One prep op: NCHW -> NHWC -> (N, 32, W*C=96), pad rows to 40 and N to N_pad.
    x = jnp.transpose(x_nchw, (0, 2, 3, 1)).reshape(n, 32, 96)
    x = jnp.pad(x, ((0, n_pad - n), (0, 8), (0, 0)))
    (w1, b1, w2, b2, se, so, sqe, sqo,
     wf1, bf1, wf2, bf2, wf3, bf3) = prepped

    def full(a):
        nd = a.ndim
        return pl.BlockSpec(a.shape, lambda i, _nd=nd: (0,) * _nd)

    out = pl.pallas_call(
        _lenet_kernel,
        out_shape=jax.ShapeDtypeStruct((n_pad, 128), jnp.float32),
        grid_spec=pltpu.PrefetchScalarGridSpec(
            num_scalar_prefetch=0,
            grid=(n_pad // _B,),
            in_specs=[
                pl.BlockSpec((_B, 40, 96), lambda i: (i, 0, 0)),
                full(w1), full(b1), full(w2), full(b2),
                full(se), full(so), full(sqe), full(sqo),
                full(wf1), full(bf1), full(wf2), full(bf2), full(wf3), full(bf3),
            ],
            out_specs=pl.BlockSpec((_B, 128), lambda i: (i, 0)),
        ),
        compiler_params=pltpu.CompilerParams(
            dimension_semantics=("parallel",),
            vmem_limit_bytes=32 * 1024 * 1024,
        ),
    )(x, w1, b1, w2, b2, se, so, sqe, sqo, wf1, bf1, wf2, bf2, wf3, bf3)
    return out[:n, :10]


def init_params(key):
    # Deterministic PyTorch-like uniform(-1/sqrt(fan_in), 1/sqrt(fan_in)) init.
    def u(k, shape, fan_in):
        bnd = 1.0 / math.sqrt(fan_in)
        return jax.random.uniform(k, shape, jnp.float32, -bnd, bnd)
    ks = jax.random.split(key, 10)
    return {
        "conv1_w": u(ks[0], (5, 5, 3, 6), 3 * 25),    # HWIO
        "conv1_b": u(ks[1], (6,), 3 * 25),
        "conv2_w": u(ks[2], (5, 5, 6, 16), 6 * 25),   # HWIO
        "conv2_b": u(ks[3], (16,), 6 * 25),
        "fc1_w": u(ks[4], (400, 120), 400),           # (in, out), PyTorch flatten order
        "fc1_b": u(ks[5], (120,), 400),
        "fc2_w": u(ks[6], (120, 84), 120),
        "fc2_b": u(ks[7], (84,), 120),
        "fc3_w": u(ks[8], (84, 10), 84),
        "fc3_b": u(ks[9], (10,), 84),
    }


def prep_params(p, B):
    """One-time host-side weight prep: banded conv weights, pooling selectors,
    flatten folded into fc1, lane padding, bf16 cast of every matmul operand."""
    f32 = np.float32
    c1w = np.asarray(p["conv1_w"], f32); c1b = np.asarray(p["conv1_b"], f32)
    c2w = np.asarray(p["conv2_w"], f32); c2b = np.asarray(p["conv2_b"], f32)
    f1w = np.asarray(p["fc1_w"], f32);   f1b = np.asarray(p["fc1_b"], f32)
    f2w = np.asarray(p["fc2_w"], f32);   f2b = np.asarray(p["fc2_b"], f32)
    f3w = np.asarray(p["fc3_w"], f32);   f3b = np.asarray(p["fc3_b"], f32)

    # conv1 banded weights: one (96, 224) slab per dh; in lane 3*wi+ci, out lane 8*wo+co.
    w1 = np.zeros((5, 96, 224), f32)
    for dh in range(5):
        for dw in range(5):
            for wo in range(28):
                wi = wo + dw
                w1[dh, 3 * wi:3 * wi + 3, 8 * wo:8 * wo + 6] = c1w[dh, dw]
    b1 = np.zeros((1, 224), f32)
    for wo in range(28):
        b1[0, 8 * wo:8 * wo + 6] = c1b

    # conv2 banded weights: (216, 160) per dh; in lane 16*wi+ci, out lane 16*wo+co.
    w2 = np.zeros((5, 216, 160), f32)
    for dh in range(5):
        for dw in range(5):
            for wo in range(10):
                wi = wo + dw
                w2[dh, 16 * wi:16 * wi + 6, 16 * wo:16 * wo + 16] = c2w[dh, dw]
    b2 = np.zeros((1, 160), f32)
    for wo in range(10):
        b2[0, 16 * wo:16 * wo + 16] = c2b

    # pool1 row selectors: pick even / odd conv1 rows, 24 output rows per image
    # (rows 14..23 stay exactly zero so conv2's shifted window reads zeros).
    se = np.zeros((B * 24, B * 32), f32)
    so = np.zeros((B * 24, B * 32), f32)
    for b in range(B):
        for i in range(14):
            se[b * 24 + i, b * 32 + 2 * i] = 1.0
            so[b * 24 + i, b * 32 + 2 * i + 1] = 1.0

    # pool2 row selectors + gather of the 5 pooled rows per image, h-major.
    sqe = np.zeros((5 * B, B * 16), f32)
    sqo = np.zeros((5 * B, B * 16), f32)
    for h in range(5):
        for b in range(B):
            sqe[h * B + b, b * 16 + 2 * h] = 1.0
            sqo[h * B + b, b * 16 + 2 * h + 1] = 1.0

    # fc1: PyTorch (c,h,w) flatten folded into 5 per-pooled-row weight slabs (144,128).
    wf1 = np.zeros((5, 144, 128), f32)
    for h in range(5):
        for j in range(5):
            for c in range(16):
                wf1[h, 32 * j + c, :120] = f1w[c * 25 + h * 5 + j]
    bf1 = np.zeros((1, 128), f32); bf1[0, :120] = f1b
    wf2 = np.zeros((128, 128), f32); wf2[:120, :84] = f2w
    bf2 = np.zeros((1, 128), f32); bf2[0, :84] = f2b
    wf3 = np.zeros((128, 128), f32); wf3[:84, :10] = f3w
    bf3 = np.zeros((1, 128), f32); bf3[0, :10] = f3b

    bf16 = jnp.bfloat16
    return (jnp.asarray(w1, bf16), jnp.asarray(b1), jnp.asarray(w2, bf16),
            jnp.asarray(b2), jnp.asarray(se, bf16), jnp.asarray(so, bf16),
            jnp.asarray(sqe, bf16), jnp.asarray(sqo, bf16),
            jnp.asarray(wf1, bf16), jnp.asarray(bf1),
            jnp.asarray(wf2, bf16), jnp.asarray(bf2),
            jnp.asarray(wf3, bf16), jnp.asarray(bf3))


def _reference_forward(x_nchw, p):
    # Pure-JAX f32 reference with the exact PyTorch forward semantics.
    x = jnp.transpose(x_nchw, (0, 2, 3, 1))

    def conv(v, w, b):
        y = jax.lax.conv_general_dilated(
            v, w, window_strides=(1, 1), padding="VALID",
            dimension_numbers=("NHWC", "HWIO", "NHWC"))
        return jax.nn.relu(y + b)

    def pool(v):
        return jax.lax.reduce_window(v, -jnp.inf, jax.lax.max,
                                     (1, 2, 2, 1), (1, 2, 2, 1), "VALID")

    y = pool(conv(x, p["conv1_w"], p["conv1_b"]))
    y = pool(conv(y, p["conv2_w"], p["conv2_b"]))
    feat = jnp.transpose(y, (0, 3, 1, 2)).reshape(y.shape[0], 400)  # (c,h,w) order
    h = jax.nn.relu(feat @ p["fc1_w"] + p["fc1_b"])
    h = jax.nn.relu(h @ p["fc2_w"] + p["fc2_b"])
    return h @ p["fc3_w"] + p["fc3_b"]


if __name__ == "__main__":
    key = jax.random.PRNGKey(0)
    pkey, xkey = jax.random.split(key)
    params = init_params(pkey)
    prepped = prep_params(params, _B)

    x = jax.random.normal(xkey, (16, 3, 32, 32), jnp.float32)   # NCHW, like PyTorch

    out = jax.jit(lenet_forward)(x, prepped)
    jax.block_until_ready(out)
    assert out.shape == (16, 10)
    assert bool(jnp.all(jnp.isfinite(out)))

    ref = _reference_forward(x, params)
    err = float(jnp.max(jnp.abs(out - ref)))
    assert err < 0.1, f"kernel mismatch vs reference, max abs err {err}"

    print("KERNEL_OK")
</pallas_src>

<mosaic_0001>
module attributes {stable_mosaic.version = 11 : i64} {
  func.func @_lenet_kernel(%arg0: i32, %arg1: memref<8x40x96xf32, #tpu.memory_space<vmem>>, %arg2: memref<5x96x224xbf16, #tpu.memory_space<vmem>>, %arg3: memref<1x224xf32, #tpu.memory_space<vmem>>, %arg4: memref<5x216x160xbf16, #tpu.memory_space<vmem>>, %arg5: memref<1x160xf32, #tpu.memory_space<vmem>>, %arg6: memref<192x256xbf16, #tpu.memory_space<vmem>>, %arg7: memref<192x256xbf16, #tpu.memory_space<vmem>>, %arg8: memref<40x128xbf16, #tpu.memory_space<vmem>>, %arg9: memref<40x128xbf16, #tpu.memory_space<vmem>>, %arg10: memref<5x144x128xbf16, #tpu.memory_space<vmem>>, %arg11: memref<1x128xf32, #tpu.memory_space<vmem>>, %arg12: memref<128x128xbf16, #tpu.memory_space<vmem>>, %arg13: memref<1x128xf32, #tpu.memory_space<vmem>>, %arg14: memref<128x128xbf16, #tpu.memory_space<vmem>>, %arg15: memref<1x128xf32, #tpu.memory_space<vmem>>, %arg16: memref<8x128xf32, #tpu.memory_space<vmem>>) attributes {dimension_semantics = [#tpu.dimension_semantics<parallel>], iteration_bounds = array<i64: 2>, scalar_prefetch = 0 : i64, scratch_operands = 0 : i64, tpu.core_type = #tpu.core_type<tc>, window_params = [{transform_indices = @transform_0, window_bounds = array<i64: 8, 40, 96>}, {pipeline_mode = #tpu.pipeline_mode<synchronous>, transform_indices = @transform_1, window_bounds = array<i64: 5, 96, 224>}, {pipeline_mode = #tpu.pipeline_mode<synchronous>, transform_indices = @transform_2, window_bounds = array<i64: 1, 224>}, {pipeline_mode = #tpu.pipeline_mode<synchronous>, transform_indices = @transform_3, window_bounds = array<i64: 5, 216, 160>}, {pipeline_mode = #tpu.pipeline_mode<synchronous>, transform_indices = @transform_4, window_bounds = array<i64: 1, 160>}, {pipeline_mode = #tpu.pipeline_mode<synchronous>, transform_indices = @transform_5, window_bounds = array<i64: 192, 256>}, {pipeline_mode = #tpu.pipeline_mode<synchronous>, transform_indices = @transform_6, window_bounds = array<i64: 192, 256>}, {pipeline_mode = #tpu.pipeline_mode<synchronous>, transform_indices = @transform_7, window_bounds = array<i64: 40, 128>}, {pipeline_mode = #tpu.pipeline_mode<synchronous>, transform_indices = @transform_8, window_bounds = array<i64: 40, 128>}, {pipeline_mode = #tpu.pipeline_mode<synchronous>, transform_indices = @transform_9, window_bounds = array<i64: 5, 144, 128>}, {pipeline_mode = #tpu.pipeline_mode<synchronous>, transform_indices = @transform_10, window_bounds = array<i64: 1, 128>}, {pipeline_mode = #tpu.pipeline_mode<synchronous>, transform_indices = @transform_11, window_bounds = array<i64: 128, 128>}, {pipeline_mode = #tpu.pipeline_mode<synchronous>, transform_indices = @transform_12, window_bounds = array<i64: 1, 128>}, {pipeline_mode = #tpu.pipeline_mode<synchronous>, transform_indices = @transform_13, window_bounds = array<i64: 128, 128>}, {pipeline_mode = #tpu.pipeline_mode<synchronous>, transform_indices = @transform_14, window_bounds = array<i64: 1, 128>}, {transform_indices = @transform_15, window_bounds = array<i64: 8, 128>}]} {
    %cst = arith.constant 0.000000e+00 : f32
    %0 = vector.broadcast %cst : f32 to vector<256x224xf32>
    %c0 = arith.constant 0 : index
    %c0_0 = arith.constant 0 : index
    %c0_1 = arith.constant 0 : index
    %1 = vector.load %arg1[%c0, %c0_0, %c0_1] : memref<8x40x96xf32, #tpu.memory_space<vmem>>, vector<8x32x96xf32>
    %2 = vector.shape_cast %1 : vector<8x32x96xf32> to vector<256x96xf32>
    %3 = arith.truncf %2 : vector<256x96xf32> to vector<256x96xbf16>
    %c0_2 = arith.constant 0 : index
    %c0_3 = arith.constant 0 : index
    %c0_4 = arith.constant 0 : index
    %4 = vector.load %arg2[%c0_2, %c0_3, %c0_4] : memref<5x96x224xbf16, #tpu.memory_space<vmem>>, vector<1x96x224xbf16>
    %5 = vector.shape_cast %4 : vector<1x96x224xbf16> to vector<96x224xbf16>
    %cst_5 = arith.constant dense<0.000000e+00> : vector<256x224xf32>
    %6 = tpu.matmul %3, %5, %cst_5 {dimension_numbers = #tpu.dot_dimension_numbers<[1], [0], [0], [1], [0, 0, 1, 1], [], []>} : vector<256x96xbf16>, vector<96x224xbf16>, vector<256x224xf32> -> vector<256x224xf32>
    %7 = arith.addf %0, %6 : vector<256x224xf32>
    %c0_6 = arith.constant 0 : index
    %c1 = arith.constant 1 : index
    %c0_7 = arith.constant 0 : index
    %8 = vector.load %arg1[%c0_6, %c1, %c0_7] : memref<8x40x96xf32, #tpu.memory_space<vmem>>, vector<8x32x96xf32>
    %9 = vector.shape_cast %8 : vector<8x32x96xf32> to vector<256x96xf32>
    %10 = arith.truncf %9 : vector<256x96xf32> to vector<256x96xbf16>
    %c1_8 = arith.constant 1 : index
    %c0_9 = arith.constant 0 : index
    %c0_10 = arith.constant 0 : index
    %11 = vector.load %arg2[%c1_8, %c0_9, %c0_10] : memref<5x96x224xbf16, #tpu.memory_space<vmem>>, vector<1x96x224xbf16>
    %12 = vector.shape_cast %11 : vector<1x96x224xbf16> to vector<96x224xbf16>
    %cst_11 = arith.constant dense<0.000000e+00> : vector<256x224xf32>
    %13 = tpu.matmul %10, %12, %cst_11 {dimension_numbers = #tpu.dot_dimension_numbers<[1], [0], [0], [1], [0, 0, 1, 1], [], []>} : vector<256x96xbf16>, vector<96x224xbf16>, vector<256x224xf32> -> vector<256x224xf32>
    %14 = arith.addf %7, %13 : vector<256x224xf32>
    %c0_12 = arith.constant 0 : index
    %c2 = arith.constant 2 : index
    %c0_13 = arith.constant 0 : index
    %15 = vector.load %arg1[%c0_12, %c2, %c0_13] : memref<8x40x96xf32, #tpu.memory_space<vmem>>, vector<8x32x96xf32>
    %16 = vector.shape_cast %15 : vector<8x32x96xf32> to vector<256x96xf32>
    %17 = arith.truncf %16 : vector<256x96xf32> to vector<256x96xbf16>
    %c2_14 = arith.constant 2 : index
    %c0_15 = arith.constant 0 : index
    %c0_16 = arith.constant 0 : index
    %18 = vector.load %arg2[%c2_14, %c0_15, %c0_16] : memref<5x96x224xbf16, #tpu.memory_space<vmem>>, vector<1x96x224xbf16>
    %19 = vector.shape_cast %18 : vector<1x96x224xbf16> to vector<96x224xbf16>
    %cst_17 = arith.constant dense<0.000000e+00> : vector<256x224xf32>
    %20 = tpu.matmul %17, %19, %cst_17 {dimension_numbers = #tpu.dot_dimension_numbers<[1], [0], [0], [1], [0, 0, 1, 1], [], []>} : vector<256x96xbf16>, vector<96x224xbf16>, vector<256x224xf32> -> vector<256x224xf32>
    %21 = arith.addf %14, %20 : vector<256x224xf32>
    %c0_18 = arith.constant 0 : index
    %c3 = arith.constant 3 : index
    %c0_19 = arith.constant 0 : index
    %22 = vector.load %arg1[%c0_18, %c3, %c0_19] : memref<8x40x96xf32, #tpu.memory_space<vmem>>, vector<8x32x96xf32>
    %23 = vector.shape_cast %22 : vector<8x32x96xf32> to vector<256x96xf32>
    %24 = arith.truncf %23 : vector<256x96xf32> to vector<256x96xbf16>
    %c3_20 = arith.constant 3 : index
    %c0_21 = arith.constant 0 : index
    %c0_22 = arith.constant 0 : index
    %25 = vector.load %arg2[%c3_20, %c0_21, %c0_22] : memref<5x96x224xbf16, #tpu.memory_space<vmem>>, vector<1x96x224xbf16>
    %26 = vector.shape_cast %25 : vector<1x96x224xbf16> to vector<96x224xbf16>
    %cst_23 = arith.constant dense<0.000000e+00> : vector<256x224xf32>
    %27 = tpu.matmul %24, %26, %cst_23 {dimension_numbers = #tpu.dot_dimension_numbers<[1], [0], [0], [1], [0, 0, 1, 1], [], []>} : vector<256x96xbf16>, vector<96x224xbf16>, vector<256x224xf32> -> vector<256x224xf32>
    %28 = arith.addf %21, %27 : vector<256x224xf32>
    %c0_24 = arith.constant 0 : index
    %c4 = arith.constant 4 : index
    %c0_25 = arith.constant 0 : index
    %29 = vector.load %arg1[%c0_24, %c4, %c0_25] : memref<8x40x96xf32, #tpu.memory_space<vmem>>, vector<8x32x96xf32>
    %30 = vector.shape_cast %29 : vector<8x32x96xf32> to vector<256x96xf32>
    %31 = arith.truncf %30 : vector<256x96xf32> to vector<256x96xbf16>
    %c4_26 = arith.constant 4 : index
    %c0_27 = arith.constant 0 : index
    %c0_28 = arith.constant 0 : index
    %32 = vector.load %arg2[%c4_26, %c0_27, %c0_28] : memref<5x96x224xbf16, #tpu.memory_space<vmem>>, vector<1x96x224xbf16>
    %33 = vector.shape_cast %32 : vector<1x96x224xbf16> to vector<96x224xbf16>
    %cst_29 = arith.constant dense<0.000000e+00> : vector<256x224xf32>
    %34 = tpu.matmul %31, %33, %cst_29 {dimension_numbers = #tpu.dot_dimension_numbers<[1], [0], [0], [1], [0, 0, 1, 1], [], []>} : vector<256x96xbf16>, vector<96x224xbf16>, vector<256x224xf32> -> vector<256x224xf32>
    %35 = arith.addf %28, %34 : vector<256x224xf32>
    %c0_30 = arith.constant 0 : index
    %c0_31 = arith.constant 0 : index
    %36 = vector.load %arg3[%c0_30, %c0_31] : memref<1x224xf32, #tpu.memory_space<vmem>>, vector<1x224xf32>
    %37 = vector.broadcast %36 : vector<1x224xf32> to vector<256x224xf32>
    %38 = arith.addf %35, %37 : vector<256x224xf32>
    %cst_32 = arith.constant 0.000000e+00 : f32
    %39 = vector.broadcast %cst_32 : f32 to vector<256x224xf32>
    %40 = arith.maximumf %38, %39 : vector<256x224xf32>
    %41 = vector.extract_strided_slice %40 {offsets = [0, 0], sizes = [256, 216], strides = [1, 1]} : vector<256x224xf32> to vector<256x216xf32>
    %42 = vector.extract_strided_slice %40 {offsets = [0, 8], sizes = [256, 216], strides = [1, 1]} : vector<256x224xf32> to vector<256x216xf32>
    %43 = arith.maximumf %41, %42 : vector<256x216xf32>
    %44 = arith.truncf %43 : vector<256x216xf32> to vector<256x216xbf16>
    %c0_33 = arith.constant 0 : index
    %c0_34 = arith.constant 0 : index
    %45 = vector.load %arg6[%c0_33, %c0_34] : memref<192x256xbf16, #tpu.memory_space<vmem>>, vector<192x256xbf16>
    %cst_35 = arith.constant dense<0.000000e+00> : vector<192x216xf32>
    %46 = tpu.matmul %45, %44, %cst_35 {dimension_numbers = #tpu.dot_dimension_numbers<[1], [0], [0], [1], [0, 0, 1, 1], [], []>} : vector<192x256xbf16>, vector<256x216xbf16>, vector<192x216xf32> -> vector<192x216xf32>
    %c0_36 = arith.constant 0 : index
    %c0_37 = arith.constant 0 : index
    %47 = vector.load %arg7[%c0_36, %c0_37] : memref<192x256xbf16, #tpu.memory_space<vmem>>, vector<192x256xbf16>
    %cst_38 = arith.constant dense<0.000000e+00> : vector<192x216xf32>
    %48 = tpu.matmul %47, %44, %cst_38 {dimension_numbers = #tpu.dot_dimension_numbers<[1], [0], [0], [1], [0, 0, 1, 1], [], []>} : vector<192x256xbf16>, vector<256x216xbf16>, vector<192x216xf32> -> vector<192x216xf32>
    %49 = arith.maximumf %46, %48 : vector<192x216xf32>
    %50 = vector.shape_cast %49 : vector<192x216xf32> to vector<8x24x216xf32>
    %cst_39 = arith.constant 0.000000e+00 : f32
    %51 = vector.broadcast %cst_39 : f32 to vector<128x160xf32>
    %52 = vector.extract_strided_slice %50 {offsets = [0, 0, 0], sizes = [8, 16, 216], strides = [1, 1, 1]} : vector<8x24x216xf32> to vector<8x16x216xf32>
    %53 = vector.shape_cast %52 : vector<8x16x216xf32> to vector<128x216xf32>
    %54 = arith.truncf %53 : vector<128x216xf32> to vector<128x216xbf16>
    %c0_40 = arith.constant 0 : index
    %c0_41 = arith.constant 0 : index
    %c0_42 = arith.constant 0 : index
    %55 = vector.load %arg4[%c0_40, %c0_41, %c0_42] : memref<5x216x160xbf16, #tpu.memory_space<vmem>>, vector<1x216x160xbf16>
    %56 = vector.shape_cast %55 : vector<1x216x160xbf16> to vector<216x160xbf16>
    %cst_43 = arith.constant dense<0.000000e+00> : vector<128x160xf32>
    %57 = tpu.matmul %54, %56, %cst_43 {dimension_numbers = #tpu.dot_dimension_numbers<[1], [0], [0], [1], [0, 0, 1, 1], [], []>} : vector<128x216xbf16>, vector<216x160xbf16>, vector<128x160xf32> -> vector<128x160xf32>
    %58 = arith.addf %51, %57 : vector<128x160xf32>
    %59 = vector.extract_strided_slice %50 {offsets = [0, 1, 0], sizes = [8, 16, 216], strides = [1, 1, 1]} : vector<8x24x216xf32> to vector<8x16x216xf32>
    %60 = vector.shape_cast %59 : vector<8x16x216xf32> to vector<128x216xf32>
    %61 = arith.truncf %60 : vector<128x216xf32> to vector<128x216xbf16>
    %c1_44 = arith.constant 1 : index
    %c0_45 = arith.constant 0 : index
    %c0_46 = arith.constant 0 : index
    %62 = vector.load %arg4[%c1_44, %c0_45, %c0_46] : memref<5x216x160xbf16, #tpu.memory_space<vmem>>, vector<1x216x160xbf16>
    %63 = vector.shape_cast %62 : vector<1x216x160xbf16> to vector<216x160xbf16>
    %cst_47 = arith.constant dense<0.000000e+00> : vector<128x160xf32>
    %64 = tpu.matmul %61, %63, %cst_47 {dimension_numbers = #tpu.dot_dimension_numbers<[1], [0], [0], [1], [0, 0, 1, 1], [], []>} : vector<128x216xbf16>, vector<216x160xbf16>, vector<128x160xf32> -> vector<128x160xf32>
    %65 = arith.addf %58, %64 : vector<128x160xf32>
    %66 = vector.extract_strided_slice %50 {offsets = [0, 2, 0], sizes = [8, 16, 216], strides = [1, 1, 1]} : vector<8x24x216xf32> to vector<8x16x216xf32>
    %67 = vector.shape_cast %66 : vector<8x16x216xf32> to vector<128x216xf32>
    %68 = arith.truncf %67 : vector<128x216xf32> to vector<128x216xbf16>
    %c2_48 = arith.constant 2 : index
    %c0_49 = arith.constant 0 : index
    %c0_50 = arith.constant 0 : index
    %69 = vector.load %arg4[%c2_48, %c0_49, %c0_50] : memref<5x216x160xbf16, #tpu.memory_space<vmem>>, vector<1x216x160xbf16>
    %70 = vector.shape_cast %69 : vector<1x216x160xbf16> to vector<216x160xbf16>
    %cst_51 = arith.constant dense<0.000000e+00> : vector<128x160xf32>
    %71 = tpu.matmul %68, %70, %cst_51 {dimension_numbers = #tpu.dot_dimension_numbers<[1], [0], [0], [1], [0, 0, 1, 1], [], []>} : vector<128x216xbf16>, vector<216x160xbf16>, vector<128x160xf32> -> vector<128x160xf32>
    %72 = arith.addf %65, %71 : vector<128x160xf32>
    %73 = vector.extract_strided_slice %50 {offsets = [0, 3, 0], sizes = [8, 16, 216], strides = [1, 1, 1]} : vector<8x24x216xf32> to vector<8x16x216xf32>
    %74 = vector.shape_cast %73 : vector<8x16x216xf32> to vector<128x216xf32>
    %75 = arith.truncf %74 : vector<128x216xf32> to vector<128x216xbf16>
    %c3_52 = arith.constant 3 : index
    %c0_53 = arith.constant 0 : index
    %c0_54 = arith.constant 0 : index
    %76 = vector.load %arg4[%c3_52, %c0_53, %c0_54] : memref<5x216x160xbf16, #tpu.memory_space<vmem>>, vector<1x216x160xbf16>
    %77 = vector.shape_cast %76 : vector<1x216x160xbf16> to vector<216x160xbf16>
    %cst_55 = arith.constant dense<0.000000e+00> : vector<128x160xf32>
    %78 = tpu.matmul %75, %77, %cst_55 {dimension_numbers = #tpu.dot_dimension_numbers<[1], [0], [0], [1], [0, 0, 1, 1], [], []>} : vector<128x216xbf16>, vector<216x160xbf16>, vector<128x160xf32> -> vector<128x160xf32>
    %79 = arith.addf %72, %78 : vector<128x160xf32>
    %80 = vector.extract_strided_slice %50 {offsets = [0, 4, 0], sizes = [8, 16, 216], strides = [1, 1, 1]} : vector<8x24x216xf32> to vector<8x16x216xf32>
    %81 = vector.shape_cast %80 : vector<8x16x216xf32> to vector<128x216xf32>
    %82 = arith.truncf %81 : vector<128x216xf32> to vector<128x216xbf16>
    %c4_56 = arith.constant 4 : index
    %c0_57 = arith.constant 0 : index
    %c0_58 = arith.constant 0 : index
    %83 = vector.load %arg4[%c4_56, %c0_57, %c0_58] : memref<5x216x160xbf16, #tpu.memory_space<vmem>>, vector<1x216x160xbf16>
    %84 = vector.shape_cast %83 : vector<1x216x160xbf16> to vector<216x160xbf16>
    %cst_59 = arith.constant dense<0.000000e+00> : vector<128x160xf32>
    %85 = tpu.matmul %82, %84, %cst_59 {dimension_numbers = #tpu.dot_dimension_numbers<[1], [0], [0], [1], [0, 0, 1, 1], [], []>} : vector<128x216xbf16>, vector<216x160xbf16>, vector<128x160xf32> -> vector<128x160xf32>
    %86 = arith.addf %79, %85 : vector<128x160xf32>
    %c0_60 = arith.constant 0 : index
    %c0_61 = arith.constant 0 : index
    %87 = vector.load %arg5[%c0_60, %c0_61] : memref<1x160xf32, #tpu.memory_space<vmem>>, vector<1x160xf32>
    %88 = vector.broadcast %87 : vector<1x160xf32> to vector<128x160xf32>
    %89 = arith.addf %86, %88 : vector<128x160xf32>
    %cst_62 = arith.constant 0.000000e+00 : f32
    %90 = vector.broadcast %cst_62 : f32 to vector<128x160xf32>
    %91 = arith.maximumf %89, %90 : vector<128x160xf32>
    %92 = vector.extract_strided_slice %91 {offsets = [0, 0], sizes = [128, 144], strides = [1, 1]} : vector<128x160xf32> to vector<128x144xf32>
    %93 = vector.extract_strided_slice %91 {offsets = [0, 16], sizes = [128, 144], strides = [1, 1]} : vector<128x160xf32> to vector<128x144xf32>
    %94 = arith.maximumf %92, %93 : vector<128x144xf32>
    %95 = arith.truncf %94 : vector<128x144xf32> to vector<128x144xbf16>
    %c0_63 = arith.constant 0 : index
    %c0_64 = arith.constant 0 : index
    %96 = vector.load %arg8[%c0_63, %c0_64] : memref<40x128xbf16, #tpu.memory_space<vmem>>, vector<40x128xbf16>
    %cst_65 = arith.constant dense<0.000000e+00> : vector<40x144xf32>
    %97 = tpu.matmul %96, %95, %cst_65 {dimension_numbers = #tpu.dot_dimension_numbers<[1], [0], [0], [1], [0, 0, 1, 1], [], []>} : vector<40x128xbf16>, vector<128x144xbf16>, vector<40x144xf32> -> vector<40x144xf32>
    %c0_66 = arith.constant 0 : index
    %c0_67 = arith.constant 0 : index
    %98 = vector.load %arg9[%c0_66, %c0_67] : memref<40x128xbf16, #tpu.memory_space<vmem>>, vector<40x128xbf16>
    %cst_68 = arith.constant dense<0.000000e+00> : vector<40x144xf32>
    %99 = tpu.matmul %98, %95, %cst_68 {dimension_numbers = #tpu.dot_dimension_numbers<[1], [0], [0], [1], [0, 0, 1, 1], [], []>} : vector<40x128xbf16>, vector<128x144xbf16>, vector<40x144xf32> -> vector<40x144xf32>
    %100 = arith.maximumf %97, %99 : vector<40x144xf32>
    %cst_69 = arith.constant 0.000000e+00 : f32
    %101 = vector.broadcast %cst_69 : f32 to vector<8x128xf32>
    %102 = vector.extract_strided_slice %100 {offsets = [0, 0], sizes = [8, 144], strides = [1, 1]} : vector<40x144xf32> to vector<8x144xf32>
    %103 = arith.truncf %102 : vector<8x144xf32> to vector<8x144xbf16>
    %c0_70 = arith.constant 0 : index
    %c0_71 = arith.constant 0 : index
    %c0_72 = arith.constant 0 : index
    %104 = vector.load %arg10[%c0_70, %c0_71, %c0_72] : memref<5x144x128xbf16, #tpu.memory_space<vmem>>, vector<1x144x128xbf16>
    %105 = vector.shape_cast %104 : vector<1x144x128xbf16> to vector<144x128xbf16>
    %cst_73 = arith.constant dense<0.000000e+00> : vector<8x128xf32>
    %106 = tpu.matmul %103, %105, %cst_73 {dimension_numbers = #tpu.dot_dimension_numbers<[1], [0], [0], [1], [0, 0, 1, 1], [], []>} : vector<8x144xbf16>, vector<144x128xbf16>, vector<8x128xf32> -> vector<8x128xf32>
    %107 = arith.addf %101, %106 : vector<8x128xf32>
    %108 = vector.extract_strided_slice %100 {offsets = [8, 0], sizes = [8, 144], strides = [1, 1]} : vector<40x144xf32> to vector<8x144xf32>
    %109 = arith.truncf %108 : vector<8x144xf32> to vector<8x144xbf16>
    %c1_74 = arith.constant 1 : index
    %c0_75 = arith.constant 0 : index
    %c0_76 = arith.constant 0 : index
    %110 = vector.load %arg10[%c1_74, %c0_75, %c0_76] : memref<5x144x128xbf16, #tpu.memory_space<vmem>>, vector<1x144x128xbf16>
    %111 = vector.shape_cast %110 : vector<1x144x128xbf16> to vector<144x128xbf16>
    %cst_77 = arith.constant dense<0.000000e+00> : vector<8x128xf32>
    %112 = tpu.matmul %109, %111, %cst_77 {dimension_numbers = #tpu.dot_dimension_numbers<[1], [0], [0], [1], [0, 0, 1, 1], [], []>} : vector<8x144xbf16>, vector<144x128xbf16>, vector<8x128xf32> -> vector<8x128xf32>
    %113 = arith.addf %107, %112 : vector<8x128xf32>
    %114 = vector.extract_strided_slice %100 {offsets = [16, 0], sizes = [8, 144], strides = [1, 1]} : vector<40x144xf32> to vector<8x144xf32>
    %115 = arith.truncf %114 : vector<8x144xf32> to vector<8x144xbf16>
    %c2_78 = arith.constant 2 : index
    %c0_79 = arith.constant 0 : index
    %c0_80 = arith.constant 0 : index
    %116 = vector.load %arg10[%c2_78, %c0_79, %c0_80] : memref<5x144x128xbf16, #tpu.memory_space<vmem>>, vector<1x144x128xbf16>
    %117 = vector.shape_cast %116 : vector<1x144x128xbf16> to vector<144x128xbf16>
    %cst_81 = arith.constant dense<0.000000e+00> : vector<8x128xf32>
    %118 = tpu.matmul %115, %117, %cst_81 {dimension_numbers = #tpu.dot_dimension_numbers<[1], [0], [0], [1], [0, 0, 1, 1], [], []>} : vector<8x144xbf16>, vector<144x128xbf16>, vector<8x128xf32> -> vector<8x128xf32>
    %119 = arith.addf %113, %118 : vector<8x128xf32>
    %120 = vector.extract_strided_slice %100 {offsets = [24, 0], sizes = [8, 144], strides = [1, 1]} : vector<40x144xf32> to vector<8x144xf32>
    %121 = arith.truncf %120 : vector<8x144xf32> to vector<8x144xbf16>
    %c3_82 = arith.constant 3 : index
    %c0_83 = arith.constant 0 : index
    %c0_84 = arith.constant 0 : index
    %122 = vector.load %arg10[%c3_82, %c0_83, %c0_84] : memref<5x144x128xbf16, #tpu.memory_space<vmem>>, vector<1x144x128xbf16>
    %123 = vector.shape_cast %122 : vector<1x144x128xbf16> to vector<144x128xbf16>
    %cst_85 = arith.constant dense<0.000000e+00> : vector<8x128xf32>
    %124 = tpu.matmul %121, %123, %cst_85 {dimension_numbers = #tpu.dot_dimension_numbers<[1], [0], [0], [1], [0, 0, 1, 1], [], []>} : vector<8x144xbf16>, vector<144x128xbf16>, vector<8x128xf32> -> vector<8x128xf32>
    %125 = arith.addf %119, %124 : vector<8x128xf32>
    %126 = vector.extract_strided_slice %100 {offsets = [32, 0], sizes = [8, 144], strides = [1, 1]} : vector<40x144xf32> to vector<8x144xf32>
    %127 = arith.truncf %126 : vector<8x144xf32> to vector<8x144xbf16>
    %c4_86 = arith.constant 4 : index
    %c0_87 = arith.constant 0 : index
    %c0_88 = arith.constant 0 : index
    %128 = vector.load %arg10[%c4_86, %c0_87, %c0_88] : memref<5x144x128xbf16, #tpu.memory_space<vmem>>, vector<1x144x128xbf16>
    %129 = vector.shape_cast %128 : vector<1x144x128xbf16> to vector<144x128xbf16>
    %cst_89 = arith.constant dense<0.000000e+00> : vector<8x128xf32>
    %130 = tpu.matmul %127, %129, %cst_89 {dimension_numbers = #tpu.dot_dimension_numbers<[1], [0], [0], [1], [0, 0, 1, 1], [], []>} : vector<8x144xbf16>, vector<144x128xbf16>, vector<8x128xf32> -> vector<8x128xf32>
    %131 = arith.addf %125, %130 : vector<8x128xf32>
    %c0_90 = arith.constant 0 : index
    %c0_91 = arith.constant 0 : index
    %132 = vector.load %arg11[%c0_90, %c0_91] : memref<1x128xf32, #tpu.memory_space<vmem>>, vector<1x128xf32>
    %133 = vector.broadcast %132 : vector<1x128xf32> to vector<8x128xf32>
    %134 = arith.addf %131, %133 : vector<8x128xf32>
    %cst_92 = arith.constant 0.000000e+00 : f32
    %135 = vector.broadcast %cst_92 : f32 to vector<8x128xf32>
    %136 = arith.maximumf %134, %135 : vector<8x128xf32>
    %137 = arith.truncf %136 : vector<8x128xf32> to vector<8x128xbf16>
    %c0_93 = arith.constant 0 : index
    %c0_94 = arith.constant 0 : index
    %138 = vector.load %arg12[%c0_93, %c0_94] : memref<128x128xbf16, #tpu.memory_space<vmem>>, vector<128x128xbf16>
    %cst_95 = arith.constant dense<0.000000e+00> : vector<8x128xf32>
    %139 = tpu.matmul %137, %138, %cst_95 {dimension_numbers = #tpu.dot_dimension_numbers<[1], [0], [0], [1], [0, 0, 1, 1], [], []>} : vector<8x128xbf16>, vector<128x128xbf16>, vector<8x128xf32> -> vector<8x128xf32>
    %c0_96 = arith.constant 0 : index
    %c0_97 = arith.constant 0 : index
    %140 = vector.load %arg13[%c0_96, %c0_97] : memref<1x128xf32, #tpu.memory_space<vmem>>, vector<1x128xf32>
    %141 = vector.broadcast %140 : vector<1x128xf32> to vector<8x128xf32>
    %142 = arith.addf %139, %141 : vector<8x128xf32>
    %cst_98 = arith.constant 0.000000e+00 : f32
    %143 = vector.broadcast %cst_98 : f32 to vector<8x128xf32>
    %144 = arith.maximumf %142, %143 : vector<8x128xf32>
    %145 = arith.truncf %144 : vector<8x128xf32> to vector<8x128xbf16>
    %c0_99 = arith.constant 0 : index
    %c0_100 = arith.constant 0 : index
    %146 = vector.load %arg14[%c0_99, %c0_100] : memref<128x128xbf16, #tpu.memory_space<vmem>>, vector<128x128xbf16>
    %cst_101 = arith.constant dense<0.000000e+00> : vector<8x128xf32>
    %147 = tpu.matmul %145, %146, %cst_101 {dimension_numbers = #tpu.dot_dimension_numbers<[1], [0], [0], [1], [0, 0, 1, 1], [], []>} : vector<8x128xbf16>, vector<128x128xbf16>, vector<8x128xf32> -> vector<8x128xf32>
    %c0_102 = arith.constant 0 : index
    %c0_103 = arith.constant 0 : index
    %148 = vector.load %arg15[%c0_102, %c0_103] : memref<1x128xf32, #tpu.memory_space<vmem>>, vector<1x128xf32>
    %149 = vector.broadcast %148 : vector<1x128xf32> to vector<8x128xf32>
    %150 = arith.addf %147, %149 : vector<8x128xf32>
    %c0_104 = arith.constant 0 : index
    %c0_105 = arith.constant 0 : index
    %151 = vector.load %arg16[%c0_104, %c0_105] : memref<8x128xf32, #tpu.memory_space<vmem>>, vector<8x128xf32>
    tpu.vector_store %arg16[%c0_104, %c0_105], %150 {strides = array<i32>} : memref<8x128xf32, #tpu.memory_space<vmem>>, vector<8x128xf32>,
    return
  }
  func.func @transform_0(%arg0: i32) -> (i32, i32, i32) {
    %c0_i32 = arith.constant 0 : i32
    %c0_i32_0 = arith.constant 0 : i32
    %c0_i32_1 = arith.constant 0 : i32
    return %arg0, %c0_i32, %c0_i32_0 : i32, i32, i32
  }
  func.func @transform_1(%arg0: i32) -> (i32, i32, i32) {
    %c0_i32 = arith.constant 0 : i32
    %c0_i32_0 = arith.constant 0 : i32
    %c0_i32_1 = arith.constant 0 : i32
    %c0_i32_2 = arith.constant 0 : i32
    return %c0_i32, %c0_i32_0, %c0_i32_1 : i32, i32, i32
  }
  func.func @transform_2(%arg0: i32) -> (i32, i32) {
    %c0_i32 = arith.constant 0 : i32
    %c0_i32_0 = arith.constant 0 : i32
    %c0_i32_1 = arith.constant 0 : i32
    return %c0_i32, %c0_i32_0 : i32, i32
  }
  func.func @transform_3(%arg0: i32) -> (i32, i32, i32) {
    %c0_i32 = arith.constant 0 : i32
    %c0_i32_0 = arith.constant 0 : i32
    %c0_i32_1 = arith.constant 0 : i32
    %c0_i32_2 = arith.constant 0 : i32
    return %c0_i32, %c0_i32_0, %c0_i32_1 : i32, i32, i32
  }
  func.func @transform_4(%arg0: i32) -> (i32, i32) {
    %c0_i32 = arith.constant 0 : i32
    %c0_i32_0 = arith.constant 0 : i32
    %c0_i32_1 = arith.constant 0 : i32
    return %c0_i32, %c0_i32_0 : i32, i32
  }
  func.func @transform_5(%arg0: i32) -> (i32, i32) {
    %c0_i32 = arith.constant 0 : i32
    %c0_i32_0 = arith.constant 0 : i32
    %c0_i32_1 = arith.constant 0 : i32
    return %c0_i32, %c0_i32_0 : i32, i32
  }
  func.func @transform_6(%arg0: i32) -> (i32, i32) {
    %c0_i32 = arith.constant 0 : i32
    %c0_i32_0 = arith.constant 0 : i32
    %c0_i32_1 = arith.constant 0 : i32
    return %c0_i32, %c0_i32_0 : i32, i32
  }
  func.func @transform_7(%arg0: i32) -> (i32, i32) {
    %c0_i32 = arith.constant 0 : i32
    %c0_i32_0 = arith.constant 0 : i32
    %c0_i32_1 = arith.constant 0 : i32
    return %c0_i32, %c0_i32_0 : i32, i32
  }
  func.func @transform_8(%arg0: i32) -> (i32, i32) {
    %c0_i32 = arith.constant 0 : i32
    %c0_i32_0 = arith.constant 0 : i32
    %c0_i32_1 = arith.constant 0 : i32
    return %c0_i32, %c0_i32_0 : i32, i32
  }
  func.func @transform_9(%arg0: i32) -> (i32, i32, i32) {
    %c0_i32 = arith.constant 0 : i32
    %c0_i32_0 = arith.constant 0 : i32
    %c0_i32_1 = arith.constant 0 : i32
    %c0_i32_2 = arith.constant 0 : i32
    return %c0_i32, %c0_i32_0, %c0_i32_1 : i32, i32, i32
  }
  func.func @transform_10(%arg0: i32) -> (i32, i32) {
    %c0_i32 = arith.constant 0 : i32
    %c0_i32_0 = arith.constant 0 : i32
    %c0_i32_1 = arith.constant 0 : i32
    return %c0_i32, %c0_i32_0 : i32, i32
  }
  func.func @transform_11(%arg0: i32) -> (i32, i32) {
    %c0_i32 = arith.constant 0 : i32
    %c0_i32_0 = arith.constant 0 : i32
    %c0_i32_1 = arith.constant 0 : i32
    return %c0_i32, %c0_i32_0 : i32, i32
  }
  func.func @transform_12(%arg0: i32) -> (i32, i32) {
    %c0_i32 = arith.constant 0 : i32
    %c0_i32_0 = arith.constant 0 : i32
    %c0_i32_1 = arith.constant 0 : i32
    return %c0_i32, %c0_i32_0 : i32, i32
  }
  func.func @transform_13(%arg0: i32) -> (i32, i32) {
    %c0_i32 = arith.constant 0 : i32
    %c0_i32_0 = arith.constant 0 : i32
    %c0_i32_1 = arith.constant 0 : i32
    return %c0_i32, %c0_i32_0 : i32, i32
  }
  func.func @transform_14(%arg0: i32) -> (i32, i32) {
    %c0_i32 = arith.constant 0 : i32
    %c0_i32_0 = arith.constant 0 : i32
    %c0_i32_1 = arith.constant 0 : i32
    return %c0_i32, %c0_i32_0 : i32, i32
  }
  func.func @transform_15(%arg0: i32) -> (i32, i32) {
    %c0_i32 = arith.constant 0 : i32
    %c0_i32_0 = arith.constant 0 : i32
    return %arg0, %c0_i32 : i32, i32
  }
}

</mosaic_0001>

<llo_original>
// kernel: lenet_forward.1
$region0: #{lenet_forward.1}
  #allocation0 [shape = 'u32[]', space=smem, size = 0x4, offset = 0x4, fixed_abs, tag = 'smem constant byte address 0x4 - core index']
  #allocation1 [shape = 'u32[144,128]{1,0:T(1,128)}', space=vmem, size = 0x12000, scoped, tag = 'internal scratch']
  %s0 = inlined_call_operand.vmem [shape: f32[16,40,96], index: 0, kind: input, shape index: {}]
  %s1 = inlined_call_operand.vmem [shape: bf16[5,96,224], index: 1, kind: input, shape index: {}]
  %s2 = inlined_call_operand.vmem [shape: f32[1,224], index: 2, kind: input, shape index: {}]
  %s3 = inlined_call_operand.vmem [shape: bf16[5,216,160], index: 3, kind: input, shape index: {}]
  %s4 = inlined_call_operand.vmem [shape: f32[1,160], index: 4, kind: input, shape index: {}]
  %s5 = inlined_call_operand.vmem [shape: bf16[192,256], index: 5, kind: input, shape index: {}]
  %s6 = inlined_call_operand.vmem [shape: bf16[192,256], index: 6, kind: input, shape index: {}]
  %s7 = inlined_call_operand.vmem [shape: bf16[40,128], index: 7, kind: input, shape index: {}]
  %s8 = inlined_call_operand.vmem [shape: bf16[40,128], index: 8, kind: input, shape index: {}]
  %s9 = inlined_call_operand.vmem [shape: bf16[5,144,128], index: 9, kind: input, shape index: {}]
  %s10 = inlined_call_operand.vmem [shape: f32[1,128], index: 10, kind: input, shape index: {}]
  %s11 = inlined_call_operand.vmem [shape: bf16[128,128], index: 11, kind: input, shape index: {}]
  %s12 = inlined_call_operand.vmem [shape: f32[1,128], index: 12, kind: input, shape index: {}]
  %s13 = inlined_call_operand.vmem [shape: bf16[128,128], index: 13, kind: input, shape index: {}]
  %s14 = inlined_call_operand.vmem [shape: f32[1,128], index: 14, kind: input, shape index: {}]
  %s15 = inlined_call_operand.hbm [shape: f32[16,128], index: 15, kind: output, shape index: {}]
  %s16 = sld [smem:[#allocation0]]
  $region93: #{lenet_forward.1} parent=0
    _
  %s18 = ssub.s32 1, %s16
  %s19 = scalar_select 0, %s18, %s16
  $region1: #{lenet_forward.1} parent=0
    #allocation2 [shape = 'u8[8192]{0}', space=vmem, size = 0x2000, scoped, tag = 'output window, operand 0']
    #allocation3 [shape = 's32[2]{0}', space=sflag, size = 0x8, scoped, tag = 'scoped memory for lenet_forward.1']
    %20 = vsyncpa [#allocation3], 0
    %s21 = scalar_lea.sflag [#allocation3], 1
    %22 = vsyncpa %s21, 0
    loop: start=0, step=1, limit=4
    $region2: #{lenet_forward.1} parent=1 // loop_pre_header
      _
    $region3: #{lenet_forward.1} parent=1 // loop_header
      %s24 = sphi 0, %s28
      %p25 = scmp.ge.s32.totalorder %s24, 4
      %s34 = sphi 0, %s36
      %s37 = sphi 0, %s34
      %s38 = sphi 0, %s37
      %s54 = sphi 0, %s38
      %s58 = sphi 0, %s58
      %s60 = sphi 0, %s58
      %s61 = sphi 0, %s60
      %s75 = sphi 0, %s61
      %s79 = sphi 0, %s79
      %s81 = sphi 0, %s79
      %s82 = sphi 0, %s81
      %s96 = sphi 0, %s82
      %s100 = sphi 0, %s100
      %s102 = sphi 0, %s100
      %s103 = sphi 0, %s102
      %s117 = sphi 0, %s103
      %s121 = sphi 0, %s121
      %s123 = sphi 0, %s121
      %s124 = sphi 0, %s123
      %s138 = sphi 0, %s124
      %s142 = sphi 0, %s142
      %s144 = sphi 0, %s142
      %s145 = sphi 0, %s144
      %s159 = sphi 0, %s145
      %s163 = sphi 0, %s163
      %s165 = sphi 0, %s163
      %s166 = sphi 0, %s165
      %s180 = sphi 0, %s166
      %s184 = sphi 0, %s184
      %s186 = sphi 0, %s184
      %s187 = sphi 0, %s186
      %s201 = sphi 0, %s187
      %s205 = sphi 0, %s205
      %s207 = sphi 0, %s205
      %s208 = sphi 0, %s207
      %s222 = sphi 0, %s208
      %s226 = sphi 0, %s226
      %s228 = sphi 0, %s226
      %s229 = sphi 0, %s228
      %s243 = sphi 0, %s229
      %s247 = sphi 0, %s247
      %s249 = sphi 0, %s247
      %s250 = sphi 0, %s249
      %s264 = sphi 0, %s250
      %s268 = sphi 0, %s268
      %s270 = sphi 0, %s268
      %s271 = sphi 0, %s270
      %s285 = sphi 0, %s271
      %s289 = sphi 0, %s289
      %s291 = sphi 0, %s289
      %s292 = sphi 0, %s291
      %s306 = sphi 0, %s292
      %s310 = sphi 0, %s310
      %s312 = sphi 0, %s310
      %s313 = sphi 0, %s312
      %s327 = sphi 0, %s313
      %s331 = sphi 0, %s331
      %s333 = sphi 0, %s331
      %s334 = sphi 0, %s333
      %s348 = sphi 0, %s334
      %s354 = sphi 0, %s356
      %s357 = sphi 0, %s354
      %s358 = sphi 0, %s357
      %s374 = sphi 0, %s358
    $region4: #{lenet_forward.1} parent=1 // loop_header_branch
      %27 = sbr.rel (%p25) target = $region8
    $region5: #{lenet_forward.1} parent=1 // loop_body
      %s29 = ssub.s32 %s24, 1
      %s30 = ssub.s32 %s24, 2
      %s31 = sadd.s32 %s24, 1
      %s32 = ssub.s32 %s24, %s31
      %p33 = scmp.eq.s32.totalorder %s32, 0
      %s35 = sadd.s32 %s34, 1
      %s36 = scalar_select %p33, %s34, %s35
      %p39 = pneg %p33
      %p40 = scmp.eq.s32.totalorder %s24, 1
      %p41 = por %p39, %p40
      %p42 = scmp.ne.s32.totalorder %s34, %s37
      %p43 = scmp.eq.s32.totalorder %s24, 0
      %p44 = por %p42, %p43
      %p45 = scmp.ne.s32.totalorder %s34, %s37
      %p46 = scmp.eq.s32.totalorder %s29, 1
      %p47 = por %p45, %p46
      %p48 = scmp.ne.s32.totalorder %s37, %s38
      %p49 = scmp.eq.s32.totalorder %s29, 0
      %p50 = por %p48, %p49
      %p51 = scmp.ne.s32.totalorder %s37, %s38
      %p52 = scmp.eq.s32.totalorder %s30, 1
      %p53 = por %p51, %p52
      %p55 = scmp.ne.s32.totalorder %s38, %s54
      %p56 = scmp.eq.s32.totalorder %s30, 0
      %p57 = por %p55, %p56
      %s59 = sadd.s32 %s58, 1
      %p62 = scmp.eq.s32.totalorder %s24, 1
      %p63 = scmp.ne.s32.totalorder %s58, %s60
      %p64 = scmp.eq.s32.totalorder %s24, 0
      %p65 = por %p63, %p64
      %p66 = scmp.ne.s32.totalorder %s58, %s60
      %p67 = scmp.eq.s32.totalorder %s29, 1
      %p68 = por %p66, %p67
      %p69 = scmp.ne.s32.totalorder %s60, %s61
      %p70 = scmp.eq.s32.totalorder %s29, 0
      %p71 = por %p69, %p70
      %p72 = scmp.ne.s32.totalorder %s60, %s61
      %p73 = scmp.eq.s32.totalorder %s30, 1
      %p74 = por %p72, %p73
      %p76 = scmp.ne.s32.totalorder %s61, %s75
      %p77 = scmp.eq.s32.totalorder %s30, 0
      %p78 = por %p76, %p77
      %s80 = sadd.s32 %s79, 1
      %p83 = scmp.eq.s32.totalorder %s24, 1
      %p84 = scmp.ne.s32.totalorder %s79, %s81
      %p85 = scmp.eq.s32.totalorder %s24, 0
      %p86 = por %p84, %p85
      %p87 = scmp.ne.s32.totalorder %s79, %s81
      %p88 = scmp.eq.s32.totalorder %s29, 1
      %p89 = por %p87, %p88
      %p90 = scmp.ne.s32.totalorder %s81, %s82
      %p91 = scmp.eq.s32.totalorder %s29, 0
      %p92 = por %p90, %p91
      %p93 = scmp.ne.s32.totalorder %s81, %s82
      %p94 = scmp.eq.s32.totalorder %s30, 1
      %p95 = por %p93, %p94
      %p97 = scmp.ne.s32.totalorder %s82, %s96
      %p98 = scmp.eq.s32.totalorder %s30, 0
      %p99 = por %p97, %p98
      %s101 = sadd.s32 %s100, 1
      %p104 = scmp.eq.s32.totalorder %s24, 1
      %p105 = scmp.ne.s32.totalorder %s100, %s102
      %p106 = scmp.eq.s32.totalorder %s24, 0
      %p107 = por %p105, %p106
      %p108 = scmp.ne.s32.totalorder %s100, %s102
      %p109 = scmp.eq.s32.totalorder %s29, 1
      %p110 = por %p108, %p109
      %p111 = scmp.ne.s32.totalorder %s102, %s103
      %p112 = scmp.eq.s32.totalorder %s29, 0
      %p113 = por %p111, %p112
      %p114 = scmp.ne.s32.totalorder %s102, %s103
      %p115 = scmp.eq.s32.totalorder %s30, 1
      %p116 = por %p114, %p115
      %p118 = scmp.ne.s32.totalorder %s103, %s117
      %p119 = scmp.eq.s32.totalorder %s30, 0
      %p120 = por %p118, %p119
      %s122 = sadd.s32 %s121, 1
      %p125 = scmp.eq.s32.totalorder %s24, 1
      %p126 = scmp.ne.s32.totalorder %s121, %s123
      %p127 = scmp.eq.s32.totalorder %s24, 0
      %p128 = por %p126, %p127
      %p129 = scmp.ne.s32.totalorder %s121, %s123
      %p130 = scmp.eq.s32.totalorder %s29, 1
      %p131 = por %p129, %p130
      %p132 = scmp.ne.s32.totalorder %s123, %s124
      %p133 = scmp.eq.s32.totalorder %s29, 0
      %p134 = por %p132, %p133
      %p135 = scmp.ne.s32.totalorder %s123, %s124
      %p136 = scmp.eq.s32.totalorder %s30, 1
      %p137 = por %p135, %p136
      %p139 = scmp.ne.s32.totalorder %s124, %s138
      %p140 = scmp.eq.s32.totalorder %s30, 0
      %p141 = por %p139, %p140
      %s143 = sadd.s32 %s142, 1
      %p146 = scmp.eq.s32.totalorder %s24, 1
      %p147 = scmp.ne.s32.totalorder %s142, %s144
      %p148 = scmp.eq.s32.totalorder %s24, 0
      %p149 = por %p147, %p148
      %p150 = scmp.ne.s32.totalorder %s142, %s144
      %p151 = scmp.eq.s32.totalorder %s29, 1
      %p152 = por %p150, %p151
      %p153 = scmp.ne.s32.totalorder %s144, %s145
      %p154 = scmp.eq.s32.totalorder %s29, 0
      %p155 = por %p153, %p154
      %p156 = scmp.ne.s32.totalorder %s144, %s145
      %p157 = scmp.eq.s32.totalorder %s30, 1
      %p158 = por %p156, %p157
      %p160 = scmp.ne.s32.totalorder %s145, %s159
      %p161 = scmp.eq.s32.totalorder %s30, 0
      %p162 = por %p160, %p161
      %s164 = sadd.s32 %s163, 1
      %p167 = scmp.eq.s32.totalorder %s24, 1
      %p168 = scmp.ne.s32.totalorder %s163, %s165
      %p169 = scmp.eq.s32.totalorder %s24, 0
      %p170 = por %p168, %p169
      %p171 = scmp.ne.s32.totalorder %s163, %s165
      %p172 = scmp.eq.s32.totalorder %s29, 1
      %p173 = por %p171, %p172
      %p174 = scmp.ne.s32.totalorder %s165, %s166
      %p175 = scmp.eq.s32.totalorder %s29, 0
      %p176 = por %p174, %p175
      %p177 = scmp.ne.s32.totalorder %s165, %s166
      %p178 = scmp.eq.s32.totalorder %s30, 1
      %p179 = por %p177, %p178
      %p181 = scmp.ne.s32.totalorder %s166, %s180
      %p182 = scmp.eq.s32.totalorder %s30, 0
      %p183 = por %p181, %p182
      %s185 = sadd.s32 %s184, 1
      %p188 = scmp.eq.s32.totalorder %s24, 1
      %p189 = scmp.ne.s32.totalorder %s184, %s186
      %p190 = scmp.eq.s32.totalorder %s24, 0
      %p191 = por %p189, %p190
      %p192 = scmp.ne.s32.totalorder %s184, %s186
      %p193 = scmp.eq.s32.totalorder %s29, 1
      %p194 = por %p192, %p193
      %p195 = scmp.ne.s32.totalorder %s186, %s187
      %p196 = scmp.eq.s32.totalorder %s29, 0
      %p197 = por %p195, %p196
      %p198 = scmp.ne.s32.totalorder %s186, %s187
      %p199 = scmp.eq.s32.totalorder %s30, 1
      %p200 = por %p198, %p199
      %p202 = scmp.ne.s32.totalorder %s187, %s201
      %p203 = scmp.eq.s32.totalorder %s30, 0
      %p204 = por %p202, %p203
      %s206 = sadd.s32 %s205, 1
      %p209 = scmp.eq.s32.totalorder %s24, 1
      %p210 = scmp.ne.s32.totalorder %s205, %s207
      %p211 = scmp.eq.s32.totalorder %s24, 0
      %p212 = por %p210, %p211
      %p213 = scmp.ne.s32.totalorder %s205, %s207
      %p214 = scmp.eq.s32.totalorder %s29, 1
      %p215 = por %p213, %p214
      %p216 = scmp.ne.s32.totalorder %s207, %s208
      %p217 = scmp.eq.s32.totalorder %s29, 0
      %p218 = por %p216, %p217
      %p219 = scmp.ne.s32.totalorder %s207, %s208
      %p220 = scmp.eq.s32.totalorder %s30, 1
      %p221 = por %p219, %p220
      %p223 = scmp.ne.s32.totalorder %s208, %s222
      %p224 = scmp.eq.s32.totalorder %s30, 0
      %p225 = por %p223, %p224
      %s227 = sadd.s32 %s226, 1
      %p230 = scmp.eq.s32.totalorder %s24, 1
      %p231 = scmp.ne.s32.totalorder %s226, %s228
      %p232 = scmp.eq.s32.totalorder %s24, 0
      %p233 = por %p231, %p232
      %p234 = scmp.ne.s32.totalorder %s226, %s228
      %p235 = scmp.eq.s32.totalorder %s29, 1
      %p236 = por %p234, %p235
      %p237 = scmp.ne.s32.totalorder %s228, %s229
      %p238 = scmp.eq.s32.totalorder %s29, 0
      %p239 = por %p237, %p238
      %p240 = scmp.ne.s32.totalorder %s228, %s229
      %p241 = scmp.eq.s32.totalorder %s30, 1
      %p242 = por %p240, %p241
      %p244 = scmp.ne.s32.totalorder %s229, %s243
      %p245 = scmp.eq.s32.totalorder %s30, 0
      %p246 = por %p244, %p245
      %s248 = sadd.s32 %s247, 1
      %p251 = scmp.eq.s32.totalorder %s24, 1
      %p252 = scmp.ne.s32.totalorder %s247, %s249
      %p253 = scmp.eq.s32.totalorder %s24, 0
      %p254 = por %p252, %p253
      %p255 = scmp.ne.s32.totalorder %s247, %s249
      %p256 = scmp.eq.s32.totalorder %s29, 1
      %p257 = por %p255, %p256
      %p258 = scmp.ne.s32.totalorder %s249, %s250
      %p259 = scmp.eq.s32.totalorder %s29, 0
      %p260 = por %p258, %p259
      %p261 = scmp.ne.s32.totalorder %s249, %s250
      %p262 = scmp.eq.s32.totalorder %s30, 1
      %p263 = por %p261, %p262
      %p265 = scmp.ne.s32.totalorder %s250, %s264
      %p266 = scmp.eq.s32.totalorder %s30, 0
      %p267 = por %p265, %p266
      %s269 = sadd.s32 %s268, 1
      %p272 = scmp.eq.s32.totalorder %s24, 1
      %p273 = scmp.ne.s32.totalorder %s268, %s270
      %p274 = scmp.eq.s32.totalorder %s24, 0
      %p275 = por %p273, %p274
      %p276 = scmp.ne.s32.totalorder %s268, %s270
      %p277 = scmp.eq.s32.totalorder %s29, 1
      %p278 = por %p276, %p277
      %p279 = scmp.ne.s32.totalorder %s270, %s271
      %p280 = scmp.eq.s32.totalorder %s29, 0
      %p281 = por %p279, %p280
      %p282 = scmp.ne.s32.totalorder %s270, %s271
      %p283 = scmp.eq.s32.totalorder %s30, 1
      %p284 = por %p282, %p283
      %p286 = scmp.ne.s32.totalorder %s271, %s285
      %p287 = scmp.eq.s32.totalorder %s30, 0
      %p288 = por %p286, %p287
      %s290 = sadd.s32 %s289, 1
      %p293 = scmp.eq.s32.totalorder %s24, 1
      %p294 = scmp.ne.s32.totalorder %s289, %s291
      %p295 = scmp.eq.s32.totalorder %s24, 0
      %p296 = por %p294, %p295
      %p297 = scmp.ne.s32.totalorder %s289, %s291
      %p298 = scmp.eq.s32.totalorder %s29, 1
      %p299 = por %p297, %p298
      %p300 = scmp.ne.s32.totalorder %s291, %s292
      %p301 = scmp.eq.s32.totalorder %s29, 0
      %p302 = por %p300, %p301
      %p303 = scmp.ne.s32.totalorder %s291, %s292
      %p304 = scmp.eq.s32.totalorder %s30, 1
      %p305 = por %p303, %p304
      %p307 = scmp.ne.s32.totalorder %s292, %s306
      %p308 = scmp.eq.s32.totalorder %s30, 0
      %p309 = por %p307, %p308
      %s311 = sadd.s32 %s310, 1
      %p314 = scmp.eq.s32.totalorder %s24, 1
      %p315 = scmp.ne.s32.totalorder %s310, %s312
      %p316 = scmp.eq.s32.totalorder %s24, 0
      %p317 = por %p315, %p316
      %p318 = scmp.ne.s32.totalorder %s310, %s312
      %p319 = scmp.eq.s32.totalorder %s29, 1
      %p320 = por %p318, %p319
      %p321 = scmp.ne.s32.totalorder %s312, %s313
      %p322 = scmp.eq.s32.totalorder %s29, 0
      %p323 = por %p321, %p322
      %p324 = scmp.ne.s32.totalorder %s312, %s313
      %p325 = scmp.eq.s32.totalorder %s30, 1
      %p326 = por %p324, %p325
      %p328 = scmp.ne.s32.totalorder %s313, %s327
      %p329 = scmp.eq.s32.totalorder %s30, 0
      %p330 = por %p328, %p329
      %s332 = sadd.s32 %s331, 1
      %p335 = scmp.eq.s32.totalorder %s24, 1
      %p336 = scmp.ne.s32.totalorder %s331, %s333
      %p337 = scmp.eq.s32.totalorder %s24, 0
      %p338 = por %p336, %p337
      %p339 = scmp.ne.s32.totalorder %s331, %s333
      %p340 = scmp.eq.s32.totalorder %s29, 1
      %p341 = por %p339, %p340
      %p342 = scmp.ne.s32.totalorder %s333, %s334
      %p343 = scmp.eq.s32.totalorder %s29, 0
      %p344 = por %p342, %p343
      %p345 = scmp.ne.s32.totalorder %s333, %s334
      %p346 = scmp.eq.s32.totalorder %s30, 1
      %p347 = por %p345, %p346
      %p349 = scmp.ne.s32.totalorder %s334, %s348
      %p350 = scmp.eq.s32.totalorder %s30, 0
      %p351 = por %p349, %p350
      %s352 = ssub.s32 %s24, %s31
      %p353 = scmp.eq.s32.totalorder %s352, 0
      %s355 = sadd.s32 %s354, 1
      %s356 = scalar_select %p353, %s354, %s355
      %p359 = pneg %p353
      %p360 = scmp.eq.s32.totalorder %s24, 1
      %p361 = por %p359, %p360
      %p362 = scmp.ne.s32.totalorder %s354, %s357
      %p363 = scmp.eq.s32.totalorder %s24, 0
      %p364 = por %p362, %p363
      %p365 = scmp.ne.s32.totalorder %s354, %s357
      %p366 = scmp.eq.s32.totalorder %s29, 1
      %p367 = por %p365, %p366
      %p368 = scmp.ne.s32.totalorder %s357, %s358
      %p369 = scmp.eq.s32.totalorder %s29, 0
      %p370 = por %p368, %p369
      %p371 = scmp.ne.s32.totalorder %s357, %s358
      %p372 = scmp.eq.s32.totalorder %s30, 1
      %p373 = por %p371, %p372
      %p375 = scmp.ne.s32.totalorder %s358, %s374
      %p376 = scmp.eq.s32.totalorder %s30, 0
      %p377 = por %p375, %p376
      %p378 = scmp.le.s32.totalorder 1, %s24
      %p379 = scmp.lt.s32.totalorder %s24, 3
      %p380 = pnand %p378, %p379
      %p381 = pneg %p380
      // Predicated region
      $region9: #{lenet_forward.1} parent=5 // pred_check
        _
      $region10: #{lenet_forward.1} parent=5 // pred_check_branch
        %383 = sbr.rel (%p380) target = $region12
      $region11: #{lenet_forward.1} parent=5 // pred_region
        %s384 = ssub.s32 %s24, 1
        // Predicated region
        $region13: #{lenet_forward.1} parent=11 // pred_check
          %p385 = pneg %p71
        $region14: #{lenet_forward.1} parent=11 // pred_check_branch
          %387 = sbr.rel (%p385) target = $region16
        $region15: #{lenet_forward.1} parent=11 // pred_region
          _
        $region16: #{lenet_forward.1} parent=11 // pred_fallthru
          _
        // Predicated region
        $region17: #{lenet_forward.1} parent=11 // pred_check
          %p388 = pneg %p92
        $region18: #{lenet_forward.1} parent=11 // pred_check_branch
          %390 = sbr.rel (%p388) target = $region20
        $region19: #{lenet_forward.1} parent=11 // pred_region
          _
        $region20: #{lenet_forward.1} parent=11 // pred_fallthru
          _
        // Predicated region
        $region21: #{lenet_forward.1} parent=11 // pred_check
          %p391 = pneg %p113
        $region22: #{lenet_forward.1} parent=11 // pred_check_branch
          %393 = sbr.rel (%p391) target = $region24
        $region23: #{lenet_forward.1} parent=11 // pred_region
          _
        $region24: #{lenet_forward.1} parent=11 // pred_fallthru
          _
        // Predicated region
        $region25: #{lenet_forward.1} parent=11 // pred_check
          %p394 = pneg %p134
        $region26: #{lenet_forward.1} parent=11 // pred_check_branch
          %396 = sbr.rel (%p394) target = $region28
        $region27: #{lenet_forward.1} parent=11 // pred_region
          _
        $region28: #{lenet_forward.1} parent=11 // pred_fallthru
          _
        // Predicated region
        $region29: #{lenet_forward.1} parent=11 // pred_check
          %p397 = pneg %p155
        $region30: #{lenet_forward.1} parent=11 // pred_check_branch
          %399 = sbr.rel (%p397) target = $region32
        $region31: #{lenet_forward.1} parent=11 // pred_region
          _
        $region32: #{lenet_forward.1} parent=11 // pred_fallthru
          _
        // Predicated region
        $region33: #{lenet_forward.1} parent=11 // pred_check
          %p400 = pneg %p176
        $region34: #{lenet_forward.1} parent=11 // pred_check_branch
          %402 = sbr.rel (%p400) target = $region36
        $region35: #{lenet_forward.1} parent=11 // pred_region
          _
        $region36: #{lenet_forward.1} parent=11 // pred_fallthru
          _
        // Predicated region
        $region37: #{lenet_forward.1} parent=11 // pred_check
          %p403 = pneg %p197
        $region38: #{lenet_forward.1} parent=11 // pred_check_branch
          %405 = sbr.rel (%p403) target = $region40
        $region39: #{lenet_forward.1} parent=11 // pred_region
          _
        $region40: #{lenet_forward.1} parent=11 // pred_fallthru
          _
        // Predicated region
        $region41: #{lenet_forward.1} parent=11 // pred_check
          %p406 = pneg %p218
        $region42: #{lenet_forward.1} parent=11 // pred_check_branch
          %408 = sbr.rel (%p406) target = $region44
        $region43: #{lenet_forward.1} parent=11 // pred_region
          _
        $region44: #{lenet_forward.1} parent=11 // pred_fallthru
          _
        // Predicated region
        $region45: #{lenet_forward.1} parent=11 // pred_check
          %p409 = pneg %p239
        $region46: #{lenet_forward.1} parent=11 // pred_check_branch
          %411 = sbr.rel (%p409) target = $region48
        $region47: #{lenet_forward.1} parent=11 // pred_region
          _
        $region48: #{lenet_forward.1} parent=11 // pred_fallthru
          _
        // Predicated region
        $region49: #{lenet_forward.1} parent=11 // pred_check
          %p412 = pneg %p260
        $region50: #{lenet_forward.1} parent=11 // pred_check_branch
          %414 = sbr.rel (%p412) target = $region52
        $region51: #{lenet_forward.1} parent=11 // pred_region
          _
        $region52: #{lenet_forward.1} parent=11 // pred_fallthru
          _
        // Predicated region
        $region53: #{lenet_forward.1} parent=11 // pred_check
          %p415 = pneg %p281
        $region54: #{lenet_forward.1} parent=11 // pred_check_branch
          %417 = sbr.rel (%p415) target = $region56
        $region55: #{lenet_forward.1} parent=11 // pred_region
          _
        $region56: #{lenet_forward.1} parent=11 // pred_fallthru
          _
        // Predicated region
        $region57: #{lenet_forward.1} parent=11 // pred_check
          %p418 = pneg %p302
        $region58: #{lenet_forward.1} parent=11 // pred_check_branch
          %420 = sbr.rel (%p418) target = $region60
        $region59: #{lenet_forward.1} parent=11 // pred_region
          _
        $region60: #{lenet_forward.1} parent=11 // pred_fallthru
          _
        // Predicated region
        $region61: #{lenet_forward.1} parent=11 // pred_check
          %p421 = pneg %p323
        $region62: #{lenet_forward.1} parent=11 // pred_check_branch
          %423 = sbr.rel (%p421) target = $region64
        $region63: #{lenet_forward.1} parent=11 // pred_region
          _
        $region64: #{lenet_forward.1} parent=11 // pred_fallthru
          _
        // Predicated region
        $region65: #{lenet_forward.1} parent=11 // pred_check
          %p424 = pneg %p344
        $region66: #{lenet_forward.1} parent=11 // pred_check_branch
          %426 = sbr.rel (%p424) target = $region68
        $region67: #{lenet_forward.1} parent=11 // pred_region
          _
        $region68: #{lenet_forward.1} parent=11 // pred_fallthru
          _
      $region12: #{lenet_forward.1} parent=5 // pred_fallthru
        _
      %p427 = scmp.lt.s32.totalorder %s24, 2
      // Predicated region
      $region69: #{lenet_forward.1} parent=5 // pred_check
        %p428 = pneg %p427
      $region70: #{lenet_forward.1} parent=5 // pred_check_branch
        %430 = sbr.rel (%p428) target = $region72
      $region71: #{lenet_forward.1} parent=5 // pred_region
        // Predicated region
        $region73: #{lenet_forward.1} parent=71 // pred_check
          %p431 = pneg %p44
        $region74: #{lenet_forward.1} parent=71 // pred_check_branch
          %433 = sbr.rel (%p431) target = $region76
        $region75: #{lenet_forward.1} parent=71 // pred_region
          %s434 = smul.u32 8, %s24
          %p435 = scmp.lt.s32.totalorder %s434, 15
          %s436 = scalar_select %p435, %s434, 15
          %s437 = smul.addr %s436, 5
          %s438 = smul.addr %s437, 8
          %s439 = scalar_lea.vmem %s0, %s438
          %s440 = smul.u32 8, %s24
        $region76: #{lenet_forward.1} parent=71 // pred_fallthru
          _
      $region72: #{lenet_forward.1} parent=5 // pred_fallthru
        _
      %p441 = scmp.le.s32.totalorder 1, %s24
      %p442 = scmp.lt.s32.totalorder %s24, 3
      %p443 = pnand %p441, %p442
      %p444 = pneg %p443
      // Predicated region
      $region77: #{lenet_forward.1} parent=5 // pred_check
        _
      $region78: #{lenet_forward.1} parent=5 // pred_check_branch
        %446 = sbr.rel (%p443) target = $region80
      $region79: #{lenet_forward.1} parent=5 // pred_region
        %s447 = ssub.s32 %s24, 1
        %s448 = smul.u32 8, %s29
        %p449 = scmp.lt.s32.totalorder %s448, 15
        %s450 = scalar_select %p449, %s448, 15
        %s451 = smul.addr %s450, 5
        %s452 = smul.addr %s451, 8
        %s453 = scalar_lea.vmem %s0, %s452
        %p454 = pneg %p50
        %p455 = pneg %p47
        %p456 = pneg %p71
        %p457 = pneg %p68
        %p458 = pneg %p92
        %p459 = pneg %p89
        %p460 = pneg %p113
        %p461 = pneg %p110
        %p462 = pneg %p134
        %p463 = pneg %p131
        %p464 = pneg %p155
        %p465 = pneg %p152
        %p466 = pneg %p176
        %p467 = pneg %p173
        %p468 = pneg %p197
        %p469 = pneg %p194
        %p470 = pneg %p218
        %p471 = pneg %p215
        %p472 = pneg %p239
        %p473 = pneg %p236
        %p474 = pneg %p260
        %p475 = pneg %p257
        %p476 = pneg %p281
        %p477 = pneg %p278
        %p478 = pneg %p302
        %p479 = pneg %p299
        %p480 = pneg %p323
        %p481 = pneg %p320
        %p482 = pneg %p344
        %p483 = pneg %p341
        %p484 = pneg %p370
        %p485 = pneg %p367
        %s486 = sand.u32 %s357, 1
        %s487 = scalar_lea.sflag [#allocation3], %s486
        %s488 = sand.u32 %s357, 1
        %s489 = smul.addr %s488, 8
        %s490 = scalar_lea.vmem [#allocation2], %s489
        %s491 = smul.u32 8, %s29
        %p492 = scmp.lt.s32.totalorder %s491, 15
        %s493 = scalar_select %p492, %s491, 15
        %s494 = smul.addr %s493, 5
        %s495 = smul.addr %s494, 8
        %s496 = scalar_lea.vmem %s0, %s495
        %s497 = smul.u32 8, %s29
        %v499 = vld [vmem:[%s496] sm:$0xff]
        %v500 = vld [vmem:[%s496 + $0x8] sm:$0xff]
        %v501 = vld [vmem:[%s496 + $0x10] sm:$0xff]
        %v502 = vld [vmem:[%s496 + $0x18] sm:$0xff]
        %v503 = vld [vmem:[%s496 + $0x28] sm:$0xff]
        %v504 = vld [vmem:[%s496 + $0x30] sm:$0xff]
        %v505 = vld [vmem:[%s496 + $0x38] sm:$0xff]
        %v506 = vld [vmem:[%s496 + $0x40] sm:$0xff]
        %v507 = vld [vmem:[%s496 + $0x50] sm:$0xff]
        %v508 = vld [vmem:[%s496 + $0x58] sm:$0xff]
        %v509 = vld [vmem:[%s496 + $0x60] sm:$0xff]
        %v510 = vld [vmem:[%s496 + $0x68] sm:$0xff]
        %v511 = vld [vmem:[%s496 + $0x78] sm:$0xff]
        %v512 = vld [vmem:[%s496 + $0x80] sm:$0xff]
        %v513 = vld [vmem:[%s496 + $0x88] sm:$0xff]
        %v514 = vld [vmem:[%s496 + $0x90] sm:$0xff]
        %v515 = vld [vmem:[%s496 + $0xa0] sm:$0xff]
        %v516 = vld [vmem:[%s496 + $0xa8] sm:$0xff]
        %v517 = vld [vmem:[%s496 + $0xb0] sm:$0xff]
        %v518 = vld [vmem:[%s496 + $0xb8] sm:$0xff]
        %v519 = vld [vmem:[%s496 + $0xc8] sm:$0xff]
        %v520 = vld [vmem:[%s496 + $0xd0] sm:$0xff]
        %v521 = vld [vmem:[%s496 + $0xd8] sm:$0xff]
        %v522 = vld [vmem:[%s496 + $0xe0] sm:$0xff]
        %v523 = vld [vmem:[%s496 + $0xf0] sm:$0xff]
        %v524 = vld [vmem:[%s496 + $0xf8] sm:$0xff]
        %v525 = vld [vmem:[%s496 + $0x100] sm:$0xff]
        %v526 = vld [vmem:[%s496 + $0x108] sm:$0xff]
        %v527 = vld [vmem:[%s496 + $0x118] sm:$0xff]
        %v528 = vld [vmem:[%s496 + $0x120] sm:$0xff]
        %v529 = vld [vmem:[%s496 + $0x128] sm:$0xff]
        %v530 = vld [vmem:[%s496 + $0x130] sm:$0xff]
        %v531 = vpack.c.bf16 %v500, %v499
        %v532 = vpack.c.bf16 %v502, %v501
        %v533 = vpack.c.bf16 %v504, %v503
        %v534 = vpack.c.bf16 %v506, %v505
        %v535 = vpack.c.bf16 %v508, %v507
        %v536 = vpack.c.bf16 %v510, %v509
        %v537 = vpack.c.bf16 %v512, %v511
        %v538 = vpack.c.bf16 %v514, %v513
        %v539 = vpack.c.bf16 %v516, %v515
        %v540 = vpack.c.bf16 %v518, %v517
        %v541 = vpack.c.bf16 %v520, %v519
        %v542 = vpack.c.bf16 %v522, %v521
        %v543 = vpack.c.bf16 %v524, %v523
        %v544 = vpack.c.bf16 %v526, %v525
        %v545 = vpack.c.bf16 %v528, %v527
        %v546 = vpack.c.bf16 %v530, %v529
        %v547 = vld [vmem:[%s1] sm:$0xff]
        %v548 = vld [vmem:[%s1 + $0x8] sm:$0xff]
        %v549 = vld [vmem:[%s1 + $0x10] sm:$0xff]
        %v550 = vld [vmem:[%s1 + $0x18] sm:$0xff]
        %v551 = vld [vmem:[%s1 + $0x20] sm:$0xff]
        %v552 = vld [vmem:[%s1 + $0x28] sm:$0xff]
        %v553 = vld [vmem:[%s1 + $0x30] sm:$0xff]
        %v554 = vld [vmem:[%s1 + $0x38] sm:$0xff]
        %v555 = vld [vmem:[%s1 + $0x40] sm:$0xff]
        %v556 = vld [vmem:[%s1 + $0x48] sm:$0xff]
        %v557 = vld [vmem:[%s1 + $0x50] sm:$0xff]
        %v558 = vld [vmem:[%s1 + $0x58] sm:$0xff]
        %v559 = vld [vmem:[%s496 + $0x1] sm:$0xff]
        %v560 = vld [vmem:[%s496 + $0x9] sm:$0xff]
        %v561 = vld [vmem:[%s496 + $0x11] sm:$0xff]
        %v562 = vld [vmem:[%s496 + $0x19] sm:$0xff]
        %v563 = vld [vmem:[%s496 + $0x29] sm:$0xff]
        %v564 = vld [vmem:[%s496 + $0x31] sm:$0xff]
        %v565 = vld [vmem:[%s496 + $0x39] sm:$0xff]
        %v566 = vld [vmem:[%s496 + $0x41] sm:$0xff]
        %v567 = vld [vmem:[%s496 + $0x51] sm:$0xff]
        %v568 = vld [vmem:[%s496 + $0x59] sm:$0xff]
        %v569 = vld [vmem:[%s496 + $0x61] sm:$0xff]
        %v570 = vld [vmem:[%s496 + $0x69] sm:$0xff]
        %v571 = vld [vmem:[%s496 + $0x79] sm:$0xff]
        %v572 = vld [vmem:[%s496 + $0x81] sm:$0xff]
        %v573 = vld [vmem:[%s496 + $0x89] sm:$0xff]
        %v574 = vld [vmem:[%s496 + $0x91] sm:$0xff]
        %v575 = vld [vmem:[%s496 + $0xa1] sm:$0xff]
        %v576 = vld [vmem:[%s496 + $0xa9] sm:$0xff]
        %v577 = vld [vmem:[%s496 + $0xb1] sm:$0xff]
        %v578 = vld [vmem:[%s496 + $0xb9] sm:$0xff]
        %v579 = vld [vmem:[%s496 + $0xc9] sm:$0xff]
        %v580 = vld [vmem:[%s496 + $0xd1] sm:$0xff]
        %v581 = vld [vmem:[%s496 + $0xd9] sm:$0xff]
        %v582 = vld [vmem:[%s496 + $0xe1] sm:$0xff]
        %v583 = vld [vmem:[%s496 + $0xf1] sm:$0xff]
        %v584 = vld [vmem:[%s496 + $0xf9] sm:$0xff]
        %v585 = vld [vmem:[%s496 + $0x101] sm:$0xff]
        %v586 = vld [vmem:[%s496 + $0x109] sm:$0xff]
        %v587 = vld [vmem:[%s496 + $0x119] sm:$0xff]
        %v588 = vld [vmem:[%s496 + $0x121] sm:$0xff]
        %v589 = vld [vmem:[%s496 + $0x129] sm:$0xff]
        %v590 = vld [vmem:[%s496 + $0x131] sm:$0xff]
        %v591 = vpack.c.bf16 %v560, %v559
        %v592 = vpack.c.bf16 %v562, %v561
        %v593 = vpack.c.bf16 %v564, %v563
        %v594 = vpack.c.bf16 %v566, %v565
        %v595 = vpack.c.bf16 %v568, %v567
        %v596 = vpack.c.bf16 %v570, %v569
        %v597 = vpack.c.bf16 %v572, %v571
        %v598 = vpack.c.bf16 %v574, %v573
        %v599 = vpack.c.bf16 %v576, %v575
        %v600 = vpack.c.bf16 %v578, %v577
        %v601 = vpack.c.bf16 %v580, %v579
        %v602 = vpack.c.bf16 %v582, %v581
        %v603 = vpack.c.bf16 %v584, %v583
        %v604 = vpack.c.bf16 %v586, %v585
        %v605 = vpack.c.bf16 %v588, %v587
        %v606 = vpack.c.bf16 %v590, %v589
        %s607 = scalar_lea.vmem %s1, 96
        %v608 = vld [vmem:[%s607] sm:$0xff]
        %v609 = vld [vmem:[%s607 + $0x8] sm:$0xff]
        %v610 = vld [vmem:[%s607 + $0x10] sm:$0xff]
        %v611 = vld [vmem:[%s607 + $0x18] sm:$0xff]
        %v612 = vld [vmem:[%s607 + $0x20] sm:$0xff]
        %v613 = vld [vmem:[%s607 + $0x28] sm:$0xff]
        %v614 = vld [vmem:[%s607 + $0x30] sm:$0xff]
        %v615 = vld [vmem:[%s607 + $0x38] sm:$0xff]
        %v616 = vld [vmem:[%s607 + $0x40] sm:$0xff]
        %v617 = vld [vmem:[%s607 + $0x48] sm:$0xff]
        %v618 = vld [vmem:[%s607 + $0x50] sm:$0xff]
        %v619 = vld [vmem:[%s607 + $0x58] sm:$0xff]
        %v632 = vunpack.c.l.b16 %v608
        %v633 = vunpack.c.h.b16 %v608
        %v634 = vunpack.c.l.b16 %v609
        %v635 = vunpack.c.h.b16 %v609
        %v636 = vunpack.c.l.b16 %v610
        %v637 = vunpack.c.h.b16 %v610
        %v638 = vunpack.c.l.b16 %v611
        %v639 = vunpack.c.h.b16 %v611
        %v640 = vunpack.c.l.b16 %v612
        %v641 = vunpack.c.h.b16 %v612
        %v642 = vunpack.c.l.b16 %v613
        %v643 = vunpack.c.h.b16 %v613
        %v644 = vunpack.c.l.b16 %v614
        %v645 = vunpack.c.h.b16 %v614
        %v646 = vunpack.c.l.b16 %v615
        %v647 = vunpack.c.h.b16 %v615
        %v648 = vunpack.c.l.b16 %v616
        %v649 = vunpack.c.h.b16 %v616
        %v650 = vunpack.c.l.b16 %v617
        %v651 = vunpack.c.h.b16 %v617
        %v652 = vunpack.c.l.b16 %v618
        %v653 = vunpack.c.h.b16 %v618
        %v654 = vunpack.c.l.b16 %v619
        %v655 = vunpack.c.h.b16 %v619
        %v656 = vpack.c.b16 %v634, %v632
        %v657 = vpack.c.b16 %v635, %v633
        %v658 = vpack.c.b16 %v638, %v636
        %v659 = vpack.c.b16 %v639, %v637
        %v660 = vpack.c.b16 %v642, %v640
        %v661 = vpack.c.b16 %v643, %v641
        %v662 = vpack.c.b16 %v646, %v644
        %v663 = vpack.c.b16 %v647, %v645
        %v664 = vpack.c.b16 %v650, %v648
        %v665 = vpack.c.b16 %v651, %v649
        %v666 = vpack.c.b16 %v654, %v652
        %v667 = vpack.c.b16 %v655, %v653
        %vm680 = vcmask 785408
        %v682 = vsel %vm680, %v591, 0
        %v685 = vsel %vm680, %v592, 0
        %v688 = vsel %vm680, %v593, 0
        %v691 = vsel %vm680, %v594, 0
        %v694 = vsel %vm680, %v595, 0
        %v697 = vsel %vm680, %v596, 0
        %v700 = vsel %vm680, %v597, 0
        %v703 = vsel %vm680, %v598, 0
        %v706 = vsel %vm680, %v599, 0
        %v709 = vsel %vm680, %v600, 0
        %v712 = vsel %vm680, %v601, 0
        %v715 = vsel %vm680, %v602, 0
        %v718 = vsel %vm680, %v603, 0
        %v721 = vsel %vm680, %v604, 0
        %v724 = vsel %vm680, %v605, 0
        %v727 = vsel %vm680, %v606, 0
        %729 = vmatprep.subr.bf16.mxu0 %v657
        %730 = vmatpush1.bf16.msra.mxu0 %v656
        %731 = vmatprep.subr.bf16.mxu0 %v659
        %732 = vmatpush1.bf16.msra.mxu0 %v658
        %733 = vmatprep.subr.bf16.mxu0 %v661
        %734 = vmatpush1.bf16.msra.mxu0 %v660
        %735 = vmatprep.subr.bf16.mxu0 %v663
        %736 = vmatpush1.bf16.msra.mxu0 %v662
        %737 = vmatprep.subr.bf16.mxu0 %v665
        %738 = vmatpush1.bf16.msra.mxu0 %v664
        %739 = vmatprep.subr.bf16.mxu0 %v667
        %740 = vmatpush1.bf16.msra.mxu0 %v666
        %741 = vmatprep.subr.bf16.mxu0 0
        %742 = vmatpush1.bf16.msra.mxu0 0
        %743 = vmatprep.subr.bf16.mxu0 0
        %744 = vmatpush1.bf16.msra.mxu0 0
        %745 = vmatprep.subr.bf16.mxu0 0
        %746 = vmatpush1.bf16.msra.mxu0 0
        %747 = vmatprep.subr.bf16.mxu0 0
        %748 = vmatpush1.bf16.msra.mxu0 0
        %749 = vmatprep.subr.bf16.mxu0 0
        %750 = vmatpush1.bf16.msra.mxu0 0
        %751 = vmatprep.subr.bf16.mxu0 0
        %752 = vmatpush1.bf16.msra.mxu0 0
        %753 = vmatprep.subr.bf16.mxu0 0
        %754 = vmatpush1.bf16.msra.mxu0 0
        %755 = vmatprep.subr.bf16.mxu0 0
        %756 = vmatpush1.bf16.msra.mxu0 0
        %757 = vmatprep.subr.bf16.mxu0 0
        %758 = vmatpush1.bf16.msra.mxu0 0
        %759 = vmatprep.subr.bf16.mxu0 0
        %760 = vmatpush1.bf16.msra.mxu0 0
        %761 = vmatprep.mubr.bf16.mxu0 0
        %762 = vmatmul.mubr.bf16.gmra.mrb[0].mxu0 %v682
        %v763 = vpop.f32.mrb[0].mxu0
        %v764 = vadd.f32 0.0, %v763
        %v765 = vpop.f32.mrb[0].mxu0
        %v766 = vadd.f32 0.0, %v765
        %v767 = vpop.f32.mrb[0].mxu0
        %v768 = vadd.f32 0.0, %v767
        %v769 = vpop.f32.mrb[0].mxu0
        %v770 = vadd.f32 0.0, %v769
        %771 = vmatprep.mubr.bf16.mxu0 0
        %772 = vmatmul.mubr.bf16.gmra.mrb[0].mxu0 %v685
        %v773 = vpop.f32.mrb[0].mxu0
        %v774 = vadd.f32 0.0, %v773
        %v775 = vpop.f32.mrb[0].mxu0
        %v776 = vadd.f32 0.0, %v775
        %v777 = vpop.f32.mrb[0].mxu0
        %v778 = vadd.f32 0.0, %v777
        %v779 = vpop.f32.mrb[0].mxu0
        %v780 = vadd.f32 0.0, %v779
        %781 = vmatprep.mubr.bf16.mxu0 0
        %782 = vmatmul.mubr.bf16.gmra.mrb[0].mxu0 %v688
        %v783 = vpop.f32.mrb[0].mxu0
        %v784 = vadd.f32 0.0, %v783
        %v785 = vpop.f32.mrb[0].mxu0
        %v786 = vadd.f32 0.0, %v785
        %v787 = vpop.f32.mrb[0].mxu0
        %v788 = vadd.f32 0.0, %v787
        %v789 = vpop.f32.mrb[0].mxu0
        %v790 = vadd.f32 0.0, %v789
        %791 = vmatprep.mubr.bf16.mxu0 0
        %792 = vmatmul.mubr.bf16.gmra.mrb[0].mxu0 %v691
        %v793 = vpop.f32.mrb[0].mxu0
        %v794 = vadd.f32 0.0, %v793
        %v795 = vpop.f32.mrb[0].mxu0
        %v796 = vadd.f32 0.0, %v795
        %v797 = vpop.f32.mrb[0].mxu0
        %v798 = vadd.f32 0.0, %v797
        %v799 = vpop.f32.mrb[0].mxu0
        %v800 = vadd.f32 0.0, %v799
        %801 = vmatprep.mubr.bf16.mxu0 0
        %802 = vmatmul.mubr.bf16.gmra.mrb[0].mxu0 %v694
        %v803 = vpop.f32.mrb[0].mxu0
        %v804 = vadd.f32 0.0, %v803
        %v805 = vpop.f32.mrb[0].mxu0
        %v806 = vadd.f32 0.0, %v805
        %v807 = vpop.f32.mrb[0].mxu0
        %v808 = vadd.f32 0.0, %v807
        %v809 = vpop.f32.mrb[0].mxu0
        %v810 = vadd.f32 0.0, %v809
        %811 = vmatprep.mubr.bf16.mxu0 0
        %812 = vmatmul.mubr.bf16.gmra.mrb[0].mxu0 %v697
        %v813 = vpop.f32.mrb[0].mxu0
        %v814 = vadd.f32 0.0, %v813
        %v815 = vpop.f32.mrb[0].mxu0
        %v816 = vadd.f32 0.0, %v815
        %v817 = vpop.f32.mrb[0].mxu0
        %v818 = vadd.f32 0.0, %v817
        %v819 = vpop.f32.mrb[0].mxu0
        %v820 = vadd.f32 0.0, %v819
        %821 = vmatprep.mubr.bf16.mxu0 0
        %822 = vmatmul.mubr.bf16.gmra.mrb[0].mxu0 %v700
        %v823 = vpop.f32.mrb[0].mxu0
        %v824 = vadd.f32 0.0, %v823
        %v825 = vpop.f32.mrb[0].mxu0
        %v826 = vadd.f32 0.0, %v825
        %v827 = vpop.f32.mrb[0].mxu0
        %v828 = vadd.f32 0.0, %v827
        %v829 = vpop.f32.mrb[0].mxu0
        %v830 = vadd.f32 0.0, %v829
        %831 = vmatprep.mubr.bf16.mxu0 0
        %832 = vmatmul.mubr.bf16.gmra.mrb[0].mxu0 %v703
        %v833 = vpop.f32.mrb[0].mxu0
        %v834 = vadd.f32 0.0, %v833
        %v835 = vpop.f32.mrb[0].mxu0
        %v836 = vadd.f32 0.0, %v835
        %v837 = vpop.f32.mrb[0].mxu0
        %v838 = vadd.f32 0.0, %v837
        %v839 = vpop.f32.mrb[0].mxu0
        %v840 = vadd.f32 0.0, %v839
        %841 = vmatprep.mubr.bf16.mxu0 0
        %842 = vmatmul.mubr.bf16.gmra.mrb[0].mxu0 %v706
        %v843 = vpop.f32.mrb[0].mxu0
        %v844 = vadd.f32 0.0, %v843
        %v845 = vpop.f32.mrb[0].mxu0
        %v846 = vadd.f32 0.0, %v845
        %v847 = vpop.f32.mrb[0].mxu0
        %v848 = vadd.f32 0.0, %v847
        %v849 = vpop.f32.mrb[0].mxu0
        %v850 = vadd.f32 0.0, %v849
        %851 = vmatprep.mubr.bf16.mxu0 0
        %852 = vmatmul.mubr.bf16.gmra.mrb[0].mxu0 %v709
        %v853 = vpop.f32.mrb[0].mxu0
        %v854 = vadd.f32 0.0, %v853
        %v855 = vpop.f32.mrb[0].mxu0
        %v856 = vadd.f32 0.0, %v855
        %v857 = vpop.f32.mrb[0].mxu0
        %v858 = vadd.f32 0.0, %v857
        %v859 = vpop.f32.mrb[0].mxu0
        %v860 = vadd.f32 0.0, %v859
        %861 = vmatprep.mubr.bf16.mxu0 0
        %862 = vmatmul.mubr.bf16.gmra.mrb[0].mxu0 %v712
        %v863 = vpop.f32.mrb[0].mxu0
        %v864 = vadd.f32 0.0, %v863
        %v865 = vpop.f32.mrb[0].mxu0
        %v866 = vadd.f32 0.0, %v865
        %v867 = vpop.f32.mrb[0].mxu0
        %v868 = vadd.f32 0.0, %v867
        %v869 = vpop.f32.mrb[0].mxu0
        %v870 = vadd.f32 0.0, %v869
        %871 = vmatprep.mubr.bf16.mxu0 0
        %872 = vmatmul.mubr.bf16.gmra.mrb[0].mxu0 %v715
        %v873 = vpop.f32.mrb[0].mxu0
        %v874 = vadd.f32 0.0, %v873
        %v875 = vpop.f32.mrb[0].mxu0
        %v876 = vadd.f32 0.0, %v875
        %v877 = vpop.f32.mrb[0].mxu0
        %v878 = vadd.f32 0.0, %v877
        %v879 = vpop.f32.mrb[0].mxu0
        %v880 = vadd.f32 0.0, %v879
        %881 = vmatprep.mubr.bf16.mxu0 0
        %882 = vmatmul.mubr.bf16.gmra.mrb[0].mxu0 %v718
        %v883 = vpop.f32.mrb[0].mxu0
        %v884 = vadd.f32 0.0, %v883
        %v885 = vpop.f32.mrb[0].mxu0
        %v886 = vadd.f32 0.0, %v885
        %v887 = vpop.f32.mrb[0].mxu0
        %v888 = vadd.f32 0.0, %v887
        %v889 = vpop.f32.mrb[0].mxu0
        %v890 = vadd.f32 0.0, %v889
        %891 = vmatprep.mubr.bf16.mxu0 0
        %892 = vmatmul.mubr.bf16.gmra.mrb[0].mxu0 %v721
        %v893 = vpop.f32.mrb[0].mxu0
        %v894 = vadd.f32 0.0, %v893
        %v895 = vpop.f32.mrb[0].mxu0
        %v896 = vadd.f32 0.0, %v895
        %v897 = vpop.f32.mrb[0].mxu0
        %v898 = vadd.f32 0.0, %v897
        %v899 = vpop.f32.mrb[0].mxu0
        %v900 = vadd.f32 0.0, %v899
        %901 = vmatprep.mubr.bf16.mxu0 0
        %902 = vmatmul.mubr.bf16.gmra.mrb[0].mxu0 %v724
        %v903 = vpop.f32.mrb[0].mxu0
        %v904 = vadd.f32 0.0, %v903
        %v905 = vpop.f32.mrb[0].mxu0
        %v906 = vadd.f32 0.0, %v905
        %v907 = vpop.f32.mrb[0].mxu0
        %v908 = vadd.f32 0.0, %v907
        %v909 = vpop.f32.mrb[0].mxu0
        %v910 = vadd.f32 0.0, %v909
        %911 = vmatprep.mubr.bf16.mxu0 0
        %912 = vmatmul.mubr.bf16.gmra.mrb[0].mxu0 %v727
        %v913 = vpop.f32.mrb[0].mxu0
        %v914 = vadd.f32 0.0, %v913
        %v915 = vpop.f32.mrb[0].mxu0
        %v916 = vadd.f32 0.0, %v915
        %v917 = vpop.f32.mrb[0].mxu0
        %v918 = vadd.f32 0.0, %v917
        %v919 = vpop.f32.mrb[0].mxu0
        %v920 = vadd.f32 0.0, %v919
        %921 = vdwg.mxu0
        %v934 = vunpack.c.l.b16 %v547
        %v935 = vunpack.c.h.b16 %v547
        %v936 = vunpack.c.l.b16 %v548
        %v937 = vunpack.c.h.b16 %v548
        %v938 = vunpack.c.l.b16 %v549
        %v939 = vunpack.c.h.b16 %v549
        %v940 = vunpack.c.l.b16 %v550
        %v941 = vunpack.c.h.b16 %v550
        %v942 = vunpack.c.l.b16 %v551
        %v943 = vunpack.c.h.b16 %v551
        %v944 = vunpack.c.l.b16 %v552
        %v945 = vunpack.c.h.b16 %v552
        %v946 = vunpack.c.l.b16 %v553
        %v947 = vunpack.c.h.b16 %v553
        %v948 = vunpack.c.l.b16 %v554
        %v949 = vunpack.c.h.b16 %v554
        %v950 = vunpack.c.l.b16 %v555
        %v951 = vunpack.c.h.b16 %v555
        %v952 = vunpack.c.l.b16 %v556
        %v953 = vunpack.c.h.b16 %v556
        %v954 = vunpack.c.l.b16 %v557
        %v955 = vunpack.c.h.b16 %v557
        %v956 = vunpack.c.l.b16 %v558
        %v957 = vunpack.c.h.b16 %v558
        %v958 = vpack.c.b16 %v936, %v934
        %v959 = vpack.c.b16 %v937, %v935
        %v960 = vpack.c.b16 %v940, %v938
        %v961 = vpack.c.b16 %v941, %v939
        %v962 = vpack.c.b16 %v944, %v942
        %v963 = vpack.c.b16 %v945, %v943
        %v964 = vpack.c.b16 %v948, %v946
        %v965 = vpack.c.b16 %v949, %v947
        %v966 = vpack.c.b16 %v952, %v950
        %v967 = vpack.c.b16 %v953, %v951
        %v968 = vpack.c.b16 %v956, %v954
        %v969 = vpack.c.b16 %v957, %v955
        %v983 = vsel %vm680, %v531, 0
        %v986 = vsel %vm680, %v532, 0
        %v989 = vsel %vm680, %v533, 0
        %v992 = vsel %vm680, %v534, 0
        %v995 = vsel %vm680, %v535, 0
        %v998 = vsel %vm680, %v536, 0
        %v1001 = vsel %vm680, %v537, 0
        %v1004 = vsel %vm680, %v538, 0
        %v1007 = vsel %vm680, %v539, 0
        %v1010 = vsel %vm680, %v540, 0
        %v1013 = vsel %vm680, %v541, 0
        %v1016 = vsel %vm680, %v542, 0
        %v1019 = vsel %vm680, %v543, 0
        %v1022 = vsel %vm680, %v544, 0
        %v1025 = vsel %vm680, %v545, 0
        %v1028 = vsel %vm680, %v546, 0
        %1030 = vmatprep.subr.bf16.mxu0 %v959
        %1031 = vmatpush1.bf16.msra.mxu0 %v958
        %1032 = vmatprep.subr.bf16.mxu0 %v961
        %1033 = vmatpush1.bf16.msra.mxu0 %v960
        %1034 = vmatprep.subr.bf16.mxu0 %v963
        %1035 = vmatpush1.bf16.msra.mxu0 %v962
        %1036 = vmatprep.subr.bf16.mxu0 %v965
        %1037 = vmatpush1.bf16.msra.mxu0 %v964
        %1038 = vmatprep.subr.bf16.mxu0 %v967
        %1039 = vmatpush1.bf16.msra.mxu0 %v966
        %1040 = vmatprep.subr.bf16.mxu0 %v969
        %1041 = vmatpush1.bf16.msra.mxu0 %v968
        %1042 = vmatprep.subr.bf16.mxu0 0
        %1043 = vmatpush1.bf16.msra.mxu0 0
        %1044 = vmatprep.subr.bf16.mxu0 0
        %1045 = vmatpush1.bf16.msra.mxu0 0
        %1046 = vmatprep.subr.bf16.mxu0 0
        %1047 = vmatpush1.bf16.msra.mxu0 0
        %1048 = vmatprep.subr.bf16.mxu0 0
        %1049 = vmatpush1.bf16.msra.mxu0 0
        %1050 = vmatprep.subr.bf16.mxu0 0
        %1051 = vmatpush1.bf16.msra.mxu0 0
        %1052 = vmatprep.subr.bf16.mxu0 0
        %1053 = vmatpush1.bf16.msra.mxu0 0
        %1054 = vmatprep.subr.bf16.mxu0 0
        %1055 = vmatpush1.bf16.msra.mxu0 0
        %1056 = vmatprep.subr.bf16.mxu0 0
        %1057 = vmatpush1.bf16.msra.mxu0 0
        %1058 = vmatprep.subr.bf16.mxu0 0
        %1059 = vmatpush1.bf16.msra.mxu0 0
        %1060 = vmatprep.subr.bf16.mxu0 0
        %1061 = vmatpush1.bf16.msra.mxu0 0
        %1062 = vmatprep.mubr.bf16.mxu0 0
        %1063 = vmatmul.mubr.bf16.gmra.mrb[0].mxu0 %v983
        %v1064 = vpop.f32.mrb[0].mxu0
        %v1065 = vadd.f32 %v764, %v1064
        %v1066 = vpop.f32.mrb[0].mxu0
        %v1067 = vadd.f32 %v766, %v1066
        %v1068 = vpop.f32.mrb[0].mxu0
        %v1069 = vadd.f32 %v768, %v1068
        %v1070 = vpop.f32.mrb[0].mxu0
        %v1071 = vadd.f32 %v770, %v1070
        %1072 = vmatprep.mubr.bf16.mxu0 0
        %1073 = vmatmul.mubr.bf16.gmra.mrb[0].mxu0 %v986
        %v1074 = vpop.f32.mrb[0].mxu0
        %v1075 = vadd.f32 %v774, %v1074
        %v1076 = vpop.f32.mrb[0].mxu0
        %v1077 = vadd.f32 %v776, %v1076
        %v1078 = vpop.f32.mrb[0].mxu0
        %v1079 = vadd.f32 %v778, %v1078
        %v1080 = vpop.f32.mrb[0].mxu0
        %v1081 = vadd.f32 %v780, %v1080
        %1082 = vmatprep.mubr.bf16.mxu0 0
        %1083 = vmatmul.mubr.bf16.gmra.mrb[0].mxu0 %v989
        %v1084 = vpop.f32.mrb[0].mxu0
        %v1085 = vadd.f32 %v784, %v1084
        %v1086 = vpop.f32.mrb[0].mxu0
        %v1087 = vadd.f32 %v786, %v1086
        %v1088 = vpop.f32.mrb[0].mxu0
        %v1089 = vadd.f32 %v788, %v1088
        %v1090 = vpop.f32.mrb[0].mxu0
        %v1091 = vadd.f32 %v790, %v1090
        %1092 = vmatprep.mubr.bf16.mxu0 0
        %1093 = vmatmul.mubr.bf16.gmra.mrb[0].mxu0 %v992
        %v1094 = vpop.f32.mrb[0].mxu0
        %v1095 = vadd.f32 %v794, %v1094
        %v1096 = vpop.f32.mrb[0].mxu0
        %v1097 = vadd.f32 %v796, %v1096
        %v1098 = vpop.f32.mrb[0].mxu0
        %v1099 = vadd.f32 %v798, %v1098
        %v1100 = vpop.f32.mrb[0].mxu0
        %v1101 = vadd.f32 %v800, %v1100
        %1102 = vmatprep.mubr.bf16.mxu0 0
        %1103 = vmatmul.mubr.bf16.gmra.mrb[0].mxu0 %v995
        %v1104 = vpop.f32.mrb[0].mxu0
        %v1105 = vadd.f32 %v804, %v1104
        %v1106 = vpop.f32.mrb[0].mxu0
        %v1107 = vadd.f32 %v806, %v1106
        %v1108 = vpop.f32.mrb[0].mxu0
        %v1109 = vadd.f32 %v808, %v1108
        %v1110 = vpop.f32.mrb[0].mxu0
        %v1111 = vadd.f32 %v810, %v1110
        %1112 = vmatprep.mubr.bf16.mxu0 0
        %1113 = vmatmul.mubr.bf16.gmra.mrb[0].mxu0 %v998
        %v1114 = vpop.f32.mrb[0].mxu0
        %v1115 = vadd.f32 %v814, %v1114
        %v1116 = vpop.f32.mrb[0].mxu0
        %v1117 = vadd.f32 %v816, %v1116
        %v1118 = vpop.f32.mrb[0].mxu0
        %v1119 = vadd.f32 %v818, %v1118
        %v1120 = vpop.f32.mrb[0].mxu0
        %v1121 = vadd.f32 %v820, %v1120
        %1122 = vmatprep.mubr.bf16.mxu0 0
        %1123 = vmatmul.mubr.bf16.gmra.mrb[0].mxu0 %v1001
        %v1124 = vpop.f32.mrb[0].mxu0
        %v1125 = vadd.f32 %v824, %v1124
        %v1126 = vpop.f32.mrb[0].mxu0
        %v1127 = vadd.f32 %v826, %v1126
        %v1128 = vpop.f32.mrb[0].mxu0
        %v1129 = vadd.f32 %v828, %v1128
        %v1130 = vpop.f32.mrb[0].mxu0
        %v1131 = vadd.f32 %v830, %v1130
        %1132 = vmatprep.mubr.bf16.mxu0 0
        %1133 = vmatmul.mubr.bf16.gmra.mrb[0].mxu0 %v1004
        %v1134 = vpop.f32.mrb[0].mxu0
        %v1135 = vadd.f32 %v834, %v1134
        %v1136 = vpop.f32.mrb[0].mxu0
        %v1137 = vadd.f32 %v836, %v1136
        %v1138 = vpop.f32.mrb[0].mxu0
        %v1139 = vadd.f32 %v838, %v1138
        %v1140 = vpop.f32.mrb[0].mxu0
        %v1141 = vadd.f32 %v840, %v1140
        %1142 = vmatprep.mubr.bf16.mxu0 0
        %1143 = vmatmul.mubr.bf16.gmra.mrb[0].mxu0 %v1007
        %v1144 = vpop.f32.mrb[0].mxu0
        %v1145 = vadd.f32 %v844, %v1144
        %v1146 = vpop.f32.mrb[0].mxu0
        %v1147 = vadd.f32 %v846, %v1146
        %v1148 = vpop.f32.mrb[0].mxu0
        %v1149 = vadd.f32 %v848, %v1148
        %v1150 = vpop.f32.mrb[0].mxu0
        %v1151 = vadd.f32 %v850, %v1150
        %1152 = vmatprep.mubr.bf16.mxu0 0
        %1153 = vmatmul.mubr.bf16.gmra.mrb[0].mxu0 %v1010
        %v1154 = vpop.f32.mrb[0].mxu0
        %v1155 = vadd.f32 %v854, %v1154
        %v1156 = vpop.f32.mrb[0].mxu0
        %v1157 = vadd.f32 %v856, %v1156
        %v1158 = vpop.f32.mrb[0].mxu0
        %v1159 = vadd.f32 %v858, %v1158
        %v1160 = vpop.f32.mrb[0].mxu0
        %v1161 = vadd.f32 %v860, %v1160
        %1162 = vmatprep.mubr.bf16.mxu0 0
        %1163 = vmatmul.mubr.bf16.gmra.mrb[0].mxu0 %v1013
        %v1164 = vpop.f32.mrb[0].mxu0
        %v1165 = vadd.f32 %v864, %v1164
        %v1166 = vpop.f32.mrb[0].mxu0
        %v1167 = vadd.f32 %v866, %v1166
        %v1168 = vpop.f32.mrb[0].mxu0
        %v1169 = vadd.f32 %v868, %v1168
        %v1170 = vpop.f32.mrb[0].mxu0
        %v1171 = vadd.f32 %v870, %v1170
        %1172 = vmatprep.mubr.bf16.mxu0 0
        %1173 = vmatmul.mubr.bf16.gmra.mrb[0].mxu0 %v1016
        %v1174 = vpop.f32.mrb[0].mxu0
        %v1175 = vadd.f32 %v874, %v1174
        %v1176 = vpop.f32.mrb[0].mxu0
        %v1177 = vadd.f32 %v876, %v1176
        %v1178 = vpop.f32.mrb[0].mxu0
        %v1179 = vadd.f32 %v878, %v1178
        %v1180 = vpop.f32.mrb[0].mxu0
        %v1181 = vadd.f32 %v880, %v1180
        %1182 = vmatprep.mubr.bf16.mxu0 0
        %1183 = vmatmul.mubr.bf16.gmra.mrb[0].mxu0 %v1019
        %v1184 = vpop.f32.mrb[0].mxu0
        %v1185 = vadd.f32 %v884, %v1184
        %v1186 = vpop.f32.mrb[0].mxu0
        %v1187 = vadd.f32 %v886, %v1186
        %v1188 = vpop.f32.mrb[0].mxu0
        %v1189 = vadd.f32 %v888, %v1188
        %v1190 = vpop.f32.mrb[0].mxu0
        %v1191 = vadd.f32 %v890, %v1190
        %1192 = vmatprep.mubr.bf16.mxu0 0
        %1193 = vmatmul.mubr.bf16.gmra.mrb[0].mxu0 %v1022
        %v1194 = vpop.f32.mrb[0].mxu0
        %v1195 = vadd.f32 %v894, %v1194
        %v1196 = vpop.f32.mrb[0].mxu0
        %v1197 = vadd.f32 %v896, %v1196
        %v1198 = vpop.f32.mrb[0].mxu0
        %v1199 = vadd.f32 %v898, %v1198
        %v1200 = vpop.f32.mrb[0].mxu0
        %v1201 = vadd.f32 %v900, %v1200
        %1202 = vmatprep.mubr.bf16.mxu0 0
        %1203 = vmatmul.mubr.bf16.gmra.mrb[0].mxu0 %v1025
        %v1204 = vpop.f32.mrb[0].mxu0
        %v1205 = vadd.f32 %v904, %v1204
        %v1206 = vpop.f32.mrb[0].mxu0
        %v1207 = vadd.f32 %v906, %v1206
        %v1208 = vpop.f32.mrb[0].mxu0
        %v1209 = vadd.f32 %v908, %v1208
        %v1210 = vpop.f32.mrb[0].mxu0
        %v1211 = vadd.f32 %v910, %v1210
        %1212 = vmatprep.mubr.bf16.mxu0 0
        %1213 = vmatmul.mubr.bf16.gmra.mrb[0].mxu0 %v1028
        %v1214 = vpop.f32.mrb[0].mxu0
        %v1215 = vadd.f32 %v914, %v1214
        %v1216 = vpop.f32.mrb[0].mxu0
        %v1217 = vadd.f32 %v916, %v1216
        %v1218 = vpop.f32.mrb[0].mxu0
        %v1219 = vadd.f32 %v918, %v1218
        %v1220 = vpop.f32.mrb[0].mxu0
        %v1221 = vadd.f32 %v920, %v1220
        %1222 = vdwg.mxu0
        %v1223 = vld [vmem:[%s496 + $0x2] sm:$0xff]
        %v1224 = vld [vmem:[%s496 + $0xa] sm:$0xff]
        %v1225 = vld [vmem:[%s496 + $0x12] sm:$0xff]
        %v1226 = vld [vmem:[%s496 + $0x1a] sm:$0xff]
        %v1227 = vld [vmem:[%s496 + $0x2a] sm:$0xff]
        %v1228 = vld [vmem:[%s496 + $0x32] sm:$0xff]
        %v1229 = vld [vmem:[%s496 + $0x3a] sm:$0xff]
        %v1230 = vld [vmem:[%s496 + $0x42] sm:$0xff]
        %v1231 = vld [vmem:[%s496 + $0x52] sm:$0xff]
        %v1232 = vld [vmem:[%s496 + $0x5a] sm:$0xff]
        %v1233 = vld [vmem:[%s496 + $0x62] sm:$0xff]
        %v1234 = vld [vmem:[%s496 + $0x6a] sm:$0xff]
        %v1235 = vld [vmem:[%s496 + $0x7a] sm:$0xff]
        %v1236 = vld [vmem:[%s496 + $0x82] sm:$0xff]
        %v1237 = vld [vmem:[%s496 + $0x8a] sm:$0xff]
        %v1238 = vld [vmem:[%s496 + $0x92] sm:$0xff]
        %v1239 = vld [vmem:[%s496 + $0xa2] sm:$0xff]
        %v1240 = vld [vmem:[%s496 + $0xaa] sm:$0xff]
        %v1241 = vld [vmem:[%s496 + $0xb2] sm:$0xff]
        %v1242 = vld [vmem:[%s496 + $0xba] sm:$0xff]
        %v1243 = vld [vmem:[%s496 + $0xca] sm:$0xff]
        %v1244 = vld [vmem:[%s496 + $0xd2] sm:$0xff]
        %v1245 = vld [vmem:[%s496 + $0xda] sm:$0xff]
        %v1246 = vld [vmem:[%s496 + $0xe2] sm:$0xff]
        %v1247 = vld [vmem:[%s496 + $0xf2] sm:$0xff]
        %v1248 = vld [vmem:[%s496 + $0xfa] sm:$0xff]
        %v1249 = vld [vmem:[%s496 + $0x102] sm:$0xff]
        %v1250 = vld [vmem:[%s496 + $0x10a] sm:$0xff]
        %v1251 = vld [vmem:[%s496 + $0x11a] sm:$0xff]
        %v1252 = vld [vmem:[%s496 + $0x122] sm:$0xff]
        %v1253 = vld [vmem:[%s496 + $0x12a] sm:$0xff]
        %v1254 = vld [vmem:[%s496 + $0x132] sm:$0xff]
        %v1255 = vpack.c.bf16 %v1224, %v1223
        %v1256 = vpack.c.bf16 %v1226, %v1225
        %v1257 = vpack.c.bf16 %v1228, %v1227
        %v1258 = vpack.c.bf16 %v1230, %v1229
        %v1259 = vpack.c.bf16 %v1232, %v1231
        %v1260 = vpack.c.bf16 %v1234, %v1233
        %v1261 = vpack.c.bf16 %v1236, %v1235
        %v1262 = vpack.c.bf16 %v1238, %v1237
        %v1263 = vpack.c.bf16 %v1240, %v1239
        %v1264 = vpack.c.bf16 %v1242, %v1241
        %v1265 = vpack.c.bf16 %v1244, %v1243
        %v1266 = vpack.c.bf16 %v1246, %v1245
        %v1267 = vpack.c.bf16 %v1248, %v1247
        %v1268 = vpack.c.bf16 %v1250, %v1249
        %v1269 = vpack.c.bf16 %v1252, %v1251
        %v1270 = vpack.c.bf16 %v1254, %v1253
        %s1271 = scalar_lea.vmem %s1, 192
        %v1272 = vld [vmem:[%s1271] sm:$0xff]
        %v1273 = vld [vmem:[%s1271 + $0x8] sm:$0xff]
        %v1274 = vld [vmem:[%s1271 + $0x10] sm:$0xff]
        %v1275 = vld [vmem:[%s1271 + $0x18] sm:$0xff]
        %v1276 = vld [vmem:[%s1271 + $0x20] sm:$0xff]
        %v1277 = vld [vmem:[%s1271 + $0x28] sm:$0xff]
        %v1278 = vld [vmem:[%s1271 + $0x30] sm:$0xff]
        %v1279 = vld [vmem:[%s1271 + $0x38] sm:$0xff]
        %v1280 = vld [vmem:[%s1271 + $0x40] sm:$0xff]
        %v1281 = vld [vmem:[%s1271 + $0x48] sm:$0xff]
        %v1282 = vld [vmem:[%s1271 + $0x50] sm:$0xff]
        %v1283 = vld [vmem:[%s1271 + $0x58] sm:$0xff]
        %v1296 = vunpack.c.l.b16 %v1272
        %v1297 = vunpack.c.h.b16 %v1272
        %v1298 = vunpack.c.l.b16 %v1273
        %v1299 = vunpack.c.h.b16 %v1273
        %v1300 = vunpack.c.l.b16 %v1274
        %v1301 = vunpack.c.h.b16 %v1274
        %v1302 = vunpack.c.l.b16 %v1275
        %v1303 = vunpack.c.h.b16 %v1275
        %v1304 = vunpack.c.l.b16 %v1276
        %v1305 = vunpack.c.h.b16 %v1276
        %v1306 = vunpack.c.l.b16 %v1277
        %v1307 = vunpack.c.h.b16 %v1277
        %v1308 = vunpack.c.l.b16 %v1278
        %v1309 = vunpack.c.h.b16 %v1278
        %v1310 = vunpack.c.l.b16 %v1279
        %v1311 = vunpack.c.h.b16 %v1279
        %v1312 = vunpack.c.l.b16 %v1280
        %v1313 = vunpack.c.h.b16 %v1280
        %v1314 = vunpack.c.l.b16 %v1281
        %v1315 = vunpack.c.h.b16 %v1281
        %v1316 = vunpack.c.l.b16 %v1282
        %v1317 = vunpack.c.h.b16 %v1282
        %v1318 = vunpack.c.l.b16 %v1283
        %v1319 = vunpack.c.h.b16 %v1283
        %v1320 = vpack.c.b16 %v1298, %v1296
        %v1321 = vpack.c.b16 %v1299, %v1297
        %v1322 = vpack.c.b16 %v1302, %v1300
        %v1323 = vpack.c.b16 %v1303, %v1301
        %v1324 = vpack.c.b16 %v1306, %v1304
        %v1325 = vpack.c.b16 %v1307, %v1305
        %v1326 = vpack.c.b16 %v1310, %v1308
        %v1327 = vpack.c.b16 %v1311, %v1309
        %v1328 = vpack.c.b16 %v1314, %v1312
        %v1329 = vpack.c.b16 %v1315, %v1313
        %v1330 = vpack.c.b16 %v1318, %v1316
        %v1331 = vpack.c.b16 %v1319, %v1317
        %v1345 = vsel %vm680, %v1255, 0
        %v1348 = vsel %vm680, %v1256, 0
        %v1351 = vsel %vm680, %v1257, 0
        %v1354 = vsel %vm680, %v1258, 0
        %v1357 = vsel %vm680, %v1259, 0
        %v1360 = vsel %vm680, %v1260, 0
        %v1363 = vsel %vm680, %v1261, 0
        %v1366 = vsel %vm680, %v1262, 0
        %v1369 = vsel %vm680, %v1263, 0
        %v1372 = vsel %vm680, %v1264, 0
        %v1375 = vsel %vm680, %v1265, 0
        %v1378 = vsel %vm680, %v1266, 0
        %v1381 = vsel %vm680, %v1267, 0
        %v1384 = vsel %vm680, %v1268, 0
        %v1387 = vsel %vm680, %v1269, 0
        %v1390 = vsel %vm680, %v1270, 0
        %1392 = vmatprep.subr.bf16.mxu0 %v1321
        %1393 = vmatpush1.bf16.msra.mxu0 %v1320
        %1394 = vmatprep.subr.bf16.mxu0 %v1323
        %1395 = vmatpush1.bf16.msra.mxu0 %v1322
        %1396 = vmatprep.subr.bf16.mxu0 %v1325
        %1397 = vmatpush1.bf16.msra.mxu0 %v1324
        %1398 = vmatprep.subr.bf16.mxu0 %v1327
        %1399 = vmatpush1.bf16.msra.mxu0 %v1326
        %1400 = vmatprep.subr.bf16.mxu0 %v1329
        %1401 = vmatpush1.bf16.msra.mxu0 %v1328
        %1402 = vmatprep.subr.bf16.mxu0 %v1331
        %1403 = vmatpush1.bf16.msra.mxu0 %v1330
        %1404 = vmatprep.subr.bf16.mxu0 0
        %1405 = vmatpush1.bf16.msra.mxu0 0
        %1406 = vmatprep.subr.bf16.mxu0 0
        %1407 = vmatpush1.bf16.msra.mxu0 0
        %1408 = vmatprep.subr.bf16.mxu0 0
        %1409 = vmatpush1.bf16.msra.mxu0 0
        %1410 = vmatprep.subr.bf16.mxu0 0
        %1411 = vmatpush1.bf16.msra.mxu0 0
        %1412 = vmatprep.subr.bf16.mxu0 0
        %1413 = vmatpush1.bf16.msra.mxu0 0
        %1414 = vmatprep.subr.bf16.mxu0 0
        %1415 = vmatpush1.bf16.msra.mxu0 0
        %1416 = vmatprep.subr.bf16.mxu0 0
        %1417 = vmatpush1.bf16.msra.mxu0 0
        %1418 = vmatprep.subr.bf16.mxu0 0
        %1419 = vmatpush1.bf16.msra.mxu0 0
        %1420 = vmatprep.subr.bf16.mxu0 0
        %1421 = vmatpush1.bf16.msra.mxu0 0
        %1422 = vmatprep.subr.bf16.mxu0 0
        %1423 = vmatpush1.bf16.msra.mxu0 0
        %1424 = vmatprep.mubr.bf16.mxu0 0
        %1425 = vmatmul.mubr.bf16.gmra.mrb[0].mxu0 %v1345
        %v1426 = vpop.f32.mrb[0].mxu0
        %v1427 = vadd.f32 0.0, %v1426
        %v1428 = vpop.f32.mrb[0].mxu0
        %v1429 = vadd.f32 0.0, %v1428
        %v1430 = vpop.f32.mrb[0].mxu0
        %v1431 = vadd.f32 0.0, %v1430
        %v1432 = vpop.f32.mrb[0].mxu0
        %v1433 = vadd.f32 0.0, %v1432
        %1434 = vmatprep.mubr.bf16.mxu0 0
        %1435 = vmatmul.mubr.bf16.gmra.mrb[0].mxu0 %v1348
        %v1436 = vpop.f32.mrb[0].mxu0
        %v1437 = vadd.f32 0.0, %v1436
        %v1438 = vpop.f32.mrb[0].mxu0
        %v1439 = vadd.f32 0.0, %v1438
        %v1440 = vpop.f32.mrb[0].mxu0
        %v1441 = vadd.f32 0.0, %v1440
        %v1442 = vpop.f32.mrb[0].mxu0
        %v1443 = vadd.f32 0.0, %v1442
        %1444 = vmatprep.mubr.bf16.mxu0 0
        %1445 = vmatmul.mubr.bf16.gmra.mrb[0].mxu0 %v1351
        %v1446 = vpop.f32.mrb[0].mxu0
        %v1447 = vadd.f32 0.0, %v1446
        %v1448 = vpop.f32.mrb[0].mxu0
        %v1449 = vadd.f32 0.0, %v1448
        %v1450 = vpop.f32.mrb[0].mxu0
        %v1451 = vadd.f32 0.0, %v1450
        %v1452 = vpop.f32.mrb[0].mxu0
        %v1453 = vadd.f32 0.0, %v1452
        %1454 = vmatprep.mubr.bf16.mxu0 0
        %1455 = vmatmul.mubr.bf16.gmra.mrb[0].mxu0 %v1354
        %v1456 = vpop.f32.mrb[0].mxu0
        %v1457 = vadd.f32 0.0, %v1456
        %v1458 = vpop.f32.mrb[0].mxu0
        %v1459 = vadd.f32 0.0, %v1458
        %v1460 = vpop.f32.mrb[0].mxu0
        %v1461 = vadd.f32 0.0, %v1460
        %v1462 = vpop.f32.mrb[0].mxu0
        %v1463 = vadd.f32 0.0, %v1462
        %1464 = vmatprep.mubr.bf16.mxu0 0
        %1465 = vmatmul.mubr.bf16.gmra.mrb[0].mxu0 %v1357
        %v1466 = vpop.f32.mrb[0].mxu0
        %v1467 = vadd.f32 0.0, %v1466
        %v1468 = vpop.f32.mrb[0].mxu0
        %v1469 = vadd.f32 0.0, %v1468
        %v1470 = vpop.f32.mrb[0].mxu0
        %v1471 = vadd.f32 0.0, %v1470
        %v1472 = vpop.f32.mrb[0].mxu0
        %v1473 = vadd.f32 0.0, %v1472
        %1474 = vmatprep.mubr.bf16.mxu0 0
        %1475 = vmatmul.mubr.bf16.gmra.mrb[0].mxu0 %v1360
        %v1476 = vpop.f32.mrb[0].mxu0
        %v1477 = vadd.f32 0.0, %v1476
        %v1478 = vpop.f32.mrb[0].mxu0
        %v1479 = vadd.f32 0.0, %v1478
        %v1480 = vpop.f32.mrb[0].mxu0
        %v1481 = vadd.f32 0.0, %v1480
        %v1482 = vpop.f32.mrb[0].mxu0
        %v1483 = vadd.f32 0.0, %v1482
        %1484 = vmatprep.mubr.bf16.mxu0 0
        %1485 = vmatmul.mubr.bf16.gmra.mrb[0].mxu0 %v1363
        %v1486 = vpop.f32.mrb[0].mxu0
        %v1487 = vadd.f32 0.0, %v1486
        %v1488 = vpop.f32.mrb[0].mxu0
        %v1489 = vadd.f32 0.0, %v1488
        %v1490 = vpop.f32.mrb[0].mxu0
        %v1491 = vadd.f32 0.0, %v1490
        %v1492 = vpop.f32.mrb[0].mxu0
        %v1493 = vadd.f32 0.0, %v1492
        %1494 = vmatprep.mubr.bf16.mxu0 0
        %1495 = vmatmul.mubr.bf16.gmra.mrb[0].mxu0 %v1366
        %v1496 = vpop.f32.mrb[0].mxu0
        %v1497 = vadd.f32 0.0, %v1496
        %v1498 = vpop.f32.mrb[0].mxu0
        %v1499 = vadd.f32 0.0, %v1498
        %v1500 = vpop.f32.mrb[0].mxu0
        %v1501 = vadd.f32 0.0, %v1500
        %v1502 = vpop.f32.mrb[0].mxu0
        %v1503 = vadd.f32 0.0, %v1502
        %1504 = vmatprep.mubr.bf16.mxu0 0
        %1505 = vmatmul.mubr.bf16.gmra.mrb[0].mxu0 %v1369
        %v1506 = vpop.f32.mrb[0].mxu0
        %v1507 = vadd.f32 0.0, %v1506
        %v1508 = vpop.f32.mrb[0].mxu0
        %v1509 = vadd.f32 0.0, %v1508
        %v1510 = vpop.f32.mrb[0].mxu0
        %v1511 = vadd.f32 0.0, %v1510
        %v1512 = vpop.f32.mrb[0].mxu0
        %v1513 = vadd.f32 0.0, %v1512
        %1514 = vmatprep.mubr.bf16.mxu0 0
        %1515 = vmatmul.mubr.bf16.gmra.mrb[0].mxu0 %v1372
        %v1516 = vpop.f32.mrb[0].mxu0
        %v1517 = vadd.f32 0.0, %v1516
        %v1518 = vpop.f32.mrb[0].mxu0
        %v1519 = vadd.f32 0.0, %v1518
        %v1520 = vpop.f32.mrb[0].mxu0
        %v1521 = vadd.f32 0.0, %v1520
        %v1522 = vpop.f32.mrb[0].mxu0
        %v1523 = vadd.f32 0.0, %v1522
        %1524 = vmatprep.mubr.bf16.mxu0 0
        %1525 = vmatmul.mubr.bf16.gmra.mrb[0].mxu0 %v1375
        %v1526 = vpop.f32.mrb[0].mxu0
        %v1527 = vadd.f32 0.0, %v1526
        %v1528 = vpop.f32.mrb[0].mxu0
        %v1529 = vadd.f32 0.0, %v1528
        %v1530 = vpop.f32.mrb[0].mxu0
        %v1531 = vadd.f32 0.0, %v1530
        %v1532 = vpop.f32.mrb[0].mxu0
        %v1533 = vadd.f32 0.0, %v1532
        %1534 = vmatprep.mubr.bf16.mxu0 0
        %1535 = vmatmul.mubr.bf16.gmra.mrb[0].mxu0 %v1378
        %v1536 = vpop.f32.mrb[0].mxu0
        %v1537 = vadd.f32 0.0, %v1536
        %v1538 = vpop.f32.mrb[0].mxu0
        %v1539 = vadd.f32 0.0, %v1538
        %v1540 = vpop.f32.mrb[0].mxu0
        %v1541 = vadd.f32 0.0, %v1540
        %v1542 = vpop.f32.mrb[0].mxu0
        %v1543 = vadd.f32 0.0, %v1542
        %1544 = vmatprep.mubr.bf16.mxu0 0
        %1545 = vmatmul.mubr.bf16.gmra.mrb[0].mxu0 %v1381
        %v1546 = vpop.f32.mrb[0].mxu0
        %v1547 = vadd.f32 0.0, %v1546
        %v1548 = vpop.f32.mrb[0].mxu0
        %v1549 = vadd.f32 0.0, %v1548
        %v1550 = vpop.f32.mrb[0].mxu0
        %v1551 = vadd.f32 0.0, %v1550
        %v1552 = vpop.f32.mrb[0].mxu0
        %v1553 = vadd.f32 0.0, %v1552
        %1554 = vmatprep.mubr.bf16.mxu0 0
        %1555 = vmatmul.mubr.bf16.gmra.mrb[0].mxu0 %v1384
        %v1556 = vpop.f32.mrb[0].mxu0
        %v1557 = vadd.f32 0.0, %v1556
        %v1558 = vpop.f32.mrb[0].mxu0
        %v1559 = vadd.f32 0.0, %v1558
        %v1560 = vpop.f32.mrb[0].mxu0
        %v1561 = vadd.f32 0.0, %v1560
        %v1562 = vpop.f32.mrb[0].mxu0
        %v1563 = vadd.f32 0.0, %v1562
        %1564 = vmatprep.mubr.bf16.mxu0 0
        %1565 = vmatmul.mubr.bf16.gmra.mrb[0].mxu0 %v1387
        %v1566 = vpop.f32.mrb[0].mxu0
        %v1567 = vadd.f32 0.0, %v1566
        %v1568 = vpop.f32.mrb[0].mxu0
        %v1569 = vadd.f32 0.0, %v1568
        %v1570 = vpop.f32.mrb[0].mxu0
        %v1571 = vadd.f32 0.0, %v1570
        %v1572 = vpop.f32.mrb[0].mxu0
        %v1573 = vadd.f32 0.0, %v1572
        %1574 = vmatprep.mubr.bf16.mxu0 0
        %1575 = vmatmul.mubr.bf16.gmra.mrb[0].mxu0 %v1390
        %v1576 = vpop.f32.mrb[0].mxu0
        %v1577 = vadd.f32 0.0, %v1576
        %v1578 = vpop.f32.mrb[0].mxu0
        %v1579 = vadd.f32 0.0, %v1578
        %v1580 = vpop.f32.mrb[0].mxu0
        %v1581 = vadd.f32 0.0, %v1580
        %v1582 = vpop.f32.mrb[0].mxu0
        %v1583 = vadd.f32 0.0, %v1582
        %1584 = vdwg.mxu0
        %v1585 = vadd.f32 %v1065, %v1427
        %v1586 = vadd.f32 %v1067, %v1429
        %v1587 = vadd.f32 %v1069, %v1431
        %v1588 = vadd.f32 %v1071, %v1433
        %v1589 = vadd.f32 %v1075, %v1437
        %v1590 = vadd.f32 %v1077, %v1439
        %v1591 = vadd.f32 %v1079, %v1441
        %v1592 = vadd.f32 %v1081, %v1443
        %v1593 = vadd.f32 %v1085, %v1447
        %v1594 = vadd.f32 %v1087, %v1449
        %v1595 = vadd.f32 %v1089, %v1451
        %v1596 = vadd.f32 %v1091, %v1453
        %v1597 = vadd.f32 %v1095, %v1457
        %v1598 = vadd.f32 %v1097, %v1459
        %v1599 = vadd.f32 %v1099, %v1461
        %v1600 = vadd.f32 %v1101, %v1463
        %v1601 = vadd.f32 %v1105, %v1467
        %v1602 = vadd.f32 %v1107, %v1469
        %v1603 = vadd.f32 %v1109, %v1471
        %v1604 = vadd.f32 %v1111, %v1473
        %v1605 = vadd.f32 %v1115, %v1477
        %v1606 = vadd.f32 %v1117, %v1479
        %v1607 = vadd.f32 %v1119, %v1481
        %v1608 = vadd.f32 %v1121, %v1483
        %v1609 = vadd.f32 %v1125, %v1487
        %v1610 = vadd.f32 %v1127, %v1489
        %v1611 = vadd.f32 %v1129, %v1491
        %v1612 = vadd.f32 %v1131, %v1493
        %v1613 = vadd.f32 %v1135, %v1497
        %v1614 = vadd.f32 %v1137, %v1499
        %v1615 = vadd.f32 %v1139, %v1501
        %v1616 = vadd.f32 %v1141, %v1503
        %v1617 = vadd.f32 %v1145, %v1507
        %v1618 = vadd.f32 %v1147, %v1509
        %v1619 = vadd.f32 %v1149, %v1511
        %v1620 = vadd.f32 %v1151, %v1513
        %v1621 = vadd.f32 %v1155, %v1517
        %v1622 = vadd.f32 %v1157, %v1519
        %v1623 = vadd.f32 %v1159, %v1521
        %v1624 = vadd.f32 %v1161, %v1523
        %v1625 = vadd.f32 %v1165, %v1527
        %v1626 = vadd.f32 %v1167, %v1529
        %v1627 = vadd.f32 %v1169, %v1531
        %v1628 = vadd.f32 %v1171, %v1533
        %v1629 = vadd.f32 %v1175, %v1537
        %v1630 = vadd.f32 %v1177, %v1539
        %v1631 = vadd.f32 %v1179, %v1541
        %v1632 = vadd.f32 %v1181, %v1543
        %v1633 = vadd.f32 %v1185, %v1547
        %v1634 = vadd.f32 %v1187, %v1549
        %v1635 = vadd.f32 %v1189, %v1551
        %v1636 = vadd.f32 %v1191, %v1553
        %v1637 = vadd.f32 %v1195, %v1557
        %v1638 = vadd.f32 %v1197, %v1559
        %v1639 = vadd.f32 %v1199, %v1561
        %v1640 = vadd.f32 %v1201, %v1563
        %v1641 = vadd.f32 %v1205, %v1567
        %v1642 = vadd.f32 %v1207, %v1569
        %v1643 = vadd.f32 %v1209, %v1571
        %v1644 = vadd.f32 %v1211, %v1573
        %v1645 = vadd.f32 %v1215, %v1577
        %v1646 = vadd.f32 %v1217, %v1579
        %v1647 = vadd.f32 %v1219, %v1581
        %v1648 = vadd.f32 %v1221, %v1583
        %v1649 = vld [vmem:[%s496 + $0x3] sm:$0xff]
        %v1650 = vld [vmem:[%s496 + $0xb] sm:$0xff]
        %v1651 = vld [vmem:[%s496 + $0x13] sm:$0xff]
        %v1652 = vld [vmem:[%s496 + $0x1b] sm:$0xff]
        %v1653 = vld [vmem:[%s496 + $0x2b] sm:$0xff]
        %v1654 = vld [vmem:[%s496 + $0x33] sm:$0xff]
        %v1655 = vld [vmem:[%s496 + $0x3b] sm:$0xff]
        %v1656 = vld [vmem:[%s496 + $0x43] sm:$0xff]
        %v1657 = vld [vmem:[%s496 + $0x53] sm:$0xff]
        %v1658 = vld [vmem:[%s496 + $0x5b] sm:$0xff]
        %v1659 = vld [vmem:[%s496 + $0x63] sm:$0xff]
        %v1660 = vld [vmem:[%s496 + $0x6b] sm:$0xff]
        %v1661 = vld [vmem:[%s496 + $0x7b] sm:$0xff]
        %v1662 = vld [vmem:[%s496 + $0x83] sm:$0xff]
        %v1663 = vld [vmem:[%s496 + $0x8b] sm:$0xff]
        %v1664 = vld [vmem:[%s496 + $0x93] sm:$0xff]
        %v1665 = vld [vmem:[%s496 + $0xa3] sm:$0xff]
        %v1666 = vld [vmem:[%s496 + $0xab] sm:$0xff]
        %v1667 = vld [vmem:[%s496 + $0xb3] sm:$0xff]
        %v1668 = vld [vmem:[%s496 + $0xbb] sm:$0xff]
        %v1669 = vld [vmem:[%s496 + $0xcb] sm:$0xff]
        %v1670 = vld [vmem:[%s496 + $0xd3] sm:$0xff]
        %v1671 = vld [vmem:[%s496 + $0xdb] sm:$0xff]
        %v1672 = vld [vmem:[%s496 + $0xe3] sm:$0xff]
        %v1673 = vld [vmem:[%s496 + $0xf3] sm:$0xff]
        %v1674 = vld [vmem:[%s496 + $0xfb] sm:$0xff]
        %v1675 = vld [vmem:[%s496 + $0x103] sm:$0xff]
        %v1676 = vld [vmem:[%s496 + $0x10b] sm:$0xff]
        %v1677 = vld [vmem:[%s496 + $0x11b] sm:$0xff]
        %v1678 = vld [vmem:[%s496 + $0x123] sm:$0xff]
        %v1679 = vld [vmem:[%s496 + $0x12b] sm:$0xff]
        %v1680 = vld [vmem:[%s496 + $0x133] sm:$0xff]
        %v1681 = vpack.c.bf16 %v1650, %v1649
        %v1682 = vpack.c.bf16 %v1652, %v1651
        %v1683 = vpack.c.bf16 %v1654, %v1653
        %v1684 = vpack.c.bf16 %v1656, %v1655
        %v1685 = vpack.c.bf16 %v1658, %v1657
        %v1686 = vpack.c.bf16 %v1660, %v1659
        %v1687 = vpack.c.bf16 %v1662, %v1661
        %v1688 = vpack.c.bf16 %v1664, %v1663
        %v1689 = vpack.c.bf16 %v1666, %v1665
        %v1690 = vpack.c.bf16 %v1668, %v1667
        %v1691 = vpack.c.bf16 %v1670, %v1669
        %v1692 = vpack.c.bf16 %v1672, %v1671
        %v1693 = vpack.c.bf16 %v1674, %v1673
        %v1694 = vpack.c.bf16 %v1676, %v1675
        %v1695 = vpack.c.bf16 %v1678, %v1677
        %v1696 = vpack.c.bf16 %v1680, %v1679
        %s1697 = scalar_lea.vmem %s1, 288
        %v1698 = vld [vmem:[%s1697] sm:$0xff]
        %v1699 = vld [vmem:[%s1697 + $0x8] sm:$0xff]
        %v1700 = vld [vmem:[%s1697 + $0x10] sm:$0xff]
        %v1701 = vld [vmem:[%s1697 + $0x18] sm:$0xff]
        %v1702 = vld [vmem:[%s1697 + $0x20] sm:$0xff]
        %v1703 = vld [vmem:[%s1697 + $0x28] sm:$0xff]
        %v1704 = vld [vmem:[%s1697 + $0x30] sm:$0xff]
        %v1705 = vld [vmem:[%s1697 + $0x38] sm:$0xff]
        %v1706 = vld [vmem:[%s1697 + $0x40] sm:$0xff]
        %v1707 = vld [vmem:[%s1697 + $0x48] sm:$0xff]
        %v1708 = vld [vmem:[%s1697 + $0x50] sm:$0xff]
        %v1709 = vld [vmem:[%s1697 + $0x58] sm:$0xff]
        %v1722 = vunpack.c.l.b16 %v1698
        %v1723 = vunpack.c.h.b16 %v1698
        %v1724 = vunpack.c.l.b16 %v1699
        %v1725 = vunpack.c.h.b16 %v1699
        %v1726 = vunpack.c.l.b16 %v1700
        %v1727 = vunpack.c.h.b16 %v1700
        %v1728 = vunpack.c.l.b16 %v1701
        %v1729 = vunpack.c.h.b16 %v1701
        %v1730 = vunpack.c.l.b16 %v1702
        %v1731 = vunpack.c.h.b16 %v1702
        %v1732 = vunpack.c.l.b16 %v1703
        %v1733 = vunpack.c.h.b16 %v1703
        %v1734 = vunpack.c.l.b16 %v1704
        %v1735 = vunpack.c.h.b16 %v1704
        %v1736 = vunpack.c.l.b16 %v1705
        %v1737 = vunpack.c.h.b16 %v1705
        %v1738 = vunpack.c.l.b16 %v1706
        %v1739 = vunpack.c.h.b16 %v1706
        %v1740 = vunpack.c.l.b16 %v1707
        %v1741 = vunpack.c.h.b16 %v1707
        %v1742 = vunpack.c.l.b16 %v1708
        %v1743 = vunpack.c.h.b16 %v1708
        %v1744 = vunpack.c.l.b16 %v1709
        %v1745 = vunpack.c.h.b16 %v1709
        %v1746 = vpack.c.b16 %v1724, %v1722
        %v1747 = vpack.c.b16 %v1725, %v1723
        %v1748 = vpack.c.b16 %v1728, %v1726
        %v1749 = vpack.c.b16 %v1729, %v1727
        %v1750 = vpack.c.b16 %v1732, %v1730
        %v1751 = vpack.c.b16 %v1733, %v1731
        %v1752 = vpack.c.b16 %v1736, %v1734
        %v1753 = vpack.c.b16 %v1737, %v1735
        %v1754 = vpack.c.b16 %v1740, %v1738
        %v1755 = vpack.c.b16 %v1741, %v1739
        %v1756 = vpack.c.b16 %v1744, %v1742
        %v1757 = vpack.c.b16 %v1745, %v1743
        %v1771 = vsel %vm680, %v1681, 0
        %v1774 = vsel %vm680, %v1682, 0
        %v1777 = vsel %vm680, %v1683, 0
        %v1780 = vsel %vm680, %v1684, 0
        %v1783 = vsel %vm680, %v1685, 0
        %v1786 = vsel %vm680, %v1686, 0
        %v1789 = vsel %vm680, %v1687, 0
        %v1792 = vsel %vm680, %v1688, 0
        %v1795 = vsel %vm680, %v1689, 0
        %v1798 = vsel %vm680, %v1690, 0
        %v1801 = vsel %vm680, %v1691, 0
        %v1804 = vsel %vm680, %v1692, 0
        %v1807 = vsel %vm680, %v1693, 0
        %v1810 = vsel %vm680, %v1694, 0
        %v1813 = vsel %vm680, %v1695, 0
        %v1816 = vsel %vm680, %v1696, 0
        %1818 = vmatprep.subr.bf16.mxu0 %v1747
        %1819 = vmatpush1.bf16.msra.mxu0 %v1746
        %1820 = vmatprep.subr.bf16.mxu0 %v1749
        %1821 = vmatpush1.bf16.msra.mxu0 %v1748
        %1822 = vmatprep.subr.bf16.mxu0 %v1751
        %1823 = vmatpush1.bf16.msra.mxu0 %v1750
        %1824 = vmatprep.subr.bf16.mxu0 %v1753
        %1825 = vmatpush1.bf16.msra.mxu0 %v1752
        %1826 = vmatprep.subr.bf16.mxu0 %v1755
        %1827 = vmatpush1.bf16.msra.mxu0 %v1754
        %1828 = vmatprep.subr.bf16.mxu0 %v1757
        %1829 = vmatpush1.bf16.msra.mxu0 %v1756
        %1830 = vmatprep.subr.bf16.mxu0 0
        %1831 = vmatpush1.bf16.msra.mxu0 0
        %1832 = vmatprep.subr.bf16.mxu0 0
        %1833 = vmatpush1.bf16.msra.mxu0 0
        %1834 = vmatprep.subr.bf16.mxu0 0
        %1835 = vmatpush1.bf16.msra.mxu0 0
        %1836 = vmatprep.subr.bf16.mxu0 0
        %1837 = vmatpush1.bf16.msra.mxu0 0
        %1838 = vmatprep.subr.bf16.mxu0 0
        %1839 = vmatpush1.bf16.msra.mxu0 0
        %1840 = vmatprep.subr.bf16.mxu0 0
        %1841 = vmatpush1.bf16.msra.mxu0 0
        %1842 = vmatprep.subr.bf16.mxu0 0
        %1843 = vmatpush1.bf16.msra.mxu0 0
        %1844 = vmatprep.subr.bf16.mxu0 0
        %1845 = vmatpush1.bf16.msra.mxu0 0
        %1846 = vmatprep.subr.bf16.mxu0 0
        %1847 = vmatpush1.bf16.msra.mxu0 0
        %1848 = vmatprep.subr.bf16.mxu0 0
        %1849 = vmatpush1.bf16.msra.mxu0 0
        %1850 = vmatprep.mubr.bf16.mxu0 0
        %1851 = vmatmul.mubr.bf16.gmra.mrb[0].mxu0 %v1771
        %v1852 = vpop.f32.mrb[0].mxu0
        %v1853 = vadd.f32 0.0, %v1852
        %v1854 = vpop.f32.mrb[0].mxu0
        %v1855 = vadd.f32 0.0, %v1854
        %v1856 = vpop.f32.mrb[0].mxu0
        %v1857 = vadd.f32 0.0, %v1856
        %v1858 = vpop.f32.mrb[0].mxu0
        %v1859 = vadd.f32 0.0, %v1858
        %1860 = vmatprep.mubr.bf16.mxu0 0
        %1861 = vmatmul.mubr.bf16.gmra.mrb[0].mxu0 %v1774
        %v1862 = vpop.f32.mrb[0].mxu0
        %v1863 = vadd.f32 0.0, %v1862
        %v1864 = vpop.f32.mrb[0].mxu0
        %v1865 = vadd.f32 0.0, %v1864
        %v1866 = vpop.f32.mrb[0].mxu0
        %v1867 = vadd.f32 0.0, %v1866
        %v1868 = vpop.f32.mrb[0].mxu0
        %v1869 = vadd.f32 0.0, %v1868
        %1870 = vmatprep.mubr.bf16.mxu0 0
        %1871 = vmatmul.mubr.bf16.gmra.mrb[0].mxu0 %v1777
        %v1872 = vpop.f32.mrb[0].mxu0
        %v1873 = vadd.f32 0.0, %v1872
        %v1874 = vpop.f32.mrb[0].mxu0
        %v1875 = vadd.f32 0.0, %v1874
        %v1876 = vpop.f32.mrb[0].mxu0
        %v1877 = vadd.f32 0.0, %v1876
        %v1878 = vpop.f32.mrb[0].mxu0
        %v1879 = vadd.f32 0.0, %v1878
        %1880 = vmatprep.mubr.bf16.mxu0 0
        %1881 = vmatmul.mubr.bf16.gmra.mrb[0].mxu0 %v1780
        %v1882 = vpop.f32.mrb[0].mxu0
        %v1883 = vadd.f32 0.0, %v1882
        %v1884 = vpop.f32.mrb[0].mxu0
        %v1885 = vadd.f32 0.0, %v1884
        %v1886 = vpop.f32.mrb[0].mxu0
        %v1887 = vadd.f32 0.0, %v1886
        %v1888 = vpop.f32.mrb[0].mxu0
        %v1889 = vadd.f32 0.0, %v1888
        %1890 = vmatprep.mubr.bf16.mxu0 0
        %1891 = vmatmul.mubr.bf16.gmra.mrb[0].mxu0 %v1783
        %v1892 = vpop.f32.mrb[0].mxu0
        %v1893 = vadd.f32 0.0, %v1892
        %v1894 = vpop.f32.mrb[0].mxu0
        %v1895 = vadd.f32 0.0, %v1894
        %v1896 = vpop.f32.mrb[0].mxu0
        %v1897 = vadd.f32 0.0, %v1896
        %v1898 = vpop.f32.mrb[0].mxu0
        %v1899 = vadd.f32 0.0, %v1898
        %1900 = vmatprep.mubr.bf16.mxu0 0
        %1901 = vmatmul.mubr.bf16.gmra.mrb[0].mxu0 %v1786
        %v1902 = vpop.f32.mrb[0].mxu0
        %v1903 = vadd.f32 0.0, %v1902
        %v1904 = vpop.f32.mrb[0].mxu0
        %v1905 = vadd.f32 0.0, %v1904
        %v1906 = vpop.f32.mrb[0].mxu0
        %v1907 = vadd.f32 0.0, %v1906
        %v1908 = vpop.f32.mrb[0].mxu0
        %v1909 = vadd.f32 0.0, %v1908
        %1910 = vmatprep.mubr.bf16.mxu0 0
        %1911 = vmatmul.mubr.bf16.gmra.mrb[0].mxu0 %v1789
        %v1912 = vpop.f32.mrb[0].mxu0
        %v1913 = vadd.f32 0.0, %v1912
        %v1914 = vpop.f32.mrb[0].mxu0
        %v1915 = vadd.f32 0.0, %v1914
        %v1916 = vpop.f32.mrb[0].mxu0
        %v1917 = vadd.f32 0.0, %v1916
        %v1918 = vpop.f32.mrb[0].mxu0
        %v1919 = vadd.f32 0.0, %v1918
        %1920 = vmatprep.mubr.bf16.mxu0 0
        %1921 = vmatmul.mubr.bf16.gmra.mrb[0].mxu0 %v1792
        %v1922 = vpop.f32.mrb[0].mxu0
        %v1923 = vadd.f32 0.0, %v1922
        %v1924 = vpop.f32.mrb[0].mxu0
        %v1925 = vadd.f32 0.0, %v1924
        %v1926 = vpop.f32.mrb[0].mxu0
        %v1927 = vadd.f32 0.0, %v1926
        %v1928 = vpop.f32.mrb[0].mxu0
        %v1929 = vadd.f32 0.0, %v1928
        %1930 = vmatprep.mubr.bf16.mxu0 0
        %1931 = vmatmul.mubr.bf16.gmra.mrb[0].mxu0 %v1795
        %v1932 = vpop.f32.mrb[0].mxu0
        %v1933 = vadd.f32 0.0, %v1932
        %v1934 = vpop.f32.mrb[0].mxu0
        %v1935 = vadd.f32 0.0, %v1934
        %v1936 = vpop.f32.mrb[0].mxu0
        %v1937 = vadd.f32 0.0, %v1936
        %v1938 = vpop.f32.mrb[0].mxu0
        %v1939 = vadd.f32 0.0, %v1938
        %1940 = vmatprep.mubr.bf16.mxu0 0
        %1941 = vmatmul.mubr.bf16.gmra.mrb[0].mxu0 %v1798
        %v1942 = vpop.f32.mrb[0].mxu0
        %v1943 = vadd.f32 0.0, %v1942
        %v1944 = vpop.f32.mrb[0].mxu0
        %v1945 = vadd.f32 0.0, %v1944
        %v1946 = vpop.f32.mrb[0].mxu0
        %v1947 = vadd.f32 0.0, %v1946
        %v1948 = vpop.f32.mrb[0].mxu0
        %v1949 = vadd.f32 0.0, %v1948
        %1950 = vmatprep.mubr.bf16.mxu0 0
        %1951 = vmatmul.mubr.bf16.gmra.mrb[0].mxu0 %v1801
        %v1952 = vpop.f32.mrb[0].mxu0
        %v1953 = vadd.f32 0.0, %v1952
        %v1954 = vpop.f32.mrb[0].mxu0
        %v1955 = vadd.f32 0.0, %v1954
        %v1956 = vpop.f32.mrb[0].mxu0
        %v1957 = vadd.f32 0.0, %v1956
        %v1958 = vpop.f32.mrb[0].mxu0
        %v1959 = vadd.f32 0.0, %v1958
        %1960 = vmatprep.mubr.bf16.mxu0 0
        %1961 = vmatmul.mubr.bf16.gmra.mrb[0].mxu0 %v1804
        %v1962 = vpop.f32.mrb[0].mxu0
        %v1963 = vadd.f32 0.0, %v1962
        %v1964 = vpop.f32.mrb[0].mxu0
        %v1965 = vadd.f32 0.0, %v1964
        %v1966 = vpop.f32.mrb[0].mxu0
        %v1967 = vadd.f32 0.0, %v1966
        %v1968 = vpop.f32.mrb[0].mxu0
        %v1969 = vadd.f32 0.0, %v1968
        %1970 = vmatprep.mubr.bf16.mxu0 0
        %1971 = vmatmul.mubr.bf16.gmra.mrb[0].mxu0 %v1807
        %v1972 = vpop.f32.mrb[0].mxu0
        %v1973 = vadd.f32 0.0, %v1972
        %v1974 = vpop.f32.mrb[0].mxu0
        %v1975 = vadd.f32 0.0, %v1974
        %v1976 = vpop.f32.mrb[0].mxu0
        %v1977 = vadd.f32 0.0, %v1976
        %v1978 = vpop.f32.mrb[0].mxu0
        %v1979 = vadd.f32 0.0, %v1978
        %1980 = vmatprep.mubr.bf16.mxu0 0
        %1981 = vmatmul.mubr.bf16.gmra.mrb[0].mxu0 %v1810
        %v1982 = vpop.f32.mrb[0].mxu0
        %v1983 = vadd.f32 0.0, %v1982
        %v1984 = vpop.f32.mrb[0].mxu0
        %v1985 = vadd.f32 0.0, %v1984
        %v1986 = vpop.f32.mrb[0].mxu0
        %v1987 = vadd.f32 0.0, %v1986
        %v1988 = vpop.f32.mrb[0].mxu0
        %v1989 = vadd.f32 0.0, %v1988
        %1990 = vmatprep.mubr.bf16.mxu0 0
        %1991 = vmatmul.mubr.bf16.gmra.mrb[0].mxu0 %v1813
        %v1992 = vpop.f32.mrb[0].mxu0
        %v1993 = vadd.f32 0.0, %v1992
        %v1994 = vpop.f32.mrb[0].mxu0
        %v1995 = vadd.f32 0.0, %v1994
        %v1996 = vpop.f32.mrb[0].mxu0
        %v1997 = vadd.f32 0.0, %v1996
        %v1998 = vpop.f32.mrb[0].mxu0
        %v1999 = vadd.f32 0.0, %v1998
        %2000 = vmatprep.mubr.bf16.mxu0 0
        %2001 = vmatmul.mubr.bf16.gmra.mrb[0].mxu0 %v1816
        %v2002 = vpop.f32.mrb[0].mxu0
        %v2003 = vadd.f32 0.0, %v2002
        %v2004 = vpop.f32.mrb[0].mxu0
        %v2005 = vadd.f32 0.0, %v2004
        %v2006 = vpop.f32.mrb[0].mxu0
        %v2007 = vadd.f32 0.0, %v2006
        %v2008 = vpop.f32.mrb[0].mxu0
        %v2009 = vadd.f32 0.0, %v2008
        %2010 = vdwg.mxu0
        %v2011 = vadd.f32 %v1585, %v1853
        %v2012 = vadd.f32 %v1586, %v1855
        %v2013 = vadd.f32 %v1587, %v1857
        %v2014 = vadd.f32 %v1588, %v1859
        %v2015 = vadd.f32 %v1589, %v1863
        %v2016 = vadd.f32 %v1590, %v1865
        %v2017 = vadd.f32 %v1591, %v1867
        %v2018 = vadd.f32 %v1592, %v1869
        %v2019 = vadd.f32 %v1593, %v1873
        %v2020 = vadd.f32 %v1594, %v1875
        %v2021 = vadd.f32 %v1595, %v1877
        %v2022 = vadd.f32 %v1596, %v1879
        %v2023 = vadd.f32 %v1597, %v1883
        %v2024 = vadd.f32 %v1598, %v1885
        %v2025 = vadd.f32 %v1599, %v1887
        %v2026 = vadd.f32 %v1600, %v1889
        %v2027 = vadd.f32 %v1601, %v1893
        %v2028 = vadd.f32 %v1602, %v1895
        %v2029 = vadd.f32 %v1603, %v1897
        %v2030 = vadd.f32 %v1604, %v1899
        %v2031 = vadd.f32 %v1605, %v1903
        %v2032 = vadd.f32 %v1606, %v1905
        %v2033 = vadd.f32 %v1607, %v1907
        %v2034 = vadd.f32 %v1608, %v1909
        %v2035 = vadd.f32 %v1609, %v1913
        %v2036 = vadd.f32 %v1610, %v1915
        %v2037 = vadd.f32 %v1611, %v1917
        %v2038 = vadd.f32 %v1612, %v1919
        %v2039 = vadd.f32 %v1613, %v1923
        %v2040 = vadd.f32 %v1614, %v1925
        %v2041 = vadd.f32 %v1615, %v1927
        %v2042 = vadd.f32 %v1616, %v1929
        %v2043 = vadd.f32 %v1617, %v1933
        %v2044 = vadd.f32 %v1618, %v1935
        %v2045 = vadd.f32 %v1619, %v1937
        %v2046 = vadd.f32 %v1620, %v1939
        %v2047 = vadd.f32 %v1621, %v1943
        %v2048 = vadd.f32 %v1622, %v1945
        %v2049 = vadd.f32 %v1623, %v1947
        %v2050 = vadd.f32 %v1624, %v1949
        %v2051 = vadd.f32 %v1625, %v1953
        %v2052 = vadd.f32 %v1626, %v1955
        %v2053 = vadd.f32 %v1627, %v1957
        %v2054 = vadd.f32 %v1628, %v1959
        %v2055 = vadd.f32 %v1629, %v1963
        %v2056 = vadd.f32 %v1630, %v1965
        %v2057 = vadd.f32 %v1631, %v1967
        %v2058 = vadd.f32 %v1632, %v1969
        %v2059 = vadd.f32 %v1633, %v1973
        %v2060 = vadd.f32 %v1634, %v1975
        %v2061 = vadd.f32 %v1635, %v1977
        %v2062 = vadd.f32 %v1636, %v1979
        %v2063 = vadd.f32 %v1637, %v1983
        %v2064 = vadd.f32 %v1638, %v1985
        %v2065 = vadd.f32 %v1639, %v1987
        %v2066 = vadd.f32 %v1640, %v1989
        %v2067 = vadd.f32 %v1641, %v1993
        %v2068 = vadd.f32 %v1642, %v1995
        %v2069 = vadd.f32 %v1643, %v1997
        %v2070 = vadd.f32 %v1644, %v1999
        %v2071 = vadd.f32 %v1645, %v2003
        %v2072 = vadd.f32 %v1646, %v2005
        %v2073 = vadd.f32 %v1647, %v2007
        %v2074 = vadd.f32 %v1648, %v2009
        %v2075 = vld [vmem:[%s496 + $0x4] sm:$0xff]
        %v2076 = vld [vmem:[%s496 + $0xc] sm:$0xff]
        %v2077 = vld [vmem:[%s496 + $0x14] sm:$0xff]
        %v2078 = vld [vmem:[%s496 + $0x1c] sm:$0xff]
        %v2079 = vld [vmem:[%s496 + $0x2c] sm:$0xff]
        %v2080 = vld [vmem:[%s496 + $0x34] sm:$0xff]
        %v2081 = vld [vmem:[%s496 + $0x3c] sm:$0xff]
        %v2082 = vld [vmem:[%s496 + $0x44] sm:$0xff]
        %v2083 = vld [vmem:[%s496 + $0x54] sm:$0xff]
        %v2084 = vld [vmem:[%s496 + $0x5c] sm:$0xff]
        %v2085 = vld [vmem:[%s496 + $0x64] sm:$0xff]
        %v2086 = vld [vmem:[%s496 + $0x6c] sm:$0xff]
        %v2087 = vld [vmem:[%s496 + $0x7c] sm:$0xff]
        %v2088 = vld [vmem:[%s496 + $0x84] sm:$0xff]
        %v2089 = vld [vmem:[%s496 + $0x8c] sm:$0xff]
        %v2090 = vld [vmem:[%s496 + $0x94] sm:$0xff]
        %v2091 = vld [vmem:[%s496 + $0xa4] sm:$0xff]
        %v2092 = vld [vmem:[%s496 + $0xac] sm:$0xff]
        %v2093 = vld [vmem:[%s496 + $0xb4] sm:$0xff]
        %v2094 = vld [vmem:[%s496 + $0xbc] sm:$0xff]
        %v2095 = vld [vmem:[%s496 + $0xcc] sm:$0xff]
        %v2096 = vld [vmem:[%s496 + $0xd4] sm:$0xff]
        %v2097 = vld [vmem:[%s496 + $0xdc] sm:$0xff]
        %v2098 = vld [vmem:[%s496 + $0xe4] sm:$0xff]
        %v2099 = vld [vmem:[%s496 + $0xf4] sm:$0xff]
        %v2100 = vld [vmem:[%s496 + $0xfc] sm:$0xff]
        %v2101 = vld [vmem:[%s496 + $0x104] sm:$0xff]
        %v2102 = vld [vmem:[%s496 + $0x10c] sm:$0xff]
        %v2103 = vld [vmem:[%s496 + $0x11c] sm:$0xff]
        %v2104 = vld [vmem:[%s496 + $0x124] sm:$0xff]
        %v2105 = vld [vmem:[%s496 + $0x12c] sm:$0xff]
        %v2106 = vld [vmem:[%s496 + $0x134] sm:$0xff]
        %v2107 = vpack.c.bf16 %v2076, %v2075
        %v2108 = vpack.c.bf16 %v2078, %v2077
        %v2109 = vpack.c.bf16 %v2080, %v2079
        %v2110 = vpack.c.bf16 %v2082, %v2081
        %v2111 = vpack.c.bf16 %v2084, %v2083
        %v2112 = vpack.c.bf16 %v2086, %v2085
        %v2113 = vpack.c.bf16 %v2088, %v2087
        %v2114 = vpack.c.bf16 %v2090, %v2089
        %v2115 = vpack.c.bf16 %v2092, %v2091
        %v2116 = vpack.c.bf16 %v2094, %v2093
        %v2117 = vpack.c.bf16 %v2096, %v2095
        %v2118 = vpack.c.bf16 %v2098, %v2097
        %v2119 = vpack.c.bf16 %v2100, %v2099
        %v2120 = vpack.c.bf16 %v2102, %v2101
        %v2121 = vpack.c.bf16 %v2104, %v2103
        %v2122 = vpack.c.bf16 %v2106, %v2105
        %s2123 = scalar_lea.vmem %s1, 384
        %v2124 = vld [vmem:[%s2123] sm:$0xff]
        %v2125 = vld [vmem:[%s2123 + $0x8] sm:$0xff]
        %v2126 = vld [vmem:[%s2123 + $0x10] sm:$0xff]
        %v2127 = vld [vmem:[%s2123 + $0x18] sm:$0xff]
        %v2128 = vld [vmem:[%s2123 + $0x20] sm:$0xff]
        %v2129 = vld [vmem:[%s2123 + $0x28] sm:$0xff]
        %v2130 = vld [vmem:[%s2123 + $0x30] sm:$0xff]
        %v2131 = vld [vmem:[%s2123 + $0x38] sm:$0xff]
        %v2132 = vld [vmem:[%s2123 + $0x40] sm:$0xff]
        %v2133 = vld [vmem:[%s2123 + $0x48] sm:$0xff]
        %v2134 = vld [vmem:[%s2123 + $0x50] sm:$0xff]
        %v2135 = vld [vmem:[%s2123 + $0x58] sm:$0xff]
        %v2148 = vunpack.c.l.b16 %v2124
        %v2149 = vunpack.c.h.b16 %v2124
        %v2150 = vunpack.c.l.b16 %v2125
        %v2151 = vunpack.c.h.b16 %v2125
        %v2152 = vunpack.c.l.b16 %v2126
        %v2153 = vunpack.c.h.b16 %v2126
        %v2154 = vunpack.c.l.b16 %v2127
        %v2155 = vunpack.c.h.b16 %v2127
        %v2156 = vunpack.c.l.b16 %v2128
        %v2157 = vunpack.c.h.b16 %v2128
        %v2158 = vunpack.c.l.b16 %v2129
        %v2159 = vunpack.c.h.b16 %v2129
        %v2160 = vunpack.c.l.b16 %v2130
        %v2161 = vunpack.c.h.b16 %v2130
        %v2162 = vunpack.c.l.b16 %v2131
        %v2163 = vunpack.c.h.b16 %v2131
        %v2164 = vunpack.c.l.b16 %v2132
        %v2165 = vunpack.c.h.b16 %v2132
        %v2166 = vunpack.c.l.b16 %v2133
        %v2167 = vunpack.c.h.b16 %v2133
        %v2168 = vunpack.c.l.b16 %v2134
        %v2169 = vunpack.c.h.b16 %v2134
        %v2170 = vunpack.c.l.b16 %v2135
        %v2171 = vunpack.c.h.b16 %v2135
        %v2172 = vpack.c.b16 %v2150, %v2148
        %v2173 = vpack.c.b16 %v2151, %v2149
        %v2174 = vpack.c.b16 %v2154, %v2152
        %v2175 = vpack.c.b16 %v2155, %v2153
        %v2176 = vpack.c.b16 %v2158, %v2156
        %v2177 = vpack.c.b16 %v2159, %v2157
        %v2178 = vpack.c.b16 %v2162, %v2160
        %v2179 = vpack.c.b16 %v2163, %v2161
        %v2180 = vpack.c.b16 %v2166, %v2164
        %v2181 = vpack.c.b16 %v2167, %v2165
        %v2182 = vpack.c.b16 %v2170, %v2168
        %v2183 = vpack.c.b16 %v2171, %v2169
        %v2197 = vsel %vm680, %v2107, 0
        %v2200 = vsel %vm680, %v2108, 0
        %v2203 = vsel %vm680, %v2109, 0
        %v2206 = vsel %vm680, %v2110, 0
        %v2209 = vsel %vm680, %v2111, 0
        %v2212 = vsel %vm680, %v2112, 0
        %v2215 = vsel %vm680, %v2113, 0
        %v2218 = vsel %vm680, %v2114, 0
        %v2221 = vsel %vm680, %v2115, 0
        %v2224 = vsel %vm680, %v2116, 0
        %v2227 = vsel %vm680, %v2117, 0
        %v2230 = vsel %vm680, %v2118, 0
        %v2233 = vsel %vm680, %v2119, 0
        %v2236 = vsel %vm680, %v2120, 0
        %v2239 = vsel %vm680, %v2121, 0
        %v2242 = vsel %vm680, %v2122, 0
        %2244 = vmatprep.subr.bf16.mxu0 %v2173
        %2245 = vmatpush1.bf16.msra.mxu0 %v2172
        %2246 = vmatprep.subr.bf16.mxu0 %v2175
        %2247 = vmatpush1.bf16.msra.mxu0 %v2174
        %2248 = vmatprep.subr.bf16.mxu0 %v2177
        %2249 = vmatpush1.bf16.msra.mxu0 %v2176
        %2250 = vmatprep.subr.bf16.mxu0 %v2179
        %2251 = vmatpush1.bf16.msra.mxu0 %v2178
        %2252 = vmatprep.subr.bf16.mxu0 %v2181
        %2253 = vmatpush1.bf16.msra.mxu0 %v2180
        %2254 = vmatprep.subr.bf16.mxu0 %v2183
        %2255 = vmatpush1.bf16.msra.mxu0 %v2182
        %2256 = vmatprep.subr.bf16.mxu0 0
        %2257 = vmatpush1.bf16.msra.mxu0 0
        %2258 = vmatprep.subr.bf16.mxu0 0
        %2259 = vmatpush1.bf16.msra.mxu0 0
        %2260 = vmatprep.subr.bf16.mxu0 0
        %2261 = vmatpush1.bf16.msra.mxu0 0
        %2262 = vmatprep.subr.bf16.mxu0 0
        %2263 = vmatpush1.bf16.msra.mxu0 0
        %2264 = vmatprep.subr.bf16.mxu0 0
        %2265 = vmatpush1.bf16.msra.mxu0 0
        %2266 = vmatprep.subr.bf16.mxu0 0
        %2267 = vmatpush1.bf16.msra.mxu0 0
        %2268 = vmatprep.subr.bf16.mxu0 0
        %2269 = vmatpush1.bf16.msra.mxu0 0
        %2270 = vmatprep.subr.bf16.mxu0 0
        %2271 = vmatpush1.bf16.msra.mxu0 0
        %2272 = vmatprep.subr.bf16.mxu0 0
        %2273 = vmatpush1.bf16.msra.mxu0 0
        %2274 = vmatprep.subr.bf16.mxu0 0
        %2275 = vmatpush1.bf16.msra.mxu0 0
        %2276 = vmatprep.mubr.bf16.mxu0 0
        %2277 = vmatmul.mubr.bf16.gmra.mrb[0].mxu0 %v2197
        %v2278 = vpop.f32.mrb[0].mxu0
        %v2279 = vadd.f32 0.0, %v2278
        %v2280 = vpop.f32.mrb[0].mxu0
        %v2281 = vadd.f32 0.0, %v2280
        %v2282 = vpop.f32.mrb[0].mxu0
        %v2283 = vadd.f32 0.0, %v2282
        %v2284 = vpop.f32.mrb[0].mxu0
        %v2285 = vadd.f32 0.0, %v2284
        %2286 = vmatprep.mubr.bf16.mxu0 0
        %2287 = vmatmul.mubr.bf16.gmra.mrb[0].mxu0 %v2200
        %v2288 = vpop.f32.mrb[0].mxu0
        %v2289 = vadd.f32 0.0, %v2288
        %v2290 = vpop.f32.mrb[0].mxu0
        %v2291 = vadd.f32 0.0, %v2290
        %v2292 = vpop.f32.mrb[0].mxu0
        %v2293 = vadd.f32 0.0, %v2292
        %v2294 = vpop.f32.mrb[0].mxu0
        %v2295 = vadd.f32 0.0, %v2294
        %2296 = vmatprep.mubr.bf16.mxu0 0
        %2297 = vmatmul.mubr.bf16.gmra.mrb[0].mxu0 %v2203
        %v2298 = vpop.f32.mrb[0].mxu0
        %v2299 = vadd.f32 0.0, %v2298
        %v2300 = vpop.f32.mrb[0].mxu0
        %v2301 = vadd.f32 0.0, %v2300
        %v2302 = vpop.f32.mrb[0].mxu0
        %v2303 = vadd.f32 0.0, %v2302
        %v2304 = vpop.f32.mrb[0].mxu0
        %v2305 = vadd.f32 0.0, %v2304
        %2306 = vmatprep.mubr.bf16.mxu0 0
        %2307 = vmatmul.mubr.bf16.gmra.mrb[0].mxu0 %v2206
        %v2308 = vpop.f32.mrb[0].mxu0
        %v2309 = vadd.f32 0.0, %v2308
        %v2310 = vpop.f32.mrb[0].mxu0
        %v2311 = vadd.f32 0.0, %v2310
        %v2312 = vpop.f32.mrb[0].mxu0
        %v2313 = vadd.f32 0.0, %v2312
        %v2314 = vpop.f32.mrb[0].mxu0
        %v2315 = vadd.f32 0.0, %v2314
        %2316 = vmatprep.mubr.bf16.mxu0 0
        %2317 = vmatmul.mubr.bf16.gmra.mrb[0].mxu0 %v2209
        %v2318 = vpop.f32.mrb[0].mxu0
        %v2319 = vadd.f32 0.0, %v2318
        %v2320 = vpop.f32.mrb[0].mxu0
        %v2321 = vadd.f32 0.0, %v2320
        %v2322 = vpop.f32.mrb[0].mxu0
        %v2323 = vadd.f32 0.0, %v2322
        %v2324 = vpop.f32.mrb[0].mxu0
        %v2325 = vadd.f32 0.0, %v2324
        %2326 = vmatprep.mubr.bf16.mxu0 0
        %2327 = vmatmul.mubr.bf16.gmra.mrb[0].mxu0 %v2212
        %v2328 = vpop.f32.mrb[0].mxu0
        %v2329 = vadd.f32 0.0, %v2328
        %v2330 = vpop.f32.mrb[0].mxu0
        %v2331 = vadd.f32 0.0, %v2330
        %v2332 = vpop.f32.mrb[0].mxu0
        %v2333 = vadd.f32 0.0, %v2332
        %v2334 = vpop.f32.mrb[0].mxu0
        %v2335 = vadd.f32 0.0, %v2334
        %2336 = vmatprep.mubr.bf16.mxu0 0
        %2337 = vmatmul.mubr.bf16.gmra.mrb[0].mxu0 %v2215
        %v2338 = vpop.f32.mrb[0].mxu0
        %v2339 = vadd.f32 0.0, %v2338
        %v2340 = vpop.f32.mrb[0].mxu0
        %v2341 = vadd.f32 0.0, %v2340
        %v2342 = vpop.f32.mrb[0].mxu0
        %v2343 = vadd.f32 0.0, %v2342
        %v2344 = vpop.f32.mrb[0].mxu0
        %v2345 = vadd.f32 0.0, %v2344
        %2346 = vmatprep.mubr.bf16.mxu0 0
        %2347 = vmatmul.mubr.bf16.gmra.mrb[0].mxu0 %v2218
        %v2348 = vpop.f32.mrb[0].mxu0
        %v2349 = vadd.f32 0.0, %v2348
        %v2350 = vpop.f32.mrb[0].mxu0
        %v2351 = vadd.f32 0.0, %v2350
        %v2352 = vpop.f32.mrb[0].mxu0
        %v2353 = vadd.f32 0.0, %v2352
        %v2354 = vpop.f32.mrb[0].mxu0
        %v2355 = vadd.f32 0.0, %v2354
        %2356 = vmatprep.mubr.bf16.mxu0 0
        %2357 = vmatmul.mubr.bf16.gmra.mrb[0].mxu0 %v2221
        %v2358 = vpop.f32.mrb[0].mxu0
        %v2359 = vadd.f32 0.0, %v2358
        %v2360 = vpop.f32.mrb[0].mxu0
        %v2361 = vadd.f32 0.0, %v2360
        %v2362 = vpop.f32.mrb[0].mxu0
        %v2363 = vadd.f32 0.0, %v2362
        %v2364 = vpop.f32.mrb[0].mxu0
        %v2365 = vadd.f32 0.0, %v2364
        %2366 = vmatprep.mubr.bf16.mxu0 0
        %2367 = vmatmul.mubr.bf16.gmra.mrb[0].mxu0 %v2224
        %v2368 = vpop.f32.mrb[0].mxu0
        %v2369 = vadd.f32 0.0, %v2368
        %v2370 = vpop.f32.mrb[0].mxu0
        %v2371 = vadd.f32 0.0, %v2370
        %v2372 = vpop.f32.mrb[0].mxu0
        %v2373 = vadd.f32 0.0, %v2372
        %v2374 = vpop.f32.mrb[0].mxu0
        %v2375 = vadd.f32 0.0, %v2374
        %2376 = vmatprep.mubr.bf16.mxu0 0
        %2377 = vmatmul.mubr.bf16.gmra.mrb[0].mxu0 %v2227
        %v2378 = vpop.f32.mrb[0].mxu0
        %v2379 = vadd.f32 0.0, %v2378
        %v2380 = vpop.f32.mrb[0].mxu0
        %v2381 = vadd.f32 0.0, %v2380
        %v2382 = vpop.f32.mrb[0].mxu0
        %v2383 = vadd.f32 0.0, %v2382
        %v2384 = vpop.f32.mrb[0].mxu0
        %v2385 = vadd.f32 0.0, %v2384
        %2386 = vmatprep.mubr.bf16.mxu0 0
        %2387 = vmatmul.mubr.bf16.gmra.mrb[0].mxu0 %v2230
        %v2388 = vpop.f32.mrb[0].mxu0
        %v2389 = vadd.f32 0.0, %v2388
        %v2390 = vpop.f32.mrb[0].mxu0
        %v2391 = vadd.f32 0.0, %v2390
        %v2392 = vpop.f32.mrb[0].mxu0
        %v2393 = vadd.f32 0.0, %v2392
        %v2394 = vpop.f32.mrb[0].mxu0
        %v2395 = vadd.f32 0.0, %v2394
        %2396 = vmatprep.mubr.bf16.mxu0 0
        %2397 = vmatmul.mubr.bf16.gmra.mrb[0].mxu0 %v2233
        %v2398 = vpop.f32.mrb[0].mxu0
        %v2399 = vadd.f32 0.0, %v2398
        %v2400 = vpop.f32.mrb[0].mxu0
        %v2401 = vadd.f32 0.0, %v2400
        %v2402 = vpop.f32.mrb[0].mxu0
        %v2403 = vadd.f32 0.0, %v2402
        %v2404 = vpop.f32.mrb[0].mxu0
        %v2405 = vadd.f32 0.0, %v2404
        %2406 = vmatprep.mubr.bf16.mxu0 0
        %2407 = vmatmul.mubr.bf16.gmra.mrb[0].mxu0 %v2236
        %v2408 = vpop.f32.mrb[0].mxu0
        %v2409 = vadd.f32 0.0, %v2408
        %v2410 = vpop.f32.mrb[0].mxu0
        %v2411 = vadd.f32 0.0, %v2410
        %v2412 = vpop.f32.mrb[0].mxu0
        %v2413 = vadd.f32 0.0, %v2412
        %v2414 = vpop.f32.mrb[0].mxu0
        %v2415 = vadd.f32 0.0, %v2414
        %2416 = vmatprep.mubr.bf16.mxu0 0
        %2417 = vmatmul.mubr.bf16.gmra.mrb[0].mxu0 %v2239
        %v2418 = vpop.f32.mrb[0].mxu0
        %v2419 = vadd.f32 0.0, %v2418
        %v2420 = vpop.f32.mrb[0].mxu0
        %v2421 = vadd.f32 0.0, %v2420
        %v2422 = vpop.f32.mrb[0].mxu0
        %v2423 = vadd.f32 0.0, %v2422
        %v2424 = vpop.f32.mrb[0].mxu0
        %v2425 = vadd.f32 0.0, %v2424
        %2426 = vmatprep.mubr.bf16.mxu0 0
        %2427 = vmatmul.mubr.bf16.gmra.mrb[0].mxu0 %v2242
        %v2428 = vpop.f32.mrb[0].mxu0
        %v2429 = vadd.f32 0.0, %v2428
        %v2430 = vpop.f32.mrb[0].mxu0
        %v2431 = vadd.f32 0.0, %v2430
        %v2432 = vpop.f32.mrb[0].mxu0
        %v2433 = vadd.f32 0.0, %v2432
        %v2434 = vpop.f32.mrb[0].mxu0
        %v2435 = vadd.f32 0.0, %v2434
        %2436 = vdwg.mxu0
        %v2437 = vadd.f32 %v2011, %v2279
        %v2438 = vadd.f32 %v2012, %v2281
        %v2439 = vadd.f32 %v2013, %v2283
        %v2440 = vadd.f32 %v2014, %v2285
        %v2441 = vadd.f32 %v2015, %v2289
        %v2442 = vadd.f32 %v2016, %v2291
        %v2443 = vadd.f32 %v2017, %v2293
        %v2444 = vadd.f32 %v2018, %v2295
        %v2445 = vadd.f32 %v2019, %v2299
        %v2446 = vadd.f32 %v2020, %v2301
        %v2447 = vadd.f32 %v2021, %v2303
        %v2448 = vadd.f32 %v2022, %v2305
        %v2449 = vadd.f32 %v2023, %v2309
        %v2450 = vadd.f32 %v2024, %v2311
        %v2451 = vadd.f32 %v2025, %v2313
        %v2452 = vadd.f32 %v2026, %v2315
        %v2453 = vadd.f32 %v2027, %v2319
        %v2454 = vadd.f32 %v2028, %v2321
        %v2455 = vadd.f32 %v2029, %v2323
        %v2456 = vadd.f32 %v2030, %v2325
        %v2457 = vadd.f32 %v2031, %v2329
        %v2458 = vadd.f32 %v2032, %v2331
        %v2459 = vadd.f32 %v2033, %v2333
        %v2460 = vadd.f32 %v2034, %v2335
        %v2461 = vadd.f32 %v2035, %v2339
        %v2462 = vadd.f32 %v2036, %v2341
        %v2463 = vadd.f32 %v2037, %v2343
        %v2464 = vadd.f32 %v2038, %v2345
        %v2465 = vadd.f32 %v2039, %v2349
        %v2466 = vadd.f32 %v2040, %v2351
        %v2467 = vadd.f32 %v2041, %v2353
        %v2468 = vadd.f32 %v2042, %v2355
        %v2469 = vadd.f32 %v2043, %v2359
        %v2470 = vadd.f32 %v2044, %v2361
        %v2471 = vadd.f32 %v2045, %v2363
        %v2472 = vadd.f32 %v2046, %v2365
        %v2473 = vadd.f32 %v2047, %v2369
        %v2474 = vadd.f32 %v2048, %v2371
        %v2475 = vadd.f32 %v2049, %v2373
        %v2476 = vadd.f32 %v2050, %v2375
        %v2477 = vadd.f32 %v2051, %v2379
        %v2478 = vadd.f32 %v2052, %v2381
        %v2479 = vadd.f32 %v2053, %v2383
        %v2480 = vadd.f32 %v2054, %v2385
        %v2481 = vadd.f32 %v2055, %v2389
        %v2482 = vadd.f32 %v2056, %v2391
        %v2483 = vadd.f32 %v2057, %v2393
        %v2484 = vadd.f32 %v2058, %v2395
        %v2485 = vadd.f32 %v2059, %v2399
        %v2486 = vadd.f32 %v2060, %v2401
        %v2487 = vadd.f32 %v2061, %v2403
        %v2488 = vadd.f32 %v2062, %v2405
        %v2489 = vadd.f32 %v2063, %v2409
        %v2490 = vadd.f32 %v2064, %v2411
        %v2491 = vadd.f32 %v2065, %v2413
        %v2492 = vadd.f32 %v2066, %v2415
        %v2493 = vadd.f32 %v2067, %v2419
        %v2494 = vadd.f32 %v2068, %v2421
        %v2495 = vadd.f32 %v2069, %v2423
        %v2496 = vadd.f32 %v2070, %v2425
        %v2497 = vadd.f32 %v2071, %v2429
        %v2498 = vadd.f32 %v2072, %v2431
        %v2499 = vadd.f32 %v2073, %v2433
        %v2500 = vadd.f32 %v2074, %v2435
        %v2501 = vld [vmem:[%s2] sm:$0x3]
        %v2503 = vlaneseq
        %v2504 = vshrl.u32 %v2503, 7
        %v2505 = vsub.s32 0, %v2504
        %v2506 = vrot.slane %v2501, %v2505
        %v2507 = vlaneseq
        %v2508 = vshrl.u32 %v2507, 7
        %v2509 = vsub.s32 1, %v2508
        %v2510 = vrot.slane %v2501, %v2509
        %v2513 = vadd.f32 %v2437, %v2506
        %v2514 = vadd.f32 %v2438, %v2510
        %v2515 = vadd.f32 %v2439, %v2506
        %v2516 = vadd.f32 %v2440, %v2510
        %v2517 = vadd.f32 %v2441, %v2506
        %v2518 = vadd.f32 %v2442, %v2510
        %v2519 = vadd.f32 %v2443, %v2506
        %v2520 = vadd.f32 %v2444, %v2510
        %v2521 = vadd.f32 %v2445, %v2506
        %v2522 = vadd.f32 %v2446, %v2510
        %v2523 = vadd.f32 %v2447, %v2506
        %v2524 = vadd.f32 %v2448, %v2510
        %v2525 = vadd.f32 %v2449, %v2506
        %v2526 = vadd.f32 %v2450, %v2510
        %v2527 = vadd.f32 %v2451, %v2506
        %v2528 = vadd.f32 %v2452, %v2510
        %v2529 = vadd.f32 %v2453, %v2506
        %v2530 = vadd.f32 %v2454, %v2510
        %v2531 = vadd.f32 %v2455, %v2506
        %v2532 = vadd.f32 %v2456, %v2510
        %v2533 = vadd.f32 %v2457, %v2506
        %v2534 = vadd.f32 %v2458, %v2510
        %v2535 = vadd.f32 %v2459, %v2506
        %v2536 = vadd.f32 %v2460, %v2510
        %v2537 = vadd.f32 %v2461, %v2506
        %v2538 = vadd.f32 %v2462, %v2510
        %v2539 = vadd.f32 %v2463, %v2506
        %v2540 = vadd.f32 %v2464, %v2510
        %v2541 = vadd.f32 %v2465, %v2506
        %v2542 = vadd.f32 %v2466, %v2510
        %v2543 = vadd.f32 %v2467, %v2506
        %v2544 = vadd.f32 %v2468, %v2510
        %v2545 = vadd.f32 %v2469, %v2506
        %v2546 = vadd.f32 %v2470, %v2510
        %v2547 = vadd.f32 %v2471, %v2506
        %v2548 = vadd.f32 %v2472, %v2510
        %v2549 = vadd.f32 %v2473, %v2506
        %v2550 = vadd.f32 %v2474, %v2510
        %v2551 = vadd.f32 %v2475, %v2506
        %v2552 = vadd.f32 %v2476, %v2510
        %v2553 = vadd.f32 %v2477, %v2506
        %v2554 = vadd.f32 %v2478, %v2510
        %v2555 = vadd.f32 %v2479, %v2506
        %v2556 = vadd.f32 %v2480, %v2510
        %v2557 = vadd.f32 %v2481, %v2506
        %v2558 = vadd.f32 %v2482, %v2510
        %v2559 = vadd.f32 %v2483, %v2506
        %v2560 = vadd.f32 %v2484, %v2510
        %v2561 = vadd.f32 %v2485, %v2506
        %v2562 = vadd.f32 %v2486, %v2510
        %v2563 = vadd.f32 %v2487, %v2506
        %v2564 = vadd.f32 %v2488, %v2510
        %v2565 = vadd.f32 %v2489, %v2506
        %v2566 = vadd.f32 %v2490, %v2510
        %v2567 = vadd.f32 %v2491, %v2506
        %v2568 = vadd.f32 %v2492, %v2510
        %v2569 = vadd.f32 %v2493, %v2506
        %v2570 = vadd.f32 %v2494, %v2510
        %v2571 = vadd.f32 %v2495, %v2506
        %v2572 = vadd.f32 %v2496, %v2510
        %v2573 = vadd.f32 %v2497, %v2506
        %v2574 = vadd.f32 %v2498, %v2510
        %v2575 = vadd.f32 %v2499, %v2506
        %v2576 = vadd.f32 %v2500, %v2510
        %v2577 = vmax.f32 %v2513, 0.0
        %v2578 = vmax.f32 %v2514, 0.0
        %v2579 = vmax.f32 %v2515, 0.0
        %v2580 = vmax.f32 %v2516, 0.0
        %v2581 = vmax.f32 %v2517, 0.0
        %v2582 = vmax.f32 %v2518, 0.0
        %v2583 = vmax.f32 %v2519, 0.0
        %v2584 = vmax.f32 %v2520, 0.0
        %v2585 = vmax.f32 %v2521, 0.0
        %v2586 = vmax.f32 %v2522, 0.0
        %v2587 = vmax.f32 %v2523, 0.0
        %v2588 = vmax.f32 %v2524, 0.0
        %v2589 = vmax.f32 %v2525, 0.0
        %v2590 = vmax.f32 %v2526, 0.0
        %v2591 = vmax.f32 %v2527, 0.0
        %v2592 = vmax.f32 %v2528, 0.0
        %v2593 = vmax.f32 %v2529, 0.0
        %v2594 = vmax.f32 %v2530, 0.0
        %v2595 = vmax.f32 %v2531, 0.0
        %v2596 = vmax.f32 %v2532, 0.0
        %v2597 = vmax.f32 %v2533, 0.0
        %v2598 = vmax.f32 %v2534, 0.0
        %v2599 = vmax.f32 %v2535, 0.0
        %v2600 = vmax.f32 %v2536, 0.0
        %v2601 = vmax.f32 %v2537, 0.0
        %v2602 = vmax.f32 %v2538, 0.0
        %v2603 = vmax.f32 %v2539, 0.0
        %v2604 = vmax.f32 %v2540, 0.0
        %v2605 = vmax.f32 %v2541, 0.0
        %v2606 = vmax.f32 %v2542, 0.0
        %v2607 = vmax.f32 %v2543, 0.0
        %v2608 = vmax.f32 %v2544, 0.0
        %v2609 = vmax.f32 %v2545, 0.0
        %v2610 = vmax.f32 %v2546, 0.0
        %v2611 = vmax.f32 %v2547, 0.0
        %v2612 = vmax.f32 %v2548, 0.0
        %v2613 = vmax.f32 %v2549, 0.0
        %v2614 = vmax.f32 %v2550, 0.0
        %v2615 = vmax.f32 %v2551, 0.0
        %v2616 = vmax.f32 %v2552, 0.0
        %v2617 = vmax.f32 %v2553, 0.0
        %v2618 = vmax.f32 %v2554, 0.0
        %v2619 = vmax.f32 %v2555, 0.0
        %v2620 = vmax.f32 %v2556, 0.0
        %v2621 = vmax.f32 %v2557, 0.0
        %v2622 = vmax.f32 %v2558, 0.0
        %v2623 = vmax.f32 %v2559, 0.0
        %v2624 = vmax.f32 %v2560, 0.0
        %v2625 = vmax.f32 %v2561, 0.0
        %v2626 = vmax.f32 %v2562, 0.0
        %v2627 = vmax.f32 %v2563, 0.0
        %v2628 = vmax.f32 %v2564, 0.0
        %v2629 = vmax.f32 %v2565, 0.0
        %v2630 = vmax.f32 %v2566, 0.0
        %v2631 = vmax.f32 %v2567, 0.0
        %v2632 = vmax.f32 %v2568, 0.0
        %v2633 = vmax.f32 %v2569, 0.0
        %v2634 = vmax.f32 %v2570, 0.0
        %v2635 = vmax.f32 %v2571, 0.0
        %v2636 = vmax.f32 %v2572, 0.0
        %v2637 = vmax.f32 %v2573, 0.0
        %v2638 = vmax.f32 %v2574, 0.0
        %v2639 = vmax.f32 %v2575, 0.0
        %v2640 = vmax.f32 %v2576, 0.0
        %2705 = vrot.lane.b32.xlu0 %v2577, 120
        %v2706 = vpop.permute.xlu0 %2705
        %2707 = vrot.lane.b32.xlu0 %v2578, 120
        %v2708 = vpop.permute.xlu0 %2707
        %2709 = vrot.lane.b32.xlu0 %v2579, 120
        %v2710 = vpop.permute.xlu0 %2709
        %2711 = vrot.lane.b32.xlu0 %v2580, 120
        %v2712 = vpop.permute.xlu0 %2711
        %2713 = vrot.lane.b32.xlu0 %v2581, 120
        %v2714 = vpop.permute.xlu0 %2713
        %2715 = vrot.lane.b32.xlu0 %v2582, 120
        %v2716 = vpop.permute.xlu0 %2715
        %2717 = vrot.lane.b32.xlu0 %v2583, 120
        %v2718 = vpop.permute.xlu0 %2717
        %2719 = vrot.lane.b32.xlu0 %v2584, 120
        %v2720 = vpop.permute.xlu0 %2719
        %2721 = vrot.lane.b32.xlu0 %v2585, 120
        %v2722 = vpop.permute.xlu0 %2721
        %2723 = vrot.lane.b32.xlu0 %v2586, 120
        %v2724 = vpop.permute.xlu0 %2723
        %2725 = vrot.lane.b32.xlu0 %v2587, 120
        %v2726 = vpop.permute.xlu0 %2725
        %2727 = vrot.lane.b32.xlu0 %v2588, 120
        %v2728 = vpop.permute.xlu0 %2727
        %2729 = vrot.lane.b32.xlu0 %v2589, 120
        %v2730 = vpop.permute.xlu0 %2729
        %2731 = vrot.lane.b32.xlu0 %v2590, 120
        %v2732 = vpop.permute.xlu0 %2731
        %2733 = vrot.lane.b32.xlu0 %v2591, 120
        %v2734 = vpop.permute.xlu0 %2733
        %2735 = vrot.lane.b32.xlu0 %v2592, 120
        %v2736 = vpop.permute.xlu0 %2735
        %2737 = vrot.lane.b32.xlu0 %v2593, 120
        %v2738 = vpop.permute.xlu0 %2737
        %2739 = vrot.lane.b32.xlu0 %v2594, 120
        %v2740 = vpop.permute.xlu0 %2739
        %2741 = vrot.lane.b32.xlu0 %v2595, 120
        %v2742 = vpop.permute.xlu0 %2741
        %2743 = vrot.lane.b32.xlu0 %v2596, 120
        %v2744 = vpop.permute.xlu0 %2743
        %2745 = vrot.lane.b32.xlu0 %v2597, 120
        %v2746 = vpop.permute.xlu0 %2745
        %2747 = vrot.lane.b32.xlu0 %v2598, 120
        %v2748 = vpop.permute.xlu0 %2747
        %2749 = vrot.lane.b32.xlu0 %v2599, 120
        %v2750 = vpop.permute.xlu0 %2749
        %2751 = vrot.lane.b32.xlu0 %v2600, 120
        %v2752 = vpop.permute.xlu0 %2751
        %2753 = vrot.lane.b32.xlu0 %v2601, 120
        %v2754 = vpop.permute.xlu0 %2753
        %2755 = vrot.lane.b32.xlu0 %v2602, 120
        %v2756 = vpop.permute.xlu0 %2755
        %2757 = vrot.lane.b32.xlu0 %v2603, 120
        %v2758 = vpop.permute.xlu0 %2757
        %2759 = vrot.lane.b32.xlu0 %v2604, 120
        %v2760 = vpop.permute.xlu0 %2759
        %2761 = vrot.lane.b32.xlu0 %v2605, 120
        %v2762 = vpop.permute.xlu0 %2761
        %2763 = vrot.lane.b32.xlu0 %v2606, 120
        %v2764 = vpop.permute.xlu0 %2763
        %2765 = vrot.lane.b32.xlu0 %v2607, 120
        %v2766 = vpop.permute.xlu0 %2765
        %2767 = vrot.lane.b32.xlu0 %v2608, 120
        %v2768 = vpop.permute.xlu0 %2767
        %2769 = vrot.lane.b32.xlu0 %v2609, 120
        %v2770 = vpop.permute.xlu0 %2769
        %2771 = vrot.lane.b32.xlu0 %v2610, 120
        %v2772 = vpop.permute.xlu0 %2771
        %2773 = vrot.lane.b32.xlu0 %v2611, 120
        %v2774 = vpop.permute.xlu0 %2773
        %2775 = vrot.lane.b32.xlu0 %v2612, 120
        %v2776 = vpop.permute.xlu0 %2775
        %2777 = vrot.lane.b32.xlu0 %v2613, 120
        %v2778 = vpop.permute.xlu0 %2777
        %2779 = vrot.lane.b32.xlu0 %v2614, 120
        %v2780 = vpop.permute.xlu0 %2779
        %2781 = vrot.lane.b32.xlu0 %v2615, 120
        %v2782 = vpop.permute.xlu0 %2781
        %2783 = vrot.lane.b32.xlu0 %v2616, 120
        %v2784 = vpop.permute.xlu0 %2783
        %2785 = vrot.lane.b32.xlu0 %v2617, 120
        %v2786 = vpop.permute.xlu0 %2785
        %2787 = vrot.lane.b32.xlu0 %v2618, 120
        %v2788 = vpop.permute.xlu0 %2787
        %2789 = vrot.lane.b32.xlu0 %v2619, 120
        %v2790 = vpop.permute.xlu0 %2789
        %2791 = vrot.lane.b32.xlu0 %v2620, 120
        %v2792 = vpop.permute.xlu0 %2791
        %2793 = vrot.lane.b32.xlu0 %v2621, 120
        %v2794 = vpop.permute.xlu0 %2793
        %2795 = vrot.lane.b32.xlu0 %v2622, 120
        %v2796 = vpop.permute.xlu0 %2795
        %2797 = vrot.lane.b32.xlu0 %v2623, 120
        %v2798 = vpop.permute.xlu0 %2797
        %2799 = vrot.lane.b32.xlu0 %v2624, 120
        %v2800 = vpop.permute.xlu0 %2799
        %2801 = vrot.lane.b32.xlu0 %v2625, 120
        %v2802 = vpop.permute.xlu0 %2801
        %2803 = vrot.lane.b32.xlu0 %v2626, 120
        %v2804 = vpop.permute.xlu0 %2803
        %2805 = vrot.lane.b32.xlu0 %v2627, 120
        %v2806 = vpop.permute.xlu0 %2805
        %2807 = vrot.lane.b32.xlu0 %v2628, 120
        %v2808 = vpop.permute.xlu0 %2807
        %2809 = vrot.lane.b32.xlu0 %v2629, 120
        %v2810 = vpop.permute.xlu0 %2809
        %2811 = vrot.lane.b32.xlu0 %v2630, 120
        %v2812 = vpop.permute.xlu0 %2811
        %2813 = vrot.lane.b32.xlu0 %v2631, 120
        %v2814 = vpop.permute.xlu0 %2813
        %2815 = vrot.lane.b32.xlu0 %v2632, 120
        %v2816 = vpop.permute.xlu0 %2815
        %2817 = vrot.lane.b32.xlu0 %v2633, 120
        %v2818 = vpop.permute.xlu0 %2817
        %2819 = vrot.lane.b32.xlu0 %v2634, 120
        %v2820 = vpop.permute.xlu0 %2819
        %2821 = vrot.lane.b32.xlu0 %v2635, 120
        %v2822 = vpop.permute.xlu0 %2821
        %2823 = vrot.lane.b32.xlu0 %v2636, 120
        %v2824 = vpop.permute.xlu0 %2823
        %2825 = vrot.lane.b32.xlu0 %v2637, 120
        %v2826 = vpop.permute.xlu0 %2825
        %2827 = vrot.lane.b32.xlu0 %v2638, 120
        %v2828 = vpop.permute.xlu0 %2827
        %2829 = vrot.lane.b32.xlu0 %v2639, 120
        %v2830 = vpop.permute.xlu0 %2829
        %2831 = vrot.lane.b32.xlu0 %v2640, 120
        %v2832 = vpop.permute.xlu0 %2831
        %vm2833 = vcmask 982016
        %v2834 = vsel %vm2833, %v2706, %v2708
        %v2835 = vsel %vm2833, %v2710, %v2712
        %v2836 = vsel %vm2833, %v2714, %v2716
        %v2837 = vsel %vm2833, %v2718, %v2720
        %v2838 = vsel %vm2833, %v2722, %v2724
        %v2839 = vsel %vm2833, %v2726, %v2728
        %v2840 = vsel %vm2833, %v2730, %v2732
        %v2841 = vsel %vm2833, %v2734, %v2736
        %v2842 = vsel %vm2833, %v2738, %v2740
        %v2843 = vsel %vm2833, %v2742, %v2744
        %v2844 = vsel %vm2833, %v2746, %v2748
        %v2845 = vsel %vm2833, %v2750, %v2752
        %v2846 = vsel %vm2833, %v2754, %v2756
        %v2847 = vsel %vm2833, %v2758, %v2760
        %v2848 = vsel %vm2833, %v2762, %v2764
        %v2849 = vsel %vm2833, %v2766, %v2768
        %v2850 = vsel %vm2833, %v2770, %v2772
        %v2851 = vsel %vm2833, %v2774, %v2776
        %v2852 = vsel %vm2833, %v2778, %v2780
        %v2853 = vsel %vm2833, %v2782, %v2784
        %v2854 = vsel %vm2833, %v2786, %v2788
        %v2855 = vsel %vm2833, %v2790, %v2792
        %v2856 = vsel %vm2833, %v2794, %v2796
        %v2857 = vsel %vm2833, %v2798, %v2800
        %v2858 = vsel %vm2833, %v2802, %v2804
        %v2859 = vsel %vm2833, %v2806, %v2808
        %v2860 = vsel %vm2833, %v2810, %v2812
        %v2861 = vsel %vm2833, %v2814, %v2816
        %v2862 = vsel %vm2833, %v2818, %v2820
        %v2863 = vsel %vm2833, %v2822, %v2824
        %v2864 = vsel %vm2833, %v2826, %v2828
        %v2865 = vsel %vm2833, %v2830, %v2832
        %v2930 = vmax.f32 %v2577, %v2834
        %v2931 = vmax.f32 %v2578, %v2708
        %v2932 = vmax.f32 %v2579, %v2835
        %v2933 = vmax.f32 %v2580, %v2712
        %v2934 = vmax.f32 %v2581, %v2836
        %v2935 = vmax.f32 %v2582, %v2716
        %v2936 = vmax.f32 %v2583, %v2837
        %v2937 = vmax.f32 %v2584, %v2720
        %v2938 = vmax.f32 %v2585, %v2838
        %v2939 = vmax.f32 %v2586, %v2724
        %v2940 = vmax.f32 %v2587, %v2839
        %v2941 = vmax.f32 %v2588, %v2728
        %v2942 = vmax.f32 %v2589, %v2840
        %v2943 = vmax.f32 %v2590, %v2732
        %v2944 = vmax.f32 %v2591, %v2841
        %v2945 = vmax.f32 %v2592, %v2736
        %v2946 = vmax.f32 %v2593, %v2842
        %v2947 = vmax.f32 %v2594, %v2740
        %v2948 = vmax.f32 %v2595, %v2843
        %v2949 = vmax.f32 %v2596, %v2744
        %v2950 = vmax.f32 %v2597, %v2844
        %v2951 = vmax.f32 %v2598, %v2748
        %v2952 = vmax.f32 %v2599, %v2845
        %v2953 = vmax.f32 %v2600, %v2752
        %v2954 = vmax.f32 %v2601, %v2846
        %v2955 = vmax.f32 %v2602, %v2756
        %v2956 = vmax.f32 %v2603, %v2847
        %v2957 = vmax.f32 %v2604, %v2760
        %v2958 = vmax.f32 %v2605, %v2848
        %v2959 = vmax.f32 %v2606, %v2764
        %v2960 = vmax.f32 %v2607, %v2849
        %v2961 = vmax.f32 %v2608, %v2768
        %v2962 = vmax.f32 %v2609, %v2850
        %v2963 = vmax.f32 %v2610, %v2772
        %v2964 = vmax.f32 %v2611, %v2851
        %v2965 = vmax.f32 %v2612, %v2776
        %v2966 = vmax.f32 %v2613, %v2852
        %v2967 = vmax.f32 %v2614, %v2780
        %v2968 = vmax.f32 %v2615, %v2853
        %v2969 = vmax.f32 %v2616, %v2784
        %v2970 = vmax.f32 %v2617, %v2854
        %v2971 = vmax.f32 %v2618, %v2788
        %v2972 = vmax.f32 %v2619, %v2855
        %v2973 = vmax.f32 %v2620, %v2792
        %v2974 = vmax.f32 %v2621, %v2856
        %v2975 = vmax.f32 %v2622, %v2796
        %v2976 = vmax.f32 %v2623, %v2857
        %v2977 = vmax.f32 %v2624, %v2800
        %v2978 = vmax.f32 %v2625, %v2858
        %v2979 = vmax.f32 %v2626, %v2804
        %v2980 = vmax.f32 %v2627, %v2859
        %v2981 = vmax.f32 %v2628, %v2808
        %v2982 = vmax.f32 %v2629, %v2860
        %v2983 = vmax.f32 %v2630, %v2812
        %v2984 = vmax.f32 %v2631, %v2861
        %v2985 = vmax.f32 %v2632, %v2816
        %v2986 = vmax.f32 %v2633, %v2862
        %v2987 = vmax.f32 %v2634, %v2820
        %v2988 = vmax.f32 %v2635, %v2863
        %v2989 = vmax.f32 %v2636, %v2824
        %v2990 = vmax.f32 %v2637, %v2864
        %v2991 = vmax.f32 %v2638, %v2828
        %v2992 = vmax.f32 %v2639, %v2865
        %v2993 = vmax.f32 %v2640, %v2832
        %v2994 = vpack.c.bf16 %v2932, %v2930
        %v2995 = vpack.c.bf16 %v2933, %v2931
        %v2996 = vpack.c.bf16 %v2936, %v2934
        %v2997 = vpack.c.bf16 %v2937, %v2935
        %v2998 = vpack.c.bf16 %v2940, %v2938
        %v2999 = vpack.c.bf16 %v2941, %v2939
        %v3000 = vpack.c.bf16 %v2944, %v2942
        %v3001 = vpack.c.bf16 %v2945, %v2943
        %v3002 = vpack.c.bf16 %v2948, %v2946
        %v3003 = vpack.c.bf16 %v2949, %v2947
        %v3004 = vpack.c.bf16 %v2952, %v2950
        %v3005 = vpack.c.bf16 %v2953, %v2951
        %v3006 = vpack.c.bf16 %v2956, %v2954
        %v3007 = vpack.c.bf16 %v2957, %v2955
        %v3008 = vpack.c.bf16 %v2960, %v2958
        %v3009 = vpack.c.bf16 %v2961, %v2959
        %v3010 = vpack.c.bf16 %v2964, %v2962
        %v3011 = vpack.c.bf16 %v2965, %v2963
        %v3012 = vpack.c.bf16 %v2968, %v2966
        %v3013 = vpack.c.bf16 %v2969, %v2967
        %v3014 = vpack.c.bf16 %v2972, %v2970
        %v3015 = vpack.c.bf16 %v2973, %v2971
        %v3016 = vpack.c.bf16 %v2976, %v2974
        %v3017 = vpack.c.bf16 %v2977, %v2975
        %v3018 = vpack.c.bf16 %v2980, %v2978
        %v3019 = vpack.c.bf16 %v2981, %v2979
        %v3020 = vpack.c.bf16 %v2984, %v2982
        %v3021 = vpack.c.bf16 %v2985, %v2983
        %v3022 = vpack.c.bf16 %v2988, %v2986
        %v3023 = vpack.c.bf16 %v2989, %v2987
        %v3024 = vpack.c.bf16 %v2992, %v2990
        %v3025 = vpack.c.bf16 %v2993, %v2991
        %v3026 = vld [vmem:[%s5] sm:$0xff]
        %v3027 = vld [vmem:[%s5 + $0x8] sm:$0xff]
        %v3028 = vld [vmem:[%s5 + $0x10] sm:$0xff]
        %v3029 = vld [vmem:[%s5 + $0x18] sm:$0xff]
        %v3030 = vld [vmem:[%s5 + $0x20] sm:$0xff]
        %v3031 = vld [vmem:[%s5 + $0x28] sm:$0xff]
        %v3032 = vld [vmem:[%s5 + $0x30] sm:$0xff]
        %v3033 = vld [vmem:[%s5 + $0x38] sm:$0xff]
        %v3034 = vld [vmem:[%s5 + $0x40] sm:$0xff]
        %v3035 = vld [vmem:[%s5 + $0x48] sm:$0xff]
        %v3036 = vld [vmem:[%s5 + $0x50] sm:$0xff]
        %v3037 = vld [vmem:[%s5 + $0x58] sm:$0xff]
        %v3038 = vld [vmem:[%s5 + $0x60] sm:$0xff]
        %v3039 = vld [vmem:[%s5 + $0x68] sm:$0xff]
        %v3040 = vld [vmem:[%s5 + $0x70] sm:$0xff]
        %v3041 = vld [vmem:[%s5 + $0x78] sm:$0xff]
        %v3042 = vld [vmem:[%s5 + $0x80] sm:$0xff]
        %v3043 = vld [vmem:[%s5 + $0x88] sm:$0xff]
        %v3044 = vld [vmem:[%s5 + $0x90] sm:$0xff]
        %v3045 = vld [vmem:[%s5 + $0x98] sm:$0xff]
        %v3046 = vld [vmem:[%s5 + $0xa0] sm:$0xff]
        %v3047 = vld [vmem:[%s5 + $0xa8] sm:$0xff]
        %v3048 = vld [vmem:[%s5 + $0xb0] sm:$0xff]
        %v3049 = vld [vmem:[%s5 + $0xb8] sm:$0xff]
        %v3074 = vunpack.c.l.b16 %v3026
        %v3075 = vunpack.c.h.b16 %v3026
        %v3076 = vunpack.c.l.b16 %v3027
        %v3077 = vunpack.c.h.b16 %v3027
        %v3078 = vunpack.c.l.b16 %v3028
        %v3079 = vunpack.c.h.b16 %v3028
        %v3080 = vunpack.c.l.b16 %v3029
        %v3081 = vunpack.c.h.b16 %v3029
        %v3082 = vunpack.c.l.b16 %v3030
        %v3083 = vunpack.c.h.b16 %v3030
        %v3084 = vunpack.c.l.b16 %v3031
        %v3085 = vunpack.c.h.b16 %v3031
        %v3086 = vunpack.c.l.b16 %v3032
        %v3087 = vunpack.c.h.b16 %v3032
        %v3088 = vunpack.c.l.b16 %v3033
        %v3089 = vunpack.c.h.b16 %v3033
        %v3090 = vunpack.c.l.b16 %v3034
        %v3091 = vunpack.c.h.b16 %v3034
        %v3092 = vunpack.c.l.b16 %v3035
        %v3093 = vunpack.c.h.b16 %v3035
        %v3094 = vunpack.c.l.b16 %v3036
        %v3095 = vunpack.c.h.b16 %v3036
        %v3096 = vunpack.c.l.b16 %v3037
        %v3097 = vunpack.c.h.b16 %v3037
        %v3098 = vunpack.c.l.b16 %v3038
        %v3099 = vunpack.c.h.b16 %v3038
        %v3100 = vunpack.c.l.b16 %v3039
        %v3101 = vunpack.c.h.b16 %v3039
        %v3102 = vunpack.c.l.b16 %v3040
        %v3103 = vunpack.c.h.b16 %v3040
        %v3104 = vunpack.c.l.b16 %v3041
        %v3105 = vunpack.c.h.b16 %v3041
        %v3106 = vunpack.c.l.b16 %v3042
        %v3107 = vunpack.c.h.b16 %v3042
        %v3108 = vunpack.c.l.b16 %v3043
        %v3109 = vunpack.c.h.b16 %v3043
        %v3110 = vunpack.c.l.b16 %v3044
        %v3111 = vunpack.c.h.b16 %v3044
        %v3112 = vunpack.c.l.b16 %v3045
        %v3113 = vunpack.c.h.b16 %v3045
        %v3114 = vunpack.c.l.b16 %v3046
        %v3115 = vunpack.c.h.b16 %v3046
        %v3116 = vunpack.c.l.b16 %v3047
        %v3117 = vunpack.c.h.b16 %v3047
        %v3118 = vunpack.c.l.b16 %v3048
        %v3119 = vunpack.c.h.b16 %v3048
        %v3120 = vunpack.c.l.b16 %v3049
        %v3121 = vunpack.c.h.b16 %v3049
        %v3122 = vpack.c.b16 %v3076, %v3074
        %v3123 = vpack.c.b16 %v3077, %v3075
        %v3124 = vpack.c.b16 %v3080, %v3078
        %v3125 = vpack.c.b16 %v3081, %v3079
        %v3126 = vpack.c.b16 %v3084, %v3082
        %v3127 = vpack.c.b16 %v3085, %v3083
        %v3128 = vpack.c.b16 %v3088, %v3086
        %v3129 = vpack.c.b16 %v3089, %v3087
        %v3130 = vpack.c.b16 %v3092, %v3090
        %v3131 = vpack.c.b16 %v3093, %v3091
        %v3132 = vpack.c.b16 %v3096, %v3094
        %v3133 = vpack.c.b16 %v3097, %v3095
        %v3134 = vpack.c.b16 %v3100, %v3098
        %v3135 = vpack.c.b16 %v3101, %v3099
        %v3136 = vpack.c.b16 %v3104, %v3102
        %v3137 = vpack.c.b16 %v3105, %v3103
        %v3138 = vpack.c.b16 %v3108, %v3106
        %v3139 = vpack.c.b16 %v3109, %v3107
        %v3140 = vpack.c.b16 %v3112, %v3110
        %v3141 = vpack.c.b16 %v3113, %v3111
        %v3142 = vpack.c.b16 %v3116, %v3114
        %v3143 = vpack.c.b16 %v3117, %v3115
        %v3144 = vpack.c.b16 %v3120, %v3118
        %v3145 = vpack.c.b16 %v3121, %v3119
        %3170 = vmatprep.subr.bf16.mxu0 %v2995
        %3171 = vmatpush1.bf16.msra.mxu0 %v2994
        %3172 = vmatprep.subr.bf16.mxu0 %v2997
        %3173 = vmatpush1.bf16.msra.mxu0 %v2996
        %3174 = vmatprep.subr.bf16.mxu0 %v2999
        %3175 = vmatpush1.bf16.msra.mxu0 %v2998
        %3176 = vmatprep.subr.bf16.mxu0 %v3001
        %3177 = vmatpush1.bf16.msra.mxu0 %v3000
        %3178 = vmatprep.subr.bf16.mxu0 %v3003
        %3179 = vmatpush1.bf16.msra.mxu0 %v3002
        %3180 = vmatprep.subr.bf16.mxu0 %v3005
        %3181 = vmatpush1.bf16.msra.mxu0 %v3004
        %3182 = vmatprep.subr.bf16.mxu0 %v3007
        %3183 = vmatpush1.bf16.msra.mxu0 %v3006
        %3184 = vmatprep.subr.bf16.mxu0 %v3009
        %3185 = vmatpush1.bf16.msra.mxu0 %v3008
        %3186 = vmatprep.subr.bf16.mxu0 %v3011
        %3187 = vmatpush1.bf16.msra.mxu0 %v3010
        %3188 = vmatprep.subr.bf16.mxu0 %v3013
        %3189 = vmatpush1.bf16.msra.mxu0 %v3012
        %3190 = vmatprep.subr.bf16.mxu0 %v3015
        %3191 = vmatpush1.bf16.msra.mxu0 %v3014
        %3192 = vmatprep.subr.bf16.mxu0 %v3017
        %3193 = vmatpush1.bf16.msra.mxu0 %v3016
        %3194 = vmatprep.subr.bf16.mxu0 %v3019
        %3195 = vmatpush1.bf16.msra.mxu0 %v3018
        %3196 = vmatprep.subr.bf16.mxu0 %v3021
        %3197 = vmatpush1.bf16.msra.mxu0 %v3020
        %3198 = vmatprep.subr.bf16.mxu0 %v3023
        %3199 = vmatpush1.bf16.msra.mxu0 %v3022
        %3200 = vmatprep.subr.bf16.mxu0 %v3025
        %3201 = vmatpush1.bf16.msra.mxu0 %v3024
        %3202 = vmatprep.mubr.bf16.mxu0 %v3123
        %3203 = vmatmul.mubr.bf16.gmra.mrb[0].mxu0 %v3122
        %v3204 = vpop.f32.mrb[0].mxu0
        %v3205 = vadd.f32 0.0, %v3204
        %v3206 = vpop.f32.mrb[0].mxu0
        %v3207 = vadd.f32 0.0, %v3206
        %v3208 = vpop.f32.mrb[0].mxu0
        %v3209 = vadd.f32 0.0, %v3208
        %v3210 = vpop.f32.mrb[0].mxu0
        %v3211 = vadd.f32 0.0, %v3210
        %3212 = vmatprep.mubr.bf16.mxu0 %v3125
        %3213 = vmatmul.mubr.bf16.gmra.mrb[0].mxu0 %v3124
        %v3214 = vpop.f32.mrb[0].mxu0
        %v3215 = vadd.f32 0.0, %v3214
        %v3216 = vpop.f32.mrb[0].mxu0
        %v3217 = vadd.f32 0.0, %v3216
        %v3218 = vpop.f32.mrb[0].mxu0
        %v3219 = vadd.f32 0.0, %v3218
        %v3220 = vpop.f32.mrb[0].mxu0
        %v3221 = vadd.f32 0.0, %v3220
        %3222 = vmatprep.mubr.bf16.mxu0 %v3127
        %3223 = vmatmul.mubr.bf16.gmra.mrb[0].mxu0 %v3126
        %v3224 = vpop.f32.mrb[0].mxu0
        %v3225 = vadd.f32 0.0, %v3224
        %v3226 = vpop.f32.mrb[0].mxu0
        %v3227 = vadd.f32 0.0, %v3226
        %v3228 = vpop.f32.mrb[0].mxu0
        %v3229 = vadd.f32 0.0, %v3228
        %v3230 = vpop.f32.mrb[0].mxu0
        %v3231 = vadd.f32 0.0, %v3230
        %3232 = vmatprep.mubr.bf16.mxu0 %v3129
        %3233 = vmatmul.mubr.bf16.gmra.mrb[0].mxu0 %v3128
        %v3234 = vpop.f32.mrb[0].mxu0
        %v3235 = vadd.f32 0.0, %v3234
        %v3236 = vpop.f32.mrb[0].mxu0
        %v3237 = vadd.f32 0.0, %v3236
        %v3238 = vpop.f32.mrb[0].mxu0
        %v3239 = vadd.f32 0.0, %v3238
        %v3240 = vpop.f32.mrb[0].mxu0
        %v3241 = vadd.f32 0.0, %v3240
        %3242 = vmatprep.mubr.bf16.mxu0 %v3131
        %3243 = vmatmul.mubr.bf16.gmra.mrb[0].mxu0 %v3130
        %v3244 = vpop.f32.mrb[0].mxu0
        %v3245 = vadd.f32 0.0, %v3244
        %v3246 = vpop.f32.mrb[0].mxu0
        %v3247 = vadd.f32 0.0, %v3246
        %v3248 = vpop.f32.mrb[0].mxu0
        %v3249 = vadd.f32 0.0, %v3248
        %v3250 = vpop.f32.mrb[0].mxu0
        %v3251 = vadd.f32 0.0, %v3250
        %3252 = vmatprep.mubr.bf16.mxu0 %v3133
        %3253 = vmatmul.mubr.bf16.gmra.mrb[0].mxu0 %v3132
        %v3254 = vpop.f32.mrb[0].mxu0
        %v3255 = vadd.f32 0.0, %v3254
        %v3256 = vpop.f32.mrb[0].mxu0
        %v3257 = vadd.f32 0.0, %v3256
        %v3258 = vpop.f32.mrb[0].mxu0
        %v3259 = vadd.f32 0.0, %v3258
        %v3260 = vpop.f32.mrb[0].mxu0
        %v3261 = vadd.f32 0.0, %v3260
        %3262 = vmatprep.mubr.bf16.mxu0 %v3135
        %3263 = vmatmul.mubr.bf16.gmra.mrb[0].mxu0 %v3134
        %v3264 = vpop.f32.mrb[0].mxu0
        %v3265 = vadd.f32 0.0, %v3264
        %v3266 = vpop.f32.mrb[0].mxu0
        %v3267 = vadd.f32 0.0, %v3266
        %v3268 = vpop.f32.mrb[0].mxu0
        %v3269 = vadd.f32 0.0, %v3268
        %v3270 = vpop.f32.mrb[0].mxu0
        %v3271 = vadd.f32 0.0, %v3270
        %3272 = vmatprep.mubr.bf16.mxu0 %v3137
        %3273 = vmatmul.mubr.bf16.gmra.mrb[0].mxu0 %v3136
        %v3274 = vpop.f32.mrb[0].mxu0
        %v3275 = vadd.f32 0.0, %v3274
        %v3276 = vpop.f32.mrb[0].mxu0
        %v3277 = vadd.f32 0.0, %v3276
        %v3278 = vpop.f32.mrb[0].mxu0
        %v3279 = vadd.f32 0.0, %v3278
        %v3280 = vpop.f32.mrb[0].mxu0
        %v3281 = vadd.f32 0.0, %v3280
        %3282 = vmatprep.mubr.bf16.mxu0 %v3139
        %3283 = vmatmul.mubr.bf16.gmra.mrb[0].mxu0 %v3138
        %v3284 = vpop.f32.mrb[0].mxu0
        %v3285 = vadd.f32 0.0, %v3284
        %v3286 = vpop.f32.mrb[0].mxu0
        %v3287 = vadd.f32 0.0, %v3286
        %v3288 = vpop.f32.mrb[0].mxu0
        %v3289 = vadd.f32 0.0, %v3288
        %v3290 = vpop.f32.mrb[0].mxu0
        %v3291 = vadd.f32 0.0, %v3290
        %3292 = vmatprep.mubr.bf16.mxu0 %v3141
        %3293 = vmatmul.mubr.bf16.gmra.mrb[0].mxu0 %v3140
        %v3294 = vpop.f32.mrb[0].mxu0
        %v3295 = vadd.f32 0.0, %v3294
        %v3296 = vpop.f32.mrb[0].mxu0
        %v3297 = vadd.f32 0.0, %v3296
        %v3298 = vpop.f32.mrb[0].mxu0
        %v3299 = vadd.f32 0.0, %v3298
        %v3300 = vpop.f32.mrb[0].mxu0
        %v3301 = vadd.f32 0.0, %v3300
        %3302 = vmatprep.mubr.bf16.mxu0 %v3143
        %3303 = vmatmul.mubr.bf16.gmra.mrb[0].mxu0 %v3142
        %v3304 = vpop.f32.mrb[0].mxu0
        %v3305 = vadd.f32 0.0, %v3304
        %v3306 = vpop.f32.mrb[0].mxu0
        %v3307 = vadd.f32 0.0, %v3306
        %v3308 = vpop.f32.mrb[0].mxu0
        %v3309 = vadd.f32 0.0, %v3308
        %v3310 = vpop.f32.mrb[0].mxu0
        %v3311 = vadd.f32 0.0, %v3310
        %3312 = vmatprep.mubr.bf16.mxu0 %v3145
        %3313 = vmatmul.mubr.bf16.gmra.mrb[0].mxu0 %v3144
        %v3314 = vpop.f32.mrb[0].mxu0
        %v3315 = vadd.f32 0.0, %v3314
        %v3316 = vpop.f32.mrb[0].mxu0
        %v3317 = vadd.f32 0.0, %v3316
        %v3318 = vpop.f32.mrb[0].mxu0
        %v3319 = vadd.f32 0.0, %v3318
        %v3320 = vpop.f32.mrb[0].mxu0
        %v3321 = vadd.f32 0.0, %v3320
        %3322 = vdwg.mxu0
        %v3323 = vld [vmem:[%s6] sm:$0xff]
        %v3324 = vld [vmem:[%s6 + $0x8] sm:$0xff]
        %v3325 = vld [vmem:[%s6 + $0x10] sm:$0xff]
        %v3326 = vld [vmem:[%s6 + $0x18] sm:$0xff]
        %v3327 = vld [vmem:[%s6 + $0x20] sm:$0xff]
        %v3328 = vld [vmem:[%s6 + $0x28] sm:$0xff]
        %v3329 = vld [vmem:[%s6 + $0x30] sm:$0xff]
        %v3330 = vld [vmem:[%s6 + $0x38] sm:$0xff]
        %v3331 = vld [vmem:[%s6 + $0x40] sm:$0xff]
        %v3332 = vld [vmem:[%s6 + $0x48] sm:$0xff]
        %v3333 = vld [vmem:[%s6 + $0x50] sm:$0xff]
        %v3334 = vld [vmem:[%s6 + $0x58] sm:$0xff]
        %v3335 = vld [vmem:[%s6 + $0x60] sm:$0xff]
        %v3336 = vld [vmem:[%s6 + $0x68] sm:$0xff]
        %v3337 = vld [vmem:[%s6 + $0x70] sm:$0xff]
        %v3338 = vld [vmem:[%s6 + $0x78] sm:$0xff]
        %v3339 = vld [vmem:[%s6 + $0x80] sm:$0xff]
        %v3340 = vld [vmem:[%s6 + $0x88] sm:$0xff]
        %v3341 = vld [vmem:[%s6 + $0x90] sm:$0xff]
        %v3342 = vld [vmem:[%s6 + $0x98] sm:$0xff]
        %v3343 = vld [vmem:[%s6 + $0xa0] sm:$0xff]
        %v3344 = vld [vmem:[%s6 + $0xa8] sm:$0xff]
        %v3345 = vld [vmem:[%s6 + $0xb0] sm:$0xff]
        %v3346 = vld [vmem:[%s6 + $0xb8] sm:$0xff]
        %v3371 = vunpack.c.l.b16 %v3323
        %v3372 = vunpack.c.h.b16 %v3323
        %v3373 = vunpack.c.l.b16 %v3324
        %v3374 = vunpack.c.h.b16 %v3324
        %v3375 = vunpack.c.l.b16 %v3325
        %v3376 = vunpack.c.h.b16 %v3325
        %v3377 = vunpack.c.l.b16 %v3326
        %v3378 = vunpack.c.h.b16 %v3326
        %v3379 = vunpack.c.l.b16 %v3327
        %v3380 = vunpack.c.h.b16 %v3327
        %v3381 = vunpack.c.l.b16 %v3328
        %v3382 = vunpack.c.h.b16 %v3328
        %v3383 = vunpack.c.l.b16 %v3329
        %v3384 = vunpack.c.h.b16 %v3329
        %v3385 = vunpack.c.l.b16 %v3330
        %v3386 = vunpack.c.h.b16 %v3330
        %v3387 = vunpack.c.l.b16 %v3331
        %v3388 = vunpack.c.h.b16 %v3331
        %v3389 = vunpack.c.l.b16 %v3332
        %v3390 = vunpack.c.h.b16 %v3332
        %v3391 = vunpack.c.l.b16 %v3333
        %v3392 = vunpack.c.h.b16 %v3333
        %v3393 = vunpack.c.l.b16 %v3334
        %v3394 = vunpack.c.h.b16 %v3334
        %v3395 = vunpack.c.l.b16 %v3335
        %v3396 = vunpack.c.h.b16 %v3335
        %v3397 = vunpack.c.l.b16 %v3336
        %v3398 = vunpack.c.h.b16 %v3336
        %v3399 = vunpack.c.l.b16 %v3337
        %v3400 = vunpack.c.h.b16 %v3337
        %v3401 = vunpack.c.l.b16 %v3338
        %v3402 = vunpack.c.h.b16 %v3338
        %v3403 = vunpack.c.l.b16 %v3339
        %v3404 = vunpack.c.h.b16 %v3339
        %v3405 = vunpack.c.l.b16 %v3340
        %v3406 = vunpack.c.h.b16 %v3340
        %v3407 = vunpack.c.l.b16 %v3341
        %v3408 = vunpack.c.h.b16 %v3341
        %v3409 = vunpack.c.l.b16 %v3342
        %v3410 = vunpack.c.h.b16 %v3342
        %v3411 = vunpack.c.l.b16 %v3343
        %v3412 = vunpack.c.h.b16 %v3343
        %v3413 = vunpack.c.l.b16 %v3344
        %v3414 = vunpack.c.h.b16 %v3344
        %v3415 = vunpack.c.l.b16 %v3345
        %v3416 = vunpack.c.h.b16 %v3345
        %v3417 = vunpack.c.l.b16 %v3346
        %v3418 = vunpack.c.h.b16 %v3346
        %v3419 = vpack.c.b16 %v3373, %v3371
        %v3420 = vpack.c.b16 %v3374, %v3372
        %v3421 = vpack.c.b16 %v3377, %v3375
        %v3422 = vpack.c.b16 %v3378, %v3376
        %v3423 = vpack.c.b16 %v3381, %v3379
        %v3424 = vpack.c.b16 %v3382, %v3380
        %v3425 = vpack.c.b16 %v3385, %v3383
        %v3426 = vpack.c.b16 %v3386, %v3384
        %v3427 = vpack.c.b16 %v3389, %v3387
        %v3428 = vpack.c.b16 %v3390, %v3388
        %v3429 = vpack.c.b16 %v3393, %v3391
        %v3430 = vpack.c.b16 %v3394, %v3392
        %v3431 = vpack.c.b16 %v3397, %v3395
        %v3432 = vpack.c.b16 %v3398, %v3396
        %v3433 = vpack.c.b16 %v3401, %v3399
        %v3434 = vpack.c.b16 %v3402, %v3400
        %v3435 = vpack.c.b16 %v3405, %v3403
        %v3436 = vpack.c.b16 %v3406, %v3404
        %v3437 = vpack.c.b16 %v3409, %v3407
        %v3438 = vpack.c.b16 %v3410, %v3408
        %v3439 = vpack.c.b16 %v3413, %v3411
        %v3440 = vpack.c.b16 %v3414, %v3412
        %v3441 = vpack.c.b16 %v3417, %v3415
        %v3442 = vpack.c.b16 %v3418, %v3416
        %3467 = vmatprep.subr.bf16.mxu0 %v2995
        %3468 = vmatpush1.bf16.msra.mxu0 %v2994
        %3469 = vmatprep.subr.bf16.mxu0 %v2997
        %3470 = vmatpush1.bf16.msra.mxu0 %v2996
        %3471 = vmatprep.subr.bf16.mxu0 %v2999
        %3472 = vmatpush1.bf16.msra.mxu0 %v2998
        %3473 = vmatprep.subr.bf16.mxu0 %v3001
        %3474 = vmatpush1.bf16.msra.mxu0 %v3000
        %3475 = vmatprep.subr.bf16.mxu0 %v3003
        %3476 = vmatpush1.bf16.msra.mxu0 %v3002
        %3477 = vmatprep.subr.bf16.mxu0 %v3005
        %3478 = vmatpush1.bf16.msra.mxu0 %v3004
        %3479 = vmatprep.subr.bf16.mxu0 %v3007
        %3480 = vmatpush1.bf16.msra.mxu0 %v3006
        %3481 = vmatprep.subr.bf16.mxu0 %v3009
        %3482 = vmatpush1.bf16.msra.mxu0 %v3008
        %3483 = vmatprep.subr.bf16.mxu0 %v3011
        %3484 = vmatpush1.bf16.msra.mxu0 %v3010
        %3485 = vmatprep.subr.bf16.mxu0 %v3013
        %3486 = vmatpush1.bf16.msra.mxu0 %v3012
        %3487 = vmatprep.subr.bf16.mxu0 %v3015
        %3488 = vmatpush1.bf16.msra.mxu0 %v3014
        %3489 = vmatprep.subr.bf16.mxu0 %v3017
        %3490 = vmatpush1.bf16.msra.mxu0 %v3016
        %3491 = vmatprep.subr.bf16.mxu0 %v3019
        %3492 = vmatpush1.bf16.msra.mxu0 %v3018
        %3493 = vmatprep.subr.bf16.mxu0 %v3021
        %3494 = vmatpush1.bf16.msra.mxu0 %v3020
        %3495 = vmatprep.subr.bf16.mxu0 %v3023
        %3496 = vmatpush1.bf16.msra.mxu0 %v3022
        %3497 = vmatprep.subr.bf16.mxu0 %v3025
        %3498 = vmatpush1.bf16.msra.mxu0 %v3024
        %3499 = vmatprep.mubr.bf16.mxu0 %v3420
        %3500 = vmatmul.mubr.bf16.gmra.mrb[0].mxu0 %v3419
        %v3501 = vpop.f32.mrb[0].mxu0
        %v3502 = vadd.f32 0.0, %v3501
        %v3503 = vpop.f32.mrb[0].mxu0
        %v3504 = vadd.f32 0.0, %v3503
        %v3505 = vpop.f32.mrb[0].mxu0
        %v3506 = vadd.f32 0.0, %v3505
        %v3507 = vpop.f32.mrb[0].mxu0
        %v3508 = vadd.f32 0.0, %v3507
        %3509 = vmatprep.mubr.bf16.mxu0 %v3422
        %3510 = vmatmul.mubr.bf16.gmra.mrb[0].mxu0 %v3421
        %v3511 = vpop.f32.mrb[0].mxu0
        %v3512 = vadd.f32 0.0, %v3511
        %v3513 = vpop.f32.mrb[0].mxu0
        %v3514 = vadd.f32 0.0, %v3513
        %v3515 = vpop.f32.mrb[0].mxu0
        %v3516 = vadd.f32 0.0, %v3515
        %v3517 = vpop.f32.mrb[0].mxu0
        %v3518 = vadd.f32 0.0, %v3517
        %3519 = vmatprep.mubr.bf16.mxu0 %v3424
        %3520 = vmatmul.mubr.bf16.gmra.mrb[0].mxu0 %v3423
        %v3521 = vpop.f32.mrb[0].mxu0
        %v3522 = vadd.f32 0.0, %v3521
        %v3523 = vpop.f32.mrb[0].mxu0
        %v3524 = vadd.f32 0.0, %v3523
        %v3525 = vpop.f32.mrb[0].mxu0
        %v3526 = vadd.f32 0.0, %v3525
        %v3527 = vpop.f32.mrb[0].mxu0
        %v3528 = vadd.f32 0.0, %v3527
        %3529 = vmatprep.mubr.bf16.mxu0 %v3426
        %3530 = vmatmul.mubr.bf16.gmra.mrb[0].mxu0 %v3425
        %v3531 = vpop.f32.mrb[0].mxu0
        %v3532 = vadd.f32 0.0, %v3531
        %v3533 = vpop.f32.mrb[0].mxu0
        %v3534 = vadd.f32 0.0, %v3533
        %v3535 = vpop.f32.mrb[0].mxu0
        %v3536 = vadd.f32 0.0, %v3535
        %v3537 = vpop.f32.mrb[0].mxu0
        %v3538 = vadd.f32 0.0, %v3537
        %3539 = vmatprep.mubr.bf16.mxu0 %v3428
        %3540 = vmatmul.mubr.bf16.gmra.mrb[0].mxu0 %v3427
        %v3541 = vpop.f32.mrb[0].mxu0
        %v3542 = vadd.f32 0.0, %v3541
        %v3543 = vpop.f32.mrb[0].mxu0
        %v3544 = vadd.f32 0.0, %v3543
        %v3545 = vpop.f32.mrb[0].mxu0
        %v3546 = vadd.f32 0.0, %v3545
        %v3547 = vpop.f32.mrb[0].mxu0
        %v3548 = vadd.f32 0.0, %v3547
        %3549 = vmatprep.mubr.bf16.mxu0 %v3430
        %3550 = vmatmul.mubr.bf16.gmra.mrb[0].mxu0 %v3429
        %v3551 = vpop.f32.mrb[0].mxu0
        %v3552 = vadd.f32 0.0, %v3551
        %v3553 = vpop.f32.mrb[0].mxu0
        %v3554 = vadd.f32 0.0, %v3553
        %v3555 = vpop.f32.mrb[0].mxu0
        %v3556 = vadd.f32 0.0, %v3555
        %v3557 = vpop.f32.mrb[0].mxu0
        %v3558 = vadd.f32 0.0, %v3557
        %3559 = vmatprep.mubr.bf16.mxu0 %v3432
        %3560 = vmatmul.mubr.bf16.gmra.mrb[0].mxu0 %v3431
        %v3561 = vpop.f32.mrb[0].mxu0
        %v3562 = vadd.f32 0.0, %v3561
        %v3563 = vpop.f32.mrb[0].mxu0
        %v3564 = vadd.f32 0.0, %v3563
        %v3565 = vpop.f32.mrb[0].mxu0
        %v3566 = vadd.f32 0.0, %v3565
        %v3567 = vpop.f32.mrb[0].mxu0
        %v3568 = vadd.f32 0.0, %v3567
        %3569 = vmatprep.mubr.bf16.mxu0 %v3434
        %3570 = vmatmul.mubr.bf16.gmra.mrb[0].mxu0 %v3433
        %v3571 = vpop.f32.mrb[0].mxu0
        %v3572 = vadd.f32 0.0, %v3571
        %v3573 = vpop.f32.mrb[0].mxu0
        %v3574 = vadd.f32 0.0, %v3573
        %v3575 = vpop.f32.mrb[0].mxu0
        %v3576 = vadd.f32 0.0, %v3575
        %v3577 = vpop.f32.mrb[0].mxu0
        %v3578 = vadd.f32 0.0, %v3577
        %3579 = vmatprep.mubr.bf16.mxu0 %v3436
        %3580 = vmatmul.mubr.bf16.gmra.mrb[0].mxu0 %v3435
        %v3581 = vpop.f32.mrb[0].mxu0
        %v3582 = vadd.f32 0.0, %v3581
        %v3583 = vpop.f32.mrb[0].mxu0
        %v3584 = vadd.f32 0.0, %v3583
        %v3585 = vpop.f32.mrb[0].mxu0
        %v3586 = vadd.f32 0.0, %v3585
        %v3587 = vpop.f32.mrb[0].mxu0
        %v3588 = vadd.f32 0.0, %v3587
        %3589 = vmatprep.mubr.bf16.mxu0 %v3438
        %3590 = vmatmul.mubr.bf16.gmra.mrb[0].mxu0 %v3437
        %v3591 = vpop.f32.mrb[0].mxu0
        %v3592 = vadd.f32 0.0, %v3591
        %v3593 = vpop.f32.mrb[0].mxu0
        %v3594 = vadd.f32 0.0, %v3593
        %v3595 = vpop.f32.mrb[0].mxu0
        %v3596 = vadd.f32 0.0, %v3595
        %v3597 = vpop.f32.mrb[0].mxu0
        %v3598 = vadd.f32 0.0, %v3597
        %3599 = vmatprep.mubr.bf16.mxu0 %v3440
        %3600 = vmatmul.mubr.bf16.gmra.mrb[0].mxu0 %v3439
        %v3601 = vpop.f32.mrb[0].mxu0
        %v3602 = vadd.f32 0.0, %v3601
        %v3603 = vpop.f32.mrb[0].mxu0
        %v3604 = vadd.f32 0.0, %v3603
        %v3605 = vpop.f32.mrb[0].mxu0
        %v3606 = vadd.f32 0.0, %v3605
        %v3607 = vpop.f32.mrb[0].mxu0
        %v3608 = vadd.f32 0.0, %v3607
        %3609 = vmatprep.mubr.bf16.mxu0 %v3442
        %3610 = vmatmul.mubr.bf16.gmra.mrb[0].mxu0 %v3441
        %v3611 = vpop.f32.mrb[0].mxu0
        %v3612 = vadd.f32 0.0, %v3611
        %v3613 = vpop.f32.mrb[0].mxu0
        %v3614 = vadd.f32 0.0, %v3613
        %v3615 = vpop.f32.mrb[0].mxu0
        %v3616 = vadd.f32 0.0, %v3615
        %v3617 = vpop.f32.mrb[0].mxu0
        %v3618 = vadd.f32 0.0, %v3617
        %3619 = vdwg.mxu0
        %v3620 = vmax.f32 %v3205, %v3502
        %v3621 = vmax.f32 %v3207, %v3504
        %v3622 = vmax.f32 %v3209, %v3506
        %v3623 = vmax.f32 %v3211, %v3508
        %v3624 = vmax.f32 %v3215, %v3512
        %v3625 = vmax.f32 %v3217, %v3514
        %v3626 = vmax.f32 %v3219, %v3516
        %v3627 = vmax.f32 %v3221, %v3518
        %v3628 = vmax.f32 %v3225, %v3522
        %v3629 = vmax.f32 %v3227, %v3524
        %v3630 = vmax.f32 %v3229, %v3526
        %v3631 = vmax.f32 %v3231, %v3528
        %v3632 = vmax.f32 %v3235, %v3532
        %v3633 = vmax.f32 %v3237, %v3534
        %v3634 = vmax.f32 %v3239, %v3536
        %v3635 = vmax.f32 %v3241, %v3538
        %v3636 = vmax.f32 %v3245, %v3542
        %v3637 = vmax.f32 %v3247, %v3544
        %v3638 = vmax.f32 %v3249, %v3546
        %v3639 = vmax.f32 %v3251, %v3548
        %v3640 = vmax.f32 %v3255, %v3552
        %v3641 = vmax.f32 %v3257, %v3554
        %v3642 = vmax.f32 %v3259, %v3556
        %v3643 = vmax.f32 %v3261, %v3558
        %v3644 = vmax.f32 %v3265, %v3562
        %v3645 = vmax.f32 %v3267, %v3564
        %v3646 = vmax.f32 %v3269, %v3566
        %v3647 = vmax.f32 %v3271, %v3568
        %v3648 = vmax.f32 %v3275, %v3572
        %v3649 = vmax.f32 %v3277, %v3574
        %v3650 = vmax.f32 %v3279, %v3576
        %v3651 = vmax.f32 %v3281, %v3578
        %v3652 = vmax.f32 %v3285, %v3582
        %v3653 = vmax.f32 %v3287, %v3584
        %v3654 = vmax.f32 %v3289, %v3586
        %v3655 = vmax.f32 %v3291, %v3588
        %v3656 = vmax.f32 %v3295, %v3592
        %v3657 = vmax.f32 %v3297, %v3594
        %v3658 = vmax.f32 %v3299, %v3596
        %v3659 = vmax.f32 %v3301, %v3598
        %v3660 = vmax.f32 %v3305, %v3602
        %v3661 = vmax.f32 %v3307, %v3604
        %v3662 = vmax.f32 %v3309, %v3606
        %v3663 = vmax.f32 %v3311, %v3608
        %v3664 = vmax.f32 %v3315, %v3612
        %v3665 = vmax.f32 %v3317, %v3614
        %v3666 = vmax.f32 %v3319, %v3616
        %v3667 = vmax.f32 %v3321, %v3618
        %v3668 = vpack.c.bf16 %v3622, %v3620
        %v3669 = vpack.c.bf16 %v3623, %v3621
        %v3670 = vpack.c.bf16 %v3628, %v3626
        %v3671 = vpack.c.bf16 %v3629, %v3627
        %v3672 = vpack.c.bf16 %v3634, %v3632
        %v3673 = vpack.c.bf16 %v3635, %v3633
        %v3674 = vpack.c.bf16 %v3640, %v3638
        %v3675 = vpack.c.bf16 %v3641, %v3639
        %v3676 = vpack.c.bf16 %v3646, %v3644
        %v3677 = vpack.c.bf16 %v3647, %v3645
        %v3678 = vpack.c.bf16 %v3652, %v3650
        %v3679 = vpack.c.bf16 %v3653, %v3651
        %v3680 = vpack.c.bf16 %v3658, %v3656
        %v3681 = vpack.c.bf16 %v3659, %v3657
        %v3682 = vpack.c.bf16 %v3664, %v3662
        %v3683 = vpack.c.bf16 %v3665, %v3663
        %v3684 = vld [vmem:[%s3] sm:$0xff]
        %v3685 = vld [vmem:[%s3 + $0x8] sm:$0xff]
        %v3686 = vld [vmem:[%s3 + $0x10] sm:$0xff]
        %v3687 = vld [vmem:[%s3 + $0x18] sm:$0xff]
        %v3688 = vld [vmem:[%s3 + $0x20] sm:$0xff]
        %v3689 = vld [vmem:[%s3 + $0x28] sm:$0xff]
        %v3690 = vld [vmem:[%s3 + $0x30] sm:$0xff]
        %v3691 = vld [vmem:[%s3 + $0x38] sm:$0xff]
        %v3692 = vld [vmem:[%s3 + $0x40] sm:$0xff]
        %v3693 = vld [vmem:[%s3 + $0x48] sm:$0xff]
        %v3694 = vld [vmem:[%s3 + $0x50] sm:$0xff]
        %v3695 = vld [vmem:[%s3 + $0x58] sm:$0xff]
        %v3696 = vld [vmem:[%s3 + $0x60] sm:$0xff]
        %v3697 = vld [vmem:[%s3 + $0x68] sm:$0xff]
        %v3698 = vld [vmem:[%s3 + $0x70] sm:$0xff]
        %v3699 = vld [vmem:[%s3 + $0x78] sm:$0xff]
        %v3700 = vld [vmem:[%s3 + $0x80] sm:$0xff]
        %v3701 = vld [vmem:[%s3 + $0x88] sm:$0xff]
        %v3702 = vld [vmem:[%s3 + $0x90] sm:$0xff]
        %v3703 = vld [vmem:[%s3 + $0x98] sm:$0xff]
        %v3704 = vld [vmem:[%s3 + $0xa0] sm:$0xff]
        %v3705 = vld [vmem:[%s3 + $0xa8] sm:$0xff]
        %v3706 = vld [vmem:[%s3 + $0xb0] sm:$0xff]
        %v3707 = vld [vmem:[%s3 + $0xb8] sm:$0xff]
        %v3708 = vld [vmem:[%s3 + $0xc0] sm:$0xff]
        %v3709 = vld [vmem:[%s3 + $0xc8] sm:$0xff]
        %v3710 = vld [vmem:[%s3 + $0xd0] sm:$0xff]
        %vm3759 = vcmask 1046528
        %v3760 = vrot.slane %v3620, 1
        %v3761 = vrot.slane %v3622, 1
        %v3762 = vsel %vm3759, %v3760, %v3761
        %v3763 = vrot.slane %v3621, 1
        %v3764 = vrot.slane %v3623, 1
        %v3765 = vsel %vm3759, %v3763, %v3764
        %v3766 = vrot.slane %v3624, 1
        %v3767 = vsel %vm3759, %v3761, %v3766
        %v3768 = vrot.slane %v3625, 1
        %v3769 = vsel %vm3759, %v3764, %v3768
        %v3770 = vrot.slane %v3626, 1
        %v3771 = vrot.slane %v3628, 1
        %v3772 = vsel %vm3759, %v3770, %v3771
        %v3773 = vrot.slane %v3627, 1
        %v3774 = vrot.slane %v3629, 1
        %v3775 = vsel %vm3759, %v3773, %v3774
        %v3776 = vrot.slane %v3630, 1
        %v3777 = vsel %vm3759, %v3771, %v3776
        %v3778 = vrot.slane %v3631, 1
        %v3779 = vsel %vm3759, %v3774, %v3778
        %v3780 = vrot.slane %v3632, 1
        %v3781 = vrot.slane %v3634, 1
        %v3782 = vsel %vm3759, %v3780, %v3781
        %v3783 = vrot.slane %v3633, 1
        %v3784 = vrot.slane %v3635, 1
        %v3785 = vsel %vm3759, %v3783, %v3784
        %v3786 = vrot.slane %v3636, 1
        %v3787 = vsel %vm3759, %v3781, %v3786
        %v3788 = vrot.slane %v3637, 1
        %v3789 = vsel %vm3759, %v3784, %v3788
        %v3790 = vrot.slane %v3638, 1
        %v3791 = vrot.slane %v3640, 1
        %v3792 = vsel %vm3759, %v3790, %v3791
        %v3793 = vrot.slane %v3639, 1
        %v3794 = vrot.slane %v3641, 1
        %v3795 = vsel %vm3759, %v3793, %v3794
        %v3796 = vrot.slane %v3642, 1
        %v3797 = vsel %vm3759, %v3791, %v3796
        %v3798 = vrot.slane %v3643, 1
        %v3799 = vsel %vm3759, %v3794, %v3798
        %v3800 = vrot.slane %v3644, 1
        %v3801 = vrot.slane %v3646, 1
        %v3802 = vsel %vm3759, %v3800, %v3801
        %v3803 = vrot.slane %v3645, 1
        %v3804 = vrot.slane %v3647, 1
        %v3805 = vsel %vm3759, %v3803, %v3804
        %v3806 = vrot.slane %v3648, 1
        %v3807 = vsel %vm3759, %v3801, %v3806
        %v3808 = vrot.slane %v3649, 1
        %v3809 = vsel %vm3759, %v3804, %v3808
        %v3810 = vrot.slane %v3650, 1
        %v3811 = vrot.slane %v3652, 1
        %v3812 = vsel %vm3759, %v3810, %v3811
        %v3813 = vrot.slane %v3651, 1
        %v3814 = vrot.slane %v3653, 1
        %v3815 = vsel %vm3759, %v3813, %v3814
        %v3816 = vrot.slane %v3654, 1
        %v3817 = vsel %vm3759, %v3811, %v3816
        %v3818 = vrot.slane %v3655, 1
        %v3819 = vsel %vm3759, %v3814, %v3818
        %v3820 = vrot.slane %v3656, 1
        %v3821 = vrot.slane %v3658, 1
        %v3822 = vsel %vm3759, %v3820, %v3821
        %v3823 = vrot.slane %v3657, 1
        %v3824 = vrot.slane %v3659, 1
        %v3825 = vsel %vm3759, %v3823, %v3824
        %v3826 = vrot.slane %v3660, 1
        %v3827 = vsel %vm3759, %v3821, %v3826
        %v3828 = vrot.slane %v3661, 1
        %v3829 = vsel %vm3759, %v3824, %v3828
        %v3830 = vrot.slane %v3662, 1
        %v3831 = vrot.slane %v3664, 1
        %v3832 = vsel %vm3759, %v3830, %v3831
        %v3833 = vrot.slane %v3663, 1
        %v3834 = vrot.slane %v3665, 1
        %v3835 = vsel %vm3759, %v3833, %v3834
        %v3836 = vrot.slane %v3666, 1
        %v3837 = vsel %vm3759, %v3831, %v3836
        %v3838 = vrot.slane %v3667, 1
        %v3839 = vsel %vm3759, %v3834, %v3838
        %v3872 = vpack.c.bf16 %v3767, %v3762
        %v3873 = vpack.c.bf16 %v3769, %v3765
        %v3874 = vpack.c.bf16 %v3777, %v3772
        %v3875 = vpack.c.bf16 %v3779, %v3775
        %v3876 = vpack.c.bf16 %v3787, %v3782
        %v3877 = vpack.c.bf16 %v3789, %v3785
        %v3878 = vpack.c.bf16 %v3797, %v3792
        %v3879 = vpack.c.bf16 %v3799, %v3795
        %v3880 = vpack.c.bf16 %v3807, %v3802
        %v3881 = vpack.c.bf16 %v3809, %v3805
        %v3882 = vpack.c.bf16 %v3817, %v3812
        %v3883 = vpack.c.bf16 %v3819, %v3815
        %v3884 = vpack.c.bf16 %v3827, %v3822
        %v3885 = vpack.c.bf16 %v3829, %v3825
        %v3886 = vpack.c.bf16 %v3837, %v3832
        %v3887 = vpack.c.bf16 %v3839, %v3835
        %s3888 = scalar_lea.vmem %s3, 216
        %v3889 = vld [vmem:[%s3888] sm:$0xff]
        %v3890 = vld [vmem:[%s3888 + $0x8] sm:$0xff]
        %v3891 = vld [vmem:[%s3888 + $0x10] sm:$0xff]
        %v3892 = vld [vmem:[%s3888 + $0x18] sm:$0xff]
        %v3893 = vld [vmem:[%s3888 + $0x20] sm:$0xff]
        %v3894 = vld [vmem:[%s3888 + $0x28] sm:$0xff]
        %v3895 = vld [vmem:[%s3888 + $0x30] sm:$0xff]
        %v3896 = vld [vmem:[%s3888 + $0x38] sm:$0xff]
        %v3897 = vld [vmem:[%s3888 + $0x40] sm:$0xff]
        %v3898 = vld [vmem:[%s3888 + $0x48] sm:$0xff]
        %v3899 = vld [vmem:[%s3888 + $0x50] sm:$0xff]
        %v3900 = vld [vmem:[%s3888 + $0x58] sm:$0xff]
        %v3901 = vld [vmem:[%s3888 + $0x60] sm:$0xff]
        %v3902 = vld [vmem:[%s3888 + $0x68] sm:$0xff]
        %v3903 = vld [vmem:[%s3888 + $0x70] sm:$0xff]
        %v3904 = vld [vmem:[%s3888 + $0x78] sm:$0xff]
        %v3905 = vld [vmem:[%s3888 + $0x80] sm:$0xff]
        %v3906 = vld [vmem:[%s3888 + $0x88] sm:$0xff]
        %v3907 = vld [vmem:[%s3888 + $0x90] sm:$0xff]
        %v3908 = vld [vmem:[%s3888 + $0x98] sm:$0xff]
        %v3909 = vld [vmem:[%s3888 + $0xa0] sm:$0xff]
        %v3910 = vld [vmem:[%s3888 + $0xa8] sm:$0xff]
        %v3911 = vld [vmem:[%s3888 + $0xb0] sm:$0xff]
        %v3912 = vld [vmem:[%s3888 + $0xb8] sm:$0xff]
        %v3913 = vld [vmem:[%s3888 + $0xc0] sm:$0xff]
        %v3914 = vld [vmem:[%s3888 + $0xc8] sm:$0xff]
        %v3915 = vld [vmem:[%s3888 + $0xd0] sm:$0xff]
        %v3943 = vunpack.c.l.b16 %v3889
        %v3944 = vunpack.c.h.b16 %v3889
        %v3945 = vunpack.c.l.b16 %v3890
        %v3946 = vunpack.c.h.b16 %v3890
        %v3947 = vunpack.c.l.b16 %v3891
        %v3948 = vunpack.c.h.b16 %v3891
        %v3949 = vunpack.c.l.b16 %v3892
        %v3950 = vunpack.c.h.b16 %v3892
        %v3951 = vunpack.c.l.b16 %v3893
        %v3952 = vunpack.c.h.b16 %v3893
        %v3953 = vunpack.c.l.b16 %v3894
        %v3954 = vunpack.c.h.b16 %v3894
        %v3955 = vunpack.c.l.b16 %v3895
        %v3956 = vunpack.c.h.b16 %v3895
        %v3957 = vunpack.c.l.b16 %v3896
        %v3958 = vunpack.c.h.b16 %v3896
        %v3959 = vunpack.c.l.b16 %v3897
        %v3960 = vunpack.c.h.b16 %v3897
        %v3961 = vunpack.c.l.b16 %v3898
        %v3962 = vunpack.c.h.b16 %v3898
        %v3963 = vunpack.c.l.b16 %v3899
        %v3964 = vunpack.c.h.b16 %v3899
        %v3965 = vunpack.c.l.b16 %v3900
        %v3966 = vunpack.c.h.b16 %v3900
        %v3967 = vunpack.c.l.b16 %v3901
        %v3968 = vunpack.c.h.b16 %v3901
        %v3969 = vunpack.c.l.b16 %v3902
        %v3970 = vunpack.c.h.b16 %v3902
        %v3971 = vunpack.c.l.b16 %v3903
        %v3972 = vunpack.c.h.b16 %v3903
        %v3973 = vunpack.c.l.b16 %v3904
        %v3974 = vunpack.c.h.b16 %v3904
        %v3975 = vunpack.c.l.b16 %v3905
        %v3976 = vunpack.c.h.b16 %v3905
        %v3977 = vunpack.c.l.b16 %v3906
        %v3978 = vunpack.c.h.b16 %v3906
        %v3979 = vunpack.c.l.b16 %v3907
        %v3980 = vunpack.c.h.b16 %v3907
        %v3981 = vunpack.c.l.b16 %v3908
        %v3982 = vunpack.c.h.b16 %v3908
        %v3983 = vunpack.c.l.b16 %v3909
        %v3984 = vunpack.c.h.b16 %v3909
        %v3985 = vunpack.c.l.b16 %v3910
        %v3986 = vunpack.c.h.b16 %v3910
        %v3987 = vunpack.c.l.b16 %v3911
        %v3988 = vunpack.c.h.b16 %v3911
        %v3989 = vunpack.c.l.b16 %v3912
        %v3990 = vunpack.c.h.b16 %v3912
        %v3991 = vunpack.c.l.b16 %v3913
        %v3992 = vunpack.c.h.b16 %v3913
        %v3993 = vunpack.c.l.b16 %v3914
        %v3994 = vunpack.c.h.b16 %v3914
        %v3995 = vunpack.c.l.b16 %v3915
        %v3996 = vunpack.c.h.b16 %v3915
        %v3997 = vpack.c.b16 %v3945, %v3943
        %v3998 = vpack.c.b16 %v3946, %v3944
        %v3999 = vpack.c.b16 %v3949, %v3947
        %v4000 = vpack.c.b16 %v3950, %v3948
        %v4001 = vpack.c.b16 %v3953, %v3951
        %v4002 = vpack.c.b16 %v3954, %v3952
        %v4003 = vpack.c.b16 %v3957, %v3955
        %v4004 = vpack.c.b16 %v3958, %v3956
        %v4005 = vpack.c.b16 %v3961, %v3959
        %v4006 = vpack.c.b16 %v3962, %v3960
        %v4007 = vpack.c.b16 %v3965, %v3963
        %v4008 = vpack.c.b16 %v3966, %v3964
        %v4009 = vpack.c.b16 %v3969, %v3967
        %v4010 = vpack.c.b16 %v3970, %v3968
        %v4011 = vpack.c.b16 %v3973, %v3971
        %v4012 = vpack.c.b16 %v3974, %v3972
        %v4013 = vpack.c.b16 %v3977, %v3975
        %v4014 = vpack.c.b16 %v3978, %v3976
        %v4015 = vpack.c.b16 %v3981, %v3979
        %v4016 = vpack.c.b16 %v3982, %v3980
        %v4017 = vpack.c.b16 %v3985, %v3983
        %v4018 = vpack.c.b16 %v3986, %v3984
        %v4019 = vpack.c.b16 %v3989, %v3987
        %v4020 = vpack.c.b16 %v3990, %v3988
        %v4021 = vpack.c.b16 %v3993, %v3991
        %v4022 = vpack.c.b16 %v3994, %v3992
        %v4023 = vpack.c.b16 %v3995, %v3995
        %v4024 = vpack.c.b16 %v3996, %v3996
        %vm4051 = vcmask 719872
        %v4053 = vsel %vm4051, %v3873, 0
        %v4056 = vsel %vm4051, %v3875, 0
        %v4059 = vsel %vm4051, %v3877, 0
        %v4062 = vsel %vm4051, %v3879, 0
        %v4065 = vsel %vm4051, %v3881, 0
        %v4068 = vsel %vm4051, %v3883, 0
        %v4071 = vsel %vm4051, %v3885, 0
        %v4074 = vsel %vm4051, %v3887, 0
        %vm4076 = vcmask 1043456
        %v4078 = vsel %vm4076, %v4023, 0
        %v4081 = vsel %vm4076, %v4024, 0
        %4083 = vmatprep.subr.bf16.mxu0 %v3998
        %4084 = vmatpush1.bf16.msra.mxu0 %v3997
        %4085 = vmatprep.subr.bf16.mxu0 %v4000
        %4086 = vmatpush1.bf16.msra.mxu0 %v3999
        %4087 = vmatprep.subr.bf16.mxu0 %v4002
        %4088 = vmatpush1.bf16.msra.mxu0 %v4001
        %4089 = vmatprep.subr.bf16.mxu0 %v4004
        %4090 = vmatpush1.bf16.msra.mxu0 %v4003
        %4091 = vmatprep.subr.bf16.mxu0 %v4006
        %4092 = vmatpush1.bf16.msra.mxu0 %v4005
        %4093 = vmatprep.subr.bf16.mxu0 %v4008
        %4094 = vmatpush1.bf16.msra.mxu0 %v4007
        %4095 = vmatprep.subr.bf16.mxu0 %v4010
        %4096 = vmatpush1.bf16.msra.mxu0 %v4009
        %4097 = vmatprep.subr.bf16.mxu0 %v4012
        %4098 = vmatpush1.bf16.msra.mxu0 %v4011
        %4099 = vmatprep.subr.bf16.mxu0 %v4014
        %4100 = vmatpush1.bf16.msra.mxu0 %v4013
        %4101 = vmatprep.subr.bf16.mxu0 %v4016
        %4102 = vmatpush1.bf16.msra.mxu0 %v4015
        %4103 = vmatprep.subr.bf16.mxu0 %v4018
        %4104 = vmatpush1.bf16.msra.mxu0 %v4017
        %4105 = vmatprep.subr.bf16.mxu0 %v4020
        %4106 = vmatpush1.bf16.msra.mxu0 %v4019
        %4107 = vmatprep.subr.bf16.mxu0 %v4022
        %4108 = vmatpush1.bf16.msra.mxu0 %v4021
        %4109 = vmatprep.subr.bf16.mxu0 %v4081
        %4110 = vmatpush1.bf16.msra.mxu0 %v4078
        %4111 = vmatprep.subr.bf16.mxu0 0
        %4112 = vmatpush1.bf16.msra.mxu0 0
        %4113 = vmatprep.subr.bf16.mxu0 0
        %4114 = vmatpush1.bf16.msra.mxu0 0
        %4115 = vmatprep.mubr.bf16.mxu0 %v4053
        %4116 = vmatmul.mubr.bf16.gmra.mrb[0].mxu0 %v3872
        %v4117 = vpop.f32.mrb[0].mxu0
        %v4118 = vadd.f32 0.0, %v4117
        %v4119 = vpop.f32.mrb[0].mxu0
        %v4120 = vadd.f32 0.0, %v4119
        %v4121 = vpop.f32.mrb[0].mxu0
        %v4122 = vadd.f32 0.0, %v4121
        %v4123 = vpop.f32.mrb[0].mxu0
        %v4124 = vadd.f32 0.0, %v4123
        %4125 = vmatprep.mubr.bf16.mxu0 %v4056
        %4126 = vmatmul.mubr.bf16.gmra.mrb[0].mxu0 %v3874
        %v4127 = vpop.f32.mrb[0].mxu0
        %v4128 = vadd.f32 0.0, %v4127
        %v4129 = vpop.f32.mrb[0].mxu0
        %v4130 = vadd.f32 0.0, %v4129
        %v4131 = vpop.f32.mrb[0].mxu0
        %v4132 = vadd.f32 0.0, %v4131
        %v4133 = vpop.f32.mrb[0].mxu0
        %v4134 = vadd.f32 0.0, %v4133
        %4135 = vmatprep.mubr.bf16.mxu0 %v4059
        %4136 = vmatmul.mubr.bf16.gmra.mrb[0].mxu0 %v3876
        %v4137 = vpop.f32.mrb[0].mxu0
        %v4138 = vadd.f32 0.0, %v4137
        %v4139 = vpop.f32.mrb[0].mxu0
        %v4140 = vadd.f32 0.0, %v4139
        %v4141 = vpop.f32.mrb[0].mxu0
        %v4142 = vadd.f32 0.0, %v4141
        %v4143 = vpop.f32.mrb[0].mxu0
        %v4144 = vadd.f32 0.0, %v4143
        %4145 = vmatprep.mubr.bf16.mxu0 %v4062
        %4146 = vmatmul.mubr.bf16.gmra.mrb[0].mxu0 %v3878
        %v4147 = vpop.f32.mrb[0].mxu0
        %v4148 = vadd.f32 0.0, %v4147
        %v4149 = vpop.f32.mrb[0].mxu0
        %v4150 = vadd.f32 0.0, %v4149
        %v4151 = vpop.f32.mrb[0].mxu0
        %v4152 = vadd.f32 0.0, %v4151
        %v4153 = vpop.f32.mrb[0].mxu0
        %v4154 = vadd.f32 0.0, %v4153
        %4155 = vmatprep.mubr.bf16.mxu0 %v4065
        %4156 = vmatmul.mubr.bf16.gmra.mrb[0].mxu0 %v3880
        %v4157 = vpop.f32.mrb[0].mxu0
        %v4158 = vadd.f32 0.0, %v4157
        %v4159 = vpop.f32.mrb[0].mxu0
        %v4160 = vadd.f32 0.0, %v4159
        %v4161 = vpop.f32.mrb[0].mxu0
        %v4162 = vadd.f32 0.0, %v4161
        %v4163 = vpop.f32.mrb[0].mxu0
        %v4164 = vadd.f32 0.0, %v4163
        %4165 = vmatprep.mubr.bf16.mxu0 %v4068
        %4166 = vmatmul.mubr.bf16.gmra.mrb[0].mxu0 %v3882
        %v4167 = vpop.f32.mrb[0].mxu0
        %v4168 = vadd.f32 0.0, %v4167
        %v4169 = vpop.f32.mrb[0].mxu0
        %v4170 = vadd.f32 0.0, %v4169
        %v4171 = vpop.f32.mrb[0].mxu0
        %v4172 = vadd.f32 0.0, %v4171
        %v4173 = vpop.f32.mrb[0].mxu0
        %v4174 = vadd.f32 0.0, %v4173
        %4175 = vmatprep.mubr.bf16.mxu0 %v4071
        %4176 = vmatmul.mubr.bf16.gmra.mrb[0].mxu0 %v3884
        %v4177 = vpop.f32.mrb[0].mxu0
        %v4178 = vadd.f32 0.0, %v4177
        %v4179 = vpop.f32.mrb[0].mxu0
        %v4180 = vadd.f32 0.0, %v4179
        %v4181 = vpop.f32.mrb[0].mxu0
        %v4182 = vadd.f32 0.0, %v4181
        %v4183 = vpop.f32.mrb[0].mxu0
        %v4184 = vadd.f32 0.0, %v4183
        %4185 = vmatprep.mubr.bf16.mxu0 %v4074
        %4186 = vmatmul.mubr.bf16.gmra.mrb[0].mxu0 %v3886
        %v4187 = vpop.f32.mrb[0].mxu0
        %v4188 = vadd.f32 0.0, %v4187
        %v4189 = vpop.f32.mrb[0].mxu0
        %v4190 = vadd.f32 0.0, %v4189
        %v4191 = vpop.f32.mrb[0].mxu0
        %v4192 = vadd.f32 0.0, %v4191
        %v4193 = vpop.f32.mrb[0].mxu0
        %v4194 = vadd.f32 0.0, %v4193
        %4195 = vdwg.mxu0
        %v4223 = vunpack.c.l.b16 %v3684
        %v4224 = vunpack.c.h.b16 %v3684
        %v4225 = vunpack.c.l.b16 %v3685
        %v4226 = vunpack.c.h.b16 %v3685
        %v4227 = vunpack.c.l.b16 %v3686
        %v4228 = vunpack.c.h.b16 %v3686
        %v4229 = vunpack.c.l.b16 %v3687
        %v4230 = vunpack.c.h.b16 %v3687
        %v4231 = vunpack.c.l.b16 %v3688
        %v4232 = vunpack.c.h.b16 %v3688
        %v4233 = vunpack.c.l.b16 %v3689
        %v4234 = vunpack.c.h.b16 %v3689
        %v4235 = vunpack.c.l.b16 %v3690
        %v4236 = vunpack.c.h.b16 %v3690
        %v4237 = vunpack.c.l.b16 %v3691
        %v4238 = vunpack.c.h.b16 %v3691
        %v4239 = vunpack.c.l.b16 %v3692
        %v4240 = vunpack.c.h.b16 %v3692
        %v4241 = vunpack.c.l.b16 %v3693
        %v4242 = vunpack.c.h.b16 %v3693
        %v4243 = vunpack.c.l.b16 %v3694
        %v4244 = vunpack.c.h.b16 %v3694
        %v4245 = vunpack.c.l.b16 %v3695
        %v4246 = vunpack.c.h.b16 %v3695
        %v4247 = vunpack.c.l.b16 %v3696
        %v4248 = vunpack.c.h.b16 %v3696
        %v4249 = vunpack.c.l.b16 %v3697
        %v4250 = vunpack.c.h.b16 %v3697
        %v4251 = vunpack.c.l.b16 %v3698
        %v4252 = vunpack.c.h.b16 %v3698
        %v4253 = vunpack.c.l.b16 %v3699
        %v4254 = vunpack.c.h.b16 %v3699
        %v4255 = vunpack.c.l.b16 %v3700
        %v4256 = vunpack.c.h.b16 %v3700
        %v4257 = vunpack.c.l.b16 %v3701
        %v4258 = vunpack.c.h.b16 %v3701
        %v4259 = vunpack.c.l.b16 %v3702
        %v4260 = vunpack.c.h.b16 %v3702
        %v4261 = vunpack.c.l.b16 %v3703
        %v4262 = vunpack.c.h.b16 %v3703
        %v4263 = vunpack.c.l.b16 %v3704
        %v4264 = vunpack.c.h.b16 %v3704
        %v4265 = vunpack.c.l.b16 %v3705
        %v4266 = vunpack.c.h.b16 %v3705
        %v4267 = vunpack.c.l.b16 %v3706
        %v4268 = vunpack.c.h.b16 %v3706
        %v4269 = vunpack.c.l.b16 %v3707
        %v4270 = vunpack.c.h.b16 %v3707
        %v4271 = vunpack.c.l.b16 %v3708
        %v4272 = vunpack.c.h.b16 %v3708
        %v4273 = vunpack.c.l.b16 %v3709
        %v4274 = vunpack.c.h.b16 %v3709
        %v4275 = vunpack.c.l.b16 %v3710
        %v4276 = vunpack.c.h.b16 %v3710
        %v4277 = vpack.c.b16 %v4225, %v4223
        %v4278 = vpack.c.b16 %v4226, %v4224
        %v4279 = vpack.c.b16 %v4229, %v4227
        %v4280 = vpack.c.b16 %v4230, %v4228
        %v4281 = vpack.c.b16 %v4233, %v4231
        %v4282 = vpack.c.b16 %v4234, %v4232
        %v4283 = vpack.c.b16 %v4237, %v4235
        %v4284 = vpack.c.b16 %v4238, %v4236
        %v4285 = vpack.c.b16 %v4241, %v4239
        %v4286 = vpack.c.b16 %v4242, %v4240
        %v4287 = vpack.c.b16 %v4245, %v4243
        %v4288 = vpack.c.b16 %v4246, %v4244
        %v4289 = vpack.c.b16 %v4249, %v4247
        %v4290 = vpack.c.b16 %v4250, %v4248
        %v4291 = vpack.c.b16 %v4253, %v4251
        %v4292 = vpack.c.b16 %v4254, %v4252
        %v4293 = vpack.c.b16 %v4257, %v4255
        %v4294 = vpack.c.b16 %v4258, %v4256
        %v4295 = vpack.c.b16 %v4261, %v4259
        %v4296 = vpack.c.b16 %v4262, %v4260
        %v4297 = vpack.c.b16 %v4265, %v4263
        %v4298 = vpack.c.b16 %v4266, %v4264
        %v4299 = vpack.c.b16 %v4269, %v4267
        %v4300 = vpack.c.b16 %v4270, %v4268
        %v4301 = vpack.c.b16 %v4273, %v4271
        %v4302 = vpack.c.b16 %v4274, %v4272
        %v4303 = vpack.c.b16 %v4275, %v4275
        %v4304 = vpack.c.b16 %v4276, %v4276
        %v4332 = vsel %vm4051, %v3669, 0
        %v4335 = vsel %vm4051, %v3671, 0
        %v4338 = vsel %vm4051, %v3673, 0
        %v4341 = vsel %vm4051, %v3675, 0
        %v4344 = vsel %vm4051, %v3677, 0
        %v4347 = vsel %vm4051, %v3679, 0
        %v4350 = vsel %vm4051, %v3681, 0
        %v4353 = vsel %vm4051, %v3683, 0
        %v4356 = vsel %vm4076, %v4303, 0
        %v4359 = vsel %vm4076, %v4304, 0
        %4361 = vmatprep.subr.bf16.mxu0 %v4278
        %4362 = vmatpush1.bf16.msra.mxu0 %v4277
        %4363 = vmatprep.subr.bf16.mxu0 %v4280
        %4364 = vmatpush1.bf16.msra.mxu0 %v4279
        %4365 = vmatprep.subr.bf16.mxu0 %v4282
        %4366 = vmatpush1.bf16.msra.mxu0 %v4281
        %4367 = vmatprep.subr.bf16.mxu0 %v4284
        %4368 = vmatpush1.bf16.msra.mxu0 %v4283
        %4369 = vmatprep.subr.bf16.mxu0 %v4286
        %4370 = vmatpush1.bf16.msra.mxu0 %v4285
        %4371 = vmatprep.subr.bf16.mxu0 %v4288
        %4372 = vmatpush1.bf16.msra.mxu0 %v4287
        %4373 = vmatprep.subr.bf16.mxu0 %v4290
        %4374 = vmatpush1.bf16.msra.mxu0 %v4289
        %4375 = vmatprep.subr.bf16.mxu0 %v4292
        %4376 = vmatpush1.bf16.msra.mxu0 %v4291
        %4377 = vmatprep.subr.bf16.mxu0 %v4294
        %4378 = vmatpush1.bf16.msra.mxu0 %v4293
        %4379 = vmatprep.subr.bf16.mxu0 %v4296
        %4380 = vmatpush1.bf16.msra.mxu0 %v4295
        %4381 = vmatprep.subr.bf16.mxu0 %v4298
        %4382 = vmatpush1.bf16.msra.mxu0 %v4297
        %4383 = vmatprep.subr.bf16.mxu0 %v4300
        %4384 = vmatpush1.bf16.msra.mxu0 %v4299
        %4385 = vmatprep.subr.bf16.mxu0 %v4302
        %4386 = vmatpush1.bf16.msra.mxu0 %v4301
        %4387 = vmatprep.subr.bf16.mxu0 %v4359
        %4388 = vmatpush1.bf16.msra.mxu0 %v4356
        %4389 = vmatprep.subr.bf16.mxu0 0
        %4390 = vmatpush1.bf16.msra.mxu0 0
        %4391 = vmatprep.subr.bf16.mxu0 0
        %4392 = vmatpush1.bf16.msra.mxu0 0
        %4393 = vmatprep.mubr.bf16.mxu0 %v4332
        %4394 = vmatmul.mubr.bf16.gmra.mrb[0].mxu0 %v3668
        %v4395 = vpop.f32.mrb[0].mxu0
        %v4396 = vadd.f32 %v4118, %v4395
        %v4397 = vpop.f32.mrb[0].mxu0
        %v4398 = vadd.f32 %v4120, %v4397
        %v4399 = vpop.f32.mrb[0].mxu0
        %v4400 = vadd.f32 %v4122, %v4399
        %v4401 = vpop.f32.mrb[0].mxu0
        %v4402 = vadd.f32 %v4124, %v4401
        %4403 = vmatprep.mubr.bf16.mxu0 %v4335
        %4404 = vmatmul.mubr.bf16.gmra.mrb[0].mxu0 %v3670
        %v4405 = vpop.f32.mrb[0].mxu0
        %v4406 = vadd.f32 %v4128, %v4405
        %v4407 = vpop.f32.mrb[0].mxu0
        %v4408 = vadd.f32 %v4130, %v4407
        %v4409 = vpop.f32.mrb[0].mxu0
        %v4410 = vadd.f32 %v4132, %v4409
        %v4411 = vpop.f32.mrb[0].mxu0
        %v4412 = vadd.f32 %v4134, %v4411
        %4413 = vmatprep.mubr.bf16.mxu0 %v4338
        %4414 = vmatmul.mubr.bf16.gmra.mrb[0].mxu0 %v3672
        %v4415 = vpop.f32.mrb[0].mxu0
        %v4416 = vadd.f32 %v4138, %v4415
        %v4417 = vpop.f32.mrb[0].mxu0
        %v4418 = vadd.f32 %v4140, %v4417
        %v4419 = vpop.f32.mrb[0].mxu0
        %v4420 = vadd.f32 %v4142, %v4419
        %v4421 = vpop.f32.mrb[0].mxu0
        %v4422 = vadd.f32 %v4144, %v4421
        %4423 = vmatprep.mubr.bf16.mxu0 %v4341
        %4424 = vmatmul.mubr.bf16.gmra.mrb[0].mxu0 %v3674
        %v4425 = vpop.f32.mrb[0].mxu0
        %v4426 = vadd.f32 %v4148, %v4425
        %v4427 = vpop.f32.mrb[0].mxu0
        %v4428 = vadd.f32 %v4150, %v4427
        %v4429 = vpop.f32.mrb[0].mxu0
        %v4430 = vadd.f32 %v4152, %v4429
        %v4431 = vpop.f32.mrb[0].mxu0
        %v4432 = vadd.f32 %v4154, %v4431
        %4433 = vmatprep.mubr.bf16.mxu0 %v4344
        %4434 = vmatmul.mubr.bf16.gmra.mrb[0].mxu0 %v3676
        %v4435 = vpop.f32.mrb[0].mxu0
        %v4436 = vadd.f32 %v4158, %v4435
        %v4437 = vpop.f32.mrb[0].mxu0
        %v4438 = vadd.f32 %v4160, %v4437
        %v4439 = vpop.f32.mrb[0].mxu0
        %v4440 = vadd.f32 %v4162, %v4439
        %v4441 = vpop.f32.mrb[0].mxu0
        %v4442 = vadd.f32 %v4164, %v4441
        %4443 = vmatprep.mubr.bf16.mxu0 %v4347
        %4444 = vmatmul.mubr.bf16.gmra.mrb[0].mxu0 %v3678
        %v4445 = vpop.f32.mrb[0].mxu0
        %v4446 = vadd.f32 %v4168, %v4445
        %v4447 = vpop.f32.mrb[0].mxu0
        %v4448 = vadd.f32 %v4170, %v4447
        %v4449 = vpop.f32.mrb[0].mxu0
        %v4450 = vadd.f32 %v4172, %v4449
        %v4451 = vpop.f32.mrb[0].mxu0
        %v4452 = vadd.f32 %v4174, %v4451
        %4453 = vmatprep.mubr.bf16.mxu0 %v4350
        %4454 = vmatmul.mubr.bf16.gmra.mrb[0].mxu0 %v3680
        %v4455 = vpop.f32.mrb[0].mxu0
        %v4456 = vadd.f32 %v4178, %v4455
        %v4457 = vpop.f32.mrb[0].mxu0
        %v4458 = vadd.f32 %v4180, %v4457
        %v4459 = vpop.f32.mrb[0].mxu0
        %v4460 = vadd.f32 %v4182, %v4459
        %v4461 = vpop.f32.mrb[0].mxu0
        %v4462 = vadd.f32 %v4184, %v4461
        %4463 = vmatprep.mubr.bf16.mxu0 %v4353
        %4464 = vmatmul.mubr.bf16.gmra.mrb[0].mxu0 %v3682
        %v4465 = vpop.f32.mrb[0].mxu0
        %v4466 = vadd.f32 %v4188, %v4465
        %v4467 = vpop.f32.mrb[0].mxu0
        %v4468 = vadd.f32 %v4190, %v4467
        %v4469 = vpop.f32.mrb[0].mxu0
        %v4470 = vadd.f32 %v4192, %v4469
        %v4471 = vpop.f32.mrb[0].mxu0
        %v4472 = vadd.f32 %v4194, %v4471
        %4473 = vdwg.mxu0
        %vm4474 = vcmask 1045504
        %v4475 = vrot.slane %v3620, 2
        %v4476 = vrot.slane %v3622, 2
        %v4477 = vsel %vm4474, %v4475, %v4476
        %v4478 = vrot.slane %v3621, 2
        %v4479 = vrot.slane %v3623, 2
        %v4480 = vsel %vm4474, %v4478, %v4479
        %v4481 = vrot.slane %v3624, 2
        %v4482 = vsel %vm4474, %v4476, %v4481
        %v4483 = vrot.slane %v3625, 2
        %v4484 = vsel %vm4474, %v4479, %v4483
        %v4485 = vrot.slane %v3626, 2
        %v4486 = vrot.slane %v3628, 2
        %v4487 = vsel %vm4474, %v4485, %v4486
        %v4488 = vrot.slane %v3627, 2
        %v4489 = vrot.slane %v3629, 2
        %v4490 = vsel %vm4474, %v4488, %v4489
        %v4491 = vrot.slane %v3630, 2
        %v4492 = vsel %vm4474, %v4486, %v4491
        %v4493 = vrot.slane %v3631, 2
        %v4494 = vsel %vm4474, %v4489, %v4493
        %v4495 = vrot.slane %v3632, 2
        %v4496 = vrot.slane %v3634, 2
        %v4497 = vsel %vm4474, %v4495, %v4496
        %v4498 = vrot.slane %v3633, 2
        %v4499 = vrot.slane %v3635, 2
        %v4500 = vsel %vm4474, %v4498, %v4499
        %v4501 = vrot.slane %v3636, 2
        %v4502 = vsel %vm4474, %v4496, %v4501
        %v4503 = vrot.slane %v3637, 2
        %v4504 = vsel %vm4474, %v4499, %v4503
        %v4505 = vrot.slane %v3638, 2
        %v4506 = vrot.slane %v3640, 2
        %v4507 = vsel %vm4474, %v4505, %v4506
        %v4508 = vrot.slane %v3639, 2
        %v4509 = vrot.slane %v3641, 2
        %v4510 = vsel %vm4474, %v4508, %v4509
        %v4511 = vrot.slane %v3642, 2
        %v4512 = vsel %vm4474, %v4506, %v4511
        %v4513 = vrot.slane %v3643, 2
        %v4514 = vsel %vm4474, %v4509, %v4513
        %v4515 = vrot.slane %v3644, 2
        %v4516 = vrot.slane %v3646, 2
        %v4517 = vsel %vm4474, %v4515, %v4516
        %v4518 = vrot.slane %v3645, 2
        %v4519 = vrot.slane %v3647, 2
        %v4520 = vsel %vm4474, %v4518, %v4519
        %v4521 = vrot.slane %v3648, 2
        %v4522 = vsel %vm4474, %v4516, %v4521
        %v4523 = vrot.slane %v3649, 2
        %v4524 = vsel %vm4474, %v4519, %v4523
        %v4525 = vrot.slane %v3650, 2
        %v4526 = vrot.slane %v3652, 2
        %v4527 = vsel %vm4474, %v4525, %v4526
        %v4528 = vrot.slane %v3651, 2
        %v4529 = vrot.slane %v3653, 2
        %v4530 = vsel %vm4474, %v4528, %v4529
        %v4531 = vrot.slane %v3654, 2
        %v4532 = vsel %vm4474, %v4526, %v4531
        %v4533 = vrot.slane %v3655, 2
        %v4534 = vsel %vm4474, %v4529, %v4533
        %v4535 = vrot.slane %v3656, 2
        %v4536 = vrot.slane %v3658, 2
        %v4537 = vsel %vm4474, %v4535, %v4536
        %v4538 = vrot.slane %v3657, 2
        %v4539 = vrot.slane %v3659, 2
        %v4540 = vsel %vm4474, %v4538, %v4539
        %v4541 = vrot.slane %v3660, 2
        %v4542 = vsel %vm4474, %v4536, %v4541
        %v4543 = vrot.slane %v3661, 2
        %v4544 = vsel %vm4474, %v4539, %v4543
        %v4545 = vrot.slane %v3662, 2
        %v4546 = vrot.slane %v3664, 2
        %v4547 = vsel %vm4474, %v4545, %v4546
        %v4548 = vrot.slane %v3663, 2
        %v4549 = vrot.slane %v3665, 2
        %v4550 = vsel %vm4474, %v4548, %v4549
        %v4551 = vrot.slane %v3666, 2
        %v4552 = vsel %vm4474, %v4546, %v4551
        %v4553 = vrot.slane %v3667, 2
        %v4554 = vsel %vm4474, %v4549, %v4553
        %v4587 = vpack.c.bf16 %v4482, %v4477
        %v4588 = vpack.c.bf16 %v4484, %v4480
        %v4589 = vpack.c.bf16 %v4492, %v4487
        %v4590 = vpack.c.bf16 %v4494, %v4490
        %v4591 = vpack.c.bf16 %v4502, %v4497
        %v4592 = vpack.c.bf16 %v4504, %v4500
        %v4593 = vpack.c.bf16 %v4512, %v4507
        %v4594 = vpack.c.bf16 %v4514, %v4510
        %v4595 = vpack.c.bf16 %v4522, %v4517
        %v4596 = vpack.c.bf16 %v4524, %v4520
        %v4597 = vpack.c.bf16 %v4532, %v4527
        %v4598 = vpack.c.bf16 %v4534, %v4530
        %v4599 = vpack.c.bf16 %v4542, %v4537
        %v4600 = vpack.c.bf16 %v4544, %v4540
        %v4601 = vpack.c.bf16 %v4552, %v4547
        %v4602 = vpack.c.bf16 %v4554, %v4550
        %s4603 = scalar_lea.vmem %s3, 432
        %v4604 = vld [vmem:[%s4603] sm:$0xff]
        %v4605 = vld [vmem:[%s4603 + $0x8] sm:$0xff]
        %v4606 = vld [vmem:[%s4603 + $0x10] sm:$0xff]
        %v4607 = vld [vmem:[%s4603 + $0x18] sm:$0xff]
        %v4608 = vld [vmem:[%s4603 + $0x20] sm:$0xff]
        %v4609 = vld [vmem:[%s4603 + $0x28] sm:$0xff]
        %v4610 = vld [vmem:[%s4603 + $0x30] sm:$0xff]
        %v4611 = vld [vmem:[%s4603 + $0x38] sm:$0xff]
        %v4612 = vld [vmem:[%s4603 + $0x40] sm:$0xff]
        %v4613 = vld [vmem:[%s4603 + $0x48] sm:$0xff]
        %v4614 = vld [vmem:[%s4603 + $0x50] sm:$0xff]
        %v4615 = vld [vmem:[%s4603 + $0x58] sm:$0xff]
        %v4616 = vld [vmem:[%s4603 + $0x60] sm:$0xff]
        %v4617 = vld [vmem:[%s4603 + $0x68] sm:$0xff]
        %v4618 = vld [vmem:[%s4603 + $0x70] sm:$0xff]
        %v4619 = vld [vmem:[%s4603 + $0x78] sm:$0xff]
        %v4620 = vld [vmem:[%s4603 + $0x80] sm:$0xff]
        %v4621 = vld [vmem:[%s4603 + $0x88] sm:$0xff]
        %v4622 = vld [vmem:[%s4603 + $0x90] sm:$0xff]
        %v4623 = vld [vmem:[%s4603 + $0x98] sm:$0xff]
        %v4624 = vld [vmem:[%s4603 + $0xa0] sm:$0xff]
        %v4625 = vld [vmem:[%s4603 + $0xa8] sm:$0xff]
        %v4626 = vld [vmem:[%s4603 + $0xb0] sm:$0xff]
        %v4627 = vld [vmem:[%s4603 + $0xb8] sm:$0xff]
        %v4628 = vld [vmem:[%s4603 + $0xc0] sm:$0xff]
        %v4629 = vld [vmem:[%s4603 + $0xc8] sm:$0xff]
        %v4630 = vld [vmem:[%s4603 + $0xd0] sm:$0xff]
        %v4658 = vunpack.c.l.b16 %v4604
        %v4659 = vunpack.c.h.b16 %v4604
        %v4660 = vunpack.c.l.b16 %v4605
        %v4661 = vunpack.c.h.b16 %v4605
        %v4662 = vunpack.c.l.b16 %v4606
        %v4663 = vunpack.c.h.b16 %v4606
        %v4664 = vunpack.c.l.b16 %v4607
        %v4665 = vunpack.c.h.b16 %v4607
        %v4666 = vunpack.c.l.b16 %v4608
        %v4667 = vunpack.c.h.b16 %v4608
        %v4668 = vunpack.c.l.b16 %v4609
        %v4669 = vunpack.c.h.b16 %v4609
        %v4670 = vunpack.c.l.b16 %v4610
        %v4671 = vunpack.c.h.b16 %v4610
        %v4672 = vunpack.c.l.b16 %v4611
        %v4673 = vunpack.c.h.b16 %v4611
        %v4674 = vunpack.c.l.b16 %v4612
        %v4675 = vunpack.c.h.b16 %v4612
        %v4676 = vunpack.c.l.b16 %v4613
        %v4677 = vunpack.c.h.b16 %v4613
        %v4678 = vunpack.c.l.b16 %v4614
        %v4679 = vunpack.c.h.b16 %v4614
        %v4680 = vunpack.c.l.b16 %v4615
        %v4681 = vunpack.c.h.b16 %v4615
        %v4682 = vunpack.c.l.b16 %v4616
        %v4683 = vunpack.c.h.b16 %v4616
        %v4684 = vunpack.c.l.b16 %v4617
        %v4685 = vunpack.c.h.b16 %v4617
        %v4686 = vunpack.c.l.b16 %v4618
        %v4687 = vunpack.c.h.b16 %v4618
        %v4688 = vunpack.c.l.b16 %v4619
        %v4689 = vunpack.c.h.b16 %v4619
        %v4690 = vunpack.c.l.b16 %v4620
        %v4691 = vunpack.c.h.b16 %v4620
        %v4692 = vunpack.c.l.b16 %v4621
        %v4693 = vunpack.c.h.b16 %v4621
        %v4694 = vunpack.c.l.b16 %v4622
        %v4695 = vunpack.c.h.b16 %v4622
        %v4696 = vunpack.c.l.b16 %v4623
        %v4697 = vunpack.c.h.b16 %v4623
        %v4698 = vunpack.c.l.b16 %v4624
        %v4699 = vunpack.c.h.b16 %v4624
        %v4700 = vunpack.c.l.b16 %v4625
        %v4701 = vunpack.c.h.b16 %v4625
        %v4702 = vunpack.c.l.b16 %v4626
        %v4703 = vunpack.c.h.b16 %v4626
        %v4704 = vunpack.c.l.b16 %v4627
        %v4705 = vunpack.c.h.b16 %v4627
        %v4706 = vunpack.c.l.b16 %v4628
        %v4707 = vunpack.c.h.b16 %v4628
        %v4708 = vunpack.c.l.b16 %v4629
        %v4709 = vunpack.c.h.b16 %v4629
        %v4710 = vunpack.c.l.b16 %v4630
        %v4711 = vunpack.c.h.b16 %v4630
        %v4712 = vpack.c.b16 %v4660, %v4658
        %v4713 = vpack.c.b16 %v4661, %v4659
        %v4714 = vpack.c.b16 %v4664, %v4662
        %v4715 = vpack.c.b16 %v4665, %v4663
        %v4716 = vpack.c.b16 %v4668, %v4666
        %v4717 = vpack.c.b16 %v4669, %v4667
        %v4718 = vpack.c.b16 %v4672, %v4670
        %v4719 = vpack.c.b16 %v4673, %v4671
        %v4720 = vpack.c.b16 %v4676, %v4674
        %v4721 = vpack.c.b16 %v4677, %v4675
        %v4722 = vpack.c.b16 %v4680, %v4678
        %v4723 = vpack.c.b16 %v4681, %v4679
        %v4724 = vpack.c.b16 %v4684, %v4682
        %v4725 = vpack.c.b16 %v4685, %v4683
        %v4726 = vpack.c.b16 %v4688, %v4686
        %v4727 = vpack.c.b16 %v4689, %v4687
        %v4728 = vpack.c.b16 %v4692, %v4690
        %v4729 = vpack.c.b16 %v4693, %v4691
        %v4730 = vpack.c.b16 %v4696, %v4694
        %v4731 = vpack.c.b16 %v4697, %v4695
        %v4732 = vpack.c.b16 %v4700, %v4698
        %v4733 = vpack.c.b16 %v4701, %v4699
        %v4734 = vpack.c.b16 %v4704, %v4702
        %v4735 = vpack.c.b16 %v4705, %v4703
        %v4736 = vpack.c.b16 %v4708, %v4706
        %v4737 = vpack.c.b16 %v4709, %v4707
        %v4738 = vpack.c.b16 %v4710, %v4710
        %v4739 = vpack.c.b16 %v4711, %v4711
        %v4767 = vsel %vm4051, %v4588, 0
        %v4770 = vsel %vm4051, %v4590, 0
        %v4773 = vsel %vm4051, %v4592, 0
        %v4776 = vsel %vm4051, %v4594, 0
        %v4779 = vsel %vm4051, %v4596, 0
        %v4782 = vsel %vm4051, %v4598, 0
        %v4785 = vsel %vm4051, %v4600, 0
        %v4788 = vsel %vm4051, %v4602, 0
        %v4791 = vsel %vm4076, %v4738, 0
        %v4794 = vsel %vm4076, %v4739, 0
        %4796 = vmatprep.subr.bf16.mxu0 %v4713
        %4797 = vmatpush1.bf16.msra.mxu0 %v4712
        %4798 = vmatprep.subr.bf16.mxu0 %v4715
        %4799 = vmatpush1.bf16.msra.mxu0 %v4714
        %4800 = vmatprep.subr.bf16.mxu0 %v4717
        %4801 = vmatpush1.bf16.msra.mxu0 %v4716
        %4802 = vmatprep.subr.bf16.mxu0 %v4719
        %4803 = vmatpush1.bf16.msra.mxu0 %v4718
        %4804 = vmatprep.subr.bf16.mxu0 %v4721
        %4805 = vmatpush1.bf16.msra.mxu0 %v4720
        %4806 = vmatprep.subr.bf16.mxu0 %v4723
        %4807 = vmatpush1.bf16.msra.mxu0 %v4722
        %4808 = vmatprep.subr.bf16.mxu0 %v4725
        %4809 = vmatpush1.bf16.msra.mxu0 %v4724
        %4810 = vmatprep.subr.bf16.mxu0 %v4727
        %4811 = vmatpush1.bf16.msra.mxu0 %v4726
        %4812 = vmatprep.subr.bf16.mxu0 %v4729
        %4813 = vmatpush1.bf16.msra.mxu0 %v4728
        %4814 = vmatprep.subr.bf16.mxu0 %v4731
        %4815 = vmatpush1.bf16.msra.mxu0 %v4730
        %4816 = vmatprep.subr.bf16.mxu0 %v4733
        %4817 = vmatpush1.bf16.msra.mxu0 %v4732
        %4818 = vmatprep.subr.bf16.mxu0 %v4735
        %4819 = vmatpush1.bf16.msra.mxu0 %v4734
        %4820 = vmatprep.subr.bf16.mxu0 %v4737
        %4821 = vmatpush1.bf16.msra.mxu0 %v4736
        %4822 = vmatprep.subr.bf16.mxu0 %v4794
        %4823 = vmatpush1.bf16.msra.mxu0 %v4791
        %4824 = vmatprep.subr.bf16.mxu0 0
        %4825 = vmatpush1.bf16.msra.mxu0 0
        %4826 = vmatprep.subr.bf16.mxu0 0
        %4827 = vmatpush1.bf16.msra.mxu0 0
        %4828 = vmatprep.mubr.bf16.mxu0 %v4767
        %4829 = vmatmul.mubr.bf16.gmra.mrb[0].mxu0 %v4587
        %v4830 = vpop.f32.mrb[0].mxu0
        %v4831 = vadd.f32 0.0, %v4830
        %v4832 = vpop.f32.mrb[0].mxu0
        %v4833 = vadd.f32 0.0, %v4832
        %v4834 = vpop.f32.mrb[0].mxu0
        %v4835 = vadd.f32 0.0, %v4834
        %v4836 = vpop.f32.mrb[0].mxu0
        %v4837 = vadd.f32 0.0, %v4836
        %4838 = vmatprep.mubr.bf16.mxu0 %v4770
        %4839 = vmatmul.mubr.bf16.gmra.mrb[0].mxu0 %v4589
        %v4840 = vpop.f32.mrb[0].mxu0
        %v4841 = vadd.f32 0.0, %v4840
        %v4842 = vpop.f32.mrb[0].mxu0
        %v4843 = vadd.f32 0.0, %v4842
        %v4844 = vpop.f32.mrb[0].mxu0
        %v4845 = vadd.f32 0.0, %v4844
        %v4846 = vpop.f32.mrb[0].mxu0
        %v4847 = vadd.f32 0.0, %v4846
        %4848 = vmatprep.mubr.bf16.mxu0 %v4773
        %4849 = vmatmul.mubr.bf16.gmra.mrb[0].mxu0 %v4591
        %v4850 = vpop.f32.mrb[0].mxu0
        %v4851 = vadd.f32 0.0, %v4850
        %v4852 = vpop.f32.mrb[0].mxu0
        %v4853 = vadd.f32 0.0, %v4852
        %v4854 = vpop.f32.mrb[0].mxu0
        %v4855 = vadd.f32 0.0, %v4854
        %v4856 = vpop.f32.mrb[0].mxu0
        %v4857 = vadd.f32 0.0, %v4856
        %4858 = vmatprep.mubr.bf16.mxu0 %v4776
        %4859 = vmatmul.mubr.bf16.gmra.mrb[0].mxu0 %v4593
        %v4860 = vpop.f32.mrb[0].mxu0
        %v4861 = vadd.f32 0.0, %v4860
        %v4862 = vpop.f32.mrb[0].mxu0
        %v4863 = vadd.f32 0.0, %v4862
        %v4864 = vpop.f32.mrb[0].mxu0
        %v4865 = vadd.f32 0.0, %v4864
        %v4866 = vpop.f32.mrb[0].mxu0
        %v4867 = vadd.f32 0.0, %v4866
        %4868 = vmatprep.mubr.bf16.mxu0 %v4779
        %4869 = vmatmul.mubr.bf16.gmra.mrb[0].mxu0 %v4595
        %v4870 = vpop.f32.mrb[0].mxu0
        %v4871 = vadd.f32 0.0, %v4870
        %v4872 = vpop.f32.mrb[0].mxu0
        %v4873 = vadd.f32 0.0, %v4872
        %v4874 = vpop.f32.mrb[0].mxu0
        %v4875 = vadd.f32 0.0, %v4874
        %v4876 = vpop.f32.mrb[0].mxu0
        %v4877 = vadd.f32 0.0, %v4876
        %4878 = vmatprep.mubr.bf16.mxu0 %v4782
        %4879 = vmatmul.mubr.bf16.gmra.mrb[0].mxu0 %v4597
        %v4880 = vpop.f32.mrb[0].mxu0
        %v4881 = vadd.f32 0.0, %v4880
        %v4882 = vpop.f32.mrb[0].mxu0
        %v4883 = vadd.f32 0.0, %v4882
        %v4884 = vpop.f32.mrb[0].mxu0
        %v4885 = vadd.f32 0.0, %v4884
        %v4886 = vpop.f32.mrb[0].mxu0
        %v4887 = vadd.f32 0.0, %v4886
        %4888 = vmatprep.mubr.bf16.mxu0 %v4785
        %4889 = vmatmul.mubr.bf16.gmra.mrb[0].mxu0 %v4599
        %v4890 = vpop.f32.mrb[0].mxu0
        %v4891 = vadd.f32 0.0, %v4890
        %v4892 = vpop.f32.mrb[0].mxu0
        %v4893 = vadd.f32 0.0, %v4892
        %v4894 = vpop.f32.mrb[0].mxu0
        %v4895 = vadd.f32 0.0, %v4894
        %v4896 = vpop.f32.mrb[0].mxu0
        %v4897 = vadd.f32 0.0, %v4896
        %4898 = vmatprep.mubr.bf16.mxu0 %v4788
        %4899 = vmatmul.mubr.bf16.gmra.mrb[0].mxu0 %v4601
        %v4900 = vpop.f32.mrb[0].mxu0
        %v4901 = vadd.f32 0.0, %v4900
        %v4902 = vpop.f32.mrb[0].mxu0
        %v4903 = vadd.f32 0.0, %v4902
        %v4904 = vpop.f32.mrb[0].mxu0
        %v4905 = vadd.f32 0.0, %v4904
        %v4906 = vpop.f32.mrb[0].mxu0
        %v4907 = vadd.f32 0.0, %v4906
        %4908 = vdwg.mxu0
        %v4909 = vadd.f32 %v4396, %v4831
        %v4910 = vadd.f32 %v4398, %v4833
        %v4911 = vadd.f32 %v4400, %v4835
        %v4912 = vadd.f32 %v4402, %v4837
        %v4913 = vadd.f32 %v4406, %v4841
        %v4914 = vadd.f32 %v4408, %v4843
        %v4915 = vadd.f32 %v4410, %v4845
        %v4916 = vadd.f32 %v4412, %v4847
        %v4917 = vadd.f32 %v4416, %v4851
        %v4918 = vadd.f32 %v4418, %v4853
        %v4919 = vadd.f32 %v4420, %v4855
        %v4920 = vadd.f32 %v4422, %v4857
        %v4921 = vadd.f32 %v4426, %v4861
        %v4922 = vadd.f32 %v4428, %v4863
        %v4923 = vadd.f32 %v4430, %v4865
        %v4924 = vadd.f32 %v4432, %v4867
        %v4925 = vadd.f32 %v4436, %v4871
        %v4926 = vadd.f32 %v4438, %v4873
        %v4927 = vadd.f32 %v4440, %v4875
        %v4928 = vadd.f32 %v4442, %v4877
        %v4929 = vadd.f32 %v4446, %v4881
        %v4930 = vadd.f32 %v4448, %v4883
        %v4931 = vadd.f32 %v4450, %v4885
        %v4932 = vadd.f32 %v4452, %v4887
        %v4933 = vadd.f32 %v4456, %v4891
        %v4934 = vadd.f32 %v4458, %v4893
        %v4935 = vadd.f32 %v4460, %v4895
        %v4936 = vadd.f32 %v4462, %v4897
        %v4937 = vadd.f32 %v4466, %v4901
        %v4938 = vadd.f32 %v4468, %v4903
        %v4939 = vadd.f32 %v4470, %v4905
        %v4940 = vadd.f32 %v4472, %v4907
        %vm4941 = vcmask 1044480
        %v4942 = vrot.slane %v3620, 3
        %v4943 = vrot.slane %v3622, 3
        %v4944 = vsel %vm4941, %v4942, %v4943
        %v4945 = vrot.slane %v3621, 3
        %v4946 = vrot.slane %v3623, 3
        %v4947 = vsel %vm4941, %v4945, %v4946
        %v4948 = vrot.slane %v3624, 3
        %v4949 = vsel %vm4941, %v4943, %v4948
        %v4950 = vrot.slane %v3625, 3
        %v4951 = vsel %vm4941, %v4946, %v4950
        %v4952 = vrot.slane %v3626, 3
        %v4953 = vrot.slane %v3628, 3
        %v4954 = vsel %vm4941, %v4952, %v4953
        %v4955 = vrot.slane %v3627, 3
        %v4956 = vrot.slane %v3629, 3
        %v4957 = vsel %vm4941, %v4955, %v4956
        %v4958 = vrot.slane %v3630, 3
        %v4959 = vsel %vm4941, %v4953, %v4958
        %v4960 = vrot.slane %v3631, 3
        %v4961 = vsel %vm4941, %v4956, %v4960
        %v4962 = vrot.slane %v3632, 3
        %v4963 = vrot.slane %v3634, 3
        %v4964 = vsel %vm4941, %v4962, %v4963
        %v4965 = vrot.slane %v3633, 3
        %v4966 = vrot.slane %v3635, 3
        %v4967 = vsel %vm4941, %v4965, %v4966
        %v4968 = vrot.slane %v3636, 3
        %v4969 = vsel %vm4941, %v4963, %v4968
        %v4970 = vrot.slane %v3637, 3
        %v4971 = vsel %vm4941, %v4966, %v4970
        %v4972 = vrot.slane %v3638, 3
        %v4973 = vrot.slane %v3640, 3
        %v4974 = vsel %vm4941, %v4972, %v4973
        %v4975 = vrot.slane %v3639, 3
        %v4976 = vrot.slane %v3641, 3
        %v4977 = vsel %vm4941, %v4975, %v4976
        %v4978 = vrot.slane %v3642, 3
        %v4979 = vsel %vm4941, %v4973, %v4978
        %v4980 = vrot.slane %v3643, 3
        %v4981 = vsel %vm4941, %v4976, %v4980
        %v4982 = vrot.slane %v3644, 3
        %v4983 = vrot.slane %v3646, 3
        %v4984 = vsel %vm4941, %v4982, %v4983
        %v4985 = vrot.slane %v3645, 3
        %v4986 = vrot.slane %v3647, 3
        %v4987 = vsel %vm4941, %v4985, %v4986
        %v4988 = vrot.slane %v3648, 3
        %v4989 = vsel %vm4941, %v4983, %v4988
        %v4990 = vrot.slane %v3649, 3
        %v4991 = vsel %vm4941, %v4986, %v4990
        %v4992 = vrot.slane %v3650, 3
        %v4993 = vrot.slane %v3652, 3
        %v4994 = vsel %vm4941, %v4992, %v4993
        %v4995 = vrot.slane %v3651, 3
        %v4996 = vrot.slane %v3653, 3
        %v4997 = vsel %vm4941, %v4995, %v4996
        %v4998 = vrot.slane %v3654, 3
        %v4999 = vsel %vm4941, %v4993, %v4998
        %v5000 = vrot.slane %v3655, 3
        %v5001 = vsel %vm4941, %v4996, %v5000
        %v5002 = vrot.slane %v3656, 3
        %v5003 = vrot.slane %v3658, 3
        %v5004 = vsel %vm4941, %v5002, %v5003
        %v5005 = vrot.slane %v3657, 3
        %v5006 = vrot.slane %v3659, 3
        %v5007 = vsel %vm4941, %v5005, %v5006
        %v5008 = vrot.slane %v3660, 3
        %v5009 = vsel %vm4941, %v5003, %v5008
        %v5010 = vrot.slane %v3661, 3
        %v5011 = vsel %vm4941, %v5006, %v5010
        %v5012 = vrot.slane %v3662, 3
        %v5013 = vrot.slane %v3664, 3
        %v5014 = vsel %vm4941, %v5012, %v5013
        %v5015 = vrot.slane %v3663, 3
        %v5016 = vrot.slane %v3665, 3
        %v5017 = vsel %vm4941, %v5015, %v5016
        %v5018 = vrot.slane %v3666, 3
        %v5019 = vsel %vm4941, %v5013, %v5018
        %v5020 = vrot.slane %v3667, 3
        %v5021 = vsel %vm4941, %v5016, %v5020
        %v5054 = vpack.c.bf16 %v4949, %v4944
        %v5055 = vpack.c.bf16 %v4951, %v4947
        %v5056 = vpack.c.bf16 %v4959, %v4954
        %v5057 = vpack.c.bf16 %v4961, %v4957
        %v5058 = vpack.c.bf16 %v4969, %v4964
        %v5059 = vpack.c.bf16 %v4971, %v4967
        %v5060 = vpack.c.bf16 %v4979, %v4974
        %v5061 = vpack.c.bf16 %v4981, %v4977
        %v5062 = vpack.c.bf16 %v4989, %v4984
        %v5063 = vpack.c.bf16 %v4991, %v4987
        %v5064 = vpack.c.bf16 %v4999, %v4994
        %v5065 = vpack.c.bf16 %v5001, %v4997
        %v5066 = vpack.c.bf16 %v5009, %v5004
        %v5067 = vpack.c.bf16 %v5011, %v5007
        %v5068 = vpack.c.bf16 %v5019, %v5014
        %v5069 = vpack.c.bf16 %v5021, %v5017
        %s5070 = scalar_lea.vmem %s3, 648
        %v5071 = vld [vmem:[%s5070] sm:$0xff]
        %v5072 = vld [vmem:[%s5070 + $0x8] sm:$0xff]
        %v5073 = vld [vmem:[%s5070 + $0x10] sm:$0xff]
        %v5074 = vld [vmem:[%s5070 + $0x18] sm:$0xff]
        %v5075 = vld [vmem:[%s5070 + $0x20] sm:$0xff]
        %v5076 = vld [vmem:[%s5070 + $0x28] sm:$0xff]
        %v5077 = vld [vmem:[%s5070 + $0x30] sm:$0xff]
        %v5078 = vld [vmem:[%s5070 + $0x38] sm:$0xff]
        %v5079 = vld [vmem:[%s5070 + $0x40] sm:$0xff]
        %v5080 = vld [vmem:[%s5070 + $0x48] sm:$0xff]
        %v5081 = vld [vmem:[%s5070 + $0x50] sm:$0xff]
        %v5082 = vld [vmem:[%s5070 + $0x58] sm:$0xff]
        %v5083 = vld [vmem:[%s5070 + $0x60] sm:$0xff]
        %v5084 = vld [vmem:[%s5070 + $0x68] sm:$0xff]
        %v5085 = vld [vmem:[%s5070 + $0x70] sm:$0xff]
        %v5086 = vld [vmem:[%s5070 + $0x78] sm:$0xff]
        %v5087 = vld [vmem:[%s5070 + $0x80] sm:$0xff]
        %v5088 = vld [vmem:[%s5070 + $0x88] sm:$0xff]
        %v5089 = vld [vmem:[%s5070 + $0x90] sm:$0xff]
        %v5090 = vld [vmem:[%s5070 + $0x98] sm:$0xff]
        %v5091 = vld [vmem:[%s5070 + $0xa0] sm:$0xff]
        %v5092 = vld [vmem:[%s5070 + $0xa8] sm:$0xff]
        %v5093 = vld [vmem:[%s5070 + $0xb0] sm:$0xff]
        %v5094 = vld [vmem:[%s5070 + $0xb8] sm:$0xff]
        %v5095 = vld [vmem:[%s5070 + $0xc0] sm:$0xff]
        %v5096 = vld [vmem:[%s5070 + $0xc8] sm:$0xff]
        %v5097 = vld [vmem:[%s5070 + $0xd0] sm:$0xff]
        %v5125 = vunpack.c.l.b16 %v5071
        %v5126 = vunpack.c.h.b16 %v5071
        %v5127 = vunpack.c.l.b16 %v5072
        %v5128 = vunpack.c.h.b16 %v5072
        %v5129 = vunpack.c.l.b16 %v5073
        %v5130 = vunpack.c.h.b16 %v5073
        %v5131 = vunpack.c.l.b16 %v5074
        %v5132 = vunpack.c.h.b16 %v5074
        %v5133 = vunpack.c.l.b16 %v5075
        %v5134 = vunpack.c.h.b16 %v5075
        %v5135 = vunpack.c.l.b16 %v5076
        %v5136 = vunpack.c.h.b16 %v5076
        %v5137 = vunpack.c.l.b16 %v5077
        %v5138 = vunpack.c.h.b16 %v5077
        %v5139 = vunpack.c.l.b16 %v5078
        %v5140 = vunpack.c.h.b16 %v5078
        %v5141 = vunpack.c.l.b16 %v5079
        %v5142 = vunpack.c.h.b16 %v5079
        %v5143 = vunpack.c.l.b16 %v5080
        %v5144 = vunpack.c.h.b16 %v5080
        %v5145 = vunpack.c.l.b16 %v5081
        %v5146 = vunpack.c.h.b16 %v5081
        %v5147 = vunpack.c.l.b16 %v5082
        %v5148 = vunpack.c.h.b16 %v5082
        %v5149 = vunpack.c.l.b16 %v5083
        %v5150 = vunpack.c.h.b16 %v5083
        %v5151 = vunpack.c.l.b16 %v5084
        %v5152 = vunpack.c.h.b16 %v5084
        %v5153 = vunpack.c.l.b16 %v5085
        %v5154 = vunpack.c.h.b16 %v5085
        %v5155 = vunpack.c.l.b16 %v5086
        %v5156 = vunpack.c.h.b16 %v5086
        %v5157 = vunpack.c.l.b16 %v5087
        %v5158 = vunpack.c.h.b16 %v5087
        %v5159 = vunpack.c.l.b16 %v5088
        %v5160 = vunpack.c.h.b16 %v5088
        %v5161 = vunpack.c.l.b16 %v5089
        %v5162 = vunpack.c.h.b16 %v5089
        %v5163 = vunpack.c.l.b16 %v5090
        %v5164 = vunpack.c.h.b16 %v5090
        %v5165 = vunpack.c.l.b16 %v5091
        %v5166 = vunpack.c.h.b16 %v5091
        %v5167 = vunpack.c.l.b16 %v5092
        %v5168 = vunpack.c.h.b16 %v5092
        %v5169 = vunpack.c.l.b16 %v5093
        %v5170 = vunpack.c.h.b16 %v5093
        %v5171 = vunpack.c.l.b16 %v5094
        %v5172 = vunpack.c.h.b16 %v5094
        %v5173 = vunpack.c.l.b16 %v5095
        %v5174 = vunpack.c.h.b16 %v5095
        %v5175 = vunpack.c.l.b16 %v5096
        %v5176 = vunpack.c.h.b16 %v5096
        %v5177 = vunpack.c.l.b16 %v5097
        %v5178 = vunpack.c.h.b16 %v5097
        %v5179 = vpack.c.b16 %v5127, %v5125
        %v5180 = vpack.c.b16 %v5128, %v5126
        %v5181 = vpack.c.b16 %v5131, %v5129
        %v5182 = vpack.c.b16 %v5132, %v5130
        %v5183 = vpack.c.b16 %v5135, %v5133
        %v5184 = vpack.c.b16 %v5136, %v5134
        %v5185 = vpack.c.b16 %v5139, %v5137
        %v5186 = vpack.c.b16 %v5140, %v5138
        %v5187 = vpack.c.b16 %v5143, %v5141
        %v5188 = vpack.c.b16 %v5144, %v5142
        %v5189 = vpack.c.b16 %v5147, %v5145
        %v5190 = vpack.c.b16 %v5148, %v5146
        %v5191 = vpack.c.b16 %v5151, %v5149
        %v5192 = vpack.c.b16 %v5152, %v5150
        %v5193 = vpack.c.b16 %v5155, %v5153
        %v5194 = vpack.c.b16 %v5156, %v5154
        %v5195 = vpack.c.b16 %v5159, %v5157
        %v5196 = vpack.c.b16 %v5160, %v5158
        %v5197 = vpack.c.b16 %v5163, %v5161
        %v5198 = vpack.c.b16 %v5164, %v5162
        %v5199 = vpack.c.b16 %v5167, %v5165
        %v5200 = vpack.c.b16 %v5168, %v5166
        %v5201 = vpack.c.b16 %v5171, %v5169
        %v5202 = vpack.c.b16 %v5172, %v5170
        %v5203 = vpack.c.b16 %v5175, %v5173
        %v5204 = vpack.c.b16 %v5176, %v5174
        %v5205 = vpack.c.b16 %v5177, %v5177
        %v5206 = vpack.c.b16 %v5178, %v5178
        %v5234 = vsel %vm4051, %v5055, 0
        %v5237 = vsel %vm4051, %v5057, 0
        %v5240 = vsel %vm4051, %v5059, 0
        %v5243 = vsel %vm4051, %v5061, 0
        %v5246 = vsel %vm4051, %v5063, 0
        %v5249 = vsel %vm4051, %v5065, 0
        %v5252 = vsel %vm4051, %v5067, 0
        %v5255 = vsel %vm4051, %v5069, 0
        %v5258 = vsel %vm4076, %v5205, 0
        %v5261 = vsel %vm4076, %v5206, 0
        %5263 = vmatprep.subr.bf16.mxu0 %v5180
        %5264 = vmatpush1.bf16.msra.mxu0 %v5179
        %5265 = vmatprep.subr.bf16.mxu0 %v5182
        %5266 = vmatpush1.bf16.msra.mxu0 %v5181
        %5267 = vmatprep.subr.bf16.mxu0 %v5184
        %5268 = vmatpush1.bf16.msra.mxu0 %v5183
        %5269 = vmatprep.subr.bf16.mxu0 %v5186
        %5270 = vmatpush1.bf16.msra.mxu0 %v5185
        %5271 = vmatprep.subr.bf16.mxu0 %v5188
        %5272 = vmatpush1.bf16.msra.mxu0 %v5187
        %5273 = vmatprep.subr.bf16.mxu0 %v5190
        %5274 = vmatpush1.bf16.msra.mxu0 %v5189
        %5275 = vmatprep.subr.bf16.mxu0 %v5192
        %5276 = vmatpush1.bf16.msra.mxu0 %v5191
        %5277 = vmatprep.subr.bf16.mxu0 %v5194
        %5278 = vmatpush1.bf16.msra.mxu0 %v5193
        %5279 = vmatprep.subr.bf16.mxu0 %v5196
        %5280 = vmatpush1.bf16.msra.mxu0 %v5195
        %5281 = vmatprep.subr.bf16.mxu0 %v5198
        %5282 = vmatpush1.bf16.msra.mxu0 %v5197
        %5283 = vmatprep.subr.bf16.mxu0 %v5200
        %5284 = vmatpush1.bf16.msra.mxu0 %v5199
        %5285 = vmatprep.subr.bf16.mxu0 %v5202
        %5286 = vmatpush1.bf16.msra.mxu0 %v5201
        %5287 = vmatprep.subr.bf16.mxu0 %v5204
        %5288 = vmatpush1.bf16.msra.mxu0 %v5203
        %5289 = vmatprep.subr.bf16.mxu0 %v5261
        %5290 = vmatpush1.bf16.msra.mxu0 %v5258
        %5291 = vmatprep.subr.bf16.mxu0 0
        %5292 = vmatpush1.bf16.msra.mxu0 0
        %5293 = vmatprep.subr.bf16.mxu0 0
        %5294 = vmatpush1.bf16.msra.mxu0 0
        %5295 = vmatprep.mubr.bf16.mxu0 %v5234
        %5296 = vmatmul.mubr.bf16.gmra.mrb[0].mxu0 %v5054
        %v5297 = vpop.f32.mrb[0].mxu0
        %v5298 = vadd.f32 0.0, %v5297
        %v5299 = vpop.f32.mrb[0].mxu0
        %v5300 = vadd.f32 0.0, %v5299
        %v5301 = vpop.f32.mrb[0].mxu0
        %v5302 = vadd.f32 0.0, %v5301
        %v5303 = vpop.f32.mrb[0].mxu0
        %v5304 = vadd.f32 0.0, %v5303
        %5305 = vmatprep.mubr.bf16.mxu0 %v5237
        %5306 = vmatmul.mubr.bf16.gmra.mrb[0].mxu0 %v5056
        %v5307 = vpop.f32.mrb[0].mxu0
        %v5308 = vadd.f32 0.0, %v5307
        %v5309 = vpop.f32.mrb[0].mxu0
        %v5310 = vadd.f32 0.0, %v5309
        %v5311 = vpop.f32.mrb[0].mxu0
        %v5312 = vadd.f32 0.0, %v5311
        %v5313 = vpop.f32.mrb[0].mxu0
        %v5314 = vadd.f32 0.0, %v5313
        %5315 = vmatprep.mubr.bf16.mxu0 %v5240
        %5316 = vmatmul.mubr.bf16.gmra.mrb[0].mxu0 %v5058
        %v5317 = vpop.f32.mrb[0].mxu0
        %v5318 = vadd.f32 0.0, %v5317
        %v5319 = vpop.f32.mrb[0].mxu0
        %v5320 = vadd.f32 0.0, %v5319
        %v5321 = vpop.f32.mrb[0].mxu0
        %v5322 = vadd.f32 0.0, %v5321
        %v5323 = vpop.f32.mrb[0].mxu0
        %v5324 = vadd.f32 0.0, %v5323
        %5325 = vmatprep.mubr.bf16.mxu0 %v5243
        %5326 = vmatmul.mubr.bf16.gmra.mrb[0].mxu0 %v5060
        %v5327 = vpop.f32.mrb[0].mxu0
        %v5328 = vadd.f32 0.0, %v5327
        %v5329 = vpop.f32.mrb[0].mxu0
        %v5330 = vadd.f32 0.0, %v5329
        %v5331 = vpop.f32.mrb[0].mxu0
        %v5332 = vadd.f32 0.0, %v5331
        %v5333 = vpop.f32.mrb[0].mxu0
        %v5334 = vadd.f32 0.0, %v5333
        %5335 = vmatprep.mubr.bf16.mxu0 %v5246
        %5336 = vmatmul.mubr.bf16.gmra.mrb[0].mxu0 %v5062
        %v5337 = vpop.f32.mrb[0].mxu0
        %v5338 = vadd.f32 0.0, %v5337
        %v5339 = vpop.f32.mrb[0].mxu0
        %v5340 = vadd.f32 0.0, %v5339
        %v5341 = vpop.f32.mrb[0].mxu0
        %v5342 = vadd.f32 0.0, %v5341
        %v5343 = vpop.f32.mrb[0].mxu0
        %v5344 = vadd.f32 0.0, %v5343
        %5345 = vmatprep.mubr.bf16.mxu0 %v5249
        %5346 = vmatmul.mubr.bf16.gmra.mrb[0].mxu0 %v5064
        %v5347 = vpop.f32.mrb[0].mxu0
        %v5348 = vadd.f32 0.0, %v5347
        %v5349 = vpop.f32.mrb[0].mxu0
        %v5350 = vadd.f32 0.0, %v5349
        %v5351 = vpop.f32.mrb[0].mxu0
        %v5352 = vadd.f32 0.0, %v5351
        %v5353 = vpop.f32.mrb[0].mxu0
        %v5354 = vadd.f32 0.0, %v5353
        %5355 = vmatprep.mubr.bf16.mxu0 %v5252
        %5356 = vmatmul.mubr.bf16.gmra.mrb[0].mxu0 %v5066
        %v5357 = vpop.f32.mrb[0].mxu0
        %v5358 = vadd.f32 0.0, %v5357
        %v5359 = vpop.f32.mrb[0].mxu0
        %v5360 = vadd.f32 0.0, %v5359
        %v5361 = vpop.f32.mrb[0].mxu0
        %v5362 = vadd.f32 0.0, %v5361
        %v5363 = vpop.f32.mrb[0].mxu0
        %v5364 = vadd.f32 0.0, %v5363
        %5365 = vmatprep.mubr.bf16.mxu0 %v5255
        %5366 = vmatmul.mubr.bf16.gmra.mrb[0].mxu0 %v5068
        %v5367 = vpop.f32.mrb[0].mxu0
        %v5368 = vadd.f32 0.0, %v5367
        %v5369 = vpop.f32.mrb[0].mxu0
        %v5370 = vadd.f32 0.0, %v5369
        %v5371 = vpop.f32.mrb[0].mxu0
        %v5372 = vadd.f32 0.0, %v5371
        %v5373 = vpop.f32.mrb[0].mxu0
        %v5374 = vadd.f32 0.0, %v5373
        %5375 = vdwg.mxu0
        %v5376 = vadd.f32 %v4909, %v5298
        %v5377 = vadd.f32 %v4910, %v5300
        %v5378 = vadd.f32 %v4911, %v5302
        %v5379 = vadd.f32 %v4912, %v5304
        %v5380 = vadd.f32 %v4913, %v5308
        %v5381 = vadd.f32 %v4914, %v5310
        %v5382 = vadd.f32 %v4915, %v5312
        %v5383 = vadd.f32 %v4916, %v5314
        %v5384 = vadd.f32 %v4917, %v5318
        %v5385 = vadd.f32 %v4918, %v5320
        %v5386 = vadd.f32 %v4919, %v5322
        %v5387 = vadd.f32 %v4920, %v5324
        %v5388 = vadd.f32 %v4921, %v5328
        %v5389 = vadd.f32 %v4922, %v5330
        %v5390 = vadd.f32 %v4923, %v5332
        %v5391 = vadd.f32 %v4924, %v5334
        %v5392 = vadd.f32 %v4925, %v5338
        %v5393 = vadd.f32 %v4926, %v5340
        %v5394 = vadd.f32 %v4927, %v5342
        %v5395 = vadd.f32 %v4928, %v5344
        %v5396 = vadd.f32 %v4929, %v5348
        %v5397 = vadd.f32 %v4930, %v5350
        %v5398 = vadd.f32 %v4931, %v5352
        %v5399 = vadd.f32 %v4932, %v5354
        %v5400 = vadd.f32 %v4933, %v5358
        %v5401 = vadd.f32 %v4934, %v5360
        %v5402 = vadd.f32 %v4935, %v5362
        %v5403 = vadd.f32 %v4936, %v5364
        %v5404 = vadd.f32 %v4937, %v5368
        %v5405 = vadd.f32 %v4938, %v5370
        %v5406 = vadd.f32 %v4939, %v5372
        %v5407 = vadd.f32 %v4940, %v5374
        %v5408 = vrot.slane %v3620, 4
        %v5409 = vrot.slane %v3622, 4
        %v5410 = vsel %vm4076, %v5408, %v5409
        %v5411 = vrot.slane %v3621, 4
        %v5412 = vrot.slane %v3623, 4
        %v5413 = vsel %vm4076, %v5411, %v5412
        %v5414 = vrot.slane %v3624, 4
        %v5415 = vsel %vm4076, %v5409, %v5414
        %v5416 = vrot.slane %v3625, 4
        %v5417 = vsel %vm4076, %v5412, %v5416
        %v5418 = vrot.slane %v3626, 4
        %v5419 = vrot.slane %v3628, 4
        %v5420 = vsel %vm4076, %v5418, %v5419
        %v5421 = vrot.slane %v3627, 4
        %v5422 = vrot.slane %v3629, 4
        %v5423 = vsel %vm4076, %v5421, %v5422
        %v5424 = vrot.slane %v3630, 4
        %v5425 = vsel %vm4076, %v5419, %v5424
        %v5426 = vrot.slane %v3631, 4
        %v5427 = vsel %vm4076, %v5422, %v5426
        %v5428 = vrot.slane %v3632, 4
        %v5429 = vrot.slane %v3634, 4
        %v5430 = vsel %vm4076, %v5428, %v5429
        %v5431 = vrot.slane %v3633, 4
        %v5432 = vrot.slane %v3635, 4
        %v5433 = vsel %vm4076, %v5431, %v5432
        %v5434 = vrot.slane %v3636, 4
        %v5435 = vsel %vm4076, %v5429, %v5434
        %v5436 = vrot.slane %v3637, 4
        %v5437 = vsel %vm4076, %v5432, %v5436
        %v5438 = vrot.slane %v3638, 4
        %v5439 = vrot.slane %v3640, 4
        %v5440 = vsel %vm4076, %v5438, %v5439
        %v5441 = vrot.slane %v3639, 4
        %v5442 = vrot.slane %v3641, 4
        %v5443 = vsel %vm4076, %v5441, %v5442
        %v5444 = vrot.slane %v3642, 4
        %v5445 = vsel %vm4076, %v5439, %v5444
        %v5446 = vrot.slane %v3643, 4
        %v5447 = vsel %vm4076, %v5442, %v5446
        %v5448 = vrot.slane %v3644, 4
        %v5449 = vrot.slane %v3646, 4
        %v5450 = vsel %vm4076, %v5448, %v5449
        %v5451 = vrot.slane %v3645, 4
        %v5452 = vrot.slane %v3647, 4
        %v5453 = vsel %vm4076, %v5451, %v5452
        %v5454 = vrot.slane %v3648, 4
        %v5455 = vsel %vm4076, %v5449, %v5454
        %v5456 = vrot.slane %v3649, 4
        %v5457 = vsel %vm4076, %v5452, %v5456
        %v5458 = vrot.slane %v3650, 4
        %v5459 = vrot.slane %v3652, 4
        %v5460 = vsel %vm4076, %v5458, %v5459
        %v5461 = vrot.slane %v3651, 4
        %v5462 = vrot.slane %v3653, 4
        %v5463 = vsel %vm4076, %v5461, %v5462
        %v5464 = vrot.slane %v3654, 4
        %v5465 = vsel %vm4076, %v5459, %v5464
        %v5466 = vrot.slane %v3655, 4
        %v5467 = vsel %vm4076, %v5462, %v5466
        %v5468 = vrot.slane %v3656, 4
        %v5469 = vrot.slane %v3658, 4
        %v5470 = vsel %vm4076, %v5468, %v5469
        %v5471 = vrot.slane %v3657, 4
        %v5472 = vrot.slane %v3659, 4
        %v5473 = vsel %vm4076, %v5471, %v5472
        %v5474 = vrot.slane %v3660, 4
        %v5475 = vsel %vm4076, %v5469, %v5474
        %v5476 = vrot.slane %v3661, 4
        %v5477 = vsel %vm4076, %v5472, %v5476
        %v5478 = vrot.slane %v3662, 4
        %v5479 = vrot.slane %v3664, 4
        %v5480 = vsel %vm4076, %v5478, %v5479
        %v5481 = vrot.slane %v3663, 4
        %v5482 = vrot.slane %v3665, 4
        %v5483 = vsel %vm4076, %v5481, %v5482
        %v5484 = vrot.slane %v3666, 4
        %v5485 = vsel %vm4076, %v5479, %v5484
        %v5486 = vrot.slane %v3667, 4
        %v5487 = vsel %vm4076, %v5482, %v5486
        %v5520 = vpack.c.bf16 %v5415, %v5410
        %v5521 = vpack.c.bf16 %v5417, %v5413
        %v5522 = vpack.c.bf16 %v5425, %v5420
        %v5523 = vpack.c.bf16 %v5427, %v5423
        %v5524 = vpack.c.bf16 %v5435, %v5430
        %v5525 = vpack.c.bf16 %v5437, %v5433
        %v5526 = vpack.c.bf16 %v5445, %v5440
        %v5527 = vpack.c.bf16 %v5447, %v5443
        %v5528 = vpack.c.bf16 %v5455, %v5450
        %v5529 = vpack.c.bf16 %v5457, %v5453
        %v5530 = vpack.c.bf16 %v5465, %v5460
        %v5531 = vpack.c.bf16 %v5467, %v5463
        %v5532 = vpack.c.bf16 %v5475, %v5470
        %v5533 = vpack.c.bf16 %v5477, %v5473
        %v5534 = vpack.c.bf16 %v5485, %v5480
        %v5535 = vpack.c.bf16 %v5487, %v5483
        %s5536 = scalar_lea.vmem %s3, 864
        %v5537 = vld [vmem:[%s5536] sm:$0xff]
        %v5538 = vld [vmem:[%s5536 + $0x8] sm:$0xff]
        %v5539 = vld [vmem:[%s5536 + $0x10] sm:$0xff]
        %v5540 = vld [vmem:[%s5536 + $0x18] sm:$0xff]
        %v5541 = vld [vmem:[%s5536 + $0x20] sm:$0xff]
        %v5542 = vld [vmem:[%s5536 + $0x28] sm:$0xff]
        %v5543 = vld [vmem:[%s5536 + $0x30] sm:$0xff]
        %v5544 = vld [vmem:[%s5536 + $0x38] sm:$0xff]
        %v5545 = vld [vmem:[%s5536 + $0x40] sm:$0xff]
        %v5546 = vld [vmem:[%s5536 + $0x48] sm:$0xff]
        %v5547 = vld [vmem:[%s5536 + $0x50] sm:$0xff]
        %v5548 = vld [vmem:[%s5536 + $0x58] sm:$0xff]
        %v5549 = vld [vmem:[%s5536 + $0x60] sm:$0xff]
        %v5550 = vld [vmem:[%s5536 + $0x68] sm:$0xff]
        %v5551 = vld [vmem:[%s5536 + $0x70] sm:$0xff]
        %v5552 = vld [vmem:[%s5536 + $0x78] sm:$0xff]
        %v5553 = vld [vmem:[%s5536 + $0x80] sm:$0xff]
        %v5554 = vld [vmem:[%s5536 + $0x88] sm:$0xff]
        %v5555 = vld [vmem:[%s5536 + $0x90] sm:$0xff]
        %v5556 = vld [vmem:[%s5536 + $0x98] sm:$0xff]
        %v5557 = vld [vmem:[%s5536 + $0xa0] sm:$0xff]
        %v5558 = vld [vmem:[%s5536 + $0xa8] sm:$0xff]
        %v5559 = vld [vmem:[%s5536 + $0xb0] sm:$0xff]
        %v5560 = vld [vmem:[%s5536 + $0xb8] sm:$0xff]
        %v5561 = vld [vmem:[%s5536 + $0xc0] sm:$0xff]
        %v5562 = vld [vmem:[%s5536 + $0xc8] sm:$0xff]
        %v5563 = vld [vmem:[%s5536 + $0xd0] sm:$0xff]
        %v5591 = vunpack.c.l.b16 %v5537
        %v5592 = vunpack.c.h.b16 %v5537
        %v5593 = vunpack.c.l.b16 %v5538
        %v5594 = vunpack.c.h.b16 %v5538
        %v5595 = vunpack.c.l.b16 %v5539
        %v5596 = vunpack.c.h.b16 %v5539
        %v5597 = vunpack.c.l.b16 %v5540
        %v5598 = vunpack.c.h.b16 %v5540
        %v5599 = vunpack.c.l.b16 %v5541
        %v5600 = vunpack.c.h.b16 %v5541
        %v5601 = vunpack.c.l.b16 %v5542
        %v5602 = vunpack.c.h.b16 %v5542
        %v5603 = vunpack.c.l.b16 %v5543
        %v5604 = vunpack.c.h.b16 %v5543
        %v5605 = vunpack.c.l.b16 %v5544
        %v5606 = vunpack.c.h.b16 %v5544
        %v5607 = vunpack.c.l.b16 %v5545
        %v5608 = vunpack.c.h.b16 %v5545
        %v5609 = vunpack.c.l.b16 %v5546
        %v5610 = vunpack.c.h.b16 %v5546
        %v5611 = vunpack.c.l.b16 %v5547
        %v5612 = vunpack.c.h.b16 %v5547
        %v5613 = vunpack.c.l.b16 %v5548
        %v5614 = vunpack.c.h.b16 %v5548
        %v5615 = vunpack.c.l.b16 %v5549
        %v5616 = vunpack.c.h.b16 %v5549
        %v5617 = vunpack.c.l.b16 %v5550
        %v5618 = vunpack.c.h.b16 %v5550
        %v5619 = vunpack.c.l.b16 %v5551
        %v5620 = vunpack.c.h.b16 %v5551
        %v5621 = vunpack.c.l.b16 %v5552
        %v5622 = vunpack.c.h.b16 %v5552
        %v5623 = vunpack.c.l.b16 %v5553
        %v5624 = vunpack.c.h.b16 %v5553
        %v5625 = vunpack.c.l.b16 %v5554
        %v5626 = vunpack.c.h.b16 %v5554
        %v5627 = vunpack.c.l.b16 %v5555
        %v5628 = vunpack.c.h.b16 %v5555
        %v5629 = vunpack.c.l.b16 %v5556
        %v5630 = vunpack.c.h.b16 %v5556
        %v5631 = vunpack.c.l.b16 %v5557
        %v5632 = vunpack.c.h.b16 %v5557
        %v5633 = vunpack.c.l.b16 %v5558
        %v5634 = vunpack.c.h.b16 %v5558
        %v5635 = vunpack.c.l.b16 %v5559
        %v5636 = vunpack.c.h.b16 %v5559
        %v5637 = vunpack.c.l.b16 %v5560
        %v5638 = vunpack.c.h.b16 %v5560
        %v5639 = vunpack.c.l.b16 %v5561
        %v5640 = vunpack.c.h.b16 %v5561
        %v5641 = vunpack.c.l.b16 %v5562
        %v5642 = vunpack.c.h.b16 %v5562
        %v5643 = vunpack.c.l.b16 %v5563
        %v5644 = vunpack.c.h.b16 %v5563
        %v5645 = vpack.c.b16 %v5593, %v5591
        %v5646 = vpack.c.b16 %v5594, %v5592
        %v5647 = vpack.c.b16 %v5597, %v5595
        %v5648 = vpack.c.b16 %v5598, %v5596
        %v5649 = vpack.c.b16 %v5601, %v5599
        %v5650 = vpack.c.b16 %v5602, %v5600
        %v5651 = vpack.c.b16 %v5605, %v5603
        %v5652 = vpack.c.b16 %v5606, %v5604
        %v5653 = vpack.c.b16 %v5609, %v5607
        %v5654 = vpack.c.b16 %v5610, %v5608
        %v5655 = vpack.c.b16 %v5613, %v5611
        %v5656 = vpack.c.b16 %v5614, %v5612
        %v5657 = vpack.c.b16 %v5617, %v5615
        %v5658 = vpack.c.b16 %v5618, %v5616
        %v5659 = vpack.c.b16 %v5621, %v5619
        %v5660 = vpack.c.b16 %v5622, %v5620
        %v5661 = vpack.c.b16 %v5625, %v5623
        %v5662 = vpack.c.b16 %v5626, %v5624
        %v5663 = vpack.c.b16 %v5629, %v5627
        %v5664 = vpack.c.b16 %v5630, %v5628
        %v5665 = vpack.c.b16 %v5633, %v5631
        %v5666 = vpack.c.b16 %v5634, %v5632
        %v5667 = vpack.c.b16 %v5637, %v5635
        %v5668 = vpack.c.b16 %v5638, %v5636
        %v5669 = vpack.c.b16 %v5641, %v5639
        %v5670 = vpack.c.b16 %v5642, %v5640
        %v5671 = vpack.c.b16 %v5643, %v5643
        %v5672 = vpack.c.b16 %v5644, %v5644
        %v5700 = vsel %vm4051, %v5521, 0
        %v5703 = vsel %vm4051, %v5523, 0
        %v5706 = vsel %vm4051, %v5525, 0
        %v5709 = vsel %vm4051, %v5527, 0
        %v5712 = vsel %vm4051, %v5529, 0
        %v5715 = vsel %vm4051, %v5531, 0
        %v5718 = vsel %vm4051, %v5533, 0
        %v5721 = vsel %vm4051, %v5535, 0
        %v5724 = vsel %vm4076, %v5671, 0
        %v5727 = vsel %vm4076, %v5672, 0
        %5729 = vmatprep.subr.bf16.mxu0 %v5646
        %5730 = vmatpush1.bf16.msra.mxu0 %v5645
        %5731 = vmatprep.subr.bf16.mxu0 %v5648
        %5732 = vmatpush1.bf16.msra.mxu0 %v5647
        %5733 = vmatprep.subr.bf16.mxu0 %v5650
        %5734 = vmatpush1.bf16.msra.mxu0 %v5649
        %5735 = vmatprep.subr.bf16.mxu0 %v5652
        %5736 = vmatpush1.bf16.msra.mxu0 %v5651
        %5737 = vmatprep.subr.bf16.mxu0 %v5654
        %5738 = vmatpush1.bf16.msra.mxu0 %v5653
        %5739 = vmatprep.subr.bf16.mxu0 %v5656
        %5740 = vmatpush1.bf16.msra.mxu0 %v5655
        %5741 = vmatprep.subr.bf16.mxu0 %v5658
        %5742 = vmatpush1.bf16.msra.mxu0 %v5657
        %5743 = vmatprep.subr.bf16.mxu0 %v5660
        %5744 = vmatpush1.bf16.msra.mxu0 %v5659
        %5745 = vmatprep.subr.bf16.mxu0 %v5662
        %5746 = vmatpush1.bf16.msra.mxu0 %v5661
        %5747 = vmatprep.subr.bf16.mxu0 %v5664
        %5748 = vmatpush1.bf16.msra.mxu0 %v5663
        %5749 = vmatprep.subr.bf16.mxu0 %v5666
        %5750 = vmatpush1.bf16.msra.mxu0 %v5665
        %5751 = vmatprep.subr.bf16.mxu0 %v5668
        %5752 = vmatpush1.bf16.msra.mxu0 %v5667
        %5753 = vmatprep.subr.bf16.mxu0 %v5670
        %5754 = vmatpush1.bf16.msra.mxu0 %v5669
        %5755 = vmatprep.subr.bf16.mxu0 %v5727
        %5756 = vmatpush1.bf16.msra.mxu0 %v5724
        %5757 = vmatprep.subr.bf16.mxu0 0
        %5758 = vmatpush1.bf16.msra.mxu0 0
        %5759 = vmatprep.subr.bf16.mxu0 0
        %5760 = vmatpush1.bf16.msra.mxu0 0
        %5761 = vmatprep.mubr.bf16.mxu0 %v5700
        %5762 = vmatmul.mubr.bf16.gmra.mrb[0].mxu0 %v5520
        %v5763 = vpop.f32.mrb[0].mxu0
        %v5764 = vadd.f32 0.0, %v5763
        %v5765 = vpop.f32.mrb[0].mxu0
        %v5766 = vadd.f32 0.0, %v5765
        %v5767 = vpop.f32.mrb[0].mxu0
        %v5768 = vadd.f32 0.0, %v5767
        %v5769 = vpop.f32.mrb[0].mxu0
        %v5770 = vadd.f32 0.0, %v5769
        %5771 = vmatprep.mubr.bf16.mxu0 %v5703
        %5772 = vmatmul.mubr.bf16.gmra.mrb[0].mxu0 %v5522
        %v5773 = vpop.f32.mrb[0].mxu0
        %v5774 = vadd.f32 0.0, %v5773
        %v5775 = vpop.f32.mrb[0].mxu0
        %v5776 = vadd.f32 0.0, %v5775
        %v5777 = vpop.f32.mrb[0].mxu0
        %v5778 = vadd.f32 0.0, %v5777
        %v5779 = vpop.f32.mrb[0].mxu0
        %v5780 = vadd.f32 0.0, %v5779
        %5781 = vmatprep.mubr.bf16.mxu0 %v5706
        %5782 = vmatmul.mubr.bf16.gmra.mrb[0].mxu0 %v5524
        %v5783 = vpop.f32.mrb[0].mxu0
        %v5784 = vadd.f32 0.0, %v5783
        %v5785 = vpop.f32.mrb[0].mxu0
        %v5786 = vadd.f32 0.0, %v5785
        %v5787 = vpop.f32.mrb[0].mxu0
        %v5788 = vadd.f32 0.0, %v5787
        %v5789 = vpop.f32.mrb[0].mxu0
        %v5790 = vadd.f32 0.0, %v5789
        %5791 = vmatprep.mubr.bf16.mxu0 %v5709
        %5792 = vmatmul.mubr.bf16.gmra.mrb[0].mxu0 %v5526
        %v5793 = vpop.f32.mrb[0].mxu0
        %v5794 = vadd.f32 0.0, %v5793
        %v5795 = vpop.f32.mrb[0].mxu0
        %v5796 = vadd.f32 0.0, %v5795
        %v5797 = vpop.f32.mrb[0].mxu0
        %v5798 = vadd.f32 0.0, %v5797
        %v5799 = vpop.f32.mrb[0].mxu0
        %v5800 = vadd.f32 0.0, %v5799
        %5801 = vmatprep.mubr.bf16.mxu0 %v5712
        %5802 = vmatmul.mubr.bf16.gmra.mrb[0].mxu0 %v5528
        %v5803 = vpop.f32.mrb[0].mxu0
        %v5804 = vadd.f32 0.0, %v5803
        %v5805 = vpop.f32.mrb[0].mxu0
        %v5806 = vadd.f32 0.0, %v5805
        %v5807 = vpop.f32.mrb[0].mxu0
        %v5808 = vadd.f32 0.0, %v5807
        %v5809 = vpop.f32.mrb[0].mxu0
        %v5810 = vadd.f32 0.0, %v5809
        %5811 = vmatprep.mubr.bf16.mxu0 %v5715
        %5812 = vmatmul.mubr.bf16.gmra.mrb[0].mxu0 %v5530
        %v5813 = vpop.f32.mrb[0].mxu0
        %v5814 = vadd.f32 0.0, %v5813
        %v5815 = vpop.f32.mrb[0].mxu0
        %v5816 = vadd.f32 0.0, %v5815
        %v5817 = vpop.f32.mrb[0].mxu0
        %v5818 = vadd.f32 0.0, %v5817
        %v5819 = vpop.f32.mrb[0].mxu0
        %v5820 = vadd.f32 0.0, %v5819
        %5821 = vmatprep.mubr.bf16.mxu0 %v5718
        %5822 = vmatmul.mubr.bf16.gmra.mrb[0].mxu0 %v5532
        %v5823 = vpop.f32.mrb[0].mxu0
        %v5824 = vadd.f32 0.0, %v5823
        %v5825 = vpop.f32.mrb[0].mxu0
        %v5826 = vadd.f32 0.0, %v5825
        %v5827 = vpop.f32.mrb[0].mxu0
        %v5828 = vadd.f32 0.0, %v5827
        %v5829 = vpop.f32.mrb[0].mxu0
        %v5830 = vadd.f32 0.0, %v5829
        %5831 = vmatprep.mubr.bf16.mxu0 %v5721
        %5832 = vmatmul.mubr.bf16.gmra.mrb[0].mxu0 %v5534
        %v5833 = vpop.f32.mrb[0].mxu0
        %v5834 = vadd.f32 0.0, %v5833
        %v5835 = vpop.f32.mrb[0].mxu0
        %v5836 = vadd.f32 0.0, %v5835
        %v5837 = vpop.f32.mrb[0].mxu0
        %v5838 = vadd.f32 0.0, %v5837
        %v5839 = vpop.f32.mrb[0].mxu0
        %v5840 = vadd.f32 0.0, %v5839
        %5841 = vdwg.mxu0
        %v5842 = vadd.f32 %v5376, %v5764
        %v5843 = vadd.f32 %v5377, %v5766
        %v5844 = vadd.f32 %v5378, %v5768
        %v5845 = vadd.f32 %v5379, %v5770
        %v5846 = vadd.f32 %v5380, %v5774
        %v5847 = vadd.f32 %v5381, %v5776
        %v5848 = vadd.f32 %v5382, %v5778
        %v5849 = vadd.f32 %v5383, %v5780
        %v5850 = vadd.f32 %v5384, %v5784
        %v5851 = vadd.f32 %v5385, %v5786
        %v5852 = vadd.f32 %v5386, %v5788
        %v5853 = vadd.f32 %v5387, %v5790
        %v5854 = vadd.f32 %v5388, %v5794
        %v5855 = vadd.f32 %v5389, %v5796
        %v5856 = vadd.f32 %v5390, %v5798
        %v5857 = vadd.f32 %v5391, %v5800
        %v5858 = vadd.f32 %v5392, %v5804
        %v5859 = vadd.f32 %v5393, %v5806
        %v5860 = vadd.f32 %v5394, %v5808
        %v5861 = vadd.f32 %v5395, %v5810
        %v5862 = vadd.f32 %v5396, %v5814
        %v5863 = vadd.f32 %v5397, %v5816
        %v5864 = vadd.f32 %v5398, %v5818
        %v5865 = vadd.f32 %v5399, %v5820
        %v5866 = vadd.f32 %v5400, %v5824
        %v5867 = vadd.f32 %v5401, %v5826
        %v5868 = vadd.f32 %v5402, %v5828
        %v5869 = vadd.f32 %v5403, %v5830
        %v5870 = vadd.f32 %v5404, %v5834
        %v5871 = vadd.f32 %v5405, %v5836
        %v5872 = vadd.f32 %v5406, %v5838
        %v5873 = vadd.f32 %v5407, %v5840
        %v5874 = vld [vmem:[%s4] sm:$0x3]
        %v5876 = vlaneseq
        %v5877 = vshrl.u32 %v5876, 7
        %v5878 = vsub.s32 0, %v5877
        %v5879 = vrot.slane %v5874, %v5878
        %v5880 = vlaneseq
        %v5881 = vshrl.u32 %v5880, 7
        %v5882 = vsub.s32 1, %v5881
        %v5883 = vrot.slane %v5874, %v5882
        %v5886 = vadd.f32 %v5842, %v5879
        %v5887 = vadd.f32 %v5843, %v5883
        %v5888 = vadd.f32 %v5844, %v5879
        %v5889 = vadd.f32 %v5845, %v5883
        %v5890 = vadd.f32 %v5846, %v5879
        %v5891 = vadd.f32 %v5847, %v5883
        %v5892 = vadd.f32 %v5848, %v5879
        %v5893 = vadd.f32 %v5849, %v5883
        %v5894 = vadd.f32 %v5850, %v5879
        %v5895 = vadd.f32 %v5851, %v5883
        %v5896 = vadd.f32 %v5852, %v5879
        %v5897 = vadd.f32 %v5853, %v5883
        %v5898 = vadd.f32 %v5854, %v5879
        %v5899 = vadd.f32 %v5855, %v5883
        %v5900 = vadd.f32 %v5856, %v5879
        %v5901 = vadd.f32 %v5857, %v5883
        %v5902 = vadd.f32 %v5858, %v5879
        %v5903 = vadd.f32 %v5859, %v5883
        %v5904 = vadd.f32 %v5860, %v5879
        %v5905 = vadd.f32 %v5861, %v5883
        %v5906 = vadd.f32 %v5862, %v5879
        %v5907 = vadd.f32 %v5863, %v5883
        %v5908 = vadd.f32 %v5864, %v5879
        %v5909 = vadd.f32 %v5865, %v5883
        %v5910 = vadd.f32 %v5866, %v5879
        %v5911 = vadd.f32 %v5867, %v5883
        %v5912 = vadd.f32 %v5868, %v5879
        %v5913 = vadd.f32 %v5869, %v5883
        %v5914 = vadd.f32 %v5870, %v5879
        %v5915 = vadd.f32 %v5871, %v5883
        %v5916 = vadd.f32 %v5872, %v5879
        %v5917 = vadd.f32 %v5873, %v5883
        %v5918 = vmax.f32 %v5886, 0.0
        %v5919 = vmax.f32 %v5887, 0.0
        %v5920 = vmax.f32 %v5888, 0.0
        %v5921 = vmax.f32 %v5889, 0.0
        %v5922 = vmax.f32 %v5890, 0.0
        %v5923 = vmax.f32 %v5891, 0.0
        %v5924 = vmax.f32 %v5892, 0.0
        %v5925 = vmax.f32 %v5893, 0.0
        %v5926 = vmax.f32 %v5894, 0.0
        %v5927 = vmax.f32 %v5895, 0.0
        %v5928 = vmax.f32 %v5896, 0.0
        %v5929 = vmax.f32 %v5897, 0.0
        %v5930 = vmax.f32 %v5898, 0.0
        %v5931 = vmax.f32 %v5899, 0.0
        %v5932 = vmax.f32 %v5900, 0.0
        %v5933 = vmax.f32 %v5901, 0.0
        %v5934 = vmax.f32 %v5902, 0.0
        %v5935 = vmax.f32 %v5903, 0.0
        %v5936 = vmax.f32 %v5904, 0.0
        %v5937 = vmax.f32 %v5905, 0.0
        %v5938 = vmax.f32 %v5906, 0.0
        %v5939 = vmax.f32 %v5907, 0.0
        %v5940 = vmax.f32 %v5908, 0.0
        %v5941 = vmax.f32 %v5909, 0.0
        %v5942 = vmax.f32 %v5910, 0.0
        %v5943 = vmax.f32 %v5911, 0.0
        %v5944 = vmax.f32 %v5912, 0.0
        %v5945 = vmax.f32 %v5913, 0.0
        %v5946 = vmax.f32 %v5914, 0.0
        %v5947 = vmax.f32 %v5915, 0.0
        %v5948 = vmax.f32 %v5916, 0.0
        %v5949 = vmax.f32 %v5917, 0.0
        %5982 = vrot.lane.b32.xlu0 %v5918, 112
        %v5983 = vpop.permute.xlu0 %5982
        %5984 = vrot.lane.b32.xlu0 %v5919, 112
        %v5985 = vpop.permute.xlu0 %5984
        %5986 = vrot.lane.b32.xlu0 %v5920, 112
        %v5987 = vpop.permute.xlu0 %5986
        %5988 = vrot.lane.b32.xlu0 %v5921, 112
        %v5989 = vpop.permute.xlu0 %5988
        %5990 = vrot.lane.b32.xlu0 %v5922, 112
        %v5991 = vpop.permute.xlu0 %5990
        %5992 = vrot.lane.b32.xlu0 %v5923, 112
        %v5993 = vpop.permute.xlu0 %5992
        %5994 = vrot.lane.b32.xlu0 %v5924, 112
        %v5995 = vpop.permute.xlu0 %5994
        %5996 = vrot.lane.b32.xlu0 %v5925, 112
        %v5997 = vpop.permute.xlu0 %5996
        %5998 = vrot.lane.b32.xlu0 %v5926, 112
        %v5999 = vpop.permute.xlu0 %5998
        %6000 = vrot.lane.b32.xlu0 %v5927, 112
        %v6001 = vpop.permute.xlu0 %6000
        %6002 = vrot.lane.b32.xlu0 %v5928, 112
        %v6003 = vpop.permute.xlu0 %6002
        %6004 = vrot.lane.b32.xlu0 %v5929, 112
        %v6005 = vpop.permute.xlu0 %6004
        %6006 = vrot.lane.b32.xlu0 %v5930, 112
        %v6007 = vpop.permute.xlu0 %6006
        %6008 = vrot.lane.b32.xlu0 %v5931, 112
        %v6009 = vpop.permute.xlu0 %6008
        %6010 = vrot.lane.b32.xlu0 %v5932, 112
        %v6011 = vpop.permute.xlu0 %6010
        %6012 = vrot.lane.b32.xlu0 %v5933, 112
        %v6013 = vpop.permute.xlu0 %6012
        %6014 = vrot.lane.b32.xlu0 %v5934, 112
        %v6015 = vpop.permute.xlu0 %6014
        %6016 = vrot.lane.b32.xlu0 %v5935, 112
        %v6017 = vpop.permute.xlu0 %6016
        %6018 = vrot.lane.b32.xlu0 %v5936, 112
        %v6019 = vpop.permute.xlu0 %6018
        %6020 = vrot.lane.b32.xlu0 %v5937, 112
        %v6021 = vpop.permute.xlu0 %6020
        %6022 = vrot.lane.b32.xlu0 %v5938, 112
        %v6023 = vpop.permute.xlu0 %6022
        %6024 = vrot.lane.b32.xlu0 %v5939, 112
        %v6025 = vpop.permute.xlu0 %6024
        %6026 = vrot.lane.b32.xlu0 %v5940, 112
        %v6027 = vpop.permute.xlu0 %6026
        %6028 = vrot.lane.b32.xlu0 %v5941, 112
        %v6029 = vpop.permute.xlu0 %6028
        %6030 = vrot.lane.b32.xlu0 %v5942, 112
        %v6031 = vpop.permute.xlu0 %6030
        %6032 = vrot.lane.b32.xlu0 %v5943, 112
        %v6033 = vpop.permute.xlu0 %6032
        %6034 = vrot.lane.b32.xlu0 %v5944, 112
        %v6035 = vpop.permute.xlu0 %6034
        %6036 = vrot.lane.b32.xlu0 %v5945, 112
        %v6037 = vpop.permute.xlu0 %6036
        %6038 = vrot.lane.b32.xlu0 %v5946, 112
        %v6039 = vpop.permute.xlu0 %6038
        %6040 = vrot.lane.b32.xlu0 %v5947, 112
        %v6041 = vpop.permute.xlu0 %6040
        %6042 = vrot.lane.b32.xlu0 %v5948, 112
        %v6043 = vpop.permute.xlu0 %6042
        %6044 = vrot.lane.b32.xlu0 %v5949, 112
        %v6045 = vpop.permute.xlu0 %6044
        %vm6046 = vcmask 916480
        %v6047 = vsel %vm6046, %v5983, %v5985
        %v6048 = vsel %vm6046, %v5987, %v5989
        %v6049 = vsel %vm6046, %v5991, %v5993
        %v6050 = vsel %vm6046, %v5995, %v5997
        %v6051 = vsel %vm6046, %v5999, %v6001
        %v6052 = vsel %vm6046, %v6003, %v6005
        %v6053 = vsel %vm6046, %v6007, %v6009
        %v6054 = vsel %vm6046, %v6011, %v6013
        %v6055 = vsel %vm6046, %v6015, %v6017
        %v6056 = vsel %vm6046, %v6019, %v6021
        %v6057 = vsel %vm6046, %v6023, %v6025
        %v6058 = vsel %vm6046, %v6027, %v6029
        %v6059 = vsel %vm6046, %v6031, %v6033
        %v6060 = vsel %vm6046, %v6035, %v6037
        %v6061 = vsel %vm6046, %v6039, %v6041
        %v6062 = vsel %vm6046, %v6043, %v6045
        %v6095 = vmax.f32 %v5918, %v6047
        %v6096 = vmax.f32 %v5919, %v5985
        %v6097 = vmax.f32 %v5920, %v6048
        %v6098 = vmax.f32 %v5921, %v5989
        %v6099 = vmax.f32 %v5922, %v6049
        %v6100 = vmax.f32 %v5923, %v5993
        %v6101 = vmax.f32 %v5924, %v6050
        %v6102 = vmax.f32 %v5925, %v5997
        %v6103 = vmax.f32 %v5926, %v6051
        %v6104 = vmax.f32 %v5927, %v6001
        %v6105 = vmax.f32 %v5928, %v6052
        %v6106 = vmax.f32 %v5929, %v6005
        %v6107 = vmax.f32 %v5930, %v6053
        %v6108 = vmax.f32 %v5931, %v6009
        %v6109 = vmax.f32 %v5932, %v6054
        %v6110 = vmax.f32 %v5933, %v6013
        %v6111 = vmax.f32 %v5934, %v6055
        %v6112 = vmax.f32 %v5935, %v6017
        %v6113 = vmax.f32 %v5936, %v6056
        %v6114 = vmax.f32 %v5937, %v6021
        %v6115 = vmax.f32 %v5938, %v6057
        %v6116 = vmax.f32 %v5939, %v6025
        %v6117 = vmax.f32 %v5940, %v6058
        %v6118 = vmax.f32 %v5941, %v6029
        %v6119 = vmax.f32 %v5942, %v6059
        %v6120 = vmax.f32 %v5943, %v6033
        %v6121 = vmax.f32 %v5944, %v6060
        %v6122 = vmax.f32 %v5945, %v6037
        %v6123 = vmax.f32 %v5946, %v6061
        %v6124 = vmax.f32 %v5947, %v6041
        %v6125 = vmax.f32 %v5948, %v6062
        %v6126 = vmax.f32 %v5949, %v6045
        %v6127 = vpack.c.bf16 %v6097, %v6095
        %v6128 = vpack.c.bf16 %v6098, %v6096
        %v6129 = vpack.c.bf16 %v6101, %v6099
        %v6130 = vpack.c.bf16 %v6102, %v6100
        %v6131 = vpack.c.bf16 %v6105, %v6103
        %v6132 = vpack.c.bf16 %v6106, %v6104
        %v6133 = vpack.c.bf16 %v6109, %v6107
        %v6134 = vpack.c.bf16 %v6110, %v6108
        %v6135 = vpack.c.bf16 %v6113, %v6111
        %v6136 = vpack.c.bf16 %v6114, %v6112
        %v6137 = vpack.c.bf16 %v6117, %v6115
        %v6138 = vpack.c.bf16 %v6118, %v6116
        %v6139 = vpack.c.bf16 %v6121, %v6119
        %v6140 = vpack.c.bf16 %v6122, %v6120
        %v6141 = vpack.c.bf16 %v6125, %v6123
        %v6142 = vpack.c.bf16 %v6126, %v6124
        %v6143 = vld [vmem:[%s7] sm:$0xf]
        %v6144 = vld [vmem:[%s7 + $0x4] sm:$0xf]
        %v6145 = vld [vmem:[%s7 + $0x8] sm:$0xf]
        %v6146 = vld [vmem:[%s7 + $0xc] sm:$0xf]
        %v6147 = vld [vmem:[%s7 + $0x10] sm:$0xf]
        %v6153 = vunpack.c.l.b16 %v6143
        %v6154 = vunpack.c.l.b16 %v6144
        %v6155 = vunpack.c.l.b16 %v6145
        %v6156 = vunpack.c.l.b16 %v6146
        %v6157 = vunpack.c.l.b16 %v6147
        %v6158 = vpack.c.b16 %v6154, %v6153
        %v6159 = vpack.c.b16 %v6156, %v6155
        %v6160 = vpack.c.b16 %v6157, %v6157
        %6164 = vmatprep.subr.bf16.mxu0 %v6128
        %6165 = vmatpush1.bf16.msra.mxu0 %v6127
        %6166 = vmatprep.subr.bf16.mxu0 %v6130
        %6167 = vmatpush1.bf16.msra.mxu0 %v6129
        %6168 = vmatprep.subr.bf16.mxu0 %v6132
        %6169 = vmatpush1.bf16.msra.mxu0 %v6131
        %6170 = vmatprep.subr.bf16.mxu0 %v6134
        %6171 = vmatpush1.bf16.msra.mxu0 %v6133
        %6172 = vmatprep.subr.bf16.mxu0 %v6136
        %6173 = vmatpush1.bf16.msra.mxu0 %v6135
        %6174 = vmatprep.subr.bf16.mxu0 %v6138
        %6175 = vmatpush1.bf16.msra.mxu0 %v6137
        %6176 = vmatprep.subr.bf16.mxu0 %v6140
        %6177 = vmatpush1.bf16.msra.mxu0 %v6139
        %6178 = vmatprep.subr.bf16.mxu0 %v6142
        %6179 = vmatpush1.bf16.msra.mxu0 %v6141
        %6180 = vmatprep.subr.bf16.mxu0 0
        %6181 = vmatpush1.bf16.msra.mxu0 0
        %6182 = vmatprep.subr.bf16.mxu0 0
        %6183 = vmatpush1.bf16.msra.mxu0 0
        %6184 = vmatprep.subr.bf16.mxu0 0
        %6185 = vmatpush1.bf16.msra.mxu0 0
        %6186 = vmatprep.subr.bf16.mxu0 0
        %6187 = vmatpush1.bf16.msra.mxu0 0
        %6188 = vmatprep.subr.bf16.mxu0 0
        %6189 = vmatpush1.bf16.msra.mxu0 0
        %6190 = vmatprep.subr.bf16.mxu0 0
        %6191 = vmatpush1.bf16.msra.mxu0 0
        %6192 = vmatprep.subr.bf16.mxu0 0
        %6193 = vmatpush1.bf16.msra.mxu0 0
        %6194 = vmatprep.subr.bf16.mxu0 0
        %6195 = vmatpush1.bf16.msra.mxu0 0
        %6196 = vmatprep.mubr.bf16.mxu0 0
        %6197 = vmatmul.mubr.bf16.gmra.mrb[0].mxu0 %v6158
        %v6198 = vpop.f32.mrb[0].mxu0
        %v6199 = vadd.f32 0.0, %v6198
        %v6200 = vpop.f32.mrb[0].mxu0
        %v6201 = vadd.f32 0.0, %v6200
        %v6202 = vpop.f32.mrb[0].mxu0
        %v6203 = vadd.f32 0.0, %v6202
        %v6204 = vpop.f32.mrb[0].mxu0
        %v6205 = vadd.f32 0.0, %v6204
        %6206 = vmatprep.mubr.bf16.mxu0 0
        %6207 = vmatmul.mubr.bf16.gmra.mrb[0].mxu0 %v6159
        %v6208 = vpop.f32.mrb[0].mxu0
        %v6209 = vadd.f32 0.0, %v6208
        %v6210 = vpop.f32.mrb[0].mxu0
        %v6211 = vadd.f32 0.0, %v6210
        %v6212 = vpop.f32.mrb[0].mxu0
        %v6213 = vadd.f32 0.0, %v6212
        %v6214 = vpop.f32.mrb[0].mxu0
        %v6215 = vadd.f32 0.0, %v6214
        %6216 = vmatprep.mubr.bf16.mxu0 0
        %6217 = vmatmul.mubr.bf16.gmra.mrb[0].mxu0 %v6160
        %v6218 = vpop.f32.mrb[0].mxu0
        %v6219 = vadd.f32 0.0, %v6218
        %v6220 = vpop.f32.mrb[0].mxu0
        %v6221 = vadd.f32 0.0, %v6220
        %v6222 = vpop.f32.mrb[0].mxu0
        %v6223 = vpop.f32.mrb[0].mxu0
        %6224 = vdwg.mxu0
        %v6225 = vld [vmem:[%s8] sm:$0xf]
        %v6226 = vld [vmem:[%s8 + $0x4] sm:$0xf]
        %v6227 = vld [vmem:[%s8 + $0x8] sm:$0xf]
        %v6228 = vld [vmem:[%s8 + $0xc] sm:$0xf]
        %v6229 = vld [vmem:[%s8 + $0x10] sm:$0xf]
        %v6235 = vunpack.c.l.b16 %v6225
        %v6236 = vunpack.c.l.b16 %v6226
        %v6237 = vunpack.c.l.b16 %v6227
        %v6238 = vunpack.c.l.b16 %v6228
        %v6239 = vunpack.c.l.b16 %v6229
        %v6240 = vpack.c.b16 %v6236, %v6235
        %v6241 = vpack.c.b16 %v6238, %v6237
        %v6242 = vpack.c.b16 %v6239, %v6239
        %6246 = vmatprep.subr.bf16.mxu0 %v6128
        %6247 = vmatpush1.bf16.msra.mxu0 %v6127
        %6248 = vmatprep.subr.bf16.mxu0 %v6130
        %6249 = vmatpush1.bf16.msra.mxu0 %v6129
        %6250 = vmatprep.subr.bf16.mxu0 %v6132
        %6251 = vmatpush1.bf16.msra.mxu0 %v6131
        %6252 = vmatprep.subr.bf16.mxu0 %v6134
        %6253 = vmatpush1.bf16.msra.mxu0 %v6133
        %6254 = vmatprep.subr.bf16.mxu0 %v6136
        %6255 = vmatpush1.bf16.msra.mxu0 %v6135
        %6256 = vmatprep.subr.bf16.mxu0 %v6138
        %6257 = vmatpush1.bf16.msra.mxu0 %v6137
        %6258 = vmatprep.subr.bf16.mxu0 %v6140
        %6259 = vmatpush1.bf16.msra.mxu0 %v6139
        %6260 = vmatprep.subr.bf16.mxu0 %v6142
        %6261 = vmatpush1.bf16.msra.mxu0 %v6141
        %6262 = vmatprep.subr.bf16.mxu0 0
        %6263 = vmatpush1.bf16.msra.mxu0 0
        %6264 = vmatprep.subr.bf16.mxu0 0
        %6265 = vmatpush1.bf16.msra.mxu0 0
        %6266 = vmatprep.subr.bf16.mxu0 0
        %6267 = vmatpush1.bf16.msra.mxu0 0
        %6268 = vmatprep.subr.bf16.mxu0 0
        %6269 = vmatpush1.bf16.msra.mxu0 0
        %6270 = vmatprep.subr.bf16.mxu0 0
        %6271 = vmatpush1.bf16.msra.mxu0 0
        %6272 = vmatprep.subr.bf16.mxu0 0
        %6273 = vmatpush1.bf16.msra.mxu0 0
        %6274 = vmatprep.subr.bf16.mxu0 0
        %6275 = vmatpush1.bf16.msra.mxu0 0
        %6276 = vmatprep.subr.bf16.mxu0 0
        %6277 = vmatpush1.bf16.msra.mxu0 0
        %6278 = vmatprep.mubr.bf16.mxu0 0
        %6279 = vmatmul.mubr.bf16.gmra.mrb[0].mxu0 %v6240
        %v6280 = vpop.f32.mrb[0].mxu0
        %v6281 = vadd.f32 0.0, %v6280
        %v6282 = vpop.f32.mrb[0].mxu0
        %v6283 = vadd.f32 0.0, %v6282
        %v6284 = vpop.f32.mrb[0].mxu0
        %v6285 = vadd.f32 0.0, %v6284
        %v6286 = vpop.f32.mrb[0].mxu0
        %v6287 = vadd.f32 0.0, %v6286
        %6288 = vmatprep.mubr.bf16.mxu0 0
        %6289 = vmatmul.mubr.bf16.gmra.mrb[0].mxu0 %v6241
        %v6290 = vpop.f32.mrb[0].mxu0
        %v6291 = vadd.f32 0.0, %v6290
        %v6292 = vpop.f32.mrb[0].mxu0
        %v6293 = vadd.f32 0.0, %v6292
        %v6294 = vpop.f32.mrb[0].mxu0
        %v6295 = vadd.f32 0.0, %v6294
        %v6296 = vpop.f32.mrb[0].mxu0
        %v6297 = vadd.f32 0.0, %v6296
        %6298 = vmatprep.mubr.bf16.mxu0 0
        %6299 = vmatmul.mubr.bf16.gmra.mrb[0].mxu0 %v6242
        %v6300 = vpop.f32.mrb[0].mxu0
        %v6301 = vadd.f32 0.0, %v6300
        %v6302 = vpop.f32.mrb[0].mxu0
        %v6303 = vadd.f32 0.0, %v6302
        %v6304 = vpop.f32.mrb[0].mxu0
        %v6305 = vpop.f32.mrb[0].mxu0
        %6306 = vdwg.mxu0
        %v6307 = vmax.f32 %v6199, %v6281
        %v6308 = vmax.f32 %v6201, %v6283
        %v6309 = vmax.f32 %v6203, %v6285
        %v6310 = vmax.f32 %v6205, %v6287
        %v6311 = vmax.f32 %v6209, %v6291
        %v6312 = vmax.f32 %v6211, %v6293
        %v6313 = vmax.f32 %v6213, %v6295
        %v6314 = vmax.f32 %v6215, %v6297
        %v6315 = vmax.f32 %v6219, %v6301
        %v6316 = vmax.f32 %v6221, %v6303
        %v6317 = vpack.c.bf16 %v6307, %v6307
        %v6318 = vpack.c.bf16 %v6308, %v6308
        %v6319 = vld [vmem:[%s9] sm:$0xf]
        %v6320 = vld [vmem:[%s9 + $0x4] sm:$0xf]
        %v6321 = vld [vmem:[%s9 + $0x8] sm:$0xf]
        %v6322 = vld [vmem:[%s9 + $0xc] sm:$0xf]
        %v6323 = vld [vmem:[%s9 + $0x10] sm:$0xf]
        %v6324 = vld [vmem:[%s9 + $0x14] sm:$0xf]
        %v6325 = vld [vmem:[%s9 + $0x18] sm:$0xf]
        %v6326 = vld [vmem:[%s9 + $0x1c] sm:$0xf]
        %v6327 = vld [vmem:[%s9 + $0x20] sm:$0xf]
        %v6328 = vld [vmem:[%s9 + $0x24] sm:$0xf]
        %v6329 = vld [vmem:[%s9 + $0x28] sm:$0xf]
        %v6330 = vld [vmem:[%s9 + $0x2c] sm:$0xf]
        %v6331 = vld [vmem:[%s9 + $0x30] sm:$0xf]
        %v6332 = vld [vmem:[%s9 + $0x34] sm:$0xf]
        %v6333 = vld [vmem:[%s9 + $0x38] sm:$0xf]
        %v6334 = vld [vmem:[%s9 + $0x3c] sm:$0xf]
        %v6335 = vld [vmem:[%s9 + $0x40] sm:$0xf]
        %v6336 = vld [vmem:[%s9 + $0x44] sm:$0xf]
        %v6337 = vpack.c.bf16 %v6309, %v6309
        %v6338 = vpack.c.bf16 %v6310, %v6310
        %s6339 = scalar_lea.vmem %s9, 72
        %v6340 = vld [vmem:[%s6339] sm:$0xf]
        %v6341 = vld [vmem:[%s6339 + $0x4] sm:$0xf]
        %v6342 = vld [vmem:[%s6339 + $0x8] sm:$0xf]
        %v6343 = vld [vmem:[%s6339 + $0xc] sm:$0xf]
        %v6344 = vld [vmem:[%s6339 + $0x10] sm:$0xf]
        %v6345 = vld [vmem:[%s6339 + $0x14] sm:$0xf]
        %v6346 = vld [vmem:[%s6339 + $0x18] sm:$0xf]
        %v6347 = vld [vmem:[%s6339 + $0x1c] sm:$0xf]
        %v6348 = vld [vmem:[%s6339 + $0x20] sm:$0xf]
        %v6349 = vld [vmem:[%s6339 + $0x24] sm:$0xf]
        %v6350 = vld [vmem:[%s6339 + $0x28] sm:$0xf]
        %v6351 = vld [vmem:[%s6339 + $0x2c] sm:$0xf]
        %v6352 = vld [vmem:[%s6339 + $0x30] sm:$0xf]
        %v6353 = vld [vmem:[%s6339 + $0x34] sm:$0xf]
        %v6354 = vld [vmem:[%s6339 + $0x38] sm:$0xf]
        %v6355 = vld [vmem:[%s6339 + $0x3c] sm:$0xf]
        %v6356 = vld [vmem:[%s6339 + $0x40] sm:$0xf]
        %v6357 = vld [vmem:[%s6339 + $0x44] sm:$0xf]
        %v6376 = vunpack.c.l.b16 %v6340
        %v6377 = vunpack.c.l.b16 %v6341
        %v6378 = vunpack.c.l.b16 %v6342
        %v6379 = vunpack.c.l.b16 %v6343
        %v6380 = vunpack.c.l.b16 %v6344
        %v6381 = vunpack.c.l.b16 %v6345
        %v6382 = vunpack.c.l.b16 %v6346
        %v6383 = vunpack.c.l.b16 %v6347
        %v6384 = vunpack.c.l.b16 %v6348
        %v6385 = vunpack.c.l.b16 %v6349
        %v6386 = vunpack.c.l.b16 %v6350
        %v6387 = vunpack.c.l.b16 %v6351
        %v6388 = vunpack.c.l.b16 %v6352
        %v6389 = vunpack.c.l.b16 %v6353
        %v6390 = vunpack.c.l.b16 %v6354
        %v6391 = vunpack.c.l.b16 %v6355
        %v6392 = vunpack.c.l.b16 %v6356
        %v6393 = vunpack.c.l.b16 %v6357
        %v6394 = vpack.c.b16 %v6377, %v6376
        %v6395 = vpack.c.b16 %v6379, %v6378
        %v6396 = vpack.c.b16 %v6381, %v6380
        %v6397 = vpack.c.b16 %v6383, %v6382
        %v6398 = vpack.c.b16 %v6385, %v6384
        %v6399 = vpack.c.b16 %v6387, %v6386
        %v6400 = vpack.c.b16 %v6389, %v6388
        %v6401 = vpack.c.b16 %v6391, %v6390
        %v6402 = vpack.c.b16 %v6393, %v6392
        %vm6412 = vcmask 130048
        %v6414 = vsel %vm6412, %v6338, 0
        %6416 = vmatprep.subr.bf16.mxu0 0
        %6417 = vmatpush1.bf16.msra.mxu0 %v6394
        %6418 = vmatprep.subr.bf16.mxu0 0
        %6419 = vmatpush1.bf16.msra.mxu0 %v6395
        %6420 = vmatprep.subr.bf16.mxu0 0
        %6421 = vmatpush1.bf16.msra.mxu0 %v6396
        %6422 = vmatprep.subr.bf16.mxu0 0
        %6423 = vmatpush1.bf16.msra.mxu0 %v6397
        %6424 = vmatprep.subr.bf16.mxu0 0
        %6425 = vmatpush1.bf16.msra.mxu0 %v6398
        %6426 = vmatprep.subr.bf16.mxu0 0
        %6427 = vmatpush1.bf16.msra.mxu0 %v6399
        %6428 = vmatprep.subr.bf16.mxu0 0
        %6429 = vmatpush1.bf16.msra.mxu0 %v6400
        %6430 = vmatprep.subr.bf16.mxu0 0
        %6431 = vmatpush1.bf16.msra.mxu0 %v6401
        %6432 = vmatprep.subr.bf16.mxu0 0
        %6433 = vmatpush1.bf16.msra.mxu0 %v6402
        %6434 = vmatprep.subr.bf16.mxu0 0
        %6435 = vmatpush1.bf16.msra.mxu0 0
        %6436 = vmatprep.subr.bf16.mxu0 0
        %6437 = vmatpush1.bf16.msra.mxu0 0
        %6438 = vmatprep.subr.bf16.mxu0 0
        %6439 = vmatpush1.bf16.msra.mxu0 0
        %6440 = vmatprep.subr.bf16.mxu0 0
        %6441 = vmatpush1.bf16.msra.mxu0 0
        %6442 = vmatprep.subr.bf16.mxu0 0
        %6443 = vmatpush1.bf16.msra.mxu0 0
        %6444 = vmatprep.subr.bf16.mxu0 0
        %6445 = vmatpush1.bf16.msra.mxu0 0
        %6446 = vmatprep.subr.bf16.mxu0 0
        %6447 = vmatpush1.bf16.msra.mxu0 0
        %6448 = vmatprep.mubr.bf16.mxu0 %v6414
        %6449 = vmatmul.mubr.bf16.gmra.mrb[0].mxu0 %v6337
        %v6450 = vpop.f32.mrb[0].mxu0
        %v6451 = vadd.f32 0.0, %v6450
        %v6452 = vpop.f32.mrb[0].mxu0
        %v6453 = vpop.f32.mrb[0].mxu0
        %v6454 = vpop.f32.mrb[0].mxu0
        %6455 = vdwg.mxu0
        %v6474 = vunpack.c.l.b16 %v6319
        %v6475 = vunpack.c.l.b16 %v6320
        %v6476 = vunpack.c.l.b16 %v6321
        %v6477 = vunpack.c.l.b16 %v6322
        %v6478 = vunpack.c.l.b16 %v6323
        %v6479 = vunpack.c.l.b16 %v6324
        %v6480 = vunpack.c.l.b16 %v6325
        %v6481 = vunpack.c.l.b16 %v6326
        %v6482 = vunpack.c.l.b16 %v6327
        %v6483 = vunpack.c.l.b16 %v6328
        %v6484 = vunpack.c.l.b16 %v6329
        %v6485 = vunpack.c.l.b16 %v6330
        %v6486 = vunpack.c.l.b16 %v6331
        %v6487 = vunpack.c.l.b16 %v6332
        %v6488 = vunpack.c.l.b16 %v6333
        %v6489 = vunpack.c.l.b16 %v6334
        %v6490 = vunpack.c.l.b16 %v6335
        %v6491 = vunpack.c.l.b16 %v6336
        %v6492 = vpack.c.b16 %v6475, %v6474
        %v6493 = vpack.c.b16 %v6477, %v6476
        %v6494 = vpack.c.b16 %v6479, %v6478
        %v6495 = vpack.c.b16 %v6481, %v6480
        %v6496 = vpack.c.b16 %v6483, %v6482
        %v6497 = vpack.c.b16 %v6485, %v6484
        %v6498 = vpack.c.b16 %v6487, %v6486
        %v6499 = vpack.c.b16 %v6489, %v6488
        %v6500 = vpack.c.b16 %v6491, %v6490
        %v6511 = vsel %vm6412, %v6318, 0
        %6513 = vmatprep.subr.bf16.mxu0 0
        %6514 = vmatpush1.bf16.msra.mxu0 %v6492
        %6515 = vmatprep.subr.bf16.mxu0 0
        %6516 = vmatpush1.bf16.msra.mxu0 %v6493
        %6517 = vmatprep.subr.bf16.mxu0 0
        %6518 = vmatpush1.bf16.msra.mxu0 %v6494
        %6519 = vmatprep.subr.bf16.mxu0 0
        %6520 = vmatpush1.bf16.msra.mxu0 %v6495
        %6521 = vmatprep.subr.bf16.mxu0 0
        %6522 = vmatpush1.bf16.msra.mxu0 %v6496
        %6523 = vmatprep.subr.bf16.mxu0 0
        %6524 = vmatpush1.bf16.msra.mxu0 %v6497
        %6525 = vmatprep.subr.bf16.mxu0 0
        %6526 = vmatpush1.bf16.msra.mxu0 %v6498
        %6527 = vmatprep.subr.bf16.mxu0 0
        %6528 = vmatpush1.bf16.msra.mxu0 %v6499
        %6529 = vmatprep.subr.bf16.mxu0 0
        %6530 = vmatpush1.bf16.msra.mxu0 %v6500
        %6531 = vmatprep.subr.bf16.mxu0 0
        %6532 = vmatpush1.bf16.msra.mxu0 0
        %6533 = vmatprep.subr.bf16.mxu0 0
        %6534 = vmatpush1.bf16.msra.mxu0 0
        %6535 = vmatprep.subr.bf16.mxu0 0
        %6536 = vmatpush1.bf16.msra.mxu0 0
        %6537 = vmatprep.subr.bf16.mxu0 0
        %6538 = vmatpush1.bf16.msra.mxu0 0
        %6539 = vmatprep.subr.bf16.mxu0 0
        %6540 = vmatpush1.bf16.msra.mxu0 0
        %6541 = vmatprep.subr.bf16.mxu0 0
        %6542 = vmatpush1.bf16.msra.mxu0 0
        %6543 = vmatprep.subr.bf16.mxu0 0
        %6544 = vmatpush1.bf16.msra.mxu0 0
        %6545 = vmatprep.mubr.bf16.mxu0 %v6511
        %6546 = vmatmul.mubr.bf16.gmra.mrb[0].mxu0 %v6317
        %v6547 = vpop.f32.mrb[0].mxu0
        %v6548 = vadd.f32 %v6451, %v6547
        %v6549 = vpop.f32.mrb[0].mxu0
        %v6550 = vpop.f32.mrb[0].mxu0
        %v6551 = vpop.f32.mrb[0].mxu0
        %6552 = vdwg.mxu0
        %v6553 = vpack.c.bf16 %v6311, %v6311
        %v6554 = vpack.c.bf16 %v6312, %v6312
        %s6555 = scalar_lea.vmem %s9, 144
        %v6556 = vld [vmem:[%s6555] sm:$0xf]
        %v6557 = vld [vmem:[%s6555 + $0x4] sm:$0xf]
        %v6558 = vld [vmem:[%s6555 + $0x8] sm:$0xf]
        %v6559 = vld [vmem:[%s6555 + $0xc] sm:$0xf]
        %v6560 = vld [vmem:[%s6555 + $0x10] sm:$0xf]
        %v6561 = vld [vmem:[%s6555 + $0x14] sm:$0xf]
        %v6562 = vld [vmem:[%s6555 + $0x18] sm:$0xf]
        %v6563 = vld [vmem:[%s6555 + $0x1c] sm:$0xf]
        %v6564 = vld [vmem:[%s6555 + $0x20] sm:$0xf]
        %v6565 = vld [vmem:[%s6555 + $0x24] sm:$0xf]
        %v6566 = vld [vmem:[%s6555 + $0x28] sm:$0xf]
        %v6567 = vld [vmem:[%s6555 + $0x2c] sm:$0xf]
        %v6568 = vld [vmem:[%s6555 + $0x30] sm:$0xf]
        %v6569 = vld [vmem:[%s6555 + $0x34] sm:$0xf]
        %v6570 = vld [vmem:[%s6555 + $0x38] sm:$0xf]
        %v6571 = vld [vmem:[%s6555 + $0x3c] sm:$0xf]
        %v6572 = vld [vmem:[%s6555 + $0x40] sm:$0xf]
        %v6573 = vld [vmem:[%s6555 + $0x44] sm:$0xf]
        %v6592 = vunpack.c.l.b16 %v6556
        %v6593 = vunpack.c.l.b16 %v6557
        %v6594 = vunpack.c.l.b16 %v6558
        %v6595 = vunpack.c.l.b16 %v6559
        %v6596 = vunpack.c.l.b16 %v6560
        %v6597 = vunpack.c.l.b16 %v6561
        %v6598 = vunpack.c.l.b16 %v6562
        %v6599 = vunpack.c.l.b16 %v6563
        %v6600 = vunpack.c.l.b16 %v6564
        %v6601 = vunpack.c.l.b16 %v6565
        %v6602 = vunpack.c.l.b16 %v6566
        %v6603 = vunpack.c.l.b16 %v6567
        %v6604 = vunpack.c.l.b16 %v6568
        %v6605 = vunpack.c.l.b16 %v6569
        %v6606 = vunpack.c.l.b16 %v6570
        %v6607 = vunpack.c.l.b16 %v6571
        %v6608 = vunpack.c.l.b16 %v6572
        %v6609 = vunpack.c.l.b16 %v6573
        %v6610 = vpack.c.b16 %v6593, %v6592
        %v6611 = vpack.c.b16 %v6595, %v6594
        %v6612 = vpack.c.b16 %v6597, %v6596
        %v6613 = vpack.c.b16 %v6599, %v6598
        %v6614 = vpack.c.b16 %v6601, %v6600
        %v6615 = vpack.c.b16 %v6603, %v6602
        %v6616 = vpack.c.b16 %v6605, %v6604
        %v6617 = vpack.c.b16 %v6607, %v6606
        %v6618 = vpack.c.b16 %v6609, %v6608
        %v6629 = vsel %vm6412, %v6554, 0
        %6631 = vmatprep.subr.bf16.mxu0 0
        %6632 = vmatpush1.bf16.msra.mxu0 %v6610
        %6633 = vmatprep.subr.bf16.mxu0 0
        %6634 = vmatpush1.bf16.msra.mxu0 %v6611
        %6635 = vmatprep.subr.bf16.mxu0 0
        %6636 = vmatpush1.bf16.msra.mxu0 %v6612
        %6637 = vmatprep.subr.bf16.mxu0 0
        %6638 = vmatpush1.bf16.msra.mxu0 %v6613
        %6639 = vmatprep.subr.bf16.mxu0 0
        %6640 = vmatpush1.bf16.msra.mxu0 %v6614
        %6641 = vmatprep.subr.bf16.mxu0 0
        %6642 = vmatpush1.bf16.msra.mxu0 %v6615
        %6643 = vmatprep.subr.bf16.mxu0 0
        %6644 = vmatpush1.bf16.msra.mxu0 %v6616
        %6645 = vmatprep.subr.bf16.mxu0 0
        %6646 = vmatpush1.bf16.msra.mxu0 %v6617
        %6647 = vmatprep.subr.bf16.mxu0 0
        %6648 = vmatpush1.bf16.msra.mxu0 %v6618
        %6649 = vmatprep.subr.bf16.mxu0 0
        %6650 = vmatpush1.bf16.msra.mxu0 0
        %6651 = vmatprep.subr.bf16.mxu0 0
        %6652 = vmatpush1.bf16.msra.mxu0 0
        %6653 = vmatprep.subr.bf16.mxu0 0
        %6654 = vmatpush1.bf16.msra.mxu0 0
        %6655 = vmatprep.subr.bf16.mxu0 0
        %6656 = vmatpush1.bf16.msra.mxu0 0
        %6657 = vmatprep.subr.bf16.mxu0 0
        %6658 = vmatpush1.bf16.msra.mxu0 0
        %6659 = vmatprep.subr.bf16.mxu0 0
        %6660 = vmatpush1.bf16.msra.mxu0 0
        %6661 = vmatprep.subr.bf16.mxu0 0
        %6662 = vmatpush1.bf16.msra.mxu0 0
        %6663 = vmatprep.mubr.bf16.mxu0 %v6629
        %6664 = vmatmul.mubr.bf16.gmra.mrb[0].mxu0 %v6553
        %v6665 = vpop.f32.mrb[0].mxu0
        %v6666 = vadd.f32 0.0, %v6665
        %v6667 = vpop.f32.mrb[0].mxu0
        %v6668 = vpop.f32.mrb[0].mxu0
        %v6669 = vpop.f32.mrb[0].mxu0
        %6670 = vdwg.mxu0
        %v6671 = vadd.f32 %v6548, %v6666
        %v6672 = vpack.c.bf16 %v6313, %v6313
        %v6673 = vpack.c.bf16 %v6314, %v6314
        %s6674 = scalar_lea.vmem %s9, 216
        %v6675 = vld [vmem:[%s6674] sm:$0xf]
        %v6676 = vld [vmem:[%s6674 + $0x4] sm:$0xf]
        %v6677 = vld [vmem:[%s6674 + $0x8] sm:$0xf]
        %v6678 = vld [vmem:[%s6674 + $0xc] sm:$0xf]
        %v6679 = vld [vmem:[%s6674 + $0x10] sm:$0xf]
        %v6680 = vld [vmem:[%s6674 + $0x14] sm:$0xf]
        %v6681 = vld [vmem:[%s6674 + $0x18] sm:$0xf]
        %v6682 = vld [vmem:[%s6674 + $0x1c] sm:$0xf]
        %v6683 = vld [vmem:[%s6674 + $0x20] sm:$0xf]
        %v6684 = vld [vmem:[%s6674 + $0x24] sm:$0xf]
        %v6685 = vld [vmem:[%s6674 + $0x28] sm:$0xf]
        %v6686 = vld [vmem:[%s6674 + $0x2c] sm:$0xf]
        %v6687 = vld [vmem:[%s6674 + $0x30] sm:$0xf]
        %v6688 = vld [vmem:[%s6674 + $0x34] sm:$0xf]
        %v6689 = vld [vmem:[%s6674 + $0x38] sm:$0xf]
        %v6690 = vld [vmem:[%s6674 + $0x3c] sm:$0xf]
        %v6691 = vld [vmem:[%s6674 + $0x40] sm:$0xf]
        %v6692 = vld [vmem:[%s6674 + $0x44] sm:$0xf]
        %v6711 = vunpack.c.l.b16 %v6675
        %v6712 = vunpack.c.l.b16 %v6676
        %v6713 = vunpack.c.l.b16 %v6677
        %v6714 = vunpack.c.l.b16 %v6678
        %v6715 = vunpack.c.l.b16 %v6679
        %v6716 = vunpack.c.l.b16 %v6680
        %v6717 = vunpack.c.l.b16 %v6681
        %v6718 = vunpack.c.l.b16 %v6682
        %v6719 = vunpack.c.l.b16 %v6683
        %v6720 = vunpack.c.l.b16 %v6684
        %v6721 = vunpack.c.l.b16 %v6685
        %v6722 = vunpack.c.l.b16 %v6686
        %v6723 = vunpack.c.l.b16 %v6687
        %v6724 = vunpack.c.l.b16 %v6688
        %v6725 = vunpack.c.l.b16 %v6689
        %v6726 = vunpack.c.l.b16 %v6690
        %v6727 = vunpack.c.l.b16 %v6691
        %v6728 = vunpack.c.l.b16 %v6692
        %v6729 = vpack.c.b16 %v6712, %v6711
        %v6730 = vpack.c.b16 %v6714, %v6713
        %v6731 = vpack.c.b16 %v6716, %v6715
        %v6732 = vpack.c.b16 %v6718, %v6717
        %v6733 = vpack.c.b16 %v6720, %v6719
        %v6734 = vpack.c.b16 %v6722, %v6721
        %v6735 = vpack.c.b16 %v6724, %v6723
        %v6736 = vpack.c.b16 %v6726, %v6725
        %v6737 = vpack.c.b16 %v6728, %v6727
        %v6748 = vsel %vm6412, %v6673, 0
        %6750 = vmatprep.subr.bf16.mxu0 0
        %6751 = vmatpush1.bf16.msra.mxu0 %v6729
        %6752 = vmatprep.subr.bf16.mxu0 0
        %6753 = vmatpush1.bf16.msra.mxu0 %v6730
        %6754 = vmatprep.subr.bf16.mxu0 0
        %6755 = vmatpush1.bf16.msra.mxu0 %v6731
        %6756 = vmatprep.subr.bf16.mxu0 0
        %6757 = vmatpush1.bf16.msra.mxu0 %v6732
        %6758 = vmatprep.subr.bf16.mxu0 0
        %6759 = vmatpush1.bf16.msra.mxu0 %v6733
        %6760 = vmatprep.subr.bf16.mxu0 0
        %6761 = vmatpush1.bf16.msra.mxu0 %v6734
        %6762 = vmatprep.subr.bf16.mxu0 0
        %6763 = vmatpush1.bf16.msra.mxu0 %v6735
        %6764 = vmatprep.subr.bf16.mxu0 0
        %6765 = vmatpush1.bf16.msra.mxu0 %v6736
        %6766 = vmatprep.subr.bf16.mxu0 0
        %6767 = vmatpush1.bf16.msra.mxu0 %v6737
        %6768 = vmatprep.subr.bf16.mxu0 0
        %6769 = vmatpush1.bf16.msra.mxu0 0
        %6770 = vmatprep.subr.bf16.mxu0 0
        %6771 = vmatpush1.bf16.msra.mxu0 0
        %6772 = vmatprep.subr.bf16.mxu0 0
        %6773 = vmatpush1.bf16.msra.mxu0 0
        %6774 = vmatprep.subr.bf16.mxu0 0
        %6775 = vmatpush1.bf16.msra.mxu0 0
        %6776 = vmatprep.subr.bf16.mxu0 0
        %6777 = vmatpush1.bf16.msra.mxu0 0
        %6778 = vmatprep.subr.bf16.mxu0 0
        %6779 = vmatpush1.bf16.msra.mxu0 0
        %6780 = vmatprep.subr.bf16.mxu0 0
        %6781 = vmatpush1.bf16.msra.mxu0 0
        %6782 = vmatprep.mubr.bf16.mxu0 %v6748
        %6783 = vmatmul.mubr.bf16.gmra.mrb[0].mxu0 %v6672
        %v6784 = vpop.f32.mrb[0].mxu0
        %v6785 = vadd.f32 0.0, %v6784
        %v6786 = vpop.f32.mrb[0].mxu0
        %v6787 = vpop.f32.mrb[0].mxu0
        %v6788 = vpop.f32.mrb[0].mxu0
        %6789 = vdwg.mxu0
        %v6790 = vadd.f32 %v6671, %v6785
        %v6791 = vpack.c.bf16 %v6315, %v6315
        %v6792 = vpack.c.bf16 %v6316, %v6316
        %s6793 = scalar_lea.vmem %s9, 288
        %v6794 = vld [vmem:[%s6793] sm:$0xf]
        %v6795 = vld [vmem:[%s6793 + $0x4] sm:$0xf]
        %v6796 = vld [vmem:[%s6793 + $0x8] sm:$0xf]
        %v6797 = vld [vmem:[%s6793 + $0xc] sm:$0xf]
        %v6798 = vld [vmem:[%s6793 + $0x10] sm:$0xf]
        %v6799 = vld [vmem:[%s6793 + $0x14] sm:$0xf]
        %v6800 = vld [vmem:[%s6793 + $0x18] sm:$0xf]
        %v6801 = vld [vmem:[%s6793 + $0x1c] sm:$0xf]
        %v6802 = vld [vmem:[%s6793 + $0x20] sm:$0xf]
        %v6803 = vld [vmem:[%s6793 + $0x24] sm:$0xf]
        %v6804 = vld [vmem:[%s6793 + $0x28] sm:$0xf]
        %v6805 = vld [vmem:[%s6793 + $0x2c] sm:$0xf]
        %v6806 = vld [vmem:[%s6793 + $0x30] sm:$0xf]
        %v6807 = vld [vmem:[%s6793 + $0x34] sm:$0xf]
        %v6808 = vld [vmem:[%s6793 + $0x38] sm:$0xf]
        %v6809 = vld [vmem:[%s6793 + $0x3c] sm:$0xf]
        %v6810 = vld [vmem:[%s6793 + $0x40] sm:$0xf]
        %v6811 = vld [vmem:[%s6793 + $0x44] sm:$0xf]
        %v6830 = vunpack.c.l.b16 %v6794
        %v6831 = vunpack.c.l.b16 %v6795
        %v6832 = vunpack.c.l.b16 %v6796
        %v6833 = vunpack.c.l.b16 %v6797
        %v6834 = vunpack.c.l.b16 %v6798
        %v6835 = vunpack.c.l.b16 %v6799
        %v6836 = vunpack.c.l.b16 %v6800
        %v6837 = vunpack.c.l.b16 %v6801
        %v6838 = vunpack.c.l.b16 %v6802
        %v6839 = vunpack.c.l.b16 %v6803
        %v6840 = vunpack.c.l.b16 %v6804
        %v6841 = vunpack.c.l.b16 %v6805
        %v6842 = vunpack.c.l.b16 %v6806
        %v6843 = vunpack.c.l.b16 %v6807
        %v6844 = vunpack.c.l.b16 %v6808
        %v6845 = vunpack.c.l.b16 %v6809
        %v6846 = vunpack.c.l.b16 %v6810
        %v6847 = vunpack.c.l.b16 %v6811
        %v6848 = vpack.c.b16 %v6831, %v6830
        %v6849 = vpack.c.b16 %v6833, %v6832
        %v6850 = vpack.c.b16 %v6835, %v6834
        %v6851 = vpack.c.b16 %v6837, %v6836
        %v6852 = vpack.c.b16 %v6839, %v6838
        %v6853 = vpack.c.b16 %v6841, %v6840
        %v6854 = vpack.c.b16 %v6843, %v6842
        %v6855 = vpack.c.b16 %v6845, %v6844
        %v6856 = vpack.c.b16 %v6847, %v6846
        %v6867 = vsel %vm6412, %v6792, 0
        %6869 = vmatprep.subr.bf16.mxu0 0
        %6870 = vmatpush1.bf16.msra.mxu0 %v6848
        %6871 = vmatprep.subr.bf16.mxu0 0
        %6872 = vmatpush1.bf16.msra.mxu0 %v6849
        %6873 = vmatprep.subr.bf16.mxu0 0
        %6874 = vmatpush1.bf16.msra.mxu0 %v6850
        %6875 = vmatprep.subr.bf16.mxu0 0
        %6876 = vmatpush1.bf16.msra.mxu0 %v6851
        %6877 = vmatprep.subr.bf16.mxu0 0
        %6878 = vmatpush1.bf16.msra.mxu0 %v6852
        %6879 = vmatprep.subr.bf16.mxu0 0
        %6880 = vmatpush1.bf16.msra.mxu0 %v6853
        %6881 = vmatprep.subr.bf16.mxu0 0
        %6882 = vmatpush1.bf16.msra.mxu0 %v6854
        %6883 = vmatprep.subr.bf16.mxu0 0
        %6884 = vmatpush1.bf16.msra.mxu0 %v6855
        %6885 = vmatprep.subr.bf16.mxu0 0
        %6886 = vmatpush1.bf16.msra.mxu0 %v6856
        %6887 = vmatprep.subr.bf16.mxu0 0
        %6888 = vmatpush1.bf16.msra.mxu0 0
        %6889 = vmatprep.subr.bf16.mxu0 0
        %6890 = vmatpush1.bf16.msra.mxu0 0
        %6891 = vmatprep.subr.bf16.mxu0 0
        %6892 = vmatpush1.bf16.msra.mxu0 0
        %6893 = vmatprep.subr.bf16.mxu0 0
        %6894 = vmatpush1.bf16.msra.mxu0 0
        %6895 = vmatprep.subr.bf16.mxu0 0
        %6896 = vmatpush1.bf16.msra.mxu0 0
        %6897 = vmatprep.subr.bf16.mxu0 0
        %6898 = vmatpush1.bf16.msra.mxu0 0
        %6899 = vmatprep.subr.bf16.mxu0 0
        %6900 = vmatpush1.bf16.msra.mxu0 0
        %6901 = vmatprep.mubr.bf16.mxu0 %v6867
        %6902 = vmatmul.mubr.bf16.gmra.mrb[0].mxu0 %v6791
        %v6903 = vpop.f32.mrb[0].mxu0
        %v6904 = vadd.f32 0.0, %v6903
        %v6905 = vpop.f32.mrb[0].mxu0
        %v6906 = vpop.f32.mrb[0].mxu0
        %v6907 = vpop.f32.mrb[0].mxu0
        %6908 = vdwg.mxu0
        %v6909 = vadd.f32 %v6790, %v6904
        %v6910 = vld [vmem:[%s10] sm:$0x1]
        %v6912 = vlaneseq
        %v6913 = vshrl.u32 %v6912, 7
        %v6914 = vsub.s32 0, %v6913
        %v6915 = vrot.slane %v6910, %v6914
        %v6917 = vadd.f32 %v6909, %v6915
        %v6918 = vmax.f32 %v6917, 0.0
        %v6919 = vpack.c.bf16 %v6918, %v6918
        %v6920 = vld [vmem:[%s11] sm:$0xf]
        %v6921 = vld [vmem:[%s11 + $0x4] sm:$0xf]
        %v6922 = vld [vmem:[%s11 + $0x8] sm:$0xf]
        %v6923 = vld [vmem:[%s11 + $0xc] sm:$0xf]
        %v6924 = vld [vmem:[%s11 + $0x10] sm:$0xf]
        %v6925 = vld [vmem:[%s11 + $0x14] sm:$0xf]
        %v6926 = vld [vmem:[%s11 + $0x18] sm:$0xf]
        %v6927 = vld [vmem:[%s11 + $0x1c] sm:$0xf]
        %v6928 = vld [vmem:[%s11 + $0x20] sm:$0xf]
        %v6929 = vld [vmem:[%s11 + $0x24] sm:$0xf]
        %v6930 = vld [vmem:[%s11 + $0x28] sm:$0xf]
        %v6931 = vld [vmem:[%s11 + $0x2c] sm:$0xf]
        %v6932 = vld [vmem:[%s11 + $0x30] sm:$0xf]
        %v6933 = vld [vmem:[%s11 + $0x34] sm:$0xf]
        %v6934 = vld [vmem:[%s11 + $0x38] sm:$0xf]
        %v6935 = vld [vmem:[%s11 + $0x3c] sm:$0xf]
        %v6936 = vld [vmem:[%s12] sm:$0x1]
        %v6938 = vlaneseq
        %v6939 = vshrl.u32 %v6938, 7
        %v6940 = vsub.s32 0, %v6939
        %v6941 = vrot.slane %v6936, %v6940
        %v6959 = vunpack.c.l.b16 %v6920
        %v6960 = vunpack.c.l.b16 %v6921
        %v6961 = vunpack.c.l.b16 %v6922
        %v6962 = vunpack.c.l.b16 %v6923
        %v6963 = vunpack.c.l.b16 %v6924
        %v6964 = vunpack.c.l.b16 %v6925
        %v6965 = vunpack.c.l.b16 %v6926
        %v6966 = vunpack.c.l.b16 %v6927
        %v6967 = vunpack.c.l.b16 %v6928
        %v6968 = vunpack.c.l.b16 %v6929
        %v6969 = vunpack.c.l.b16 %v6930
        %v6970 = vunpack.c.l.b16 %v6931
        %v6971 = vunpack.c.l.b16 %v6932
        %v6972 = vunpack.c.l.b16 %v6933
        %v6973 = vunpack.c.l.b16 %v6934
        %v6974 = vunpack.c.l.b16 %v6935
        %v6975 = vpack.c.b16 %v6960, %v6959
        %v6976 = vpack.c.b16 %v6962, %v6961
        %v6977 = vpack.c.b16 %v6964, %v6963
        %v6978 = vpack.c.b16 %v6966, %v6965
        %v6979 = vpack.c.b16 %v6968, %v6967
        %v6980 = vpack.c.b16 %v6970, %v6969
        %v6981 = vpack.c.b16 %v6972, %v6971
        %v6982 = vpack.c.b16 %v6974, %v6973
        %6991 = vmatprep.subr.bf16.mxu0 0
        %6992 = vmatpush1.bf16.msra.mxu0 %v6975
        %6993 = vmatprep.subr.bf16.mxu0 0
        %6994 = vmatpush1.bf16.msra.mxu0 %v6976
        %6995 = vmatprep.subr.bf16.mxu0 0
        %6996 = vmatpush1.bf16.msra.mxu0 %v6977
        %6997 = vmatprep.subr.bf16.mxu0 0
        %6998 = vmatpush1.bf16.msra.mxu0 %v6978
        %6999 = vmatprep.subr.bf16.mxu0 0
        %7000 = vmatpush1.bf16.msra.mxu0 %v6979
        %7001 = vmatprep.subr.bf16.mxu0 0
        %7002 = vmatpush1.bf16.msra.mxu0 %v6980
        %7003 = vmatprep.subr.bf16.mxu0 0
        %7004 = vmatpush1.bf16.msra.mxu0 %v6981
        %7005 = vmatprep.subr.bf16.mxu0 0
        %7006 = vmatpush1.bf16.msra.mxu0 %v6982
        %7007 = vmatprep.subr.bf16.mxu0 0
        %7008 = vmatpush1.bf16.msra.mxu0 0
        %7009 = vmatprep.subr.bf16.mxu0 0
        %7010 = vmatpush1.bf16.msra.mxu0 0
        %7011 = vmatprep.subr.bf16.mxu0 0
        %7012 = vmatpush1.bf16.msra.mxu0 0
        %7013 = vmatprep.subr.bf16.mxu0 0
        %7014 = vmatpush1.bf16.msra.mxu0 0
        %7015 = vmatprep.subr.bf16.mxu0 0
        %7016 = vmatpush1.bf16.msra.mxu0 0
        %7017 = vmatprep.subr.bf16.mxu0 0
        %7018 = vmatpush1.bf16.msra.mxu0 0
        %7019 = vmatprep.subr.bf16.mxu0 0
        %7020 = vmatpush1.bf16.msra.mxu0 0
        %7021 = vmatprep.subr.bf16.mxu0 0
        %7022 = vmatpush1.bf16.msra.mxu0 0
        %7023 = vmatprep.mubr.bf16.mxu0 0
        %7024 = vmatmul.mubr.bf16.gmra.mrb[0].mxu0 %v6919
        %v7025 = vpop.f32.mrb[0].mxu0
        %v7026 = vadd.f32 %v6941, %v7025
        %v7027 = vpop.f32.mrb[0].mxu0
        %v7028 = vpop.f32.mrb[0].mxu0
        %v7029 = vpop.f32.mrb[0].mxu0
        %7030 = vdwg.mxu0
        %v7031 = vmax.f32 %v7026, 0.0
        %v7032 = vpack.c.bf16 %v7031, %v7031
        %v7033 = vld [vmem:[%s13] sm:$0xf]
        %v7034 = vld [vmem:[%s13 + $0x4] sm:$0xf]
        %v7035 = vld [vmem:[%s13 + $0x8] sm:$0xf]
        %v7036 = vld [vmem:[%s13 + $0xc] sm:$0xf]
        %v7037 = vld [vmem:[%s13 + $0x10] sm:$0xf]
        %v7038 = vld [vmem:[%s13 + $0x14] sm:$0xf]
        %v7039 = vld [vmem:[%s13 + $0x18] sm:$0xf]
        %v7040 = vld [vmem:[%s13 + $0x1c] sm:$0xf]
        %v7041 = vld [vmem:[%s13 + $0x20] sm:$0xf]
        %v7042 = vld [vmem:[%s13 + $0x24] sm:$0xf]
        %v7043 = vld [vmem:[%s13 + $0x28] sm:$0xf]
        %v7044 = vld [vmem:[%s13 + $0x2c] sm:$0xf]
        %v7045 = vld [vmem:[%s13 + $0x30] sm:$0xf]
        %v7046 = vld [vmem:[%s13 + $0x34] sm:$0xf]
        %v7047 = vld [vmem:[%s13 + $0x38] sm:$0xf]
        %v7048 = vld [vmem:[%s13 + $0x3c] sm:$0xf]
        %v7049 = vld [vmem:[%s14] sm:$0x1]
        %v7051 = vlaneseq
        %v7052 = vshrl.u32 %v7051, 7
        %v7053 = vsub.s32 0, %v7052
        %v7054 = vrot.slane %v7049, %v7053
        %v7072 = vunpack.c.l.b16 %v7033
        %v7073 = vunpack.c.l.b16 %v7034
        %v7074 = vunpack.c.l.b16 %v7035
        %v7075 = vunpack.c.l.b16 %v7036
        %v7076 = vunpack.c.l.b16 %v7037
        %v7077 = vunpack.c.l.b16 %v7038
        %v7078 = vunpack.c.l.b16 %v7039
        %v7079 = vunpack.c.l.b16 %v7040
        %v7080 = vunpack.c.l.b16 %v7041
        %v7081 = vunpack.c.l.b16 %v7042
        %v7082 = vunpack.c.l.b16 %v7043
        %v7083 = vunpack.c.l.b16 %v7044
        %v7084 = vunpack.c.l.b16 %v7045
        %v7085 = vunpack.c.l.b16 %v7046
        %v7086 = vunpack.c.l.b16 %v7047
        %v7087 = vunpack.c.l.b16 %v7048
        %v7088 = vpack.c.b16 %v7073, %v7072
        %v7089 = vpack.c.b16 %v7075, %v7074
        %v7090 = vpack.c.b16 %v7077, %v7076
        %v7091 = vpack.c.b16 %v7079, %v7078
        %v7092 = vpack.c.b16 %v7081, %v7080
        %v7093 = vpack.c.b16 %v7083, %v7082
        %v7094 = vpack.c.b16 %v7085, %v7084
        %v7095 = vpack.c.b16 %v7087, %v7086
        %7104 = vmatprep.subr.bf16.mxu0 0
        %7105 = vmatpush1.bf16.msra.mxu0 %v7088
        %7106 = vmatprep.subr.bf16.mxu0 0
        %7107 = vmatpush1.bf16.msra.mxu0 %v7089
        %7108 = vmatprep.subr.bf16.mxu0 0
        %7109 = vmatpush1.bf16.msra.mxu0 %v7090
        %7110 = vmatprep.subr.bf16.mxu0 0
        %7111 = vmatpush1.bf16.msra.mxu0 %v7091
        %7112 = vmatprep.subr.bf16.mxu0 0
        %7113 = vmatpush1.bf16.msra.mxu0 %v7092
        %7114 = vmatprep.subr.bf16.mxu0 0
        %7115 = vmatpush1.bf16.msra.mxu0 %v7093
        %7116 = vmatprep.subr.bf16.mxu0 0
        %7117 = vmatpush1.bf16.msra.mxu0 %v7094
        %7118 = vmatprep.subr.bf16.mxu0 0
        %7119 = vmatpush1.bf16.msra.mxu0 %v7095
        %7120 = vmatprep.subr.bf16.mxu0 0
        %7121 = vmatpush1.bf16.msra.mxu0 0
        %7122 = vmatprep.subr.bf16.mxu0 0
        %7123 = vmatpush1.bf16.msra.mxu0 0
        %7124 = vmatprep.subr.bf16.mxu0 0
        %7125 = vmatpush1.bf16.msra.mxu0 0
        %7126 = vmatprep.subr.bf16.mxu0 0
        %7127 = vmatpush1.bf16.msra.mxu0 0
        %7128 = vmatprep.subr.bf16.mxu0 0
        %7129 = vmatpush1.bf16.msra.mxu0 0
        %7130 = vmatprep.subr.bf16.mxu0 0
        %7131 = vmatpush1.bf16.msra.mxu0 0
        %7132 = vmatprep.subr.bf16.mxu0 0
        %7133 = vmatpush1.bf16.msra.mxu0 0
        %7134 = vmatprep.subr.bf16.mxu0 0
        %7135 = vmatpush1.bf16.msra.mxu0 0
        %7136 = vmatprep.mubr.bf16.mxu0 0
        %7137 = vmatmul.mubr.bf16.gmra.mrb[0].mxu0 %v7032
        %v7138 = vpop.f32.mrb[0].mxu0
        %v7139 = vadd.f32 %v7054, %v7138
        %v7140 = vpop.f32.mrb[0].mxu0
        %v7141 = vpop.f32.mrb[0].mxu0
        %v7142 = vpop.f32.mrb[0].mxu0
        %7143 = vdwg.mxu0
        %7144 = vst [vmem:[%s490] sm:$0xff] %v7139
        %s7145 = sand.u32 %s357, 1
        %s7146 = scalar_lea.sflag [#allocation3], %s7145
        %s7147 = sand.u32 %s357, 1
        %s7148 = smul.addr %s7147, 8
        %s7149 = scalar_lea.vmem [#allocation2], %s7148
        // Predicated region
        $region81: #{lenet_forward.1} parent=79 // pred_check
          %p7150 = pneg %p367
        $region82: #{lenet_forward.1} parent=79 // pred_check_branch
          %7152 = sbr.rel (%p7150) target = $region84
        $region83: #{lenet_forward.1} parent=79 // pred_region
          %s7154 = ssub.s32 128, 128
          %7155 = vsyncadd %s7146, %s7154
          %s7156 = smul.addr %s29, 128
          %s7157 = scalar_lea.hbm %s15, %s7156
          %s7159 = sshll.u32 %s7149, 4
          %s7160 = int_to_ptr.vmem [resolvable:$true] %s7159
          %7162 = dma.vmem_to_hbm [thread:$0]  %s7160, 128, %s7157, %s7146
        $region84: #{lenet_forward.1} parent=79 // pred_fallthru
          _
      $region80: #{lenet_forward.1} parent=5 // pred_fallthru
        _
      %p7163 = scmp.le.s32.totalorder 2, %s24
      // Predicated region
      $region85: #{lenet_forward.1} parent=5 // pred_check
        %p7164 = pneg %p7163
      $region86: #{lenet_forward.1} parent=5 // pred_check_branch
        %7166 = sbr.rel (%p7164) target = $region88
      $region87: #{lenet_forward.1} parent=5 // pred_region
        %s7167 = ssub.s32 %s24, 2
        // Predicated region
        $region89: #{lenet_forward.1} parent=87 // pred_check
          %p7168 = pneg %p373
        $region90: #{lenet_forward.1} parent=87 // pred_check_branch
          %7170 = sbr.rel (%p7168) target = $region92
        $region91: #{lenet_forward.1} parent=87 // pred_region
          %s7171 = sand.u32 %s358, 1
          %s7172 = scalar_lea.sflag [#allocation3], %s7171
          %s7173 = sand.u32 %s358, 1
          %s7174 = smul.addr %s7173, 8
          %s7175 = scalar_lea.vmem [#allocation2], %s7174
          %7176 = dma.done %s7172, 128
        $region92: #{lenet_forward.1} parent=87 // pred_fallthru
          _
      $region88: #{lenet_forward.1} parent=5 // pred_fallthru
        _
    $region6: #{lenet_forward.1} parent=1 // loop_footer
      %s28 = sadd.s32 1, %s24
    $region7: #{lenet_forward.1} parent=1 // loop_footer_branch
      %23 = sbr.rel target = $region3
    $region8: #{lenet_forward.1} parent=1 // loop_exit
      _
    %7177 = vsyncpa [#allocation3], 1
    %s7178 = scalar_lea.sflag [#allocation3], 1
    %7179 = vsyncpa %s7178, 1

</llo_original>
